<compile_context>
chip_gen: v7x
topology: tpu7x:2x2x1
jax: 0.10.0
libtpu: 0.0.40
codegen_flags: <defaults>
</compile_context>

<pallas_src>
import jax
import jax.numpy as jnp
from jax.experimental import pallas as pl
from jax.experimental.pallas import tpu as pltpu

PRIMITIVES = (
    "none", "max_pool_3x3", "avg_pool_3x3", "skip_connect",
    "sep_conv_3x3", "sep_conv_5x5", "dil_conv_3x3", "dil_conv_5x5",
)
BN_EPS = 1e-5
PMAX = 4            # zero padding applied to the kernel input (max any op needs)
DECAY_RATE = 1.0    # DecayScheduler(base_lr=1, ...) before any .step() call
NEG_PAD = -1e30     # stands in for -inf in the max-pool padding mask


def _make_kernel(N, H, W, C):
    WC = W * C

    def kernel(alpha_ref, xp_ref, valid_ref, invcnt_ref,
               g_ref, g3e_ref, g5e_ref,
               s3dw1, s3pw1, s3dw2, s3pw2,
               s5dw1, s5pw1, s5dw2, s5pw2,
               d3dw, d3pw, d5dw, d5pw,
               out_ref):
        f32 = jnp.float32
        xp = xp_ref[...]                       # (N, H+2*PMAX, (W+2*PMAX)*C)
        valid = valid_ref[...]                 # (H+2*PMAX, (W+2*PMAX)*C) 1/0
        g = g_ref[...]                         # (WC, WC) per-channel bcast / (N*H*W)
        relu_xp = jnp.maximum(xp, 0.0)         # ReLU commutes with zero padding
        x = xp[:, PMAX:PMAX + H, PMAX * C:PMAX * C + WC]

        def pconv(h, m_ref):
            """1x1 conv over channels as a packed-lane matmul (kron(I, pw))."""
            m = m_ref[...]
            outs = [jnp.dot(h[n], m, preferred_element_type=f32)
                    for n in range(N)]
            return jnp.stack(outs, axis=0)

        def bn(h_stats, h_apply, gmat, alpha=None):
            """BatchNorm2d(affine=False), training mode, single-pass stats.

            `gmat` broadcasts per-channel sums to the packed lane layout of
            `h_apply` and already carries the 1/(N*H*W) factor.  `alpha`
            (the architecture weight) is folded into the normalize scale."""
            red1 = jnp.zeros((1, WC), f32)
            red2 = jnp.zeros((1, WC), f32)
            for n in range(N):
                hs = h_stats[n]
                red1 = red1 + jnp.sum(hs, axis=0, keepdims=True)
                red2 = red2 + jnp.sum(hs * hs, axis=0, keepdims=True)
            mean_b = jnp.dot(red1, gmat, preferred_element_type=f32)
            ex2_b = jnp.dot(red2, gmat, preferred_element_type=f32)
            var_b = jnp.maximum(ex2_b - mean_b * mean_b, 0.0)
            scale = jax.lax.rsqrt(var_b + BN_EPS)
            if alpha is not None:
                scale = scale * alpha
            return (h_apply - mean_b[None]) * scale[None]

        def dconv(src, k, oy0, ox0, dil, out_h, out_l, w_ref):
            """Depthwise conv, stride 1; taps are static slices of `src`
            (already zero padded); weights are pre-tiled to the lane layout."""
            acc = None
            for ky in range(k):
                for kx in range(k):
                    oy = oy0 + ky * dil
                    ox = (ox0 + kx * dil) * C
                    tap = src[:, oy:oy + out_h, ox:ox + out_l]
                    term = tap * w_ref[ky * k + kx]
                    acc = term if acc is None else acc + term
            return acc

        def sep_conv(k, p, dw1, pw1m, dw2, pw2m, gext_ref, alpha):
            # First depthwise conv on a canvas extended by `p` so the second
            # depthwise conv reads its zero-padded taps as plain slices
            # (replaces the old VMEM pad-scratch round trip).
            He = H + 2 * p
            Le = (W + 2 * p) * C
            h = dconv(relu_xp, k, PMAX - 2 * p, PMAX - 2 * p, 1, He, Le, dw1)
            h = pconv(h, pw1m)
            # BN stats from the valid H x W interior only, applied everywhere.
            h = bn(h[:, p:p + H, p * C:p * C + WC], h, gext_ref[...])
            bmask = valid[PMAX - p:PMAX + H + p,
                          (PMAX - p) * C:(PMAX + W + p) * C]
            h = jnp.maximum(h, 0.0) * bmask      # zero the conv-pad border
            h = dconv(h, k, 0, 0, 1, H, WC, dw2)
            h = pconv(h, pw2m)
            return bn(h, h, g, alpha)

        def dil_conv(k, pad, dil, dw, pwm, alpha):
            h = dconv(relu_xp, k, PMAX - pad, PMAX - pad, dil, H, WC, dw)
            h = pconv(h, pwm)
            return bn(h, h, g, alpha)

        # skip_connect (stride 1) + auxiliary Identity * decay_rate, folded.
        res = x * (alpha_ref[3] + DECAY_RATE)

        # Fused 3x3 max/avg pooling tap loop (masks are data independent).
        neg = (1.0 - valid) * NEG_PAD            # 0 inside image, -1e30 on pad
        mx = None
        sm = None
        for ky in range(3):
            for kx in range(3):
                oy = PMAX - 1 + ky
                ox = (PMAX - 1 + kx) * C
                tap = xp[:, oy:oy + H, ox:ox + WC]
                cand = tap + neg[oy:oy + H, ox:ox + WC]
                mx = cand if mx is None else jnp.maximum(mx, cand)
                sm = tap if sm is None else sm + tap   # padded taps are zero
        avg = sm * invcnt_ref[...]                     # count_include_pad=False

        res = res + bn(mx, mx, g, alpha_ref[1])        # max_pool_3x3 + BN
        res = res + bn(avg, avg, g, alpha_ref[2])      # avg_pool_3x3 + BN
        res = res + sep_conv(3, 1, s3dw1, s3pw1, s3dw2, s3pw2, g3e_ref,
                             alpha_ref[4])
        res = res + sep_conv(5, 2, s5dw1, s5pw1, s5dw2, s5pw2, g5e_ref,
                             alpha_ref[5])
        res = res + dil_conv(3, 2, 2, d3dw, d3pw, alpha_ref[6])
        res = res + dil_conv(5, 4, 2, d5dw, d5pw, alpha_ref[7])
        # PRIMITIVES[0] == 'none' (Zero op) contributes nothing.
        out_ref[...] = res

    return kernel


def mixed_op_forward(x_nchw, alphas, params):
    x_nchw = x_nchw.astype(jnp.float32)
    N, C, H, W = x_nchw.shape
    WC = W * C
    Hp, Wp = H + 2 * PMAX, W + 2 * PMAX
    f32 = jnp.float32

    # Pack to the lane-dense layout and zero-pad by PMAX.
    x_nhwc = jnp.transpose(x_nchw, (0, 2, 3, 1))
    x_pad = jnp.pad(x_nhwc, ((0, 0), (PMAX, PMAX), (PMAX, PMAX), (0, 0)))
    x_pack = x_pad.reshape(N, Hp, Wp * C)

    # --- data-independent constants (masks / counts / broadcast matrices) ---
    vy = (jnp.arange(Hp) >= PMAX) & (jnp.arange(Hp) < PMAX + H)
    vx = (jnp.arange(Wp) >= PMAX) & (jnp.arange(Wp) < PMAX + W)
    valid = (vy[:, None] & jnp.repeat(vx, C)[None, :]).astype(f32)   # (Hp, Wp*C)

    ar_h, ar_w = jnp.arange(H), jnp.arange(W)
    cy = 3.0 - (ar_h == 0).astype(f32) - (ar_h == H - 1).astype(f32)
    cx = 3.0 - (ar_w == 0).astype(f32) - (ar_w == W - 1).astype(f32)
    inv_cnt = jnp.repeat(1.0 / (cy[:, None] * cx[None, :]), C, axis=1)  # (H, WC)

    eye_c = jnp.eye(C, dtype=f32)
    nhw = float(N * H * W)
    g = jnp.kron(jnp.ones((W, W), f32), eye_c) / nhw          # (WC, WC)
    g3e = jnp.kron(jnp.ones((W, W + 2), f32), eye_c) / nhw    # (WC, (W+2)*C)
    g5e = jnp.kron(jnp.ones((W, W + 4), f32), eye_c) / nhw    # (WC, (W+4)*C)

    def tile_dw(w, reps):      # (k*k, C) -> (k*k, reps*C), packed lane pattern
        return jnp.tile(w.astype(f32), (1, reps))

    def kron_pw(w, reps):      # (Cin, Cout) -> (reps*C, reps*C)
        return jnp.kron(jnp.eye(reps, dtype=f32), w.astype(f32))

    weights = [
        tile_dw(params["sep3_dw1"], W + 2), kron_pw(params["sep3_pw1"], W + 2),
        tile_dw(params["sep3_dw2"], W),     kron_pw(params["sep3_pw2"], W),
        tile_dw(params["sep5_dw1"], W + 4), kron_pw(params["sep5_pw1"], W + 4),
        tile_dw(params["sep5_dw2"], W),     kron_pw(params["sep5_pw2"], W),
        tile_dw(params["dil3_dw"], W),      kron_pw(params["dil3_pw"], W),
        tile_dw(params["dil5_dw"], W),      kron_pw(params["dil5_pw"], W),
    ]

    inputs = [x_pack, valid, inv_cnt, g, g3e, g5e] + weights

    def full_spec(shape):
        r = len(shape)
        return pl.BlockSpec(shape, lambda i, a, _r=r: (0,) * _r)

    in_specs = [full_spec(t.shape) for t in inputs]

    kernel = _make_kernel(N, H, W, C)
    out_packed = pl.pallas_call(
        kernel,
        out_shape=jax.ShapeDtypeStruct((N, H, WC), jnp.float32),
        grid_spec=pltpu.PrefetchScalarGridSpec(
            num_scalar_prefetch=1,                 # alphas -> SMEM
            grid=(1,),
            in_specs=in_specs,
            out_specs=pl.BlockSpec((N, H, WC), lambda i, a: (0, 0, 0)),
        ),
        compiler_params=pltpu.CompilerParams(dimension_semantics=("arbitrary",)),
    )(alphas.astype(jnp.float32), *inputs)

    out_nhwc = out_packed.reshape(N, H, W, C)
    return jnp.transpose(out_nhwc, (0, 3, 1, 2))


def init_params(key, C):
    """Deterministic synthetic weights, created in PyTorch Conv2d layout then
    converted: depthwise (C,1,k,k)->(k*k,C), pointwise (Cout,Cin,1,1)->(Cin,Cout).
    The wrapper further tiles them to the packed lane layout."""
    def dw(k_, ksz):
        w = jax.random.normal(k_, (C, 1, ksz, ksz), jnp.float32) * 0.1
        return jnp.transpose(jnp.reshape(w, (C, ksz * ksz)), (1, 0))

    def pw(k_):
        w = jax.random.normal(k_, (C, C, 1, 1), jnp.float32) * 0.1
        return jnp.transpose(w[:, :, 0, 0], (1, 0))

    ks = jax.random.split(key, 12)
    return {
        "sep3_dw1": dw(ks[0], 3), "sep3_pw1": pw(ks[1]),
        "sep3_dw2": dw(ks[2], 3), "sep3_pw2": pw(ks[3]),
        "sep5_dw1": dw(ks[4], 5), "sep5_pw1": pw(ks[5]),
        "sep5_dw2": dw(ks[6], 5), "sep5_pw2": pw(ks[7]),
        "dil3_dw": dw(ks[8], 3), "dil3_pw": pw(ks[9]),
        "dil5_dw": dw(ks[10], 5), "dil5_pw": pw(ks[11]),
    }


if __name__ == "__main__":
    key = jax.random.PRNGKey(0)
    kx, ka, kp = jax.random.split(key, 3)

    x = jax.random.normal(kx, (2, 4, 16, 16), jnp.float32)     # NCHW, like PyTorch
    alphas = jax.nn.softmax(jax.random.normal(ka, (len(PRIMITIVES),), jnp.float32))
    params = init_params(kp, 4)

    out = mixed_op_forward(x, alphas, params)
    out = jax.block_until_ready(out)

    assert out.shape == x.shape, out.shape
    assert bool(jnp.all(jnp.isfinite(out)))
    print("KERNEL_OK")
</pallas_src>

<mosaic_0001>
module attributes {stable_mosaic.version = 11 : i64} {
  func.func @kernel(%arg0: i32, %arg1: memref<8xf32, #tpu.memory_space<smem>>, %arg2: memref<2x24x96xf32, #tpu.memory_space<vmem>>, %arg3: memref<24x96xf32, #tpu.memory_space<vmem>>, %arg4: memref<16x64xf32, #tpu.memory_space<vmem>>, %arg5: memref<64x64xf32, #tpu.memory_space<vmem>>, %arg6: memref<64x72xf32, #tpu.memory_space<vmem>>, %arg7: memref<64x80xf32, #tpu.memory_space<vmem>>, %arg8: memref<9x72xf32, #tpu.memory_space<vmem>>, %arg9: memref<72x72xf32, #tpu.memory_space<vmem>>, %arg10: memref<9x64xf32, #tpu.memory_space<vmem>>, %arg11: memref<64x64xf32, #tpu.memory_space<vmem>>, %arg12: memref<25x80xf32, #tpu.memory_space<vmem>>, %arg13: memref<80x80xf32, #tpu.memory_space<vmem>>, %arg14: memref<25x64xf32, #tpu.memory_space<vmem>>, %arg15: memref<64x64xf32, #tpu.memory_space<vmem>>, %arg16: memref<9x64xf32, #tpu.memory_space<vmem>>, %arg17: memref<64x64xf32, #tpu.memory_space<vmem>>, %arg18: memref<25x64xf32, #tpu.memory_space<vmem>>, %arg19: memref<64x64xf32, #tpu.memory_space<vmem>>, %arg20: memref<2x16x64xf32, #tpu.memory_space<vmem>>) attributes {dimension_semantics = [#tpu.dimension_semantics<arbitrary>], iteration_bounds = array<i64: 1>, scalar_prefetch = 1 : i64, scratch_operands = 0 : i64, tpu.core_type = #tpu.core_type<tc>, window_params = [{pipeline_mode = #tpu.pipeline_mode<synchronous>, transform_indices = @transform_0, window_bounds = array<i64: 2, 24, 96>}, {pipeline_mode = #tpu.pipeline_mode<synchronous>, transform_indices = @transform_1, window_bounds = array<i64: 24, 96>}, {pipeline_mode = #tpu.pipeline_mode<synchronous>, transform_indices = @transform_2, window_bounds = array<i64: 16, 64>}, {pipeline_mode = #tpu.pipeline_mode<synchronous>, transform_indices = @transform_3, window_bounds = array<i64: 64, 64>}, {pipeline_mode = #tpu.pipeline_mode<synchronous>, transform_indices = @transform_4, window_bounds = array<i64: 64, 72>}, {pipeline_mode = #tpu.pipeline_mode<synchronous>, transform_indices = @transform_5, window_bounds = array<i64: 64, 80>}, {pipeline_mode = #tpu.pipeline_mode<synchronous>, transform_indices = @transform_6, window_bounds = array<i64: 9, 72>}, {pipeline_mode = #tpu.pipeline_mode<synchronous>, transform_indices = @transform_7, window_bounds = array<i64: 72, 72>}, {pipeline_mode = #tpu.pipeline_mode<synchronous>, transform_indices = @transform_8, window_bounds = array<i64: 9, 64>}, {pipeline_mode = #tpu.pipeline_mode<synchronous>, transform_indices = @transform_9, window_bounds = array<i64: 64, 64>}, {pipeline_mode = #tpu.pipeline_mode<synchronous>, transform_indices = @transform_10, window_bounds = array<i64: 25, 80>}, {pipeline_mode = #tpu.pipeline_mode<synchronous>, transform_indices = @transform_11, window_bounds = array<i64: 80, 80>}, {pipeline_mode = #tpu.pipeline_mode<synchronous>, transform_indices = @transform_12, window_bounds = array<i64: 25, 64>}, {pipeline_mode = #tpu.pipeline_mode<synchronous>, transform_indices = @transform_13, window_bounds = array<i64: 64, 64>}, {pipeline_mode = #tpu.pipeline_mode<synchronous>, transform_indices = @transform_14, window_bounds = array<i64: 9, 64>}, {pipeline_mode = #tpu.pipeline_mode<synchronous>, transform_indices = @transform_15, window_bounds = array<i64: 64, 64>}, {pipeline_mode = #tpu.pipeline_mode<synchronous>, transform_indices = @transform_16, window_bounds = array<i64: 25, 64>}, {pipeline_mode = #tpu.pipeline_mode<synchronous>, transform_indices = @transform_17, window_bounds = array<i64: 64, 64>}, {pipeline_mode = #tpu.pipeline_mode<synchronous>, transform_indices = @transform_18, window_bounds = array<i64: 2, 16, 64>}]} {
    %c0 = arith.constant 0 : index
    %c0_0 = arith.constant 0 : index
    %c0_1 = arith.constant 0 : index
    %0 = vector.load %arg2[%c0, %c0_0, %c0_1] : memref<2x24x96xf32, #tpu.memory_space<vmem>>, vector<2x24x96xf32>
    %c0_2 = arith.constant 0 : index
    %c0_3 = arith.constant 0 : index
    %1 = vector.load %arg3[%c0_2, %c0_3] : memref<24x96xf32, #tpu.memory_space<vmem>>, vector<24x96xf32>
    %c0_4 = arith.constant 0 : index
    %c0_5 = arith.constant 0 : index
    %2 = vector.load %arg5[%c0_4, %c0_5] : memref<64x64xf32, #tpu.memory_space<vmem>>, vector<64x64xf32>
    %cst = arith.constant 0.000000e+00 : f32
    %3 = vector.broadcast %cst : f32 to vector<2x24x96xf32>
    %4 = arith.maximumf %0, %3 : vector<2x24x96xf32>
    %5 = vector.extract_strided_slice %0 {offsets = [0, 4, 16], sizes = [2, 16, 64], strides = [1, 1, 1]} : vector<2x24x96xf32> to vector<2x16x64xf32>
    %c3 = arith.constant 3 : index
    %6 = memref.load %arg1[%c3] : memref<8xf32, #tpu.memory_space<smem>>
    %cst_6 = arith.constant 1.000000e+00 : f32
    %7 = arith.addf %6, %cst_6 : f32
    %8 = vector.broadcast %7 : f32 to vector<2x16x64xf32>
    %9 = arith.mulf %5, %8 : vector<2x16x64xf32>
    %cst_7 = arith.constant 1.000000e+00 : f32
    %10 = vector.broadcast %cst_7 : f32 to vector<24x96xf32>
    %11 = arith.subf %10, %1 : vector<24x96xf32>
    %cst_8 = arith.constant -1.000000e+30 : f32
    %12 = vector.broadcast %cst_8 : f32 to vector<24x96xf32>
    %13 = arith.mulf %11, %12 : vector<24x96xf32>
    %14 = vector.extract_strided_slice %0 {offsets = [0, 3, 12], sizes = [2, 16, 64], strides = [1, 1, 1]} : vector<2x24x96xf32> to vector<2x16x64xf32>
    %15 = vector.extract_strided_slice %13 {offsets = [3, 12], sizes = [16, 64], strides = [1, 1]} : vector<24x96xf32> to vector<16x64xf32>
    %16 = vector.shape_cast %15 : vector<16x64xf32> to vector<1x16x64xf32>
    %17 = vector.broadcast %16 : vector<1x16x64xf32> to vector<2x16x64xf32>
    %18 = arith.addf %14, %17 : vector<2x16x64xf32>
    %19 = vector.extract_strided_slice %0 {offsets = [0, 3, 16], sizes = [2, 16, 64], strides = [1, 1, 1]} : vector<2x24x96xf32> to vector<2x16x64xf32>
    %20 = vector.extract_strided_slice %13 {offsets = [3, 16], sizes = [16, 64], strides = [1, 1]} : vector<24x96xf32> to vector<16x64xf32>
    %21 = vector.shape_cast %20 : vector<16x64xf32> to vector<1x16x64xf32>
    %22 = vector.broadcast %21 : vector<1x16x64xf32> to vector<2x16x64xf32>
    %23 = arith.addf %19, %22 : vector<2x16x64xf32>
    %24 = arith.maximumf %18, %23 : vector<2x16x64xf32>
    %25 = arith.addf %14, %19 : vector<2x16x64xf32>
    %26 = vector.extract_strided_slice %0 {offsets = [0, 3, 20], sizes = [2, 16, 64], strides = [1, 1, 1]} : vector<2x24x96xf32> to vector<2x16x64xf32>
    %27 = vector.extract_strided_slice %13 {offsets = [3, 20], sizes = [16, 64], strides = [1, 1]} : vector<24x96xf32> to vector<16x64xf32>
    %28 = vector.shape_cast %27 : vector<16x64xf32> to vector<1x16x64xf32>
    %29 = vector.broadcast %28 : vector<1x16x64xf32> to vector<2x16x64xf32>
    %30 = arith.addf %26, %29 : vector<2x16x64xf32>
    %31 = arith.maximumf %24, %30 : vector<2x16x64xf32>
    %32 = arith.addf %25, %26 : vector<2x16x64xf32>
    %33 = vector.extract_strided_slice %0 {offsets = [0, 4, 12], sizes = [2, 16, 64], strides = [1, 1, 1]} : vector<2x24x96xf32> to vector<2x16x64xf32>
    %34 = vector.extract_strided_slice %13 {offsets = [4, 12], sizes = [16, 64], strides = [1, 1]} : vector<24x96xf32> to vector<16x64xf32>
    %35 = vector.shape_cast %34 : vector<16x64xf32> to vector<1x16x64xf32>
    %36 = vector.broadcast %35 : vector<1x16x64xf32> to vector<2x16x64xf32>
    %37 = arith.addf %33, %36 : vector<2x16x64xf32>
    %38 = arith.maximumf %31, %37 : vector<2x16x64xf32>
    %39 = arith.addf %32, %33 : vector<2x16x64xf32>
    %40 = vector.extract_strided_slice %0 {offsets = [0, 4, 16], sizes = [2, 16, 64], strides = [1, 1, 1]} : vector<2x24x96xf32> to vector<2x16x64xf32>
    %41 = vector.extract_strided_slice %13 {offsets = [4, 16], sizes = [16, 64], strides = [1, 1]} : vector<24x96xf32> to vector<16x64xf32>
    %42 = vector.shape_cast %41 : vector<16x64xf32> to vector<1x16x64xf32>
    %43 = vector.broadcast %42 : vector<1x16x64xf32> to vector<2x16x64xf32>
    %44 = arith.addf %40, %43 : vector<2x16x64xf32>
    %45 = arith.maximumf %38, %44 : vector<2x16x64xf32>
    %46 = arith.addf %39, %40 : vector<2x16x64xf32>
    %47 = vector.extract_strided_slice %0 {offsets = [0, 4, 20], sizes = [2, 16, 64], strides = [1, 1, 1]} : vector<2x24x96xf32> to vector<2x16x64xf32>
    %48 = vector.extract_strided_slice %13 {offsets = [4, 20], sizes = [16, 64], strides = [1, 1]} : vector<24x96xf32> to vector<16x64xf32>
    %49 = vector.shape_cast %48 : vector<16x64xf32> to vector<1x16x64xf32>
    %50 = vector.broadcast %49 : vector<1x16x64xf32> to vector<2x16x64xf32>
    %51 = arith.addf %47, %50 : vector<2x16x64xf32>
    %52 = arith.maximumf %45, %51 : vector<2x16x64xf32>
    %53 = arith.addf %46, %47 : vector<2x16x64xf32>
    %54 = vector.extract_strided_slice %0 {offsets = [0, 5, 12], sizes = [2, 16, 64], strides = [1, 1, 1]} : vector<2x24x96xf32> to vector<2x16x64xf32>
    %55 = vector.extract_strided_slice %13 {offsets = [5, 12], sizes = [16, 64], strides = [1, 1]} : vector<24x96xf32> to vector<16x64xf32>
    %56 = vector.shape_cast %55 : vector<16x64xf32> to vector<1x16x64xf32>
    %57 = vector.broadcast %56 : vector<1x16x64xf32> to vector<2x16x64xf32>
    %58 = arith.addf %54, %57 : vector<2x16x64xf32>
    %59 = arith.maximumf %52, %58 : vector<2x16x64xf32>
    %60 = arith.addf %53, %54 : vector<2x16x64xf32>
    %61 = vector.extract_strided_slice %0 {offsets = [0, 5, 16], sizes = [2, 16, 64], strides = [1, 1, 1]} : vector<2x24x96xf32> to vector<2x16x64xf32>
    %62 = vector.extract_strided_slice %13 {offsets = [5, 16], sizes = [16, 64], strides = [1, 1]} : vector<24x96xf32> to vector<16x64xf32>
    %63 = vector.shape_cast %62 : vector<16x64xf32> to vector<1x16x64xf32>
    %64 = vector.broadcast %63 : vector<1x16x64xf32> to vector<2x16x64xf32>
    %65 = arith.addf %61, %64 : vector<2x16x64xf32>
    %66 = arith.maximumf %59, %65 : vector<2x16x64xf32>
    %67 = arith.addf %60, %61 : vector<2x16x64xf32>
    %68 = vector.extract_strided_slice %0 {offsets = [0, 5, 20], sizes = [2, 16, 64], strides = [1, 1, 1]} : vector<2x24x96xf32> to vector<2x16x64xf32>
    %69 = vector.extract_strided_slice %13 {offsets = [5, 20], sizes = [16, 64], strides = [1, 1]} : vector<24x96xf32> to vector<16x64xf32>
    %70 = vector.shape_cast %69 : vector<16x64xf32> to vector<1x16x64xf32>
    %71 = vector.broadcast %70 : vector<1x16x64xf32> to vector<2x16x64xf32>
    %72 = arith.addf %68, %71 : vector<2x16x64xf32>
    %73 = arith.maximumf %66, %72 : vector<2x16x64xf32>
    %74 = arith.addf %67, %68 : vector<2x16x64xf32>
    %c0_9 = arith.constant 0 : index
    %c0_10 = arith.constant 0 : index
    %75 = vector.load %arg4[%c0_9, %c0_10] : memref<16x64xf32, #tpu.memory_space<vmem>>, vector<16x64xf32>
    %76 = vector.shape_cast %75 : vector<16x64xf32> to vector<1x16x64xf32>
    %77 = vector.broadcast %76 : vector<1x16x64xf32> to vector<2x16x64xf32>
    %78 = arith.mulf %74, %77 : vector<2x16x64xf32>
    %c1 = arith.constant 1 : index
    %79 = memref.load %arg1[%c1] : memref<8xf32, #tpu.memory_space<smem>>
    %cst_11 = arith.constant 0.000000e+00 : f32
    %80 = vector.broadcast %cst_11 : f32 to vector<1x64xf32>
    %cst_12 = arith.constant 0.000000e+00 : f32
    %81 = vector.broadcast %cst_12 : f32 to vector<1x64xf32>
    %82 = vector.extract_strided_slice %73 {offsets = [0, 0, 0], sizes = [1, 16, 64], strides = [1, 1, 1]} : vector<2x16x64xf32> to vector<1x16x64xf32>
    %83 = vector.shape_cast %82 : vector<1x16x64xf32> to vector<16x64xf32>
    %cst_13 = arith.constant dense<0.000000e+00> : vector<64xf32>
    %84 = vector.multi_reduction <add>, %83, %cst_13 [0] : vector<16x64xf32> to vector<64xf32>
    %85 = vector.shape_cast %84 : vector<64xf32> to vector<1x64xf32>
    %86 = arith.addf %80, %85 : vector<1x64xf32>
    %87 = arith.mulf %83, %83 : vector<16x64xf32>
    %cst_14 = arith.constant dense<0.000000e+00> : vector<64xf32>
    %88 = vector.multi_reduction <add>, %87, %cst_14 [0] : vector<16x64xf32> to vector<64xf32>
    %89 = vector.shape_cast %88 : vector<64xf32> to vector<1x64xf32>
    %90 = arith.addf %81, %89 : vector<1x64xf32>
    %91 = vector.extract_strided_slice %73 {offsets = [1, 0, 0], sizes = [1, 16, 64], strides = [1, 1, 1]} : vector<2x16x64xf32> to vector<1x16x64xf32>
    %92 = vector.shape_cast %91 : vector<1x16x64xf32> to vector<16x64xf32>
    %cst_15 = arith.constant dense<0.000000e+00> : vector<64xf32>
    %93 = vector.multi_reduction <add>, %92, %cst_15 [0] : vector<16x64xf32> to vector<64xf32>
    %94 = vector.shape_cast %93 : vector<64xf32> to vector<1x64xf32>
    %95 = arith.addf %86, %94 : vector<1x64xf32>
    %96 = arith.mulf %92, %92 : vector<16x64xf32>
    %cst_16 = arith.constant dense<0.000000e+00> : vector<64xf32>
    %97 = vector.multi_reduction <add>, %96, %cst_16 [0] : vector<16x64xf32> to vector<64xf32>
    %98 = vector.shape_cast %97 : vector<64xf32> to vector<1x64xf32>
    %99 = arith.addf %90, %98 : vector<1x64xf32>
    %cst_17 = arith.constant dense<0.000000e+00> : vector<1x64xf32>
    %100 = tpu.matmul %95, %2, %cst_17 {dimension_numbers = #tpu.dot_dimension_numbers<[1], [0], [0], [1], [0, 0, 1, 1], [], []>} : vector<1x64xf32>, vector<64x64xf32>, vector<1x64xf32> -> vector<1x64xf32>
    %cst_18 = arith.constant dense<0.000000e+00> : vector<1x64xf32>
    %101 = tpu.matmul %99, %2, %cst_18 {dimension_numbers = #tpu.dot_dimension_numbers<[1], [0], [0], [1], [0, 0, 1, 1], [], []>} : vector<1x64xf32>, vector<64x64xf32>, vector<1x64xf32> -> vector<1x64xf32>
    %102 = arith.mulf %100, %100 : vector<1x64xf32>
    %103 = arith.subf %101, %102 : vector<1x64xf32>
    %cst_19 = arith.constant 0.000000e+00 : f32
    %104 = vector.broadcast %cst_19 : f32 to vector<1x64xf32>
    %105 = arith.maximumf %103, %104 : vector<1x64xf32>
    %cst_20 = arith.constant 9.99999974E-6 : f32
    %106 = vector.broadcast %cst_20 : f32 to vector<1x64xf32>
    %107 = arith.addf %105, %106 : vector<1x64xf32>
    %108 = math.rsqrt %107 : vector<1x64xf32>
    %109 = vector.broadcast %79 : f32 to vector<1x64xf32>
    %110 = arith.mulf %108, %109 : vector<1x64xf32>
    %111 = vector.shape_cast %100 : vector<1x64xf32> to vector<1x1x64xf32>
    %112 = vector.broadcast %111 : vector<1x1x64xf32> to vector<2x16x64xf32>
    %113 = arith.subf %73, %112 : vector<2x16x64xf32>
    %114 = vector.shape_cast %110 : vector<1x64xf32> to vector<1x1x64xf32>
    %115 = vector.broadcast %114 : vector<1x1x64xf32> to vector<2x16x64xf32>
    %116 = arith.mulf %113, %115 : vector<2x16x64xf32>
    %117 = arith.addf %9, %116 : vector<2x16x64xf32>
    %c2 = arith.constant 2 : index
    %118 = memref.load %arg1[%c2] : memref<8xf32, #tpu.memory_space<smem>>
    %cst_21 = arith.constant 0.000000e+00 : f32
    %119 = vector.broadcast %cst_21 : f32 to vector<1x64xf32>
    %cst_22 = arith.constant 0.000000e+00 : f32
    %120 = vector.broadcast %cst_22 : f32 to vector<1x64xf32>
    %121 = vector.extract_strided_slice %78 {offsets = [0, 0, 0], sizes = [1, 16, 64], strides = [1, 1, 1]} : vector<2x16x64xf32> to vector<1x16x64xf32>
    %122 = vector.shape_cast %121 : vector<1x16x64xf32> to vector<16x64xf32>
    %cst_23 = arith.constant dense<0.000000e+00> : vector<64xf32>
    %123 = vector.multi_reduction <add>, %122, %cst_23 [0] : vector<16x64xf32> to vector<64xf32>
    %124 = vector.shape_cast %123 : vector<64xf32> to vector<1x64xf32>
    %125 = arith.addf %119, %124 : vector<1x64xf32>
    %126 = arith.mulf %122, %122 : vector<16x64xf32>
    %cst_24 = arith.constant dense<0.000000e+00> : vector<64xf32>
    %127 = vector.multi_reduction <add>, %126, %cst_24 [0] : vector<16x64xf32> to vector<64xf32>
    %128 = vector.shape_cast %127 : vector<64xf32> to vector<1x64xf32>
    %129 = arith.addf %120, %128 : vector<1x64xf32>
    %130 = vector.extract_strided_slice %78 {offsets = [1, 0, 0], sizes = [1, 16, 64], strides = [1, 1, 1]} : vector<2x16x64xf32> to vector<1x16x64xf32>
    %131 = vector.shape_cast %130 : vector<1x16x64xf32> to vector<16x64xf32>
    %cst_25 = arith.constant dense<0.000000e+00> : vector<64xf32>
    %132 = vector.multi_reduction <add>, %131, %cst_25 [0] : vector<16x64xf32> to vector<64xf32>
    %133 = vector.shape_cast %132 : vector<64xf32> to vector<1x64xf32>
    %134 = arith.addf %125, %133 : vector<1x64xf32>
    %135 = arith.mulf %131, %131 : vector<16x64xf32>
    %cst_26 = arith.constant dense<0.000000e+00> : vector<64xf32>
    %136 = vector.multi_reduction <add>, %135, %cst_26 [0] : vector<16x64xf32> to vector<64xf32>
    %137 = vector.shape_cast %136 : vector<64xf32> to vector<1x64xf32>
    %138 = arith.addf %129, %137 : vector<1x64xf32>
    %cst_27 = arith.constant dense<0.000000e+00> : vector<1x64xf32>
    %139 = tpu.matmul %134, %2, %cst_27 {dimension_numbers = #tpu.dot_dimension_numbers<[1], [0], [0], [1], [0, 0, 1, 1], [], []>} : vector<1x64xf32>, vector<64x64xf32>, vector<1x64xf32> -> vector<1x64xf32>
    %cst_28 = arith.constant dense<0.000000e+00> : vector<1x64xf32>
    %140 = tpu.matmul %138, %2, %cst_28 {dimension_numbers = #tpu.dot_dimension_numbers<[1], [0], [0], [1], [0, 0, 1, 1], [], []>} : vector<1x64xf32>, vector<64x64xf32>, vector<1x64xf32> -> vector<1x64xf32>
    %141 = arith.mulf %139, %139 : vector<1x64xf32>
    %142 = arith.subf %140, %141 : vector<1x64xf32>
    %cst_29 = arith.constant 0.000000e+00 : f32
    %143 = vector.broadcast %cst_29 : f32 to vector<1x64xf32>
    %144 = arith.maximumf %142, %143 : vector<1x64xf32>
    %cst_30 = arith.constant 9.99999974E-6 : f32
    %145 = vector.broadcast %cst_30 : f32 to vector<1x64xf32>
    %146 = arith.addf %144, %145 : vector<1x64xf32>
    %147 = math.rsqrt %146 : vector<1x64xf32>
    %148 = vector.broadcast %118 : f32 to vector<1x64xf32>
    %149 = arith.mulf %147, %148 : vector<1x64xf32>
    %150 = vector.shape_cast %139 : vector<1x64xf32> to vector<1x1x64xf32>
    %151 = vector.broadcast %150 : vector<1x1x64xf32> to vector<2x16x64xf32>
    %152 = arith.subf %78, %151 : vector<2x16x64xf32>
    %153 = vector.shape_cast %149 : vector<1x64xf32> to vector<1x1x64xf32>
    %154 = vector.broadcast %153 : vector<1x1x64xf32> to vector<2x16x64xf32>
    %155 = arith.mulf %152, %154 : vector<2x16x64xf32>
    %156 = arith.addf %117, %155 : vector<2x16x64xf32>
    %c4 = arith.constant 4 : index
    %157 = memref.load %arg1[%c4] : memref<8xf32, #tpu.memory_space<smem>>
    %158 = vector.extract_strided_slice %4 {offsets = [0, 2, 8], sizes = [2, 18, 72], strides = [1, 1, 1]} : vector<2x24x96xf32> to vector<2x18x72xf32>
    %c0_31 = arith.constant 0 : index
    %c0_32 = arith.constant 0 : index
    %159 = vector.load %arg8[%c0_31, %c0_32] : memref<9x72xf32, #tpu.memory_space<vmem>>, vector<1x72xf32>
    %160 = vector.shape_cast %159 : vector<1x72xf32> to vector<72xf32>
    %161 = vector.shape_cast %160 : vector<72xf32> to vector<1x1x72xf32>
    %162 = vector.broadcast %161 : vector<1x1x72xf32> to vector<2x18x72xf32>
    %163 = arith.mulf %158, %162 : vector<2x18x72xf32>
    %164 = vector.extract_strided_slice %4 {offsets = [0, 2, 12], sizes = [2, 18, 72], strides = [1, 1, 1]} : vector<2x24x96xf32> to vector<2x18x72xf32>
    %c1_33 = arith.constant 1 : index
    %c0_34 = arith.constant 0 : index
    %165 = vector.load %arg8[%c1_33, %c0_34] : memref<9x72xf32, #tpu.memory_space<vmem>>, vector<1x72xf32>
    %166 = vector.shape_cast %165 : vector<1x72xf32> to vector<72xf32>
    %167 = vector.shape_cast %166 : vector<72xf32> to vector<1x1x72xf32>
    %168 = vector.broadcast %167 : vector<1x1x72xf32> to vector<2x18x72xf32>
    %169 = arith.mulf %164, %168 : vector<2x18x72xf32>
    %170 = arith.addf %163, %169 : vector<2x18x72xf32>
    %171 = vector.extract_strided_slice %4 {offsets = [0, 2, 16], sizes = [2, 18, 72], strides = [1, 1, 1]} : vector<2x24x96xf32> to vector<2x18x72xf32>
    %c2_35 = arith.constant 2 : index
    %c0_36 = arith.constant 0 : index
    %172 = vector.load %arg8[%c2_35, %c0_36] : memref<9x72xf32, #tpu.memory_space<vmem>>, vector<1x72xf32>
    %173 = vector.shape_cast %172 : vector<1x72xf32> to vector<72xf32>
    %174 = vector.shape_cast %173 : vector<72xf32> to vector<1x1x72xf32>
    %175 = vector.broadcast %174 : vector<1x1x72xf32> to vector<2x18x72xf32>
    %176 = arith.mulf %171, %175 : vector<2x18x72xf32>
    %177 = arith.addf %170, %176 : vector<2x18x72xf32>
    %178 = vector.extract_strided_slice %4 {offsets = [0, 3, 8], sizes = [2, 18, 72], strides = [1, 1, 1]} : vector<2x24x96xf32> to vector<2x18x72xf32>
    %c3_37 = arith.constant 3 : index
    %c0_38 = arith.constant 0 : index
    %179 = vector.load %arg8[%c3_37, %c0_38] : memref<9x72xf32, #tpu.memory_space<vmem>>, vector<1x72xf32>
    %180 = vector.shape_cast %179 : vector<1x72xf32> to vector<72xf32>
    %181 = vector.shape_cast %180 : vector<72xf32> to vector<1x1x72xf32>
    %182 = vector.broadcast %181 : vector<1x1x72xf32> to vector<2x18x72xf32>
    %183 = arith.mulf %178, %182 : vector<2x18x72xf32>
    %184 = arith.addf %177, %183 : vector<2x18x72xf32>
    %185 = vector.extract_strided_slice %4 {offsets = [0, 3, 12], sizes = [2, 18, 72], strides = [1, 1, 1]} : vector<2x24x96xf32> to vector<2x18x72xf32>
    %c4_39 = arith.constant 4 : index
    %c0_40 = arith.constant 0 : index
    %186 = vector.load %arg8[%c4_39, %c0_40] : memref<9x72xf32, #tpu.memory_space<vmem>>, vector<1x72xf32>
    %187 = vector.shape_cast %186 : vector<1x72xf32> to vector<72xf32>
    %188 = vector.shape_cast %187 : vector<72xf32> to vector<1x1x72xf32>
    %189 = vector.broadcast %188 : vector<1x1x72xf32> to vector<2x18x72xf32>
    %190 = arith.mulf %185, %189 : vector<2x18x72xf32>
    %191 = arith.addf %184, %190 : vector<2x18x72xf32>
    %192 = vector.extract_strided_slice %4 {offsets = [0, 3, 16], sizes = [2, 18, 72], strides = [1, 1, 1]} : vector<2x24x96xf32> to vector<2x18x72xf32>
    %c5 = arith.constant 5 : index
    %c0_41 = arith.constant 0 : index
    %193 = vector.load %arg8[%c5, %c0_41] : memref<9x72xf32, #tpu.memory_space<vmem>>, vector<1x72xf32>
    %194 = vector.shape_cast %193 : vector<1x72xf32> to vector<72xf32>
    %195 = vector.shape_cast %194 : vector<72xf32> to vector<1x1x72xf32>
    %196 = vector.broadcast %195 : vector<1x1x72xf32> to vector<2x18x72xf32>
    %197 = arith.mulf %192, %196 : vector<2x18x72xf32>
    %198 = arith.addf %191, %197 : vector<2x18x72xf32>
    %199 = vector.extract_strided_slice %4 {offsets = [0, 4, 8], sizes = [2, 18, 72], strides = [1, 1, 1]} : vector<2x24x96xf32> to vector<2x18x72xf32>
    %c6 = arith.constant 6 : index
    %c0_42 = arith.constant 0 : index
    %200 = vector.load %arg8[%c6, %c0_42] : memref<9x72xf32, #tpu.memory_space<vmem>>, vector<1x72xf32>
    %201 = vector.shape_cast %200 : vector<1x72xf32> to vector<72xf32>
    %202 = vector.shape_cast %201 : vector<72xf32> to vector<1x1x72xf32>
    %203 = vector.broadcast %202 : vector<1x1x72xf32> to vector<2x18x72xf32>
    %204 = arith.mulf %199, %203 : vector<2x18x72xf32>
    %205 = arith.addf %198, %204 : vector<2x18x72xf32>
    %206 = vector.extract_strided_slice %4 {offsets = [0, 4, 12], sizes = [2, 18, 72], strides = [1, 1, 1]} : vector<2x24x96xf32> to vector<2x18x72xf32>
    %c7 = arith.constant 7 : index
    %c0_43 = arith.constant 0 : index
    %207 = vector.load %arg8[%c7, %c0_43] : memref<9x72xf32, #tpu.memory_space<vmem>>, vector<1x72xf32>
    %208 = vector.shape_cast %207 : vector<1x72xf32> to vector<72xf32>
    %209 = vector.shape_cast %208 : vector<72xf32> to vector<1x1x72xf32>
    %210 = vector.broadcast %209 : vector<1x1x72xf32> to vector<2x18x72xf32>
    %211 = arith.mulf %206, %210 : vector<2x18x72xf32>
    %212 = arith.addf %205, %211 : vector<2x18x72xf32>
    %213 = vector.extract_strided_slice %4 {offsets = [0, 4, 16], sizes = [2, 18, 72], strides = [1, 1, 1]} : vector<2x24x96xf32> to vector<2x18x72xf32>
    %c8 = arith.constant 8 : index
    %c0_44 = arith.constant 0 : index
    %214 = vector.load %arg8[%c8, %c0_44] : memref<9x72xf32, #tpu.memory_space<vmem>>, vector<1x72xf32>
    %215 = vector.shape_cast %214 : vector<1x72xf32> to vector<72xf32>
    %216 = vector.shape_cast %215 : vector<72xf32> to vector<1x1x72xf32>
    %217 = vector.broadcast %216 : vector<1x1x72xf32> to vector<2x18x72xf32>
    %218 = arith.mulf %213, %217 : vector<2x18x72xf32>
    %219 = arith.addf %212, %218 : vector<2x18x72xf32>
    %c0_45 = arith.constant 0 : index
    %c0_46 = arith.constant 0 : index
    %220 = vector.load %arg9[%c0_45, %c0_46] : memref<72x72xf32, #tpu.memory_space<vmem>>, vector<72x72xf32>
    %221 = vector.extract_strided_slice %219 {offsets = [0, 0, 0], sizes = [1, 18, 72], strides = [1, 1, 1]} : vector<2x18x72xf32> to vector<1x18x72xf32>
    %222 = vector.shape_cast %221 : vector<1x18x72xf32> to vector<18x72xf32>
    %cst_47 = arith.constant dense<0.000000e+00> : vector<18x72xf32>
    %223 = tpu.matmul %222, %220, %cst_47 {dimension_numbers = #tpu.dot_dimension_numbers<[1], [0], [0], [1], [0, 0, 1, 1], [], []>} : vector<18x72xf32>, vector<72x72xf32>, vector<18x72xf32> -> vector<18x72xf32>
    %224 = vector.extract_strided_slice %219 {offsets = [1, 0, 0], sizes = [1, 18, 72], strides = [1, 1, 1]} : vector<2x18x72xf32> to vector<1x18x72xf32>
    %225 = vector.shape_cast %224 : vector<1x18x72xf32> to vector<18x72xf32>
    %cst_48 = arith.constant dense<0.000000e+00> : vector<18x72xf32>
    %226 = tpu.matmul %225, %220, %cst_48 {dimension_numbers = #tpu.dot_dimension_numbers<[1], [0], [0], [1], [0, 0, 1, 1], [], []>} : vector<18x72xf32>, vector<72x72xf32>, vector<18x72xf32> -> vector<18x72xf32>
    %227 = vector.shape_cast %223 : vector<18x72xf32> to vector<1x18x72xf32>
    %228 = vector.shape_cast %226 : vector<18x72xf32> to vector<1x18x72xf32>
    %229 = tpu.concatenate %227, %228 in 0 : vector<1x18x72xf32>, vector<1x18x72xf32> -> vector<2x18x72xf32>
    %230 = vector.extract_strided_slice %229 {offsets = [0, 1, 4], sizes = [2, 16, 64], strides = [1, 1, 1]} : vector<2x18x72xf32> to vector<2x16x64xf32>
    %c0_49 = arith.constant 0 : index
    %c0_50 = arith.constant 0 : index
    %231 = vector.load %arg6[%c0_49, %c0_50] : memref<64x72xf32, #tpu.memory_space<vmem>>, vector<64x72xf32>
    %cst_51 = arith.constant 0.000000e+00 : f32
    %232 = vector.broadcast %cst_51 : f32 to vector<1x64xf32>
    %cst_52 = arith.constant 0.000000e+00 : f32
    %233 = vector.broadcast %cst_52 : f32 to vector<1x64xf32>
    %234 = vector.extract_strided_slice %230 {offsets = [0, 0, 0], sizes = [1, 16, 64], strides = [1, 1, 1]} : vector<2x16x64xf32> to vector<1x16x64xf32>
    %235 = vector.shape_cast %234 : vector<1x16x64xf32> to vector<16x64xf32>
    %cst_53 = arith.constant dense<0.000000e+00> : vector<64xf32>
    %236 = vector.multi_reduction <add>, %235, %cst_53 [0] : vector<16x64xf32> to vector<64xf32>
    %237 = vector.shape_cast %236 : vector<64xf32> to vector<1x64xf32>
    %238 = arith.addf %232, %237 : vector<1x64xf32>
    %239 = arith.mulf %235, %235 : vector<16x64xf32>
    %cst_54 = arith.constant dense<0.000000e+00> : vector<64xf32>
    %240 = vector.multi_reduction <add>, %239, %cst_54 [0] : vector<16x64xf32> to vector<64xf32>
    %241 = vector.shape_cast %240 : vector<64xf32> to vector<1x64xf32>
    %242 = arith.addf %233, %241 : vector<1x64xf32>
    %243 = vector.extract_strided_slice %230 {offsets = [1, 0, 0], sizes = [1, 16, 64], strides = [1, 1, 1]} : vector<2x16x64xf32> to vector<1x16x64xf32>
    %244 = vector.shape_cast %243 : vector<1x16x64xf32> to vector<16x64xf32>
    %cst_55 = arith.constant dense<0.000000e+00> : vector<64xf32>
    %245 = vector.multi_reduction <add>, %244, %cst_55 [0] : vector<16x64xf32> to vector<64xf32>
    %246 = vector.shape_cast %245 : vector<64xf32> to vector<1x64xf32>
    %247 = arith.addf %238, %246 : vector<1x64xf32>
    %248 = arith.mulf %244, %244 : vector<16x64xf32>
    %cst_56 = arith.constant dense<0.000000e+00> : vector<64xf32>
    %249 = vector.multi_reduction <add>, %248, %cst_56 [0] : vector<16x64xf32> to vector<64xf32>
    %250 = vector.shape_cast %249 : vector<64xf32> to vector<1x64xf32>
    %251 = arith.addf %242, %250 : vector<1x64xf32>
    %cst_57 = arith.constant dense<0.000000e+00> : vector<1x72xf32>
    %252 = tpu.matmul %247, %231, %cst_57 {dimension_numbers = #tpu.dot_dimension_numbers<[1], [0], [0], [1], [0, 0, 1, 1], [], []>} : vector<1x64xf32>, vector<64x72xf32>, vector<1x72xf32> -> vector<1x72xf32>
    %cst_58 = arith.constant dense<0.000000e+00> : vector<1x72xf32>
    %253 = tpu.matmul %251, %231, %cst_58 {dimension_numbers = #tpu.dot_dimension_numbers<[1], [0], [0], [1], [0, 0, 1, 1], [], []>} : vector<1x64xf32>, vector<64x72xf32>, vector<1x72xf32> -> vector<1x72xf32>
    %254 = arith.mulf %252, %252 : vector<1x72xf32>
    %255 = arith.subf %253, %254 : vector<1x72xf32>
    %cst_59 = arith.constant 0.000000e+00 : f32
    %256 = vector.broadcast %cst_59 : f32 to vector<1x72xf32>
    %257 = arith.maximumf %255, %256 : vector<1x72xf32>
    %cst_60 = arith.constant 9.99999974E-6 : f32
    %258 = vector.broadcast %cst_60 : f32 to vector<1x72xf32>
    %259 = arith.addf %257, %258 : vector<1x72xf32>
    %260 = math.rsqrt %259 : vector<1x72xf32>
    %261 = vector.shape_cast %252 : vector<1x72xf32> to vector<1x1x72xf32>
    %262 = vector.broadcast %261 : vector<1x1x72xf32> to vector<2x18x72xf32>
    %263 = arith.subf %229, %262 : vector<2x18x72xf32>
    %264 = vector.shape_cast %260 : vector<1x72xf32> to vector<1x1x72xf32>
    %265 = vector.broadcast %264 : vector<1x1x72xf32> to vector<2x18x72xf32>
    %266 = arith.mulf %263, %265 : vector<2x18x72xf32>
    %267 = vector.extract_strided_slice %1 {offsets = [3, 12], sizes = [18, 72], strides = [1, 1]} : vector<24x96xf32> to vector<18x72xf32>
    %cst_61 = arith.constant 0.000000e+00 : f32
    %268 = vector.broadcast %cst_61 : f32 to vector<2x18x72xf32>
    %269 = arith.maximumf %266, %268 : vector<2x18x72xf32>
    %270 = vector.shape_cast %267 : vector<18x72xf32> to vector<1x18x72xf32>
    %271 = vector.broadcast %270 : vector<1x18x72xf32> to vector<2x18x72xf32>
    %272 = arith.mulf %269, %271 : vector<2x18x72xf32>
    %273 = vector.extract_strided_slice %272 {offsets = [0, 0, 0], sizes = [2, 16, 64], strides = [1, 1, 1]} : vector<2x18x72xf32> to vector<2x16x64xf32>
    %c0_62 = arith.constant 0 : index
    %c0_63 = arith.constant 0 : index
    %274 = vector.load %arg10[%c0_62, %c0_63] : memref<9x64xf32, #tpu.memory_space<vmem>>, vector<1x64xf32>
    %275 = vector.shape_cast %274 : vector<1x64xf32> to vector<64xf32>
    %276 = vector.shape_cast %275 : vector<64xf32> to vector<1x1x64xf32>
    %277 = vector.broadcast %276 : vector<1x1x64xf32> to vector<2x16x64xf32>
    %278 = arith.mulf %273, %277 : vector<2x16x64xf32>
    %279 = vector.extract_strided_slice %272 {offsets = [0, 0, 4], sizes = [2, 16, 64], strides = [1, 1, 1]} : vector<2x18x72xf32> to vector<2x16x64xf32>
    %c1_64 = arith.constant 1 : index
    %c0_65 = arith.constant 0 : index
    %280 = vector.load %arg10[%c1_64, %c0_65] : memref<9x64xf32, #tpu.memory_space<vmem>>, vector<1x64xf32>
    %281 = vector.shape_cast %280 : vector<1x64xf32> to vector<64xf32>
    %282 = vector.shape_cast %281 : vector<64xf32> to vector<1x1x64xf32>
    %283 = vector.broadcast %282 : vector<1x1x64xf32> to vector<2x16x64xf32>
    %284 = arith.mulf %279, %283 : vector<2x16x64xf32>
    %285 = arith.addf %278, %284 : vector<2x16x64xf32>
    %286 = vector.extract_strided_slice %272 {offsets = [0, 0, 8], sizes = [2, 16, 64], strides = [1, 1, 1]} : vector<2x18x72xf32> to vector<2x16x64xf32>
    %c2_66 = arith.constant 2 : index
    %c0_67 = arith.constant 0 : index
    %287 = vector.load %arg10[%c2_66, %c0_67] : memref<9x64xf32, #tpu.memory_space<vmem>>, vector<1x64xf32>
    %288 = vector.shape_cast %287 : vector<1x64xf32> to vector<64xf32>
    %289 = vector.shape_cast %288 : vector<64xf32> to vector<1x1x64xf32>
    %290 = vector.broadcast %289 : vector<1x1x64xf32> to vector<2x16x64xf32>
    %291 = arith.mulf %286, %290 : vector<2x16x64xf32>
    %292 = arith.addf %285, %291 : vector<2x16x64xf32>
    %293 = vector.extract_strided_slice %272 {offsets = [0, 1, 0], sizes = [2, 16, 64], strides = [1, 1, 1]} : vector<2x18x72xf32> to vector<2x16x64xf32>
    %c3_68 = arith.constant 3 : index
    %c0_69 = arith.constant 0 : index
    %294 = vector.load %arg10[%c3_68, %c0_69] : memref<9x64xf32, #tpu.memory_space<vmem>>, vector<1x64xf32>
    %295 = vector.shape_cast %294 : vector<1x64xf32> to vector<64xf32>
    %296 = vector.shape_cast %295 : vector<64xf32> to vector<1x1x64xf32>
    %297 = vector.broadcast %296 : vector<1x1x64xf32> to vector<2x16x64xf32>
    %298 = arith.mulf %293, %297 : vector<2x16x64xf32>
    %299 = arith.addf %292, %298 : vector<2x16x64xf32>
    %300 = vector.extract_strided_slice %272 {offsets = [0, 1, 4], sizes = [2, 16, 64], strides = [1, 1, 1]} : vector<2x18x72xf32> to vector<2x16x64xf32>
    %c4_70 = arith.constant 4 : index
    %c0_71 = arith.constant 0 : index
    %301 = vector.load %arg10[%c4_70, %c0_71] : memref<9x64xf32, #tpu.memory_space<vmem>>, vector<1x64xf32>
    %302 = vector.shape_cast %301 : vector<1x64xf32> to vector<64xf32>
    %303 = vector.shape_cast %302 : vector<64xf32> to vector<1x1x64xf32>
    %304 = vector.broadcast %303 : vector<1x1x64xf32> to vector<2x16x64xf32>
    %305 = arith.mulf %300, %304 : vector<2x16x64xf32>
    %306 = arith.addf %299, %305 : vector<2x16x64xf32>
    %307 = vector.extract_strided_slice %272 {offsets = [0, 1, 8], sizes = [2, 16, 64], strides = [1, 1, 1]} : vector<2x18x72xf32> to vector<2x16x64xf32>
    %c5_72 = arith.constant 5 : index
    %c0_73 = arith.constant 0 : index
    %308 = vector.load %arg10[%c5_72, %c0_73] : memref<9x64xf32, #tpu.memory_space<vmem>>, vector<1x64xf32>
    %309 = vector.shape_cast %308 : vector<1x64xf32> to vector<64xf32>
    %310 = vector.shape_cast %309 : vector<64xf32> to vector<1x1x64xf32>
    %311 = vector.broadcast %310 : vector<1x1x64xf32> to vector<2x16x64xf32>
    %312 = arith.mulf %307, %311 : vector<2x16x64xf32>
    %313 = arith.addf %306, %312 : vector<2x16x64xf32>
    %314 = vector.extract_strided_slice %272 {offsets = [0, 2, 0], sizes = [2, 16, 64], strides = [1, 1, 1]} : vector<2x18x72xf32> to vector<2x16x64xf32>
    %c6_74 = arith.constant 6 : index
    %c0_75 = arith.constant 0 : index
    %315 = vector.load %arg10[%c6_74, %c0_75] : memref<9x64xf32, #tpu.memory_space<vmem>>, vector<1x64xf32>
    %316 = vector.shape_cast %315 : vector<1x64xf32> to vector<64xf32>
    %317 = vector.shape_cast %316 : vector<64xf32> to vector<1x1x64xf32>
    %318 = vector.broadcast %317 : vector<1x1x64xf32> to vector<2x16x64xf32>
    %319 = arith.mulf %314, %318 : vector<2x16x64xf32>
    %320 = arith.addf %313, %319 : vector<2x16x64xf32>
    %321 = vector.extract_strided_slice %272 {offsets = [0, 2, 4], sizes = [2, 16, 64], strides = [1, 1, 1]} : vector<2x18x72xf32> to vector<2x16x64xf32>
    %c7_76 = arith.constant 7 : index
    %c0_77 = arith.constant 0 : index
    %322 = vector.load %arg10[%c7_76, %c0_77] : memref<9x64xf32, #tpu.memory_space<vmem>>, vector<1x64xf32>
    %323 = vector.shape_cast %322 : vector<1x64xf32> to vector<64xf32>
    %324 = vector.shape_cast %323 : vector<64xf32> to vector<1x1x64xf32>
    %325 = vector.broadcast %324 : vector<1x1x64xf32> to vector<2x16x64xf32>
    %326 = arith.mulf %321, %325 : vector<2x16x64xf32>
    %327 = arith.addf %320, %326 : vector<2x16x64xf32>
    %328 = vector.extract_strided_slice %272 {offsets = [0, 2, 8], sizes = [2, 16, 64], strides = [1, 1, 1]} : vector<2x18x72xf32> to vector<2x16x64xf32>
    %c8_78 = arith.constant 8 : index
    %c0_79 = arith.constant 0 : index
    %329 = vector.load %arg10[%c8_78, %c0_79] : memref<9x64xf32, #tpu.memory_space<vmem>>, vector<1x64xf32>
    %330 = vector.shape_cast %329 : vector<1x64xf32> to vector<64xf32>
    %331 = vector.shape_cast %330 : vector<64xf32> to vector<1x1x64xf32>
    %332 = vector.broadcast %331 : vector<1x1x64xf32> to vector<2x16x64xf32>
    %333 = arith.mulf %328, %332 : vector<2x16x64xf32>
    %334 = arith.addf %327, %333 : vector<2x16x64xf32>
    %c0_80 = arith.constant 0 : index
    %c0_81 = arith.constant 0 : index
    %335 = vector.load %arg11[%c0_80, %c0_81] : memref<64x64xf32, #tpu.memory_space<vmem>>, vector<64x64xf32>
    %336 = vector.extract_strided_slice %334 {offsets = [0, 0, 0], sizes = [1, 16, 64], strides = [1, 1, 1]} : vector<2x16x64xf32> to vector<1x16x64xf32>
    %337 = vector.shape_cast %336 : vector<1x16x64xf32> to vector<16x64xf32>
    %cst_82 = arith.constant dense<0.000000e+00> : vector<16x64xf32>
    %338 = tpu.matmul %337, %335, %cst_82 {dimension_numbers = #tpu.dot_dimension_numbers<[1], [0], [0], [1], [0, 0, 1, 1], [], []>} : vector<16x64xf32>, vector<64x64xf32>, vector<16x64xf32> -> vector<16x64xf32>
    %339 = vector.extract_strided_slice %334 {offsets = [1, 0, 0], sizes = [1, 16, 64], strides = [1, 1, 1]} : vector<2x16x64xf32> to vector<1x16x64xf32>
    %340 = vector.shape_cast %339 : vector<1x16x64xf32> to vector<16x64xf32>
    %cst_83 = arith.constant dense<0.000000e+00> : vector<16x64xf32>
    %341 = tpu.matmul %340, %335, %cst_83 {dimension_numbers = #tpu.dot_dimension_numbers<[1], [0], [0], [1], [0, 0, 1, 1], [], []>} : vector<16x64xf32>, vector<64x64xf32>, vector<16x64xf32> -> vector<16x64xf32>
    %342 = vector.shape_cast %338 : vector<16x64xf32> to vector<1x16x64xf32>
    %343 = vector.shape_cast %341 : vector<16x64xf32> to vector<1x16x64xf32>
    %344 = tpu.concatenate %342, %343 in 0 : vector<1x16x64xf32>, vector<1x16x64xf32> -> vector<2x16x64xf32>
    %cst_84 = arith.constant 0.000000e+00 : f32
    %345 = vector.broadcast %cst_84 : f32 to vector<1x64xf32>
    %cst_85 = arith.constant 0.000000e+00 : f32
    %346 = vector.broadcast %cst_85 : f32 to vector<1x64xf32>
    %347 = vector.extract_strided_slice %344 {offsets = [0, 0, 0], sizes = [1, 16, 64], strides = [1, 1, 1]} : vector<2x16x64xf32> to vector<1x16x64xf32>
    %348 = vector.shape_cast %347 : vector<1x16x64xf32> to vector<16x64xf32>
    %cst_86 = arith.constant dense<0.000000e+00> : vector<64xf32>
    %349 = vector.multi_reduction <add>, %348, %cst_86 [0] : vector<16x64xf32> to vector<64xf32>
    %350 = vector.shape_cast %349 : vector<64xf32> to vector<1x64xf32>
    %351 = arith.addf %345, %350 : vector<1x64xf32>
    %352 = arith.mulf %348, %348 : vector<16x64xf32>
    %cst_87 = arith.constant dense<0.000000e+00> : vector<64xf32>
    %353 = vector.multi_reduction <add>, %352, %cst_87 [0] : vector<16x64xf32> to vector<64xf32>
    %354 = vector.shape_cast %353 : vector<64xf32> to vector<1x64xf32>
    %355 = arith.addf %346, %354 : vector<1x64xf32>
    %356 = vector.extract_strided_slice %344 {offsets = [1, 0, 0], sizes = [1, 16, 64], strides = [1, 1, 1]} : vector<2x16x64xf32> to vector<1x16x64xf32>
    %357 = vector.shape_cast %356 : vector<1x16x64xf32> to vector<16x64xf32>
    %cst_88 = arith.constant dense<0.000000e+00> : vector<64xf32>
    %358 = vector.multi_reduction <add>, %357, %cst_88 [0] : vector<16x64xf32> to vector<64xf32>
    %359 = vector.shape_cast %358 : vector<64xf32> to vector<1x64xf32>
    %360 = arith.addf %351, %359 : vector<1x64xf32>
    %361 = arith.mulf %357, %357 : vector<16x64xf32>
    %cst_89 = arith.constant dense<0.000000e+00> : vector<64xf32>
    %362 = vector.multi_reduction <add>, %361, %cst_89 [0] : vector<16x64xf32> to vector<64xf32>
    %363 = vector.shape_cast %362 : vector<64xf32> to vector<1x64xf32>
    %364 = arith.addf %355, %363 : vector<1x64xf32>
    %cst_90 = arith.constant dense<0.000000e+00> : vector<1x64xf32>
    %365 = tpu.matmul %360, %2, %cst_90 {dimension_numbers = #tpu.dot_dimension_numbers<[1], [0], [0], [1], [0, 0, 1, 1], [], []>} : vector<1x64xf32>, vector<64x64xf32>, vector<1x64xf32> -> vector<1x64xf32>
    %cst_91 = arith.constant dense<0.000000e+00> : vector<1x64xf32>
    %366 = tpu.matmul %364, %2, %cst_91 {dimension_numbers = #tpu.dot_dimension_numbers<[1], [0], [0], [1], [0, 0, 1, 1], [], []>} : vector<1x64xf32>, vector<64x64xf32>, vector<1x64xf32> -> vector<1x64xf32>
    %367 = arith.mulf %365, %365 : vector<1x64xf32>
    %368 = arith.subf %366, %367 : vector<1x64xf32>
    %cst_92 = arith.constant 0.000000e+00 : f32
    %369 = vector.broadcast %cst_92 : f32 to vector<1x64xf32>
    %370 = arith.maximumf %368, %369 : vector<1x64xf32>
    %cst_93 = arith.constant 9.99999974E-6 : f32
    %371 = vector.broadcast %cst_93 : f32 to vector<1x64xf32>
    %372 = arith.addf %370, %371 : vector<1x64xf32>
    %373 = math.rsqrt %372 : vector<1x64xf32>
    %374 = vector.broadcast %157 : f32 to vector<1x64xf32>
    %375 = arith.mulf %373, %374 : vector<1x64xf32>
    %376 = vector.shape_cast %365 : vector<1x64xf32> to vector<1x1x64xf32>
    %377 = vector.broadcast %376 : vector<1x1x64xf32> to vector<2x16x64xf32>
    %378 = arith.subf %344, %377 : vector<2x16x64xf32>
    %379 = vector.shape_cast %375 : vector<1x64xf32> to vector<1x1x64xf32>
    %380 = vector.broadcast %379 : vector<1x1x64xf32> to vector<2x16x64xf32>
    %381 = arith.mulf %378, %380 : vector<2x16x64xf32>
    %382 = arith.addf %156, %381 : vector<2x16x64xf32>
    %c5_94 = arith.constant 5 : index
    %383 = memref.load %arg1[%c5_94] : memref<8xf32, #tpu.memory_space<smem>>
    %384 = vector.extract_strided_slice %4 {offsets = [0, 0, 0], sizes = [2, 20, 80], strides = [1, 1, 1]} : vector<2x24x96xf32> to vector<2x20x80xf32>
    %c0_95 = arith.constant 0 : index
    %c0_96 = arith.constant 0 : index
    %385 = vector.load %arg12[%c0_95, %c0_96] : memref<25x80xf32, #tpu.memory_space<vmem>>, vector<1x80xf32>
    %386 = vector.shape_cast %385 : vector<1x80xf32> to vector<80xf32>
    %387 = vector.shape_cast %386 : vector<80xf32> to vector<1x1x80xf32>
    %388 = vector.broadcast %387 : vector<1x1x80xf32> to vector<2x20x80xf32>
    %389 = arith.mulf %384, %388 : vector<2x20x80xf32>
    %390 = vector.extract_strided_slice %4 {offsets = [0, 0, 4], sizes = [2, 20, 80], strides = [1, 1, 1]} : vector<2x24x96xf32> to vector<2x20x80xf32>
    %c1_97 = arith.constant 1 : index
    %c0_98 = arith.constant 0 : index
    %391 = vector.load %arg12[%c1_97, %c0_98] : memref<25x80xf32, #tpu.memory_space<vmem>>, vector<1x80xf32>
    %392 = vector.shape_cast %391 : vector<1x80xf32> to vector<80xf32>
    %393 = vector.shape_cast %392 : vector<80xf32> to vector<1x1x80xf32>
    %394 = vector.broadcast %393 : vector<1x1x80xf32> to vector<2x20x80xf32>
    %395 = arith.mulf %390, %394 : vector<2x20x80xf32>
    %396 = arith.addf %389, %395 : vector<2x20x80xf32>
    %397 = vector.extract_strided_slice %4 {offsets = [0, 0, 8], sizes = [2, 20, 80], strides = [1, 1, 1]} : vector<2x24x96xf32> to vector<2x20x80xf32>
    %c2_99 = arith.constant 2 : index
    %c0_100 = arith.constant 0 : index
    %398 = vector.load %arg12[%c2_99, %c0_100] : memref<25x80xf32, #tpu.memory_space<vmem>>, vector<1x80xf32>
    %399 = vector.shape_cast %398 : vector<1x80xf32> to vector<80xf32>
    %400 = vector.shape_cast %399 : vector<80xf32> to vector<1x1x80xf32>
    %401 = vector.broadcast %400 : vector<1x1x80xf32> to vector<2x20x80xf32>
    %402 = arith.mulf %397, %401 : vector<2x20x80xf32>
    %403 = arith.addf %396, %402 : vector<2x20x80xf32>
    %404 = vector.extract_strided_slice %4 {offsets = [0, 0, 12], sizes = [2, 20, 80], strides = [1, 1, 1]} : vector<2x24x96xf32> to vector<2x20x80xf32>
    %c3_101 = arith.constant 3 : index
    %c0_102 = arith.constant 0 : index
    %405 = vector.load %arg12[%c3_101, %c0_102] : memref<25x80xf32, #tpu.memory_space<vmem>>, vector<1x80xf32>
    %406 = vector.shape_cast %405 : vector<1x80xf32> to vector<80xf32>
    %407 = vector.shape_cast %406 : vector<80xf32> to vector<1x1x80xf32>
    %408 = vector.broadcast %407 : vector<1x1x80xf32> to vector<2x20x80xf32>
    %409 = arith.mulf %404, %408 : vector<2x20x80xf32>
    %410 = arith.addf %403, %409 : vector<2x20x80xf32>
    %411 = vector.extract_strided_slice %4 {offsets = [0, 0, 16], sizes = [2, 20, 80], strides = [1, 1, 1]} : vector<2x24x96xf32> to vector<2x20x80xf32>
    %c4_103 = arith.constant 4 : index
    %c0_104 = arith.constant 0 : index
    %412 = vector.load %arg12[%c4_103, %c0_104] : memref<25x80xf32, #tpu.memory_space<vmem>>, vector<1x80xf32>
    %413 = vector.shape_cast %412 : vector<1x80xf32> to vector<80xf32>
    %414 = vector.shape_cast %413 : vector<80xf32> to vector<1x1x80xf32>
    %415 = vector.broadcast %414 : vector<1x1x80xf32> to vector<2x20x80xf32>
    %416 = arith.mulf %411, %415 : vector<2x20x80xf32>
    %417 = arith.addf %410, %416 : vector<2x20x80xf32>
    %418 = vector.extract_strided_slice %4 {offsets = [0, 1, 0], sizes = [2, 20, 80], strides = [1, 1, 1]} : vector<2x24x96xf32> to vector<2x20x80xf32>
    %c5_105 = arith.constant 5 : index
    %c0_106 = arith.constant 0 : index
    %419 = vector.load %arg12[%c5_105, %c0_106] : memref<25x80xf32, #tpu.memory_space<vmem>>, vector<1x80xf32>
    %420 = vector.shape_cast %419 : vector<1x80xf32> to vector<80xf32>
    %421 = vector.shape_cast %420 : vector<80xf32> to vector<1x1x80xf32>
    %422 = vector.broadcast %421 : vector<1x1x80xf32> to vector<2x20x80xf32>
    %423 = arith.mulf %418, %422 : vector<2x20x80xf32>
    %424 = arith.addf %417, %423 : vector<2x20x80xf32>
    %425 = vector.extract_strided_slice %4 {offsets = [0, 1, 4], sizes = [2, 20, 80], strides = [1, 1, 1]} : vector<2x24x96xf32> to vector<2x20x80xf32>
    %c6_107 = arith.constant 6 : index
    %c0_108 = arith.constant 0 : index
    %426 = vector.load %arg12[%c6_107, %c0_108] : memref<25x80xf32, #tpu.memory_space<vmem>>, vector<1x80xf32>
    %427 = vector.shape_cast %426 : vector<1x80xf32> to vector<80xf32>
    %428 = vector.shape_cast %427 : vector<80xf32> to vector<1x1x80xf32>
    %429 = vector.broadcast %428 : vector<1x1x80xf32> to vector<2x20x80xf32>
    %430 = arith.mulf %425, %429 : vector<2x20x80xf32>
    %431 = arith.addf %424, %430 : vector<2x20x80xf32>
    %432 = vector.extract_strided_slice %4 {offsets = [0, 1, 8], sizes = [2, 20, 80], strides = [1, 1, 1]} : vector<2x24x96xf32> to vector<2x20x80xf32>
    %c7_109 = arith.constant 7 : index
    %c0_110 = arith.constant 0 : index
    %433 = vector.load %arg12[%c7_109, %c0_110] : memref<25x80xf32, #tpu.memory_space<vmem>>, vector<1x80xf32>
    %434 = vector.shape_cast %433 : vector<1x80xf32> to vector<80xf32>
    %435 = vector.shape_cast %434 : vector<80xf32> to vector<1x1x80xf32>
    %436 = vector.broadcast %435 : vector<1x1x80xf32> to vector<2x20x80xf32>
    %437 = arith.mulf %432, %436 : vector<2x20x80xf32>
    %438 = arith.addf %431, %437 : vector<2x20x80xf32>
    %439 = vector.extract_strided_slice %4 {offsets = [0, 1, 12], sizes = [2, 20, 80], strides = [1, 1, 1]} : vector<2x24x96xf32> to vector<2x20x80xf32>
    %c8_111 = arith.constant 8 : index
    %c0_112 = arith.constant 0 : index
    %440 = vector.load %arg12[%c8_111, %c0_112] : memref<25x80xf32, #tpu.memory_space<vmem>>, vector<1x80xf32>
    %441 = vector.shape_cast %440 : vector<1x80xf32> to vector<80xf32>
    %442 = vector.shape_cast %441 : vector<80xf32> to vector<1x1x80xf32>
    %443 = vector.broadcast %442 : vector<1x1x80xf32> to vector<2x20x80xf32>
    %444 = arith.mulf %439, %443 : vector<2x20x80xf32>
    %445 = arith.addf %438, %444 : vector<2x20x80xf32>
    %446 = vector.extract_strided_slice %4 {offsets = [0, 1, 16], sizes = [2, 20, 80], strides = [1, 1, 1]} : vector<2x24x96xf32> to vector<2x20x80xf32>
    %c9 = arith.constant 9 : index
    %c0_113 = arith.constant 0 : index
    %447 = vector.load %arg12[%c9, %c0_113] : memref<25x80xf32, #tpu.memory_space<vmem>>, vector<1x80xf32>
    %448 = vector.shape_cast %447 : vector<1x80xf32> to vector<80xf32>
    %449 = vector.shape_cast %448 : vector<80xf32> to vector<1x1x80xf32>
    %450 = vector.broadcast %449 : vector<1x1x80xf32> to vector<2x20x80xf32>
    %451 = arith.mulf %446, %450 : vector<2x20x80xf32>
    %452 = arith.addf %445, %451 : vector<2x20x80xf32>
    %453 = vector.extract_strided_slice %4 {offsets = [0, 2, 0], sizes = [2, 20, 80], strides = [1, 1, 1]} : vector<2x24x96xf32> to vector<2x20x80xf32>
    %c10 = arith.constant 10 : index
    %c0_114 = arith.constant 0 : index
    %454 = vector.load %arg12[%c10, %c0_114] : memref<25x80xf32, #tpu.memory_space<vmem>>, vector<1x80xf32>
    %455 = vector.shape_cast %454 : vector<1x80xf32> to vector<80xf32>
    %456 = vector.shape_cast %455 : vector<80xf32> to vector<1x1x80xf32>
    %457 = vector.broadcast %456 : vector<1x1x80xf32> to vector<2x20x80xf32>
    %458 = arith.mulf %453, %457 : vector<2x20x80xf32>
    %459 = arith.addf %452, %458 : vector<2x20x80xf32>
    %460 = vector.extract_strided_slice %4 {offsets = [0, 2, 4], sizes = [2, 20, 80], strides = [1, 1, 1]} : vector<2x24x96xf32> to vector<2x20x80xf32>
    %c11 = arith.constant 11 : index
    %c0_115 = arith.constant 0 : index
    %461 = vector.load %arg12[%c11, %c0_115] : memref<25x80xf32, #tpu.memory_space<vmem>>, vector<1x80xf32>
    %462 = vector.shape_cast %461 : vector<1x80xf32> to vector<80xf32>
    %463 = vector.shape_cast %462 : vector<80xf32> to vector<1x1x80xf32>
    %464 = vector.broadcast %463 : vector<1x1x80xf32> to vector<2x20x80xf32>
    %465 = arith.mulf %460, %464 : vector<2x20x80xf32>
    %466 = arith.addf %459, %465 : vector<2x20x80xf32>
    %467 = vector.extract_strided_slice %4 {offsets = [0, 2, 8], sizes = [2, 20, 80], strides = [1, 1, 1]} : vector<2x24x96xf32> to vector<2x20x80xf32>
    %c12 = arith.constant 12 : index
    %c0_116 = arith.constant 0 : index
    %468 = vector.load %arg12[%c12, %c0_116] : memref<25x80xf32, #tpu.memory_space<vmem>>, vector<1x80xf32>
    %469 = vector.shape_cast %468 : vector<1x80xf32> to vector<80xf32>
    %470 = vector.shape_cast %469 : vector<80xf32> to vector<1x1x80xf32>
    %471 = vector.broadcast %470 : vector<1x1x80xf32> to vector<2x20x80xf32>
    %472 = arith.mulf %467, %471 : vector<2x20x80xf32>
    %473 = arith.addf %466, %472 : vector<2x20x80xf32>
    %474 = vector.extract_strided_slice %4 {offsets = [0, 2, 12], sizes = [2, 20, 80], strides = [1, 1, 1]} : vector<2x24x96xf32> to vector<2x20x80xf32>
    %c13 = arith.constant 13 : index
    %c0_117 = arith.constant 0 : index
    %475 = vector.load %arg12[%c13, %c0_117] : memref<25x80xf32, #tpu.memory_space<vmem>>, vector<1x80xf32>
    %476 = vector.shape_cast %475 : vector<1x80xf32> to vector<80xf32>
    %477 = vector.shape_cast %476 : vector<80xf32> to vector<1x1x80xf32>
    %478 = vector.broadcast %477 : vector<1x1x80xf32> to vector<2x20x80xf32>
    %479 = arith.mulf %474, %478 : vector<2x20x80xf32>
    %480 = arith.addf %473, %479 : vector<2x20x80xf32>
    %481 = vector.extract_strided_slice %4 {offsets = [0, 2, 16], sizes = [2, 20, 80], strides = [1, 1, 1]} : vector<2x24x96xf32> to vector<2x20x80xf32>
    %c14 = arith.constant 14 : index
    %c0_118 = arith.constant 0 : index
    %482 = vector.load %arg12[%c14, %c0_118] : memref<25x80xf32, #tpu.memory_space<vmem>>, vector<1x80xf32>
    %483 = vector.shape_cast %482 : vector<1x80xf32> to vector<80xf32>
    %484 = vector.shape_cast %483 : vector<80xf32> to vector<1x1x80xf32>
    %485 = vector.broadcast %484 : vector<1x1x80xf32> to vector<2x20x80xf32>
    %486 = arith.mulf %481, %485 : vector<2x20x80xf32>
    %487 = arith.addf %480, %486 : vector<2x20x80xf32>
    %488 = vector.extract_strided_slice %4 {offsets = [0, 3, 0], sizes = [2, 20, 80], strides = [1, 1, 1]} : vector<2x24x96xf32> to vector<2x20x80xf32>
    %c15 = arith.constant 15 : index
    %c0_119 = arith.constant 0 : index
    %489 = vector.load %arg12[%c15, %c0_119] : memref<25x80xf32, #tpu.memory_space<vmem>>, vector<1x80xf32>
    %490 = vector.shape_cast %489 : vector<1x80xf32> to vector<80xf32>
    %491 = vector.shape_cast %490 : vector<80xf32> to vector<1x1x80xf32>
    %492 = vector.broadcast %491 : vector<1x1x80xf32> to vector<2x20x80xf32>
    %493 = arith.mulf %488, %492 : vector<2x20x80xf32>
    %494 = arith.addf %487, %493 : vector<2x20x80xf32>
    %495 = vector.extract_strided_slice %4 {offsets = [0, 3, 4], sizes = [2, 20, 80], strides = [1, 1, 1]} : vector<2x24x96xf32> to vector<2x20x80xf32>
    %c16 = arith.constant 16 : index
    %c0_120 = arith.constant 0 : index
    %496 = vector.load %arg12[%c16, %c0_120] : memref<25x80xf32, #tpu.memory_space<vmem>>, vector<1x80xf32>
    %497 = vector.shape_cast %496 : vector<1x80xf32> to vector<80xf32>
    %498 = vector.shape_cast %497 : vector<80xf32> to vector<1x1x80xf32>
    %499 = vector.broadcast %498 : vector<1x1x80xf32> to vector<2x20x80xf32>
    %500 = arith.mulf %495, %499 : vector<2x20x80xf32>
    %501 = arith.addf %494, %500 : vector<2x20x80xf32>
    %502 = vector.extract_strided_slice %4 {offsets = [0, 3, 8], sizes = [2, 20, 80], strides = [1, 1, 1]} : vector<2x24x96xf32> to vector<2x20x80xf32>
    %c17 = arith.constant 17 : index
    %c0_121 = arith.constant 0 : index
    %503 = vector.load %arg12[%c17, %c0_121] : memref<25x80xf32, #tpu.memory_space<vmem>>, vector<1x80xf32>
    %504 = vector.shape_cast %503 : vector<1x80xf32> to vector<80xf32>
    %505 = vector.shape_cast %504 : vector<80xf32> to vector<1x1x80xf32>
    %506 = vector.broadcast %505 : vector<1x1x80xf32> to vector<2x20x80xf32>
    %507 = arith.mulf %502, %506 : vector<2x20x80xf32>
    %508 = arith.addf %501, %507 : vector<2x20x80xf32>
    %509 = vector.extract_strided_slice %4 {offsets = [0, 3, 12], sizes = [2, 20, 80], strides = [1, 1, 1]} : vector<2x24x96xf32> to vector<2x20x80xf32>
    %c18 = arith.constant 18 : index
    %c0_122 = arith.constant 0 : index
    %510 = vector.load %arg12[%c18, %c0_122] : memref<25x80xf32, #tpu.memory_space<vmem>>, vector<1x80xf32>
    %511 = vector.shape_cast %510 : vector<1x80xf32> to vector<80xf32>
    %512 = vector.shape_cast %511 : vector<80xf32> to vector<1x1x80xf32>
    %513 = vector.broadcast %512 : vector<1x1x80xf32> to vector<2x20x80xf32>
    %514 = arith.mulf %509, %513 : vector<2x20x80xf32>
    %515 = arith.addf %508, %514 : vector<2x20x80xf32>
    %516 = vector.extract_strided_slice %4 {offsets = [0, 3, 16], sizes = [2, 20, 80], strides = [1, 1, 1]} : vector<2x24x96xf32> to vector<2x20x80xf32>
    %c19 = arith.constant 19 : index
    %c0_123 = arith.constant 0 : index
    %517 = vector.load %arg12[%c19, %c0_123] : memref<25x80xf32, #tpu.memory_space<vmem>>, vector<1x80xf32>
    %518 = vector.shape_cast %517 : vector<1x80xf32> to vector<80xf32>
    %519 = vector.shape_cast %518 : vector<80xf32> to vector<1x1x80xf32>
    %520 = vector.broadcast %519 : vector<1x1x80xf32> to vector<2x20x80xf32>
    %521 = arith.mulf %516, %520 : vector<2x20x80xf32>
    %522 = arith.addf %515, %521 : vector<2x20x80xf32>
    %523 = vector.extract_strided_slice %4 {offsets = [0, 4, 0], sizes = [2, 20, 80], strides = [1, 1, 1]} : vector<2x24x96xf32> to vector<2x20x80xf32>
    %c20 = arith.constant 20 : index
    %c0_124 = arith.constant 0 : index
    %524 = vector.load %arg12[%c20, %c0_124] : memref<25x80xf32, #tpu.memory_space<vmem>>, vector<1x80xf32>
    %525 = vector.shape_cast %524 : vector<1x80xf32> to vector<80xf32>
    %526 = vector.shape_cast %525 : vector<80xf32> to vector<1x1x80xf32>
    %527 = vector.broadcast %526 : vector<1x1x80xf32> to vector<2x20x80xf32>
    %528 = arith.mulf %523, %527 : vector<2x20x80xf32>
    %529 = arith.addf %522, %528 : vector<2x20x80xf32>
    %530 = vector.extract_strided_slice %4 {offsets = [0, 4, 4], sizes = [2, 20, 80], strides = [1, 1, 1]} : vector<2x24x96xf32> to vector<2x20x80xf32>
    %c21 = arith.constant 21 : index
    %c0_125 = arith.constant 0 : index
    %531 = vector.load %arg12[%c21, %c0_125] : memref<25x80xf32, #tpu.memory_space<vmem>>, vector<1x80xf32>
    %532 = vector.shape_cast %531 : vector<1x80xf32> to vector<80xf32>
    %533 = vector.shape_cast %532 : vector<80xf32> to vector<1x1x80xf32>
    %534 = vector.broadcast %533 : vector<1x1x80xf32> to vector<2x20x80xf32>
    %535 = arith.mulf %530, %534 : vector<2x20x80xf32>
    %536 = arith.addf %529, %535 : vector<2x20x80xf32>
    %537 = vector.extract_strided_slice %4 {offsets = [0, 4, 8], sizes = [2, 20, 80], strides = [1, 1, 1]} : vector<2x24x96xf32> to vector<2x20x80xf32>
    %c22 = arith.constant 22 : index
    %c0_126 = arith.constant 0 : index
    %538 = vector.load %arg12[%c22, %c0_126] : memref<25x80xf32, #tpu.memory_space<vmem>>, vector<1x80xf32>
    %539 = vector.shape_cast %538 : vector<1x80xf32> to vector<80xf32>
    %540 = vector.shape_cast %539 : vector<80xf32> to vector<1x1x80xf32>
    %541 = vector.broadcast %540 : vector<1x1x80xf32> to vector<2x20x80xf32>
    %542 = arith.mulf %537, %541 : vector<2x20x80xf32>
    %543 = arith.addf %536, %542 : vector<2x20x80xf32>
    %544 = vector.extract_strided_slice %4 {offsets = [0, 4, 12], sizes = [2, 20, 80], strides = [1, 1, 1]} : vector<2x24x96xf32> to vector<2x20x80xf32>
    %c23 = arith.constant 23 : index
    %c0_127 = arith.constant 0 : index
    %545 = vector.load %arg12[%c23, %c0_127] : memref<25x80xf32, #tpu.memory_space<vmem>>, vector<1x80xf32>
    %546 = vector.shape_cast %545 : vector<1x80xf32> to vector<80xf32>
    %547 = vector.shape_cast %546 : vector<80xf32> to vector<1x1x80xf32>
    %548 = vector.broadcast %547 : vector<1x1x80xf32> to vector<2x20x80xf32>
    %549 = arith.mulf %544, %548 : vector<2x20x80xf32>
    %550 = arith.addf %543, %549 : vector<2x20x80xf32>
    %551 = vector.extract_strided_slice %4 {offsets = [0, 4, 16], sizes = [2, 20, 80], strides = [1, 1, 1]} : vector<2x24x96xf32> to vector<2x20x80xf32>
    %c24 = arith.constant 24 : index
    %c0_128 = arith.constant 0 : index
    %552 = vector.load %arg12[%c24, %c0_128] : memref<25x80xf32, #tpu.memory_space<vmem>>, vector<1x80xf32>
    %553 = vector.shape_cast %552 : vector<1x80xf32> to vector<80xf32>
    %554 = vector.shape_cast %553 : vector<80xf32> to vector<1x1x80xf32>
    %555 = vector.broadcast %554 : vector<1x1x80xf32> to vector<2x20x80xf32>
    %556 = arith.mulf %551, %555 : vector<2x20x80xf32>
    %557 = arith.addf %550, %556 : vector<2x20x80xf32>
    %c0_129 = arith.constant 0 : index
    %c0_130 = arith.constant 0 : index
    %558 = vector.load %arg13[%c0_129, %c0_130] : memref<80x80xf32, #tpu.memory_space<vmem>>, vector<80x80xf32>
    %559 = vector.extract_strided_slice %557 {offsets = [0, 0, 0], sizes = [1, 20, 80], strides = [1, 1, 1]} : vector<2x20x80xf32> to vector<1x20x80xf32>
    %560 = vector.shape_cast %559 : vector<1x20x80xf32> to vector<20x80xf32>
    %cst_131 = arith.constant dense<0.000000e+00> : vector<20x80xf32>
    %561 = tpu.matmul %560, %558, %cst_131 {dimension_numbers = #tpu.dot_dimension_numbers<[1], [0], [0], [1], [0, 0, 1, 1], [], []>} : vector<20x80xf32>, vector<80x80xf32>, vector<20x80xf32> -> vector<20x80xf32>
    %562 = vector.extract_strided_slice %557 {offsets = [1, 0, 0], sizes = [1, 20, 80], strides = [1, 1, 1]} : vector<2x20x80xf32> to vector<1x20x80xf32>
    %563 = vector.shape_cast %562 : vector<1x20x80xf32> to vector<20x80xf32>
    %cst_132 = arith.constant dense<0.000000e+00> : vector<20x80xf32>
    %564 = tpu.matmul %563, %558, %cst_132 {dimension_numbers = #tpu.dot_dimension_numbers<[1], [0], [0], [1], [0, 0, 1, 1], [], []>} : vector<20x80xf32>, vector<80x80xf32>, vector<20x80xf32> -> vector<20x80xf32>
    %565 = vector.shape_cast %561 : vector<20x80xf32> to vector<1x20x80xf32>
    %566 = vector.shape_cast %564 : vector<20x80xf32> to vector<1x20x80xf32>
    %567 = tpu.concatenate %565, %566 in 0 : vector<1x20x80xf32>, vector<1x20x80xf32> -> vector<2x20x80xf32>
    %568 = vector.extract_strided_slice %567 {offsets = [0, 2, 8], sizes = [2, 16, 64], strides = [1, 1, 1]} : vector<2x20x80xf32> to vector<2x16x64xf32>
    %c0_133 = arith.constant 0 : index
    %c0_134 = arith.constant 0 : index
    %569 = vector.load %arg7[%c0_133, %c0_134] : memref<64x80xf32, #tpu.memory_space<vmem>>, vector<64x80xf32>
    %cst_135 = arith.constant 0.000000e+00 : f32
    %570 = vector.broadcast %cst_135 : f32 to vector<1x64xf32>
    %cst_136 = arith.constant 0.000000e+00 : f32
    %571 = vector.broadcast %cst_136 : f32 to vector<1x64xf32>
    %572 = vector.extract_strided_slice %568 {offsets = [0, 0, 0], sizes = [1, 16, 64], strides = [1, 1, 1]} : vector<2x16x64xf32> to vector<1x16x64xf32>
    %573 = vector.shape_cast %572 : vector<1x16x64xf32> to vector<16x64xf32>
    %cst_137 = arith.constant dense<0.000000e+00> : vector<64xf32>
    %574 = vector.multi_reduction <add>, %573, %cst_137 [0] : vector<16x64xf32> to vector<64xf32>
    %575 = vector.shape_cast %574 : vector<64xf32> to vector<1x64xf32>
    %576 = arith.addf %570, %575 : vector<1x64xf32>
    %577 = arith.mulf %573, %573 : vector<16x64xf32>
    %cst_138 = arith.constant dense<0.000000e+00> : vector<64xf32>
    %578 = vector.multi_reduction <add>, %577, %cst_138 [0] : vector<16x64xf32> to vector<64xf32>
    %579 = vector.shape_cast %578 : vector<64xf32> to vector<1x64xf32>
    %580 = arith.addf %571, %579 : vector<1x64xf32>
    %581 = vector.extract_strided_slice %568 {offsets = [1, 0, 0], sizes = [1, 16, 64], strides = [1, 1, 1]} : vector<2x16x64xf32> to vector<1x16x64xf32>
    %582 = vector.shape_cast %581 : vector<1x16x64xf32> to vector<16x64xf32>
    %cst_139 = arith.constant dense<0.000000e+00> : vector<64xf32>
    %583 = vector.multi_reduction <add>, %582, %cst_139 [0] : vector<16x64xf32> to vector<64xf32>
    %584 = vector.shape_cast %583 : vector<64xf32> to vector<1x64xf32>
    %585 = arith.addf %576, %584 : vector<1x64xf32>
    %586 = arith.mulf %582, %582 : vector<16x64xf32>
    %cst_140 = arith.constant dense<0.000000e+00> : vector<64xf32>
    %587 = vector.multi_reduction <add>, %586, %cst_140 [0] : vector<16x64xf32> to vector<64xf32>
    %588 = vector.shape_cast %587 : vector<64xf32> to vector<1x64xf32>
    %589 = arith.addf %580, %588 : vector<1x64xf32>
    %cst_141 = arith.constant dense<0.000000e+00> : vector<1x80xf32>
    %590 = tpu.matmul %585, %569, %cst_141 {dimension_numbers = #tpu.dot_dimension_numbers<[1], [0], [0], [1], [0, 0, 1, 1], [], []>} : vector<1x64xf32>, vector<64x80xf32>, vector<1x80xf32> -> vector<1x80xf32>
    %cst_142 = arith.constant dense<0.000000e+00> : vector<1x80xf32>
    %591 = tpu.matmul %589, %569, %cst_142 {dimension_numbers = #tpu.dot_dimension_numbers<[1], [0], [0], [1], [0, 0, 1, 1], [], []>} : vector<1x64xf32>, vector<64x80xf32>, vector<1x80xf32> -> vector<1x80xf32>
    %592 = arith.mulf %590, %590 : vector<1x80xf32>
    %593 = arith.subf %591, %592 : vector<1x80xf32>
    %cst_143 = arith.constant 0.000000e+00 : f32
    %594 = vector.broadcast %cst_143 : f32 to vector<1x80xf32>
    %595 = arith.maximumf %593, %594 : vector<1x80xf32>
    %cst_144 = arith.constant 9.99999974E-6 : f32
    %596 = vector.broadcast %cst_144 : f32 to vector<1x80xf32>
    %597 = arith.addf %595, %596 : vector<1x80xf32>
    %598 = math.rsqrt %597 : vector<1x80xf32>
    %599 = vector.shape_cast %590 : vector<1x80xf32> to vector<1x1x80xf32>
    %600 = vector.broadcast %599 : vector<1x1x80xf32> to vector<2x20x80xf32>
    %601 = arith.subf %567, %600 : vector<2x20x80xf32>
    %602 = vector.shape_cast %598 : vector<1x80xf32> to vector<1x1x80xf32>
    %603 = vector.broadcast %602 : vector<1x1x80xf32> to vector<2x20x80xf32>
    %604 = arith.mulf %601, %603 : vector<2x20x80xf32>
    %605 = vector.extract_strided_slice %1 {offsets = [2, 8], sizes = [20, 80], strides = [1, 1]} : vector<24x96xf32> to vector<20x80xf32>
    %cst_145 = arith.constant 0.000000e+00 : f32
    %606 = vector.broadcast %cst_145 : f32 to vector<2x20x80xf32>
    %607 = arith.maximumf %604, %606 : vector<2x20x80xf32>
    %608 = vector.shape_cast %605 : vector<20x80xf32> to vector<1x20x80xf32>
    %609 = vector.broadcast %608 : vector<1x20x80xf32> to vector<2x20x80xf32>
    %610 = arith.mulf %607, %609 : vector<2x20x80xf32>
    %611 = vector.extract_strided_slice %610 {offsets = [0, 0, 0], sizes = [2, 16, 64], strides = [1, 1, 1]} : vector<2x20x80xf32> to vector<2x16x64xf32>
    %c0_146 = arith.constant 0 : index
    %c0_147 = arith.constant 0 : index
    %612 = vector.load %arg14[%c0_146, %c0_147] : memref<25x64xf32, #tpu.memory_space<vmem>>, vector<1x64xf32>
    %613 = vector.shape_cast %612 : vector<1x64xf32> to vector<64xf32>
    %614 = vector.shape_cast %613 : vector<64xf32> to vector<1x1x64xf32>
    %615 = vector.broadcast %614 : vector<1x1x64xf32> to vector<2x16x64xf32>
    %616 = arith.mulf %611, %615 : vector<2x16x64xf32>
    %617 = vector.extract_strided_slice %610 {offsets = [0, 0, 4], sizes = [2, 16, 64], strides = [1, 1, 1]} : vector<2x20x80xf32> to vector<2x16x64xf32>
    %c1_148 = arith.constant 1 : index
    %c0_149 = arith.constant 0 : index
    %618 = vector.load %arg14[%c1_148, %c0_149] : memref<25x64xf32, #tpu.memory_space<vmem>>, vector<1x64xf32>
    %619 = vector.shape_cast %618 : vector<1x64xf32> to vector<64xf32>
    %620 = vector.shape_cast %619 : vector<64xf32> to vector<1x1x64xf32>
    %621 = vector.broadcast %620 : vector<1x1x64xf32> to vector<2x16x64xf32>
    %622 = arith.mulf %617, %621 : vector<2x16x64xf32>
    %623 = arith.addf %616, %622 : vector<2x16x64xf32>
    %624 = vector.extract_strided_slice %610 {offsets = [0, 0, 8], sizes = [2, 16, 64], strides = [1, 1, 1]} : vector<2x20x80xf32> to vector<2x16x64xf32>
    %c2_150 = arith.constant 2 : index
    %c0_151 = arith.constant 0 : index
    %625 = vector.load %arg14[%c2_150, %c0_151] : memref<25x64xf32, #tpu.memory_space<vmem>>, vector<1x64xf32>
    %626 = vector.shape_cast %625 : vector<1x64xf32> to vector<64xf32>
    %627 = vector.shape_cast %626 : vector<64xf32> to vector<1x1x64xf32>
    %628 = vector.broadcast %627 : vector<1x1x64xf32> to vector<2x16x64xf32>
    %629 = arith.mulf %624, %628 : vector<2x16x64xf32>
    %630 = arith.addf %623, %629 : vector<2x16x64xf32>
    %631 = vector.extract_strided_slice %610 {offsets = [0, 0, 12], sizes = [2, 16, 64], strides = [1, 1, 1]} : vector<2x20x80xf32> to vector<2x16x64xf32>
    %c3_152 = arith.constant 3 : index
    %c0_153 = arith.constant 0 : index
    %632 = vector.load %arg14[%c3_152, %c0_153] : memref<25x64xf32, #tpu.memory_space<vmem>>, vector<1x64xf32>
    %633 = vector.shape_cast %632 : vector<1x64xf32> to vector<64xf32>
    %634 = vector.shape_cast %633 : vector<64xf32> to vector<1x1x64xf32>
    %635 = vector.broadcast %634 : vector<1x1x64xf32> to vector<2x16x64xf32>
    %636 = arith.mulf %631, %635 : vector<2x16x64xf32>
    %637 = arith.addf %630, %636 : vector<2x16x64xf32>
    %638 = vector.extract_strided_slice %610 {offsets = [0, 0, 16], sizes = [2, 16, 64], strides = [1, 1, 1]} : vector<2x20x80xf32> to vector<2x16x64xf32>
    %c4_154 = arith.constant 4 : index
    %c0_155 = arith.constant 0 : index
    %639 = vector.load %arg14[%c4_154, %c0_155] : memref<25x64xf32, #tpu.memory_space<vmem>>, vector<1x64xf32>
    %640 = vector.shape_cast %639 : vector<1x64xf32> to vector<64xf32>
    %641 = vector.shape_cast %640 : vector<64xf32> to vector<1x1x64xf32>
    %642 = vector.broadcast %641 : vector<1x1x64xf32> to vector<2x16x64xf32>
    %643 = arith.mulf %638, %642 : vector<2x16x64xf32>
    %644 = arith.addf %637, %643 : vector<2x16x64xf32>
    %645 = vector.extract_strided_slice %610 {offsets = [0, 1, 0], sizes = [2, 16, 64], strides = [1, 1, 1]} : vector<2x20x80xf32> to vector<2x16x64xf32>
    %c5_156 = arith.constant 5 : index
    %c0_157 = arith.constant 0 : index
    %646 = vector.load %arg14[%c5_156, %c0_157] : memref<25x64xf32, #tpu.memory_space<vmem>>, vector<1x64xf32>
    %647 = vector.shape_cast %646 : vector<1x64xf32> to vector<64xf32>
    %648 = vector.shape_cast %647 : vector<64xf32> to vector<1x1x64xf32>
    %649 = vector.broadcast %648 : vector<1x1x64xf32> to vector<2x16x64xf32>
    %650 = arith.mulf %645, %649 : vector<2x16x64xf32>
    %651 = arith.addf %644, %650 : vector<2x16x64xf32>
    %652 = vector.extract_strided_slice %610 {offsets = [0, 1, 4], sizes = [2, 16, 64], strides = [1, 1, 1]} : vector<2x20x80xf32> to vector<2x16x64xf32>
    %c6_158 = arith.constant 6 : index
    %c0_159 = arith.constant 0 : index
    %653 = vector.load %arg14[%c6_158, %c0_159] : memref<25x64xf32, #tpu.memory_space<vmem>>, vector<1x64xf32>
    %654 = vector.shape_cast %653 : vector<1x64xf32> to vector<64xf32>
    %655 = vector.shape_cast %654 : vector<64xf32> to vector<1x1x64xf32>
    %656 = vector.broadcast %655 : vector<1x1x64xf32> to vector<2x16x64xf32>
    %657 = arith.mulf %652, %656 : vector<2x16x64xf32>
    %658 = arith.addf %651, %657 : vector<2x16x64xf32>
    %659 = vector.extract_strided_slice %610 {offsets = [0, 1, 8], sizes = [2, 16, 64], strides = [1, 1, 1]} : vector<2x20x80xf32> to vector<2x16x64xf32>
    %c7_160 = arith.constant 7 : index
    %c0_161 = arith.constant 0 : index
    %660 = vector.load %arg14[%c7_160, %c0_161] : memref<25x64xf32, #tpu.memory_space<vmem>>, vector<1x64xf32>
    %661 = vector.shape_cast %660 : vector<1x64xf32> to vector<64xf32>
    %662 = vector.shape_cast %661 : vector<64xf32> to vector<1x1x64xf32>
    %663 = vector.broadcast %662 : vector<1x1x64xf32> to vector<2x16x64xf32>
    %664 = arith.mulf %659, %663 : vector<2x16x64xf32>
    %665 = arith.addf %658, %664 : vector<2x16x64xf32>
    %666 = vector.extract_strided_slice %610 {offsets = [0, 1, 12], sizes = [2, 16, 64], strides = [1, 1, 1]} : vector<2x20x80xf32> to vector<2x16x64xf32>
    %c8_162 = arith.constant 8 : index
    %c0_163 = arith.constant 0 : index
    %667 = vector.load %arg14[%c8_162, %c0_163] : memref<25x64xf32, #tpu.memory_space<vmem>>, vector<1x64xf32>
    %668 = vector.shape_cast %667 : vector<1x64xf32> to vector<64xf32>
    %669 = vector.shape_cast %668 : vector<64xf32> to vector<1x1x64xf32>
    %670 = vector.broadcast %669 : vector<1x1x64xf32> to vector<2x16x64xf32>
    %671 = arith.mulf %666, %670 : vector<2x16x64xf32>
    %672 = arith.addf %665, %671 : vector<2x16x64xf32>
    %673 = vector.extract_strided_slice %610 {offsets = [0, 1, 16], sizes = [2, 16, 64], strides = [1, 1, 1]} : vector<2x20x80xf32> to vector<2x16x64xf32>
    %c9_164 = arith.constant 9 : index
    %c0_165 = arith.constant 0 : index
    %674 = vector.load %arg14[%c9_164, %c0_165] : memref<25x64xf32, #tpu.memory_space<vmem>>, vector<1x64xf32>
    %675 = vector.shape_cast %674 : vector<1x64xf32> to vector<64xf32>
    %676 = vector.shape_cast %675 : vector<64xf32> to vector<1x1x64xf32>
    %677 = vector.broadcast %676 : vector<1x1x64xf32> to vector<2x16x64xf32>
    %678 = arith.mulf %673, %677 : vector<2x16x64xf32>
    %679 = arith.addf %672, %678 : vector<2x16x64xf32>
    %680 = vector.extract_strided_slice %610 {offsets = [0, 2, 0], sizes = [2, 16, 64], strides = [1, 1, 1]} : vector<2x20x80xf32> to vector<2x16x64xf32>
    %c10_166 = arith.constant 10 : index
    %c0_167 = arith.constant 0 : index
    %681 = vector.load %arg14[%c10_166, %c0_167] : memref<25x64xf32, #tpu.memory_space<vmem>>, vector<1x64xf32>
    %682 = vector.shape_cast %681 : vector<1x64xf32> to vector<64xf32>
    %683 = vector.shape_cast %682 : vector<64xf32> to vector<1x1x64xf32>
    %684 = vector.broadcast %683 : vector<1x1x64xf32> to vector<2x16x64xf32>
    %685 = arith.mulf %680, %684 : vector<2x16x64xf32>
    %686 = arith.addf %679, %685 : vector<2x16x64xf32>
    %687 = vector.extract_strided_slice %610 {offsets = [0, 2, 4], sizes = [2, 16, 64], strides = [1, 1, 1]} : vector<2x20x80xf32> to vector<2x16x64xf32>
    %c11_168 = arith.constant 11 : index
    %c0_169 = arith.constant 0 : index
    %688 = vector.load %arg14[%c11_168, %c0_169] : memref<25x64xf32, #tpu.memory_space<vmem>>, vector<1x64xf32>
    %689 = vector.shape_cast %688 : vector<1x64xf32> to vector<64xf32>
    %690 = vector.shape_cast %689 : vector<64xf32> to vector<1x1x64xf32>
    %691 = vector.broadcast %690 : vector<1x1x64xf32> to vector<2x16x64xf32>
    %692 = arith.mulf %687, %691 : vector<2x16x64xf32>
    %693 = arith.addf %686, %692 : vector<2x16x64xf32>
    %694 = vector.extract_strided_slice %610 {offsets = [0, 2, 8], sizes = [2, 16, 64], strides = [1, 1, 1]} : vector<2x20x80xf32> to vector<2x16x64xf32>
    %c12_170 = arith.constant 12 : index
    %c0_171 = arith.constant 0 : index
    %695 = vector.load %arg14[%c12_170, %c0_171] : memref<25x64xf32, #tpu.memory_space<vmem>>, vector<1x64xf32>
    %696 = vector.shape_cast %695 : vector<1x64xf32> to vector<64xf32>
    %697 = vector.shape_cast %696 : vector<64xf32> to vector<1x1x64xf32>
    %698 = vector.broadcast %697 : vector<1x1x64xf32> to vector<2x16x64xf32>
    %699 = arith.mulf %694, %698 : vector<2x16x64xf32>
    %700 = arith.addf %693, %699 : vector<2x16x64xf32>
    %701 = vector.extract_strided_slice %610 {offsets = [0, 2, 12], sizes = [2, 16, 64], strides = [1, 1, 1]} : vector<2x20x80xf32> to vector<2x16x64xf32>
    %c13_172 = arith.constant 13 : index
    %c0_173 = arith.constant 0 : index
    %702 = vector.load %arg14[%c13_172, %c0_173] : memref<25x64xf32, #tpu.memory_space<vmem>>, vector<1x64xf32>
    %703 = vector.shape_cast %702 : vector<1x64xf32> to vector<64xf32>
    %704 = vector.shape_cast %703 : vector<64xf32> to vector<1x1x64xf32>
    %705 = vector.broadcast %704 : vector<1x1x64xf32> to vector<2x16x64xf32>
    %706 = arith.mulf %701, %705 : vector<2x16x64xf32>
    %707 = arith.addf %700, %706 : vector<2x16x64xf32>
    %708 = vector.extract_strided_slice %610 {offsets = [0, 2, 16], sizes = [2, 16, 64], strides = [1, 1, 1]} : vector<2x20x80xf32> to vector<2x16x64xf32>
    %c14_174 = arith.constant 14 : index
    %c0_175 = arith.constant 0 : index
    %709 = vector.load %arg14[%c14_174, %c0_175] : memref<25x64xf32, #tpu.memory_space<vmem>>, vector<1x64xf32>
    %710 = vector.shape_cast %709 : vector<1x64xf32> to vector<64xf32>
    %711 = vector.shape_cast %710 : vector<64xf32> to vector<1x1x64xf32>
    %712 = vector.broadcast %711 : vector<1x1x64xf32> to vector<2x16x64xf32>
    %713 = arith.mulf %708, %712 : vector<2x16x64xf32>
    %714 = arith.addf %707, %713 : vector<2x16x64xf32>
    %715 = vector.extract_strided_slice %610 {offsets = [0, 3, 0], sizes = [2, 16, 64], strides = [1, 1, 1]} : vector<2x20x80xf32> to vector<2x16x64xf32>
    %c15_176 = arith.constant 15 : index
    %c0_177 = arith.constant 0 : index
    %716 = vector.load %arg14[%c15_176, %c0_177] : memref<25x64xf32, #tpu.memory_space<vmem>>, vector<1x64xf32>
    %717 = vector.shape_cast %716 : vector<1x64xf32> to vector<64xf32>
    %718 = vector.shape_cast %717 : vector<64xf32> to vector<1x1x64xf32>
    %719 = vector.broadcast %718 : vector<1x1x64xf32> to vector<2x16x64xf32>
    %720 = arith.mulf %715, %719 : vector<2x16x64xf32>
    %721 = arith.addf %714, %720 : vector<2x16x64xf32>
    %722 = vector.extract_strided_slice %610 {offsets = [0, 3, 4], sizes = [2, 16, 64], strides = [1, 1, 1]} : vector<2x20x80xf32> to vector<2x16x64xf32>
    %c16_178 = arith.constant 16 : index
    %c0_179 = arith.constant 0 : index
    %723 = vector.load %arg14[%c16_178, %c0_179] : memref<25x64xf32, #tpu.memory_space<vmem>>, vector<1x64xf32>
    %724 = vector.shape_cast %723 : vector<1x64xf32> to vector<64xf32>
    %725 = vector.shape_cast %724 : vector<64xf32> to vector<1x1x64xf32>
    %726 = vector.broadcast %725 : vector<1x1x64xf32> to vector<2x16x64xf32>
    %727 = arith.mulf %722, %726 : vector<2x16x64xf32>
    %728 = arith.addf %721, %727 : vector<2x16x64xf32>
    %729 = vector.extract_strided_slice %610 {offsets = [0, 3, 8], sizes = [2, 16, 64], strides = [1, 1, 1]} : vector<2x20x80xf32> to vector<2x16x64xf32>
    %c17_180 = arith.constant 17 : index
    %c0_181 = arith.constant 0 : index
    %730 = vector.load %arg14[%c17_180, %c0_181] : memref<25x64xf32, #tpu.memory_space<vmem>>, vector<1x64xf32>
    %731 = vector.shape_cast %730 : vector<1x64xf32> to vector<64xf32>
    %732 = vector.shape_cast %731 : vector<64xf32> to vector<1x1x64xf32>
    %733 = vector.broadcast %732 : vector<1x1x64xf32> to vector<2x16x64xf32>
    %734 = arith.mulf %729, %733 : vector<2x16x64xf32>
    %735 = arith.addf %728, %734 : vector<2x16x64xf32>
    %736 = vector.extract_strided_slice %610 {offsets = [0, 3, 12], sizes = [2, 16, 64], strides = [1, 1, 1]} : vector<2x20x80xf32> to vector<2x16x64xf32>
    %c18_182 = arith.constant 18 : index
    %c0_183 = arith.constant 0 : index
    %737 = vector.load %arg14[%c18_182, %c0_183] : memref<25x64xf32, #tpu.memory_space<vmem>>, vector<1x64xf32>
    %738 = vector.shape_cast %737 : vector<1x64xf32> to vector<64xf32>
    %739 = vector.shape_cast %738 : vector<64xf32> to vector<1x1x64xf32>
    %740 = vector.broadcast %739 : vector<1x1x64xf32> to vector<2x16x64xf32>
    %741 = arith.mulf %736, %740 : vector<2x16x64xf32>
    %742 = arith.addf %735, %741 : vector<2x16x64xf32>
    %743 = vector.extract_strided_slice %610 {offsets = [0, 3, 16], sizes = [2, 16, 64], strides = [1, 1, 1]} : vector<2x20x80xf32> to vector<2x16x64xf32>
    %c19_184 = arith.constant 19 : index
    %c0_185 = arith.constant 0 : index
    %744 = vector.load %arg14[%c19_184, %c0_185] : memref<25x64xf32, #tpu.memory_space<vmem>>, vector<1x64xf32>
    %745 = vector.shape_cast %744 : vector<1x64xf32> to vector<64xf32>
    %746 = vector.shape_cast %745 : vector<64xf32> to vector<1x1x64xf32>
    %747 = vector.broadcast %746 : vector<1x1x64xf32> to vector<2x16x64xf32>
    %748 = arith.mulf %743, %747 : vector<2x16x64xf32>
    %749 = arith.addf %742, %748 : vector<2x16x64xf32>
    %750 = vector.extract_strided_slice %610 {offsets = [0, 4, 0], sizes = [2, 16, 64], strides = [1, 1, 1]} : vector<2x20x80xf32> to vector<2x16x64xf32>
    %c20_186 = arith.constant 20 : index
    %c0_187 = arith.constant 0 : index
    %751 = vector.load %arg14[%c20_186, %c0_187] : memref<25x64xf32, #tpu.memory_space<vmem>>, vector<1x64xf32>
    %752 = vector.shape_cast %751 : vector<1x64xf32> to vector<64xf32>
    %753 = vector.shape_cast %752 : vector<64xf32> to vector<1x1x64xf32>
    %754 = vector.broadcast %753 : vector<1x1x64xf32> to vector<2x16x64xf32>
    %755 = arith.mulf %750, %754 : vector<2x16x64xf32>
    %756 = arith.addf %749, %755 : vector<2x16x64xf32>
    %757 = vector.extract_strided_slice %610 {offsets = [0, 4, 4], sizes = [2, 16, 64], strides = [1, 1, 1]} : vector<2x20x80xf32> to vector<2x16x64xf32>
    %c21_188 = arith.constant 21 : index
    %c0_189 = arith.constant 0 : index
    %758 = vector.load %arg14[%c21_188, %c0_189] : memref<25x64xf32, #tpu.memory_space<vmem>>, vector<1x64xf32>
    %759 = vector.shape_cast %758 : vector<1x64xf32> to vector<64xf32>
    %760 = vector.shape_cast %759 : vector<64xf32> to vector<1x1x64xf32>
    %761 = vector.broadcast %760 : vector<1x1x64xf32> to vector<2x16x64xf32>
    %762 = arith.mulf %757, %761 : vector<2x16x64xf32>
    %763 = arith.addf %756, %762 : vector<2x16x64xf32>
    %764 = vector.extract_strided_slice %610 {offsets = [0, 4, 8], sizes = [2, 16, 64], strides = [1, 1, 1]} : vector<2x20x80xf32> to vector<2x16x64xf32>
    %c22_190 = arith.constant 22 : index
    %c0_191 = arith.constant 0 : index
    %765 = vector.load %arg14[%c22_190, %c0_191] : memref<25x64xf32, #tpu.memory_space<vmem>>, vector<1x64xf32>
    %766 = vector.shape_cast %765 : vector<1x64xf32> to vector<64xf32>
    %767 = vector.shape_cast %766 : vector<64xf32> to vector<1x1x64xf32>
    %768 = vector.broadcast %767 : vector<1x1x64xf32> to vector<2x16x64xf32>
    %769 = arith.mulf %764, %768 : vector<2x16x64xf32>
    %770 = arith.addf %763, %769 : vector<2x16x64xf32>
    %771 = vector.extract_strided_slice %610 {offsets = [0, 4, 12], sizes = [2, 16, 64], strides = [1, 1, 1]} : vector<2x20x80xf32> to vector<2x16x64xf32>
    %c23_192 = arith.constant 23 : index
    %c0_193 = arith.constant 0 : index
    %772 = vector.load %arg14[%c23_192, %c0_193] : memref<25x64xf32, #tpu.memory_space<vmem>>, vector<1x64xf32>
    %773 = vector.shape_cast %772 : vector<1x64xf32> to vector<64xf32>
    %774 = vector.shape_cast %773 : vector<64xf32> to vector<1x1x64xf32>
    %775 = vector.broadcast %774 : vector<1x1x64xf32> to vector<2x16x64xf32>
    %776 = arith.mulf %771, %775 : vector<2x16x64xf32>
    %777 = arith.addf %770, %776 : vector<2x16x64xf32>
    %778 = vector.extract_strided_slice %610 {offsets = [0, 4, 16], sizes = [2, 16, 64], strides = [1, 1, 1]} : vector<2x20x80xf32> to vector<2x16x64xf32>
    %c24_194 = arith.constant 24 : index
    %c0_195 = arith.constant 0 : index
    %779 = vector.load %arg14[%c24_194, %c0_195] : memref<25x64xf32, #tpu.memory_space<vmem>>, vector<1x64xf32>
    %780 = vector.shape_cast %779 : vector<1x64xf32> to vector<64xf32>
    %781 = vector.shape_cast %780 : vector<64xf32> to vector<1x1x64xf32>
    %782 = vector.broadcast %781 : vector<1x1x64xf32> to vector<2x16x64xf32>
    %783 = arith.mulf %778, %782 : vector<2x16x64xf32>
    %784 = arith.addf %777, %783 : vector<2x16x64xf32>
    %c0_196 = arith.constant 0 : index
    %c0_197 = arith.constant 0 : index
    %785 = vector.load %arg15[%c0_196, %c0_197] : memref<64x64xf32, #tpu.memory_space<vmem>>, vector<64x64xf32>
    %786 = vector.extract_strided_slice %784 {offsets = [0, 0, 0], sizes = [1, 16, 64], strides = [1, 1, 1]} : vector<2x16x64xf32> to vector<1x16x64xf32>
    %787 = vector.shape_cast %786 : vector<1x16x64xf32> to vector<16x64xf32>
    %cst_198 = arith.constant dense<0.000000e+00> : vector<16x64xf32>
    %788 = tpu.matmul %787, %785, %cst_198 {dimension_numbers = #tpu.dot_dimension_numbers<[1], [0], [0], [1], [0, 0, 1, 1], [], []>} : vector<16x64xf32>, vector<64x64xf32>, vector<16x64xf32> -> vector<16x64xf32>
    %789 = vector.extract_strided_slice %784 {offsets = [1, 0, 0], sizes = [1, 16, 64], strides = [1, 1, 1]} : vector<2x16x64xf32> to vector<1x16x64xf32>
    %790 = vector.shape_cast %789 : vector<1x16x64xf32> to vector<16x64xf32>
    %cst_199 = arith.constant dense<0.000000e+00> : vector<16x64xf32>
    %791 = tpu.matmul %790, %785, %cst_199 {dimension_numbers = #tpu.dot_dimension_numbers<[1], [0], [0], [1], [0, 0, 1, 1], [], []>} : vector<16x64xf32>, vector<64x64xf32>, vector<16x64xf32> -> vector<16x64xf32>
    %792 = vector.shape_cast %788 : vector<16x64xf32> to vector<1x16x64xf32>
    %793 = vector.shape_cast %791 : vector<16x64xf32> to vector<1x16x64xf32>
    %794 = tpu.concatenate %792, %793 in 0 : vector<1x16x64xf32>, vector<1x16x64xf32> -> vector<2x16x64xf32>
    %cst_200 = arith.constant 0.000000e+00 : f32
    %795 = vector.broadcast %cst_200 : f32 to vector<1x64xf32>
    %cst_201 = arith.constant 0.000000e+00 : f32
    %796 = vector.broadcast %cst_201 : f32 to vector<1x64xf32>
    %797 = vector.extract_strided_slice %794 {offsets = [0, 0, 0], sizes = [1, 16, 64], strides = [1, 1, 1]} : vector<2x16x64xf32> to vector<1x16x64xf32>
    %798 = vector.shape_cast %797 : vector<1x16x64xf32> to vector<16x64xf32>
    %cst_202 = arith.constant dense<0.000000e+00> : vector<64xf32>
    %799 = vector.multi_reduction <add>, %798, %cst_202 [0] : vector<16x64xf32> to vector<64xf32>
    %800 = vector.shape_cast %799 : vector<64xf32> to vector<1x64xf32>
    %801 = arith.addf %795, %800 : vector<1x64xf32>
    %802 = arith.mulf %798, %798 : vector<16x64xf32>
    %cst_203 = arith.constant dense<0.000000e+00> : vector<64xf32>
    %803 = vector.multi_reduction <add>, %802, %cst_203 [0] : vector<16x64xf32> to vector<64xf32>
    %804 = vector.shape_cast %803 : vector<64xf32> to vector<1x64xf32>
    %805 = arith.addf %796, %804 : vector<1x64xf32>
    %806 = vector.extract_strided_slice %794 {offsets = [1, 0, 0], sizes = [1, 16, 64], strides = [1, 1, 1]} : vector<2x16x64xf32> to vector<1x16x64xf32>
    %807 = vector.shape_cast %806 : vector<1x16x64xf32> to vector<16x64xf32>
    %cst_204 = arith.constant dense<0.000000e+00> : vector<64xf32>
    %808 = vector.multi_reduction <add>, %807, %cst_204 [0] : vector<16x64xf32> to vector<64xf32>
    %809 = vector.shape_cast %808 : vector<64xf32> to vector<1x64xf32>
    %810 = arith.addf %801, %809 : vector<1x64xf32>
    %811 = arith.mulf %807, %807 : vector<16x64xf32>
    %cst_205 = arith.constant dense<0.000000e+00> : vector<64xf32>
    %812 = vector.multi_reduction <add>, %811, %cst_205 [0] : vector<16x64xf32> to vector<64xf32>
    %813 = vector.shape_cast %812 : vector<64xf32> to vector<1x64xf32>
    %814 = arith.addf %805, %813 : vector<1x64xf32>
    %cst_206 = arith.constant dense<0.000000e+00> : vector<1x64xf32>
    %815 = tpu.matmul %810, %2, %cst_206 {dimension_numbers = #tpu.dot_dimension_numbers<[1], [0], [0], [1], [0, 0, 1, 1], [], []>} : vector<1x64xf32>, vector<64x64xf32>, vector<1x64xf32> -> vector<1x64xf32>
    %cst_207 = arith.constant dense<0.000000e+00> : vector<1x64xf32>
    %816 = tpu.matmul %814, %2, %cst_207 {dimension_numbers = #tpu.dot_dimension_numbers<[1], [0], [0], [1], [0, 0, 1, 1], [], []>} : vector<1x64xf32>, vector<64x64xf32>, vector<1x64xf32> -> vector<1x64xf32>
    %817 = arith.mulf %815, %815 : vector<1x64xf32>
    %818 = arith.subf %816, %817 : vector<1x64xf32>
    %cst_208 = arith.constant 0.000000e+00 : f32
    %819 = vector.broadcast %cst_208 : f32 to vector<1x64xf32>
    %820 = arith.maximumf %818, %819 : vector<1x64xf32>
    %cst_209 = arith.constant 9.99999974E-6 : f32
    %821 = vector.broadcast %cst_209 : f32 to vector<1x64xf32>
    %822 = arith.addf %820, %821 : vector<1x64xf32>
    %823 = math.rsqrt %822 : vector<1x64xf32>
    %824 = vector.broadcast %383 : f32 to vector<1x64xf32>
    %825 = arith.mulf %823, %824 : vector<1x64xf32>
    %826 = vector.shape_cast %815 : vector<1x64xf32> to vector<1x1x64xf32>
    %827 = vector.broadcast %826 : vector<1x1x64xf32> to vector<2x16x64xf32>
    %828 = arith.subf %794, %827 : vector<2x16x64xf32>
    %829 = vector.shape_cast %825 : vector<1x64xf32> to vector<1x1x64xf32>
    %830 = vector.broadcast %829 : vector<1x1x64xf32> to vector<2x16x64xf32>
    %831 = arith.mulf %828, %830 : vector<2x16x64xf32>
    %832 = arith.addf %382, %831 : vector<2x16x64xf32>
    %c6_210 = arith.constant 6 : index
    %833 = memref.load %arg1[%c6_210] : memref<8xf32, #tpu.memory_space<smem>>
    %834 = vector.extract_strided_slice %4 {offsets = [0, 2, 8], sizes = [2, 16, 64], strides = [1, 1, 1]} : vector<2x24x96xf32> to vector<2x16x64xf32>
    %c0_211 = arith.constant 0 : index
    %c0_212 = arith.constant 0 : index
    %835 = vector.load %arg16[%c0_211, %c0_212] : memref<9x64xf32, #tpu.memory_space<vmem>>, vector<1x64xf32>
    %836 = vector.shape_cast %835 : vector<1x64xf32> to vector<64xf32>
    %837 = vector.shape_cast %836 : vector<64xf32> to vector<1x1x64xf32>
    %838 = vector.broadcast %837 : vector<1x1x64xf32> to vector<2x16x64xf32>
    %839 = arith.mulf %834, %838 : vector<2x16x64xf32>
    %840 = vector.extract_strided_slice %4 {offsets = [0, 2, 16], sizes = [2, 16, 64], strides = [1, 1, 1]} : vector<2x24x96xf32> to vector<2x16x64xf32>
    %c1_213 = arith.constant 1 : index
    %c0_214 = arith.constant 0 : index
    %841 = vector.load %arg16[%c1_213, %c0_214] : memref<9x64xf32, #tpu.memory_space<vmem>>, vector<1x64xf32>
    %842 = vector.shape_cast %841 : vector<1x64xf32> to vector<64xf32>
    %843 = vector.shape_cast %842 : vector<64xf32> to vector<1x1x64xf32>
    %844 = vector.broadcast %843 : vector<1x1x64xf32> to vector<2x16x64xf32>
    %845 = arith.mulf %840, %844 : vector<2x16x64xf32>
    %846 = arith.addf %839, %845 : vector<2x16x64xf32>
    %847 = vector.extract_strided_slice %4 {offsets = [0, 2, 24], sizes = [2, 16, 64], strides = [1, 1, 1]} : vector<2x24x96xf32> to vector<2x16x64xf32>
    %c2_215 = arith.constant 2 : index
    %c0_216 = arith.constant 0 : index
    %848 = vector.load %arg16[%c2_215, %c0_216] : memref<9x64xf32, #tpu.memory_space<vmem>>, vector<1x64xf32>
    %849 = vector.shape_cast %848 : vector<1x64xf32> to vector<64xf32>
    %850 = vector.shape_cast %849 : vector<64xf32> to vector<1x1x64xf32>
    %851 = vector.broadcast %850 : vector<1x1x64xf32> to vector<2x16x64xf32>
    %852 = arith.mulf %847, %851 : vector<2x16x64xf32>
    %853 = arith.addf %846, %852 : vector<2x16x64xf32>
    %854 = vector.extract_strided_slice %4 {offsets = [0, 4, 8], sizes = [2, 16, 64], strides = [1, 1, 1]} : vector<2x24x96xf32> to vector<2x16x64xf32>
    %c3_217 = arith.constant 3 : index
    %c0_218 = arith.constant 0 : index
    %855 = vector.load %arg16[%c3_217, %c0_218] : memref<9x64xf32, #tpu.memory_space<vmem>>, vector<1x64xf32>
    %856 = vector.shape_cast %855 : vector<1x64xf32> to vector<64xf32>
    %857 = vector.shape_cast %856 : vector<64xf32> to vector<1x1x64xf32>
    %858 = vector.broadcast %857 : vector<1x1x64xf32> to vector<2x16x64xf32>
    %859 = arith.mulf %854, %858 : vector<2x16x64xf32>
    %860 = arith.addf %853, %859 : vector<2x16x64xf32>
    %861 = vector.extract_strided_slice %4 {offsets = [0, 4, 16], sizes = [2, 16, 64], strides = [1, 1, 1]} : vector<2x24x96xf32> to vector<2x16x64xf32>
    %c4_219 = arith.constant 4 : index
    %c0_220 = arith.constant 0 : index
    %862 = vector.load %arg16[%c4_219, %c0_220] : memref<9x64xf32, #tpu.memory_space<vmem>>, vector<1x64xf32>
    %863 = vector.shape_cast %862 : vector<1x64xf32> to vector<64xf32>
    %864 = vector.shape_cast %863 : vector<64xf32> to vector<1x1x64xf32>
    %865 = vector.broadcast %864 : vector<1x1x64xf32> to vector<2x16x64xf32>
    %866 = arith.mulf %861, %865 : vector<2x16x64xf32>
    %867 = arith.addf %860, %866 : vector<2x16x64xf32>
    %868 = vector.extract_strided_slice %4 {offsets = [0, 4, 24], sizes = [2, 16, 64], strides = [1, 1, 1]} : vector<2x24x96xf32> to vector<2x16x64xf32>
    %c5_221 = arith.constant 5 : index
    %c0_222 = arith.constant 0 : index
    %869 = vector.load %arg16[%c5_221, %c0_222] : memref<9x64xf32, #tpu.memory_space<vmem>>, vector<1x64xf32>
    %870 = vector.shape_cast %869 : vector<1x64xf32> to vector<64xf32>
    %871 = vector.shape_cast %870 : vector<64xf32> to vector<1x1x64xf32>
    %872 = vector.broadcast %871 : vector<1x1x64xf32> to vector<2x16x64xf32>
    %873 = arith.mulf %868, %872 : vector<2x16x64xf32>
    %874 = arith.addf %867, %873 : vector<2x16x64xf32>
    %875 = vector.extract_strided_slice %4 {offsets = [0, 6, 8], sizes = [2, 16, 64], strides = [1, 1, 1]} : vector<2x24x96xf32> to vector<2x16x64xf32>
    %c6_223 = arith.constant 6 : index
    %c0_224 = arith.constant 0 : index
    %876 = vector.load %arg16[%c6_223, %c0_224] : memref<9x64xf32, #tpu.memory_space<vmem>>, vector<1x64xf32>
    %877 = vector.shape_cast %876 : vector<1x64xf32> to vector<64xf32>
    %878 = vector.shape_cast %877 : vector<64xf32> to vector<1x1x64xf32>
    %879 = vector.broadcast %878 : vector<1x1x64xf32> to vector<2x16x64xf32>
    %880 = arith.mulf %875, %879 : vector<2x16x64xf32>
    %881 = arith.addf %874, %880 : vector<2x16x64xf32>
    %882 = vector.extract_strided_slice %4 {offsets = [0, 6, 16], sizes = [2, 16, 64], strides = [1, 1, 1]} : vector<2x24x96xf32> to vector<2x16x64xf32>
    %c7_225 = arith.constant 7 : index
    %c0_226 = arith.constant 0 : index
    %883 = vector.load %arg16[%c7_225, %c0_226] : memref<9x64xf32, #tpu.memory_space<vmem>>, vector<1x64xf32>
    %884 = vector.shape_cast %883 : vector<1x64xf32> to vector<64xf32>
    %885 = vector.shape_cast %884 : vector<64xf32> to vector<1x1x64xf32>
    %886 = vector.broadcast %885 : vector<1x1x64xf32> to vector<2x16x64xf32>
    %887 = arith.mulf %882, %886 : vector<2x16x64xf32>
    %888 = arith.addf %881, %887 : vector<2x16x64xf32>
    %889 = vector.extract_strided_slice %4 {offsets = [0, 6, 24], sizes = [2, 16, 64], strides = [1, 1, 1]} : vector<2x24x96xf32> to vector<2x16x64xf32>
    %c8_227 = arith.constant 8 : index
    %c0_228 = arith.constant 0 : index
    %890 = vector.load %arg16[%c8_227, %c0_228] : memref<9x64xf32, #tpu.memory_space<vmem>>, vector<1x64xf32>
    %891 = vector.shape_cast %890 : vector<1x64xf32> to vector<64xf32>
    %892 = vector.shape_cast %891 : vector<64xf32> to vector<1x1x64xf32>
    %893 = vector.broadcast %892 : vector<1x1x64xf32> to vector<2x16x64xf32>
    %894 = arith.mulf %889, %893 : vector<2x16x64xf32>
    %895 = arith.addf %888, %894 : vector<2x16x64xf32>
    %c0_229 = arith.constant 0 : index
    %c0_230 = arith.constant 0 : index
    %896 = vector.load %arg17[%c0_229, %c0_230] : memref<64x64xf32, #tpu.memory_space<vmem>>, vector<64x64xf32>
    %897 = vector.extract_strided_slice %895 {offsets = [0, 0, 0], sizes = [1, 16, 64], strides = [1, 1, 1]} : vector<2x16x64xf32> to vector<1x16x64xf32>
    %898 = vector.shape_cast %897 : vector<1x16x64xf32> to vector<16x64xf32>
    %cst_231 = arith.constant dense<0.000000e+00> : vector<16x64xf32>
    %899 = tpu.matmul %898, %896, %cst_231 {dimension_numbers = #tpu.dot_dimension_numbers<[1], [0], [0], [1], [0, 0, 1, 1], [], []>} : vector<16x64xf32>, vector<64x64xf32>, vector<16x64xf32> -> vector<16x64xf32>
    %900 = vector.extract_strided_slice %895 {offsets = [1, 0, 0], sizes = [1, 16, 64], strides = [1, 1, 1]} : vector<2x16x64xf32> to vector<1x16x64xf32>
    %901 = vector.shape_cast %900 : vector<1x16x64xf32> to vector<16x64xf32>
    %cst_232 = arith.constant dense<0.000000e+00> : vector<16x64xf32>
    %902 = tpu.matmul %901, %896, %cst_232 {dimension_numbers = #tpu.dot_dimension_numbers<[1], [0], [0], [1], [0, 0, 1, 1], [], []>} : vector<16x64xf32>, vector<64x64xf32>, vector<16x64xf32> -> vector<16x64xf32>
    %903 = vector.shape_cast %899 : vector<16x64xf32> to vector<1x16x64xf32>
    %904 = vector.shape_cast %902 : vector<16x64xf32> to vector<1x16x64xf32>
    %905 = tpu.concatenate %903, %904 in 0 : vector<1x16x64xf32>, vector<1x16x64xf32> -> vector<2x16x64xf32>
    %cst_233 = arith.constant 0.000000e+00 : f32
    %906 = vector.broadcast %cst_233 : f32 to vector<1x64xf32>
    %cst_234 = arith.constant 0.000000e+00 : f32
    %907 = vector.broadcast %cst_234 : f32 to vector<1x64xf32>
    %908 = vector.extract_strided_slice %905 {offsets = [0, 0, 0], sizes = [1, 16, 64], strides = [1, 1, 1]} : vector<2x16x64xf32> to vector<1x16x64xf32>
    %909 = vector.shape_cast %908 : vector<1x16x64xf32> to vector<16x64xf32>
    %cst_235 = arith.constant dense<0.000000e+00> : vector<64xf32>
    %910 = vector.multi_reduction <add>, %909, %cst_235 [0] : vector<16x64xf32> to vector<64xf32>
    %911 = vector.shape_cast %910 : vector<64xf32> to vector<1x64xf32>
    %912 = arith.addf %906, %911 : vector<1x64xf32>
    %913 = arith.mulf %909, %909 : vector<16x64xf32>
    %cst_236 = arith.constant dense<0.000000e+00> : vector<64xf32>
    %914 = vector.multi_reduction <add>, %913, %cst_236 [0] : vector<16x64xf32> to vector<64xf32>
    %915 = vector.shape_cast %914 : vector<64xf32> to vector<1x64xf32>
    %916 = arith.addf %907, %915 : vector<1x64xf32>
    %917 = vector.extract_strided_slice %905 {offsets = [1, 0, 0], sizes = [1, 16, 64], strides = [1, 1, 1]} : vector<2x16x64xf32> to vector<1x16x64xf32>
    %918 = vector.shape_cast %917 : vector<1x16x64xf32> to vector<16x64xf32>
    %cst_237 = arith.constant dense<0.000000e+00> : vector<64xf32>
    %919 = vector.multi_reduction <add>, %918, %cst_237 [0] : vector<16x64xf32> to vector<64xf32>
    %920 = vector.shape_cast %919 : vector<64xf32> to vector<1x64xf32>
    %921 = arith.addf %912, %920 : vector<1x64xf32>
    %922 = arith.mulf %918, %918 : vector<16x64xf32>
    %cst_238 = arith.constant dense<0.000000e+00> : vector<64xf32>
    %923 = vector.multi_reduction <add>, %922, %cst_238 [0] : vector<16x64xf32> to vector<64xf32>
    %924 = vector.shape_cast %923 : vector<64xf32> to vector<1x64xf32>
    %925 = arith.addf %916, %924 : vector<1x64xf32>
    %cst_239 = arith.constant dense<0.000000e+00> : vector<1x64xf32>
    %926 = tpu.matmul %921, %2, %cst_239 {dimension_numbers = #tpu.dot_dimension_numbers<[1], [0], [0], [1], [0, 0, 1, 1], [], []>} : vector<1x64xf32>, vector<64x64xf32>, vector<1x64xf32> -> vector<1x64xf32>
    %cst_240 = arith.constant dense<0.000000e+00> : vector<1x64xf32>
    %927 = tpu.matmul %925, %2, %cst_240 {dimension_numbers = #tpu.dot_dimension_numbers<[1], [0], [0], [1], [0, 0, 1, 1], [], []>} : vector<1x64xf32>, vector<64x64xf32>, vector<1x64xf32> -> vector<1x64xf32>
    %928 = arith.mulf %926, %926 : vector<1x64xf32>
    %929 = arith.subf %927, %928 : vector<1x64xf32>
    %cst_241 = arith.constant 0.000000e+00 : f32
    %930 = vector.broadcast %cst_241 : f32 to vector<1x64xf32>
    %931 = arith.maximumf %929, %930 : vector<1x64xf32>
    %cst_242 = arith.constant 9.99999974E-6 : f32
    %932 = vector.broadcast %cst_242 : f32 to vector<1x64xf32>
    %933 = arith.addf %931, %932 : vector<1x64xf32>
    %934 = math.rsqrt %933 : vector<1x64xf32>
    %935 = vector.broadcast %833 : f32 to vector<1x64xf32>
    %936 = arith.mulf %934, %935 : vector<1x64xf32>
    %937 = vector.shape_cast %926 : vector<1x64xf32> to vector<1x1x64xf32>
    %938 = vector.broadcast %937 : vector<1x1x64xf32> to vector<2x16x64xf32>
    %939 = arith.subf %905, %938 : vector<2x16x64xf32>
    %940 = vector.shape_cast %936 : vector<1x64xf32> to vector<1x1x64xf32>
    %941 = vector.broadcast %940 : vector<1x1x64xf32> to vector<2x16x64xf32>
    %942 = arith.mulf %939, %941 : vector<2x16x64xf32>
    %943 = arith.addf %832, %942 : vector<2x16x64xf32>
    %c7_243 = arith.constant 7 : index
    %944 = memref.load %arg1[%c7_243] : memref<8xf32, #tpu.memory_space<smem>>
    %945 = vector.extract_strided_slice %4 {offsets = [0, 0, 0], sizes = [2, 16, 64], strides = [1, 1, 1]} : vector<2x24x96xf32> to vector<2x16x64xf32>
    %c0_244 = arith.constant 0 : index
    %c0_245 = arith.constant 0 : index
    %946 = vector.load %arg18[%c0_244, %c0_245] : memref<25x64xf32, #tpu.memory_space<vmem>>, vector<1x64xf32>
    %947 = vector.shape_cast %946 : vector<1x64xf32> to vector<64xf32>
    %948 = vector.shape_cast %947 : vector<64xf32> to vector<1x1x64xf32>
    %949 = vector.broadcast %948 : vector<1x1x64xf32> to vector<2x16x64xf32>
    %950 = arith.mulf %945, %949 : vector<2x16x64xf32>
    %951 = vector.extract_strided_slice %4 {offsets = [0, 0, 8], sizes = [2, 16, 64], strides = [1, 1, 1]} : vector<2x24x96xf32> to vector<2x16x64xf32>
    %c1_246 = arith.constant 1 : index
    %c0_247 = arith.constant 0 : index
    %952 = vector.load %arg18[%c1_246, %c0_247] : memref<25x64xf32, #tpu.memory_space<vmem>>, vector<1x64xf32>
    %953 = vector.shape_cast %952 : vector<1x64xf32> to vector<64xf32>
    %954 = vector.shape_cast %953 : vector<64xf32> to vector<1x1x64xf32>
    %955 = vector.broadcast %954 : vector<1x1x64xf32> to vector<2x16x64xf32>
    %956 = arith.mulf %951, %955 : vector<2x16x64xf32>
    %957 = arith.addf %950, %956 : vector<2x16x64xf32>
    %958 = vector.extract_strided_slice %4 {offsets = [0, 0, 16], sizes = [2, 16, 64], strides = [1, 1, 1]} : vector<2x24x96xf32> to vector<2x16x64xf32>
    %c2_248 = arith.constant 2 : index
    %c0_249 = arith.constant 0 : index
    %959 = vector.load %arg18[%c2_248, %c0_249] : memref<25x64xf32, #tpu.memory_space<vmem>>, vector<1x64xf32>
    %960 = vector.shape_cast %959 : vector<1x64xf32> to vector<64xf32>
    %961 = vector.shape_cast %960 : vector<64xf32> to vector<1x1x64xf32>
    %962 = vector.broadcast %961 : vector<1x1x64xf32> to vector<2x16x64xf32>
    %963 = arith.mulf %958, %962 : vector<2x16x64xf32>
    %964 = arith.addf %957, %963 : vector<2x16x64xf32>
    %965 = vector.extract_strided_slice %4 {offsets = [0, 0, 24], sizes = [2, 16, 64], strides = [1, 1, 1]} : vector<2x24x96xf32> to vector<2x16x64xf32>
    %c3_250 = arith.constant 3 : index
    %c0_251 = arith.constant 0 : index
    %966 = vector.load %arg18[%c3_250, %c0_251] : memref<25x64xf32, #tpu.memory_space<vmem>>, vector<1x64xf32>
    %967 = vector.shape_cast %966 : vector<1x64xf32> to vector<64xf32>
    %968 = vector.shape_cast %967 : vector<64xf32> to vector<1x1x64xf32>
    %969 = vector.broadcast %968 : vector<1x1x64xf32> to vector<2x16x64xf32>
    %970 = arith.mulf %965, %969 : vector<2x16x64xf32>
    %971 = arith.addf %964, %970 : vector<2x16x64xf32>
    %972 = vector.extract_strided_slice %4 {offsets = [0, 0, 32], sizes = [2, 16, 64], strides = [1, 1, 1]} : vector<2x24x96xf32> to vector<2x16x64xf32>
    %c4_252 = arith.constant 4 : index
    %c0_253 = arith.constant 0 : index
    %973 = vector.load %arg18[%c4_252, %c0_253] : memref<25x64xf32, #tpu.memory_space<vmem>>, vector<1x64xf32>
    %974 = vector.shape_cast %973 : vector<1x64xf32> to vector<64xf32>
    %975 = vector.shape_cast %974 : vector<64xf32> to vector<1x1x64xf32>
    %976 = vector.broadcast %975 : vector<1x1x64xf32> to vector<2x16x64xf32>
    %977 = arith.mulf %972, %976 : vector<2x16x64xf32>
    %978 = arith.addf %971, %977 : vector<2x16x64xf32>
    %979 = vector.extract_strided_slice %4 {offsets = [0, 2, 0], sizes = [2, 16, 64], strides = [1, 1, 1]} : vector<2x24x96xf32> to vector<2x16x64xf32>
    %c5_254 = arith.constant 5 : index
    %c0_255 = arith.constant 0 : index
    %980 = vector.load %arg18[%c5_254, %c0_255] : memref<25x64xf32, #tpu.memory_space<vmem>>, vector<1x64xf32>
    %981 = vector.shape_cast %980 : vector<1x64xf32> to vector<64xf32>
    %982 = vector.shape_cast %981 : vector<64xf32> to vector<1x1x64xf32>
    %983 = vector.broadcast %982 : vector<1x1x64xf32> to vector<2x16x64xf32>
    %984 = arith.mulf %979, %983 : vector<2x16x64xf32>
    %985 = arith.addf %978, %984 : vector<2x16x64xf32>
    %986 = vector.extract_strided_slice %4 {offsets = [0, 2, 8], sizes = [2, 16, 64], strides = [1, 1, 1]} : vector<2x24x96xf32> to vector<2x16x64xf32>
    %c6_256 = arith.constant 6 : index
    %c0_257 = arith.constant 0 : index
    %987 = vector.load %arg18[%c6_256, %c0_257] : memref<25x64xf32, #tpu.memory_space<vmem>>, vector<1x64xf32>
    %988 = vector.shape_cast %987 : vector<1x64xf32> to vector<64xf32>
    %989 = vector.shape_cast %988 : vector<64xf32> to vector<1x1x64xf32>
    %990 = vector.broadcast %989 : vector<1x1x64xf32> to vector<2x16x64xf32>
    %991 = arith.mulf %986, %990 : vector<2x16x64xf32>
    %992 = arith.addf %985, %991 : vector<2x16x64xf32>
    %993 = vector.extract_strided_slice %4 {offsets = [0, 2, 16], sizes = [2, 16, 64], strides = [1, 1, 1]} : vector<2x24x96xf32> to vector<2x16x64xf32>
    %c7_258 = arith.constant 7 : index
    %c0_259 = arith.constant 0 : index
    %994 = vector.load %arg18[%c7_258, %c0_259] : memref<25x64xf32, #tpu.memory_space<vmem>>, vector<1x64xf32>
    %995 = vector.shape_cast %994 : vector<1x64xf32> to vector<64xf32>
    %996 = vector.shape_cast %995 : vector<64xf32> to vector<1x1x64xf32>
    %997 = vector.broadcast %996 : vector<1x1x64xf32> to vector<2x16x64xf32>
    %998 = arith.mulf %993, %997 : vector<2x16x64xf32>
    %999 = arith.addf %992, %998 : vector<2x16x64xf32>
    %1000 = vector.extract_strided_slice %4 {offsets = [0, 2, 24], sizes = [2, 16, 64], strides = [1, 1, 1]} : vector<2x24x96xf32> to vector<2x16x64xf32>
    %c8_260 = arith.constant 8 : index
    %c0_261 = arith.constant 0 : index
    %1001 = vector.load %arg18[%c8_260, %c0_261] : memref<25x64xf32, #tpu.memory_space<vmem>>, vector<1x64xf32>
    %1002 = vector.shape_cast %1001 : vector<1x64xf32> to vector<64xf32>
    %1003 = vector.shape_cast %1002 : vector<64xf32> to vector<1x1x64xf32>
    %1004 = vector.broadcast %1003 : vector<1x1x64xf32> to vector<2x16x64xf32>
    %1005 = arith.mulf %1000, %1004 : vector<2x16x64xf32>
    %1006 = arith.addf %999, %1005 : vector<2x16x64xf32>
    %1007 = vector.extract_strided_slice %4 {offsets = [0, 2, 32], sizes = [2, 16, 64], strides = [1, 1, 1]} : vector<2x24x96xf32> to vector<2x16x64xf32>
    %c9_262 = arith.constant 9 : index
    %c0_263 = arith.constant 0 : index
    %1008 = vector.load %arg18[%c9_262, %c0_263] : memref<25x64xf32, #tpu.memory_space<vmem>>, vector<1x64xf32>
    %1009 = vector.shape_cast %1008 : vector<1x64xf32> to vector<64xf32>
    %1010 = vector.shape_cast %1009 : vector<64xf32> to vector<1x1x64xf32>
    %1011 = vector.broadcast %1010 : vector<1x1x64xf32> to vector<2x16x64xf32>
    %1012 = arith.mulf %1007, %1011 : vector<2x16x64xf32>
    %1013 = arith.addf %1006, %1012 : vector<2x16x64xf32>
    %1014 = vector.extract_strided_slice %4 {offsets = [0, 4, 0], sizes = [2, 16, 64], strides = [1, 1, 1]} : vector<2x24x96xf32> to vector<2x16x64xf32>
    %c10_264 = arith.constant 10 : index
    %c0_265 = arith.constant 0 : index
    %1015 = vector.load %arg18[%c10_264, %c0_265] : memref<25x64xf32, #tpu.memory_space<vmem>>, vector<1x64xf32>
    %1016 = vector.shape_cast %1015 : vector<1x64xf32> to vector<64xf32>
    %1017 = vector.shape_cast %1016 : vector<64xf32> to vector<1x1x64xf32>
    %1018 = vector.broadcast %1017 : vector<1x1x64xf32> to vector<2x16x64xf32>
    %1019 = arith.mulf %1014, %1018 : vector<2x16x64xf32>
    %1020 = arith.addf %1013, %1019 : vector<2x16x64xf32>
    %1021 = vector.extract_strided_slice %4 {offsets = [0, 4, 8], sizes = [2, 16, 64], strides = [1, 1, 1]} : vector<2x24x96xf32> to vector<2x16x64xf32>
    %c11_266 = arith.constant 11 : index
    %c0_267 = arith.constant 0 : index
    %1022 = vector.load %arg18[%c11_266, %c0_267] : memref<25x64xf32, #tpu.memory_space<vmem>>, vector<1x64xf32>
    %1023 = vector.shape_cast %1022 : vector<1x64xf32> to vector<64xf32>
    %1024 = vector.shape_cast %1023 : vector<64xf32> to vector<1x1x64xf32>
    %1025 = vector.broadcast %1024 : vector<1x1x64xf32> to vector<2x16x64xf32>
    %1026 = arith.mulf %1021, %1025 : vector<2x16x64xf32>
    %1027 = arith.addf %1020, %1026 : vector<2x16x64xf32>
    %1028 = vector.extract_strided_slice %4 {offsets = [0, 4, 16], sizes = [2, 16, 64], strides = [1, 1, 1]} : vector<2x24x96xf32> to vector<2x16x64xf32>
    %c12_268 = arith.constant 12 : index
    %c0_269 = arith.constant 0 : index
    %1029 = vector.load %arg18[%c12_268, %c0_269] : memref<25x64xf32, #tpu.memory_space<vmem>>, vector<1x64xf32>
    %1030 = vector.shape_cast %1029 : vector<1x64xf32> to vector<64xf32>
    %1031 = vector.shape_cast %1030 : vector<64xf32> to vector<1x1x64xf32>
    %1032 = vector.broadcast %1031 : vector<1x1x64xf32> to vector<2x16x64xf32>
    %1033 = arith.mulf %1028, %1032 : vector<2x16x64xf32>
    %1034 = arith.addf %1027, %1033 : vector<2x16x64xf32>
    %1035 = vector.extract_strided_slice %4 {offsets = [0, 4, 24], sizes = [2, 16, 64], strides = [1, 1, 1]} : vector<2x24x96xf32> to vector<2x16x64xf32>
    %c13_270 = arith.constant 13 : index
    %c0_271 = arith.constant 0 : index
    %1036 = vector.load %arg18[%c13_270, %c0_271] : memref<25x64xf32, #tpu.memory_space<vmem>>, vector<1x64xf32>
    %1037 = vector.shape_cast %1036 : vector<1x64xf32> to vector<64xf32>
    %1038 = vector.shape_cast %1037 : vector<64xf32> to vector<1x1x64xf32>
    %1039 = vector.broadcast %1038 : vector<1x1x64xf32> to vector<2x16x64xf32>
    %1040 = arith.mulf %1035, %1039 : vector<2x16x64xf32>
    %1041 = arith.addf %1034, %1040 : vector<2x16x64xf32>
    %1042 = vector.extract_strided_slice %4 {offsets = [0, 4, 32], sizes = [2, 16, 64], strides = [1, 1, 1]} : vector<2x24x96xf32> to vector<2x16x64xf32>
    %c14_272 = arith.constant 14 : index
    %c0_273 = arith.constant 0 : index
    %1043 = vector.load %arg18[%c14_272, %c0_273] : memref<25x64xf32, #tpu.memory_space<vmem>>, vector<1x64xf32>
    %1044 = vector.shape_cast %1043 : vector<1x64xf32> to vector<64xf32>
    %1045 = vector.shape_cast %1044 : vector<64xf32> to vector<1x1x64xf32>
    %1046 = vector.broadcast %1045 : vector<1x1x64xf32> to vector<2x16x64xf32>
    %1047 = arith.mulf %1042, %1046 : vector<2x16x64xf32>
    %1048 = arith.addf %1041, %1047 : vector<2x16x64xf32>
    %1049 = vector.extract_strided_slice %4 {offsets = [0, 6, 0], sizes = [2, 16, 64], strides = [1, 1, 1]} : vector<2x24x96xf32> to vector<2x16x64xf32>
    %c15_274 = arith.constant 15 : index
    %c0_275 = arith.constant 0 : index
    %1050 = vector.load %arg18[%c15_274, %c0_275] : memref<25x64xf32, #tpu.memory_space<vmem>>, vector<1x64xf32>
    %1051 = vector.shape_cast %1050 : vector<1x64xf32> to vector<64xf32>
    %1052 = vector.shape_cast %1051 : vector<64xf32> to vector<1x1x64xf32>
    %1053 = vector.broadcast %1052 : vector<1x1x64xf32> to vector<2x16x64xf32>
    %1054 = arith.mulf %1049, %1053 : vector<2x16x64xf32>
    %1055 = arith.addf %1048, %1054 : vector<2x16x64xf32>
    %1056 = vector.extract_strided_slice %4 {offsets = [0, 6, 8], sizes = [2, 16, 64], strides = [1, 1, 1]} : vector<2x24x96xf32> to vector<2x16x64xf32>
    %c16_276 = arith.constant 16 : index
    %c0_277 = arith.constant 0 : index
    %1057 = vector.load %arg18[%c16_276, %c0_277] : memref<25x64xf32, #tpu.memory_space<vmem>>, vector<1x64xf32>
    %1058 = vector.shape_cast %1057 : vector<1x64xf32> to vector<64xf32>
    %1059 = vector.shape_cast %1058 : vector<64xf32> to vector<1x1x64xf32>
    %1060 = vector.broadcast %1059 : vector<1x1x64xf32> to vector<2x16x64xf32>
    %1061 = arith.mulf %1056, %1060 : vector<2x16x64xf32>
    %1062 = arith.addf %1055, %1061 : vector<2x16x64xf32>
    %1063 = vector.extract_strided_slice %4 {offsets = [0, 6, 16], sizes = [2, 16, 64], strides = [1, 1, 1]} : vector<2x24x96xf32> to vector<2x16x64xf32>
    %c17_278 = arith.constant 17 : index
    %c0_279 = arith.constant 0 : index
    %1064 = vector.load %arg18[%c17_278, %c0_279] : memref<25x64xf32, #tpu.memory_space<vmem>>, vector<1x64xf32>
    %1065 = vector.shape_cast %1064 : vector<1x64xf32> to vector<64xf32>
    %1066 = vector.shape_cast %1065 : vector<64xf32> to vector<1x1x64xf32>
    %1067 = vector.broadcast %1066 : vector<1x1x64xf32> to vector<2x16x64xf32>
    %1068 = arith.mulf %1063, %1067 : vector<2x16x64xf32>
    %1069 = arith.addf %1062, %1068 : vector<2x16x64xf32>
    %1070 = vector.extract_strided_slice %4 {offsets = [0, 6, 24], sizes = [2, 16, 64], strides = [1, 1, 1]} : vector<2x24x96xf32> to vector<2x16x64xf32>
    %c18_280 = arith.constant 18 : index
    %c0_281 = arith.constant 0 : index
    %1071 = vector.load %arg18[%c18_280, %c0_281] : memref<25x64xf32, #tpu.memory_space<vmem>>, vector<1x64xf32>
    %1072 = vector.shape_cast %1071 : vector<1x64xf32> to vector<64xf32>
    %1073 = vector.shape_cast %1072 : vector<64xf32> to vector<1x1x64xf32>
    %1074 = vector.broadcast %1073 : vector<1x1x64xf32> to vector<2x16x64xf32>
    %1075 = arith.mulf %1070, %1074 : vector<2x16x64xf32>
    %1076 = arith.addf %1069, %1075 : vector<2x16x64xf32>
    %1077 = vector.extract_strided_slice %4 {offsets = [0, 6, 32], sizes = [2, 16, 64], strides = [1, 1, 1]} : vector<2x24x96xf32> to vector<2x16x64xf32>
    %c19_282 = arith.constant 19 : index
    %c0_283 = arith.constant 0 : index
    %1078 = vector.load %arg18[%c19_282, %c0_283] : memref<25x64xf32, #tpu.memory_space<vmem>>, vector<1x64xf32>
    %1079 = vector.shape_cast %1078 : vector<1x64xf32> to vector<64xf32>
    %1080 = vector.shape_cast %1079 : vector<64xf32> to vector<1x1x64xf32>
    %1081 = vector.broadcast %1080 : vector<1x1x64xf32> to vector<2x16x64xf32>
    %1082 = arith.mulf %1077, %1081 : vector<2x16x64xf32>
    %1083 = arith.addf %1076, %1082 : vector<2x16x64xf32>
    %1084 = vector.extract_strided_slice %4 {offsets = [0, 8, 0], sizes = [2, 16, 64], strides = [1, 1, 1]} : vector<2x24x96xf32> to vector<2x16x64xf32>
    %c20_284 = arith.constant 20 : index
    %c0_285 = arith.constant 0 : index
    %1085 = vector.load %arg18[%c20_284, %c0_285] : memref<25x64xf32, #tpu.memory_space<vmem>>, vector<1x64xf32>
    %1086 = vector.shape_cast %1085 : vector<1x64xf32> to vector<64xf32>
    %1087 = vector.shape_cast %1086 : vector<64xf32> to vector<1x1x64xf32>
    %1088 = vector.broadcast %1087 : vector<1x1x64xf32> to vector<2x16x64xf32>
    %1089 = arith.mulf %1084, %1088 : vector<2x16x64xf32>
    %1090 = arith.addf %1083, %1089 : vector<2x16x64xf32>
    %1091 = vector.extract_strided_slice %4 {offsets = [0, 8, 8], sizes = [2, 16, 64], strides = [1, 1, 1]} : vector<2x24x96xf32> to vector<2x16x64xf32>
    %c21_286 = arith.constant 21 : index
    %c0_287 = arith.constant 0 : index
    %1092 = vector.load %arg18[%c21_286, %c0_287] : memref<25x64xf32, #tpu.memory_space<vmem>>, vector<1x64xf32>
    %1093 = vector.shape_cast %1092 : vector<1x64xf32> to vector<64xf32>
    %1094 = vector.shape_cast %1093 : vector<64xf32> to vector<1x1x64xf32>
    %1095 = vector.broadcast %1094 : vector<1x1x64xf32> to vector<2x16x64xf32>
    %1096 = arith.mulf %1091, %1095 : vector<2x16x64xf32>
    %1097 = arith.addf %1090, %1096 : vector<2x16x64xf32>
    %1098 = vector.extract_strided_slice %4 {offsets = [0, 8, 16], sizes = [2, 16, 64], strides = [1, 1, 1]} : vector<2x24x96xf32> to vector<2x16x64xf32>
    %c22_288 = arith.constant 22 : index
    %c0_289 = arith.constant 0 : index
    %1099 = vector.load %arg18[%c22_288, %c0_289] : memref<25x64xf32, #tpu.memory_space<vmem>>, vector<1x64xf32>
    %1100 = vector.shape_cast %1099 : vector<1x64xf32> to vector<64xf32>
    %1101 = vector.shape_cast %1100 : vector<64xf32> to vector<1x1x64xf32>
    %1102 = vector.broadcast %1101 : vector<1x1x64xf32> to vector<2x16x64xf32>
    %1103 = arith.mulf %1098, %1102 : vector<2x16x64xf32>
    %1104 = arith.addf %1097, %1103 : vector<2x16x64xf32>
    %1105 = vector.extract_strided_slice %4 {offsets = [0, 8, 24], sizes = [2, 16, 64], strides = [1, 1, 1]} : vector<2x24x96xf32> to vector<2x16x64xf32>
    %c23_290 = arith.constant 23 : index
    %c0_291 = arith.constant 0 : index
    %1106 = vector.load %arg18[%c23_290, %c0_291] : memref<25x64xf32, #tpu.memory_space<vmem>>, vector<1x64xf32>
    %1107 = vector.shape_cast %1106 : vector<1x64xf32> to vector<64xf32>
    %1108 = vector.shape_cast %1107 : vector<64xf32> to vector<1x1x64xf32>
    %1109 = vector.broadcast %1108 : vector<1x1x64xf32> to vector<2x16x64xf32>
    %1110 = arith.mulf %1105, %1109 : vector<2x16x64xf32>
    %1111 = arith.addf %1104, %1110 : vector<2x16x64xf32>
    %1112 = vector.extract_strided_slice %4 {offsets = [0, 8, 32], sizes = [2, 16, 64], strides = [1, 1, 1]} : vector<2x24x96xf32> to vector<2x16x64xf32>
    %c24_292 = arith.constant 24 : index
    %c0_293 = arith.constant 0 : index
    %1113 = vector.load %arg18[%c24_292, %c0_293] : memref<25x64xf32, #tpu.memory_space<vmem>>, vector<1x64xf32>
    %1114 = vector.shape_cast %1113 : vector<1x64xf32> to vector<64xf32>
    %1115 = vector.shape_cast %1114 : vector<64xf32> to vector<1x1x64xf32>
    %1116 = vector.broadcast %1115 : vector<1x1x64xf32> to vector<2x16x64xf32>
    %1117 = arith.mulf %1112, %1116 : vector<2x16x64xf32>
    %1118 = arith.addf %1111, %1117 : vector<2x16x64xf32>
    %c0_294 = arith.constant 0 : index
    %c0_295 = arith.constant 0 : index
    %1119 = vector.load %arg19[%c0_294, %c0_295] : memref<64x64xf32, #tpu.memory_space<vmem>>, vector<64x64xf32>
    %1120 = vector.extract_strided_slice %1118 {offsets = [0, 0, 0], sizes = [1, 16, 64], strides = [1, 1, 1]} : vector<2x16x64xf32> to vector<1x16x64xf32>
    %1121 = vector.shape_cast %1120 : vector<1x16x64xf32> to vector<16x64xf32>
    %cst_296 = arith.constant dense<0.000000e+00> : vector<16x64xf32>
    %1122 = tpu.matmul %1121, %1119, %cst_296 {dimension_numbers = #tpu.dot_dimension_numbers<[1], [0], [0], [1], [0, 0, 1, 1], [], []>} : vector<16x64xf32>, vector<64x64xf32>, vector<16x64xf32> -> vector<16x64xf32>
    %1123 = vector.extract_strided_slice %1118 {offsets = [1, 0, 0], sizes = [1, 16, 64], strides = [1, 1, 1]} : vector<2x16x64xf32> to vector<1x16x64xf32>
    %1124 = vector.shape_cast %1123 : vector<1x16x64xf32> to vector<16x64xf32>
    %cst_297 = arith.constant dense<0.000000e+00> : vector<16x64xf32>
    %1125 = tpu.matmul %1124, %1119, %cst_297 {dimension_numbers = #tpu.dot_dimension_numbers<[1], [0], [0], [1], [0, 0, 1, 1], [], []>} : vector<16x64xf32>, vector<64x64xf32>, vector<16x64xf32> -> vector<16x64xf32>
    %1126 = vector.shape_cast %1122 : vector<16x64xf32> to vector<1x16x64xf32>
    %1127 = vector.shape_cast %1125 : vector<16x64xf32> to vector<1x16x64xf32>
    %1128 = tpu.concatenate %1126, %1127 in 0 : vector<1x16x64xf32>, vector<1x16x64xf32> -> vector<2x16x64xf32>
    %cst_298 = arith.constant 0.000000e+00 : f32
    %1129 = vector.broadcast %cst_298 : f32 to vector<1x64xf32>
    %cst_299 = arith.constant 0.000000e+00 : f32
    %1130 = vector.broadcast %cst_299 : f32 to vector<1x64xf32>
    %1131 = vector.extract_strided_slice %1128 {offsets = [0, 0, 0], sizes = [1, 16, 64], strides = [1, 1, 1]} : vector<2x16x64xf32> to vector<1x16x64xf32>
    %1132 = vector.shape_cast %1131 : vector<1x16x64xf32> to vector<16x64xf32>
    %cst_300 = arith.constant dense<0.000000e+00> : vector<64xf32>
    %1133 = vector.multi_reduction <add>, %1132, %cst_300 [0] : vector<16x64xf32> to vector<64xf32>
    %1134 = vector.shape_cast %1133 : vector<64xf32> to vector<1x64xf32>
    %1135 = arith.addf %1129, %1134 : vector<1x64xf32>
    %1136 = arith.mulf %1132, %1132 : vector<16x64xf32>
    %cst_301 = arith.constant dense<0.000000e+00> : vector<64xf32>
    %1137 = vector.multi_reduction <add>, %1136, %cst_301 [0] : vector<16x64xf32> to vector<64xf32>
    %1138 = vector.shape_cast %1137 : vector<64xf32> to vector<1x64xf32>
    %1139 = arith.addf %1130, %1138 : vector<1x64xf32>
    %1140 = vector.extract_strided_slice %1128 {offsets = [1, 0, 0], sizes = [1, 16, 64], strides = [1, 1, 1]} : vector<2x16x64xf32> to vector<1x16x64xf32>
    %1141 = vector.shape_cast %1140 : vector<1x16x64xf32> to vector<16x64xf32>
    %cst_302 = arith.constant dense<0.000000e+00> : vector<64xf32>
    %1142 = vector.multi_reduction <add>, %1141, %cst_302 [0] : vector<16x64xf32> to vector<64xf32>
    %1143 = vector.shape_cast %1142 : vector<64xf32> to vector<1x64xf32>
    %1144 = arith.addf %1135, %1143 : vector<1x64xf32>
    %1145 = arith.mulf %1141, %1141 : vector<16x64xf32>
    %cst_303 = arith.constant dense<0.000000e+00> : vector<64xf32>
    %1146 = vector.multi_reduction <add>, %1145, %cst_303 [0] : vector<16x64xf32> to vector<64xf32>
    %1147 = vector.shape_cast %1146 : vector<64xf32> to vector<1x64xf32>
    %1148 = arith.addf %1139, %1147 : vector<1x64xf32>
    %cst_304 = arith.constant dense<0.000000e+00> : vector<1x64xf32>
    %1149 = tpu.matmul %1144, %2, %cst_304 {dimension_numbers = #tpu.dot_dimension_numbers<[1], [0], [0], [1], [0, 0, 1, 1], [], []>} : vector<1x64xf32>, vector<64x64xf32>, vector<1x64xf32> -> vector<1x64xf32>
    %cst_305 = arith.constant dense<0.000000e+00> : vector<1x64xf32>
    %1150 = tpu.matmul %1148, %2, %cst_305 {dimension_numbers = #tpu.dot_dimension_numbers<[1], [0], [0], [1], [0, 0, 1, 1], [], []>} : vector<1x64xf32>, vector<64x64xf32>, vector<1x64xf32> -> vector<1x64xf32>
    %1151 = arith.mulf %1149, %1149 : vector<1x64xf32>
    %1152 = arith.subf %1150, %1151 : vector<1x64xf32>
    %cst_306 = arith.constant 0.000000e+00 : f32
    %1153 = vector.broadcast %cst_306 : f32 to vector<1x64xf32>
    %1154 = arith.maximumf %1152, %1153 : vector<1x64xf32>
    %cst_307 = arith.constant 9.99999974E-6 : f32
    %1155 = vector.broadcast %cst_307 : f32 to vector<1x64xf32>
    %1156 = arith.addf %1154, %1155 : vector<1x64xf32>
    %1157 = math.rsqrt %1156 : vector<1x64xf32>
    %1158 = vector.broadcast %944 : f32 to vector<1x64xf32>
    %1159 = arith.mulf %1157, %1158 : vector<1x64xf32>
    %1160 = vector.shape_cast %1149 : vector<1x64xf32> to vector<1x1x64xf32>
    %1161 = vector.broadcast %1160 : vector<1x1x64xf32> to vector<2x16x64xf32>
    %1162 = arith.subf %1128, %1161 : vector<2x16x64xf32>
    %1163 = vector.shape_cast %1159 : vector<1x64xf32> to vector<1x1x64xf32>
    %1164 = vector.broadcast %1163 : vector<1x1x64xf32> to vector<2x16x64xf32>
    %1165 = arith.mulf %1162, %1164 : vector<2x16x64xf32>
    %1166 = arith.addf %943, %1165 : vector<2x16x64xf32>
    %c0_308 = arith.constant 0 : index
    %c0_309 = arith.constant 0 : index
    %c0_310 = arith.constant 0 : index
    %1167 = vector.load %arg20[%c0_308, %c0_309, %c0_310] : memref<2x16x64xf32, #tpu.memory_space<vmem>>, vector<2x16x64xf32>
    tpu.vector_store %arg20[%c0_308, %c0_309, %c0_310], %1166 {strides = array<i32>} : memref<2x16x64xf32, #tpu.memory_space<vmem>>, vector<2x16x64xf32>,
    return
  }
  func.func @transform_0(%arg0: i32, %arg1: memref<8xf32, #tpu.memory_space<smem>>) -> (i32, i32, i32) {
    %c0_i32 = arith.constant 0 : i32
    %c0_i32_0 = arith.constant 0 : i32
    %c0_i32_1 = arith.constant 0 : i32
    %c0_i32_2 = arith.constant 0 : i32
    return %c0_i32, %c0_i32_0, %c0_i32_1 : i32, i32, i32
  }
  func.func @transform_1(%arg0: i32, %arg1: memref<8xf32, #tpu.memory_space<smem>>) -> (i32, i32) {
    %c0_i32 = arith.constant 0 : i32
    %c0_i32_0 = arith.constant 0 : i32
    %c0_i32_1 = arith.constant 0 : i32
    return %c0_i32, %c0_i32_0 : i32, i32
  }
  func.func @transform_2(%arg0: i32, %arg1: memref<8xf32, #tpu.memory_space<smem>>) -> (i32, i32) {
    %c0_i32 = arith.constant 0 : i32
    %c0_i32_0 = arith.constant 0 : i32
    %c0_i32_1 = arith.constant 0 : i32
    return %c0_i32, %c0_i32_0 : i32, i32
  }
  func.func @transform_3(%arg0: i32, %arg1: memref<8xf32, #tpu.memory_space<smem>>) -> (i32, i32) {
    %c0_i32 = arith.constant 0 : i32
    %c0_i32_0 = arith.constant 0 : i32
    %c0_i32_1 = arith.constant 0 : i32
    return %c0_i32, %c0_i32_0 : i32, i32
  }
  func.func @transform_4(%arg0: i32, %arg1: memref<8xf32, #tpu.memory_space<smem>>) -> (i32, i32) {
    %c0_i32 = arith.constant 0 : i32
    %c0_i32_0 = arith.constant 0 : i32
    %c0_i32_1 = arith.constant 0 : i32
    return %c0_i32, %c0_i32_0 : i32, i32
  }
  func.func @transform_5(%arg0: i32, %arg1: memref<8xf32, #tpu.memory_space<smem>>) -> (i32, i32) {
    %c0_i32 = arith.constant 0 : i32
    %c0_i32_0 = arith.constant 0 : i32
    %c0_i32_1 = arith.constant 0 : i32
    return %c0_i32, %c0_i32_0 : i32, i32
  }
  func.func @transform_6(%arg0: i32, %arg1: memref<8xf32, #tpu.memory_space<smem>>) -> (i32, i32) {
    %c0_i32 = arith.constant 0 : i32
    %c0_i32_0 = arith.constant 0 : i32
    %c0_i32_1 = arith.constant 0 : i32
    return %c0_i32, %c0_i32_0 : i32, i32
  }
  func.func @transform_7(%arg0: i32, %arg1: memref<8xf32, #tpu.memory_space<smem>>) -> (i32, i32) {
    %c0_i32 = arith.constant 0 : i32
    %c0_i32_0 = arith.constant 0 : i32
    %c0_i32_1 = arith.constant 0 : i32
    return %c0_i32, %c0_i32_0 : i32, i32
  }
  func.func @transform_8(%arg0: i32, %arg1: memref<8xf32, #tpu.memory_space<smem>>) -> (i32, i32) {
    %c0_i32 = arith.constant 0 : i32
    %c0_i32_0 = arith.constant 0 : i32
    %c0_i32_1 = arith.constant 0 : i32
    return %c0_i32, %c0_i32_0 : i32, i32
  }
  func.func @transform_9(%arg0: i32, %arg1: memref<8xf32, #tpu.memory_space<smem>>) -> (i32, i32) {
    %c0_i32 = arith.constant 0 : i32
    %c0_i32_0 = arith.constant 0 : i32
    %c0_i32_1 = arith.constant 0 : i32
    return %c0_i32, %c0_i32_0 : i32, i32
  }
  func.func @transform_10(%arg0: i32, %arg1: memref<8xf32, #tpu.memory_space<smem>>) -> (i32, i32) {
    %c0_i32 = arith.constant 0 : i32
    %c0_i32_0 = arith.constant 0 : i32
    %c0_i32_1 = arith.constant 0 : i32
    return %c0_i32, %c0_i32_0 : i32, i32
  }
  func.func @transform_11(%arg0: i32, %arg1: memref<8xf32, #tpu.memory_space<smem>>) -> (i32, i32) {
    %c0_i32 = arith.constant 0 : i32
    %c0_i32_0 = arith.constant 0 : i32
    %c0_i32_1 = arith.constant 0 : i32
    return %c0_i32, %c0_i32_0 : i32, i32
  }
  func.func @transform_12(%arg0: i32, %arg1: memref<8xf32, #tpu.memory_space<smem>>) -> (i32, i32) {
    %c0_i32 = arith.constant 0 : i32
    %c0_i32_0 = arith.constant 0 : i32
    %c0_i32_1 = arith.constant 0 : i32
    return %c0_i32, %c0_i32_0 : i32, i32
  }
  func.func @transform_13(%arg0: i32, %arg1: memref<8xf32, #tpu.memory_space<smem>>) -> (i32, i32) {
    %c0_i32 = arith.constant 0 : i32
    %c0_i32_0 = arith.constant 0 : i32
    %c0_i32_1 = arith.constant 0 : i32
    return %c0_i32, %c0_i32_0 : i32, i32
  }
  func.func @transform_14(%arg0: i32, %arg1: memref<8xf32, #tpu.memory_space<smem>>) -> (i32, i32) {
    %c0_i32 = arith.constant 0 : i32
    %c0_i32_0 = arith.constant 0 : i32
    %c0_i32_1 = arith.constant 0 : i32
    return %c0_i32, %c0_i32_0 : i32, i32
  }
  func.func @transform_15(%arg0: i32, %arg1: memref<8xf32, #tpu.memory_space<smem>>) -> (i32, i32) {
    %c0_i32 = arith.constant 0 : i32
    %c0_i32_0 = arith.constant 0 : i32
    %c0_i32_1 = arith.constant 0 : i32
    return %c0_i32, %c0_i32_0 : i32, i32
  }
  func.func @transform_16(%arg0: i32, %arg1: memref<8xf32, #tpu.memory_space<smem>>) -> (i32, i32) {
    %c0_i32 = arith.constant 0 : i32
    %c0_i32_0 = arith.constant 0 : i32
    %c0_i32_1 = arith.constant 0 : i32
    return %c0_i32, %c0_i32_0 : i32, i32
  }
  func.func @transform_17(%arg0: i32, %arg1: memref<8xf32, #tpu.memory_space<smem>>) -> (i32, i32) {
    %c0_i32 = arith.constant 0 : i32
    %c0_i32_0 = arith.constant 0 : i32
    %c0_i32_1 = arith.constant 0 : i32
    return %c0_i32, %c0_i32_0 : i32, i32
  }
  func.func @transform_18(%arg0: i32, %arg1: memref<8xf32, #tpu.memory_space<smem>>) -> (i32, i32, i32) {
    %c0_i32 = arith.constant 0 : i32
    %c0_i32_0 = arith.constant 0 : i32
    %c0_i32_1 = arith.constant 0 : i32
    %c0_i32_2 = arith.constant 0 : i32
    return %c0_i32, %c0_i32_0, %c0_i32_1 : i32, i32, i32
  }
}

</mosaic_0001>

<llo_original>
// kernel: tpu_custom_call.1
$region0: #{tpu_custom_call.1}
  #allocation0 [shape = 'u32[]', space=smem, size = 0x4, offset = 0x4, fixed_abs, tag = 'smem constant byte address 0x4 - core index']
  #allocation1 [shape = 'u32[144,128]{1,0:T(1,128)}', space=vmem, size = 0x12000, scoped, tag = 'internal scratch']
  #allocation2 [shape = 's32[1]{0}', space=sflag, size = 0x4, scoped, tag = 'scoped memory for tpu_custom_call.1']
  #allocation3 [shape = 'u8[512]{0}', space=smem, size = 0x200, scoped, tag = 'prefetched SMEM operand 0']
  %s0 = inlined_call_operand.hbm [shape: f32[8], index: 0, kind: input, shape index: {}]
  %s1 = inlined_call_operand.hbm [shape: f32[2,24,96], index: 1, kind: input, shape index: {}]
  %s2 = inlined_call_operand.hbm [shape: f32[24,96], index: 2, kind: input, shape index: {}]
  %s3 = inlined_call_operand.hbm [shape: f32[16,64], index: 3, kind: input, shape index: {}]
  %s4 = inlined_call_operand.hbm [shape: f32[64,64], index: 4, kind: input, shape index: {}]
  %s5 = inlined_call_operand.hbm [shape: f32[64,72], index: 5, kind: input, shape index: {}]
  %s6 = inlined_call_operand.hbm [shape: f32[64,80], index: 6, kind: input, shape index: {}]
  %s7 = inlined_call_operand.hbm [shape: f32[9,72], index: 7, kind: input, shape index: {}]
  %s8 = inlined_call_operand.hbm [shape: f32[72,72], index: 8, kind: input, shape index: {}]
  %s9 = inlined_call_operand.hbm [shape: f32[9,64], index: 9, kind: input, shape index: {}]
  %s10 = inlined_call_operand.hbm [shape: f32[64,64], index: 10, kind: input, shape index: {}]
  %s11 = inlined_call_operand.hbm [shape: f32[25,80], index: 11, kind: input, shape index: {}]
  %s12 = inlined_call_operand.hbm [shape: f32[80,80], index: 12, kind: input, shape index: {}]
  %s13 = inlined_call_operand.hbm [shape: f32[25,64], index: 13, kind: input, shape index: {}]
  %s14 = inlined_call_operand.hbm [shape: f32[64,64], index: 14, kind: input, shape index: {}]
  %s15 = inlined_call_operand.hbm [shape: f32[9,64], index: 15, kind: input, shape index: {}]
  %s16 = inlined_call_operand.hbm [shape: f32[64,64], index: 16, kind: input, shape index: {}]
  %s17 = inlined_call_operand.hbm [shape: f32[25,64], index: 17, kind: input, shape index: {}]
  %s18 = inlined_call_operand.vmem [shape: f32[64,64], index: 18, kind: input, shape index: {}]
  %s19 = inlined_call_operand.hbm [shape: f32[2,16,64], index: 19, kind: output, shape index: {}]
  %s20 = sld [smem:[#allocation0]]
  $region150: #{tpu_custom_call.1} parent=0
    _
  %s22 = ssub.s32 1, %s20
  %s23 = scalar_select 0, %s22, %s20
  %25 = dma.hbm_to_smem %s0, 16, [#allocation3], [#allocation2]
  %26 = dma.done [#allocation2], 16
  %27 = sfence
  $region1: #{tpu_custom_call.1} parent=0
    #allocation4 [shape = 'u8[24576]{0}', space=vmem, size = 0x6000, scoped, tag = 'input window, operand 1, single buffered']
    #allocation5 [shape = 's32[1]{0}', space=sflag, size = 0x4, scoped, tag = 'scoped memory for tpu_custom_call.1']
    #allocation6 [shape = 's32[1]{0}', space=sflag, size = 0x4, scoped, tag = 'scoped memory for tpu_custom_call.1']
    #allocation7 [shape = 'u8[12288]{0}', space=vmem, size = 0x3000, scoped, tag = 'input window, operand 2, single buffered']
    #allocation8 [shape = 's32[1]{0}', space=sflag, size = 0x4, scoped, tag = 'scoped memory for tpu_custom_call.1']
    #allocation9 [shape = 'u8[8192]{0}', space=vmem, size = 0x2000, scoped, tag = 'input window, operand 3, single buffered']
    #allocation10 [shape = 'u8[32768]{0}', space=vmem, size = 0x8000, scoped, tag = 'input window, operand 4, single buffered']
    #allocation11 [shape = 's32[1]{0}', space=sflag, size = 0x4, scoped, tag = 'scoped memory for tpu_custom_call.1']
    #allocation12 [shape = 'u8[32768]{0}', space=vmem, size = 0x8000, scoped, tag = 'input window, operand 5, single buffered']
    #allocation13 [shape = 'u8[32768]{0}', space=vmem, size = 0x8000, scoped, tag = 'input window, operand 6, single buffered']
    #allocation14 [shape = 's32[1]{0}', space=sflag, size = 0x4, scoped, tag = 'scoped memory for tpu_custom_call.1']
    #allocation15 [shape = 'u8[8192]{0}', space=vmem, size = 0x2000, scoped, tag = 'input window, operand 7, single buffered']
    #allocation16 [shape = 'u8[36864]{0}', space=vmem, size = 0x9000, scoped, tag = 'input window, operand 8, single buffered']
    #allocation17 [shape = 's32[1]{0}', space=sflag, size = 0x4, scoped, tag = 'scoped memory for tpu_custom_call.1']
    #allocation18 [shape = 'u8[8192]{0}', space=vmem, size = 0x2000, scoped, tag = 'input window, operand 9, single buffered']
    #allocation19 [shape = 'u8[32768]{0}', space=vmem, size = 0x8000, scoped, tag = 'input window, operand 10, single buffered']
    #allocation20 [shape = 's32[1]{0}', space=sflag, size = 0x4, scoped, tag = 'scoped memory for tpu_custom_call.1']
    #allocation21 [shape = 'u8[16384]{0}', space=vmem, size = 0x4000, scoped, tag = 'input window, operand 11, single buffered']
    #allocation22 [shape = 'u8[40960]{0}', space=vmem, size = 0xa000, scoped, tag = 'input window, operand 12, single buffered']
    #allocation23 [shape = 's32[1]{0}', space=sflag, size = 0x4, scoped, tag = 'scoped memory for tpu_custom_call.1']
    #allocation24 [shape = 'u8[16384]{0}', space=vmem, size = 0x4000, scoped, tag = 'input window, operand 13, single buffered']
    #allocation25 [shape = 'u8[32768]{0}', space=vmem, size = 0x8000, scoped, tag = 'input window, operand 14, single buffered']
    #allocation26 [shape = 's32[1]{0}', space=sflag, size = 0x4, scoped, tag = 'scoped memory for tpu_custom_call.1']
    #allocation27 [shape = 'u8[8192]{0}', space=vmem, size = 0x2000, scoped, tag = 'input window, operand 15, single buffered']
    #allocation28 [shape = 'u8[32768]{0}', space=vmem, size = 0x8000, scoped, tag = 'input window, operand 16, single buffered']
    #allocation29 [shape = 's32[1]{0}', space=sflag, size = 0x4, scoped, tag = 'scoped memory for tpu_custom_call.1']
    #allocation30 [shape = 'u8[16384]{0}', space=vmem, size = 0x4000, scoped, tag = 'input window, operand 17, single buffered']
    #allocation31 [shape = 'u8[16384]{0}', space=vmem, size = 0x4000, scoped, tag = 'output window, operand 0, single buffered']
    %28 = vsyncpa [#allocation5], 0
    %29 = vsyncpa [#allocation8], 0
    %30 = vsyncpa [#allocation11], 0
    %31 = vsyncpa [#allocation14], 0
    %32 = vsyncpa [#allocation17], 0
    %33 = vsyncpa [#allocation20], 0
    %34 = vsyncpa [#allocation23], 0
    %35 = vsyncpa [#allocation26], 0
    %36 = vsyncpa [#allocation29], 0
    %37 = vsyncpa [#allocation6], 0
    // Predicated region
    $region2: #{tpu_custom_call.1} parent=1 // pred_check
      _
    $region3: #{tpu_custom_call.1} parent=1 // pred_check_branch
      %39 = sbr.rel (0) target = $region5
    $region4: #{tpu_custom_call.1} parent=1 // pred_region
      %s41 = ssub.s32 768, 768
      %42 = vsyncadd [#allocation5], %s41
      %s43 = sshll.u32 [#allocation4], 4
      %s44 = int_to_ptr.vmem [resolvable:$true] %s43
      %49 = dma.hbm_to_vmem [thread:$0]  %s1, 768, %s44, [#allocation5], 128, 128, 8
    $region5: #{tpu_custom_call.1} parent=1 // pred_fallthru
      _
    // Predicated region
    $region6: #{tpu_custom_call.1} parent=1 // pred_check
      _
    $region7: #{tpu_custom_call.1} parent=1 // pred_check_branch
      %51 = sbr.rel (0) target = $region9
    $region8: #{tpu_custom_call.1} parent=1 // pred_region
      %s53 = ssub.s32 384, 384
      %54 = vsyncadd [#allocation8], %s53
      %s55 = sshll.u32 [#allocation7], 4
      %s56 = int_to_ptr.vmem [resolvable:$true] %s55
      %61 = dma.hbm_to_vmem [thread:$0]  %s2, 384, %s56, [#allocation8], 128, 128, 8
    $region9: #{tpu_custom_call.1} parent=1 // pred_fallthru
      _
    // Predicated region
    $region10: #{tpu_custom_call.1} parent=1 // pred_check
      _
    $region11: #{tpu_custom_call.1} parent=1 // pred_check_branch
      %63 = sbr.rel (0) target = $region13
    $region12: #{tpu_custom_call.1} parent=1 // pred_region
      %s65 = ssub.s32 256, 256
      %66 = vsyncadd [#allocation8], %s65
      %s67 = sshll.u32 [#allocation9], 4
      %s68 = int_to_ptr.vmem [resolvable:$true] %s67
      %73 = dma.hbm_to_vmem [thread:$0]  %s3, 256, %s68, [#allocation8], 128, 128, 8
    $region13: #{tpu_custom_call.1} parent=1 // pred_fallthru
      _
    // Predicated region
    $region14: #{tpu_custom_call.1} parent=1 // pred_check
      _
    $region15: #{tpu_custom_call.1} parent=1 // pred_check_branch
      %75 = sbr.rel (0) target = $region17
    $region16: #{tpu_custom_call.1} parent=1 // pred_region
      %s77 = ssub.s32 1024, 1024
      %78 = vsyncadd [#allocation11], %s77
      %s79 = sshll.u32 [#allocation10], 4
      %s80 = int_to_ptr.vmem [resolvable:$true] %s79
      %85 = dma.hbm_to_vmem [thread:$0]  %s4, 1024, %s80, [#allocation11], 128, 128, 8
    $region17: #{tpu_custom_call.1} parent=1 // pred_fallthru
      _
    // Predicated region
    $region18: #{tpu_custom_call.1} parent=1 // pred_check
      _
    $region19: #{tpu_custom_call.1} parent=1 // pred_check_branch
      %87 = sbr.rel (0) target = $region21
    $region20: #{tpu_custom_call.1} parent=1 // pred_region
      %s89 = ssub.s32 1024, 1024
      %90 = vsyncadd [#allocation11], %s89
      %s91 = sshll.u32 [#allocation12], 4
      %s92 = int_to_ptr.vmem [resolvable:$true] %s91
      %97 = dma.hbm_to_vmem [thread:$0]  %s5, 1024, %s92, [#allocation11], 128, 128, 8
    $region21: #{tpu_custom_call.1} parent=1 // pred_fallthru
      _
    // Predicated region
    $region22: #{tpu_custom_call.1} parent=1 // pred_check
      _
    $region23: #{tpu_custom_call.1} parent=1 // pred_check_branch
      %99 = sbr.rel (0) target = $region25
    $region24: #{tpu_custom_call.1} parent=1 // pred_region
      %s101 = ssub.s32 1024, 1024
      %102 = vsyncadd [#allocation14], %s101
      %s103 = sshll.u32 [#allocation13], 4
      %s104 = int_to_ptr.vmem [resolvable:$true] %s103
      %109 = dma.hbm_to_vmem [thread:$0]  %s6, 1024, %s104, [#allocation14], 128, 128, 8
    $region25: #{tpu_custom_call.1} parent=1 // pred_fallthru
      _
    // Predicated region
    $region26: #{tpu_custom_call.1} parent=1 // pred_check
      _
    $region27: #{tpu_custom_call.1} parent=1 // pred_check_branch
      %111 = sbr.rel (0) target = $region29
    $region28: #{tpu_custom_call.1} parent=1 // pred_region
      %s113 = ssub.s32 256, 256
      %114 = vsyncadd [#allocation14], %s113
      %s115 = sshll.u32 [#allocation15], 4
      %s116 = int_to_ptr.vmem [resolvable:$true] %s115
      %121 = dma.hbm_to_vmem [thread:$0]  %s7, 256, %s116, [#allocation14], 128, 128, 8
    $region29: #{tpu_custom_call.1} parent=1 // pred_fallthru
      _
    // Predicated region
    $region30: #{tpu_custom_call.1} parent=1 // pred_check
      _
    $region31: #{tpu_custom_call.1} parent=1 // pred_check_branch
      %123 = sbr.rel (0) target = $region33
    $region32: #{tpu_custom_call.1} parent=1 // pred_region
      %s125 = ssub.s32 1152, 1152
      %126 = vsyncadd [#allocation17], %s125
      %s127 = sshll.u32 [#allocation16], 4
      %s128 = int_to_ptr.vmem [resolvable:$true] %s127
      %133 = dma.hbm_to_vmem [thread:$0]  %s8, 1152, %s128, [#allocation17], 128, 128, 8
    $region33: #{tpu_custom_call.1} parent=1 // pred_fallthru
      _
    // Predicated region
    $region34: #{tpu_custom_call.1} parent=1 // pred_check
      _
    $region35: #{tpu_custom_call.1} parent=1 // pred_check_branch
      %135 = sbr.rel (0) target = $region37
    $region36: #{tpu_custom_call.1} parent=1 // pred_region
      %s137 = ssub.s32 256, 256
      %138 = vsyncadd [#allocation17], %s137
      %s139 = sshll.u32 [#allocation18], 4
      %s140 = int_to_ptr.vmem [resolvable:$true] %s139
      %145 = dma.hbm_to_vmem [thread:$0]  %s9, 256, %s140, [#allocation17], 128, 128, 8
    $region37: #{tpu_custom_call.1} parent=1 // pred_fallthru
      _
    // Predicated region
    $region38: #{tpu_custom_call.1} parent=1 // pred_check
      _
    $region39: #{tpu_custom_call.1} parent=1 // pred_check_branch
      %147 = sbr.rel (0) target = $region41
    $region40: #{tpu_custom_call.1} parent=1 // pred_region
      %s149 = ssub.s32 1024, 1024
      %150 = vsyncadd [#allocation20], %s149
      %s151 = sshll.u32 [#allocation19], 4
      %s152 = int_to_ptr.vmem [resolvable:$true] %s151
      %157 = dma.hbm_to_vmem [thread:$0]  %s10, 1024, %s152, [#allocation20], 128, 128, 8
    $region41: #{tpu_custom_call.1} parent=1 // pred_fallthru
      _
    // Predicated region
    $region42: #{tpu_custom_call.1} parent=1 // pred_check
      _
    $region43: #{tpu_custom_call.1} parent=1 // pred_check_branch
      %159 = sbr.rel (0) target = $region45
    $region44: #{tpu_custom_call.1} parent=1 // pred_region
      %s161 = ssub.s32 512, 512
      %162 = vsyncadd [#allocation20], %s161
      %s163 = sshll.u32 [#allocation21], 4
      %s164 = int_to_ptr.vmem [resolvable:$true] %s163
      %169 = dma.hbm_to_vmem [thread:$0]  %s11, 512, %s164, [#allocation20], 128, 128, 8
    $region45: #{tpu_custom_call.1} parent=1 // pred_fallthru
      _
    // Predicated region
    $region46: #{tpu_custom_call.1} parent=1 // pred_check
      _
    $region47: #{tpu_custom_call.1} parent=1 // pred_check_branch
      %171 = sbr.rel (0) target = $region49
    $region48: #{tpu_custom_call.1} parent=1 // pred_region
      %s173 = ssub.s32 1280, 1280
      %174 = vsyncadd [#allocation23], %s173
      %s175 = sshll.u32 [#allocation22], 4
      %s176 = int_to_ptr.vmem [resolvable:$true] %s175
      %181 = dma.hbm_to_vmem [thread:$0]  %s12, 1280, %s176, [#allocation23], 128, 128, 8
    $region49: #{tpu_custom_call.1} parent=1 // pred_fallthru
      _
    // Predicated region
    $region50: #{tpu_custom_call.1} parent=1 // pred_check
      _
    $region51: #{tpu_custom_call.1} parent=1 // pred_check_branch
      %183 = sbr.rel (0) target = $region53
    $region52: #{tpu_custom_call.1} parent=1 // pred_region
      %s185 = ssub.s32 512, 512
      %186 = vsyncadd [#allocation23], %s185
      %s187 = sshll.u32 [#allocation24], 4
      %s188 = int_to_ptr.vmem [resolvable:$true] %s187
      %193 = dma.hbm_to_vmem [thread:$0]  %s13, 512, %s188, [#allocation23], 128, 128, 8
    $region53: #{tpu_custom_call.1} parent=1 // pred_fallthru
      _
    // Predicated region
    $region54: #{tpu_custom_call.1} parent=1 // pred_check
      _
    $region55: #{tpu_custom_call.1} parent=1 // pred_check_branch
      %195 = sbr.rel (0) target = $region57
    $region56: #{tpu_custom_call.1} parent=1 // pred_region
      %s197 = ssub.s32 1024, 1024
      %198 = vsyncadd [#allocation26], %s197
      %s199 = sshll.u32 [#allocation25], 4
      %s200 = int_to_ptr.vmem [resolvable:$true] %s199
      %205 = dma.hbm_to_vmem [thread:$0]  %s14, 1024, %s200, [#allocation26], 128, 128, 8
    $region57: #{tpu_custom_call.1} parent=1 // pred_fallthru
      _
    // Predicated region
    $region58: #{tpu_custom_call.1} parent=1 // pred_check
      _
    $region59: #{tpu_custom_call.1} parent=1 // pred_check_branch
      %207 = sbr.rel (0) target = $region61
    $region60: #{tpu_custom_call.1} parent=1 // pred_region
      %s209 = ssub.s32 256, 256
      %210 = vsyncadd [#allocation26], %s209
      %s211 = sshll.u32 [#allocation27], 4
      %s212 = int_to_ptr.vmem [resolvable:$true] %s211
      %217 = dma.hbm_to_vmem [thread:$0]  %s15, 256, %s212, [#allocation26], 128, 128, 8
    $region61: #{tpu_custom_call.1} parent=1 // pred_fallthru
      _
    // Predicated region
    $region62: #{tpu_custom_call.1} parent=1 // pred_check
      _
    $region63: #{tpu_custom_call.1} parent=1 // pred_check_branch
      %219 = sbr.rel (0) target = $region65
    $region64: #{tpu_custom_call.1} parent=1 // pred_region
      %s221 = ssub.s32 1024, 1024
      %222 = vsyncadd [#allocation29], %s221
      %s223 = sshll.u32 [#allocation28], 4
      %s224 = int_to_ptr.vmem [resolvable:$true] %s223
      %229 = dma.hbm_to_vmem [thread:$0]  %s16, 1024, %s224, [#allocation29], 128, 128, 8
    $region65: #{tpu_custom_call.1} parent=1 // pred_fallthru
      _
    // Predicated region
    $region66: #{tpu_custom_call.1} parent=1 // pred_check
      _
    $region67: #{tpu_custom_call.1} parent=1 // pred_check_branch
      %231 = sbr.rel (0) target = $region69
    $region68: #{tpu_custom_call.1} parent=1 // pred_region
      %s233 = ssub.s32 512, 512
      %234 = vsyncadd [#allocation29], %s233
      %s235 = sshll.u32 [#allocation30], 4
      %s236 = int_to_ptr.vmem [resolvable:$true] %s235
      %241 = dma.hbm_to_vmem [thread:$0]  %s17, 512, %s236, [#allocation29], 128, 128, 8
    $region69: #{tpu_custom_call.1} parent=1 // pred_fallthru
      _
    // Predicated region
    $region70: #{tpu_custom_call.1} parent=1 // pred_check
      _
    $region71: #{tpu_custom_call.1} parent=1 // pred_check_branch
      %243 = sbr.rel (0) target = $region73
    $region72: #{tpu_custom_call.1} parent=1 // pred_region
      _
    $region73: #{tpu_custom_call.1} parent=1 // pred_fallthru
      _
    // Predicated region
    $region74: #{tpu_custom_call.1} parent=1 // pred_check
      _
    $region75: #{tpu_custom_call.1} parent=1 // pred_check_branch
      %245 = sbr.rel (0) target = $region77
    $region76: #{tpu_custom_call.1} parent=1 // pred_region
      %246 = dma.done [#allocation5], 768
    $region77: #{tpu_custom_call.1} parent=1 // pred_fallthru
      _
    // Predicated region
    $region78: #{tpu_custom_call.1} parent=1 // pred_check
      _
    $region79: #{tpu_custom_call.1} parent=1 // pred_check_branch
      %248 = sbr.rel (0) target = $region81
    $region80: #{tpu_custom_call.1} parent=1 // pred_region
      %249 = dma.done [#allocation8], 384
    $region81: #{tpu_custom_call.1} parent=1 // pred_fallthru
      _
    // Predicated region
    $region82: #{tpu_custom_call.1} parent=1 // pred_check
      _
    $region83: #{tpu_custom_call.1} parent=1 // pred_check_branch
      %251 = sbr.rel (0) target = $region85
    $region84: #{tpu_custom_call.1} parent=1 // pred_region
      %252 = dma.done [#allocation8], 256
    $region85: #{tpu_custom_call.1} parent=1 // pred_fallthru
      _
    // Predicated region
    $region86: #{tpu_custom_call.1} parent=1 // pred_check
      _
    $region87: #{tpu_custom_call.1} parent=1 // pred_check_branch
      %254 = sbr.rel (0) target = $region89
    $region88: #{tpu_custom_call.1} parent=1 // pred_region
      %255 = dma.done [#allocation11], 1024
    $region89: #{tpu_custom_call.1} parent=1 // pred_fallthru
      _
    // Predicated region
    $region90: #{tpu_custom_call.1} parent=1 // pred_check
      _
    $region91: #{tpu_custom_call.1} parent=1 // pred_check_branch
      %257 = sbr.rel (0) target = $region93
    $region92: #{tpu_custom_call.1} parent=1 // pred_region
      %258 = dma.done [#allocation11], 1024
    $region93: #{tpu_custom_call.1} parent=1 // pred_fallthru
      _
    // Predicated region
    $region94: #{tpu_custom_call.1} parent=1 // pred_check
      _
    $region95: #{tpu_custom_call.1} parent=1 // pred_check_branch
      %260 = sbr.rel (0) target = $region97
    $region96: #{tpu_custom_call.1} parent=1 // pred_region
      %261 = dma.done [#allocation14], 1024
    $region97: #{tpu_custom_call.1} parent=1 // pred_fallthru
      _
    // Predicated region
    $region98: #{tpu_custom_call.1} parent=1 // pred_check
      _
    $region99: #{tpu_custom_call.1} parent=1 // pred_check_branch
      %263 = sbr.rel (0) target = $region101
    $region100: #{tpu_custom_call.1} parent=1 // pred_region
      %264 = dma.done [#allocation14], 256
    $region101: #{tpu_custom_call.1} parent=1 // pred_fallthru
      _
    // Predicated region
    $region102: #{tpu_custom_call.1} parent=1 // pred_check
      _
    $region103: #{tpu_custom_call.1} parent=1 // pred_check_branch
      %266 = sbr.rel (0) target = $region105
    $region104: #{tpu_custom_call.1} parent=1 // pred_region
      %267 = dma.done [#allocation17], 1152
    $region105: #{tpu_custom_call.1} parent=1 // pred_fallthru
      _
    // Predicated region
    $region106: #{tpu_custom_call.1} parent=1 // pred_check
      _
    $region107: #{tpu_custom_call.1} parent=1 // pred_check_branch
      %269 = sbr.rel (0) target = $region109
    $region108: #{tpu_custom_call.1} parent=1 // pred_region
      %270 = dma.done [#allocation17], 256
    $region109: #{tpu_custom_call.1} parent=1 // pred_fallthru
      _
    // Predicated region
    $region110: #{tpu_custom_call.1} parent=1 // pred_check
      _
    $region111: #{tpu_custom_call.1} parent=1 // pred_check_branch
      %272 = sbr.rel (0) target = $region113
    $region112: #{tpu_custom_call.1} parent=1 // pred_region
      %273 = dma.done [#allocation20], 1024
    $region113: #{tpu_custom_call.1} parent=1 // pred_fallthru
      _
    // Predicated region
    $region114: #{tpu_custom_call.1} parent=1 // pred_check
      _
    $region115: #{tpu_custom_call.1} parent=1 // pred_check_branch
      %275 = sbr.rel (0) target = $region117
    $region116: #{tpu_custom_call.1} parent=1 // pred_region
      %276 = dma.done [#allocation20], 512
    $region117: #{tpu_custom_call.1} parent=1 // pred_fallthru
      _
    // Predicated region
    $region118: #{tpu_custom_call.1} parent=1 // pred_check
      _
    $region119: #{tpu_custom_call.1} parent=1 // pred_check_branch
      %278 = sbr.rel (0) target = $region121
    $region120: #{tpu_custom_call.1} parent=1 // pred_region
      %279 = dma.done [#allocation23], 1280
    $region121: #{tpu_custom_call.1} parent=1 // pred_fallthru
      _
    // Predicated region
    $region122: #{tpu_custom_call.1} parent=1 // pred_check
      _
    $region123: #{tpu_custom_call.1} parent=1 // pred_check_branch
      %281 = sbr.rel (0) target = $region125
    $region124: #{tpu_custom_call.1} parent=1 // pred_region
      %282 = dma.done [#allocation23], 512
    $region125: #{tpu_custom_call.1} parent=1 // pred_fallthru
      _
    // Predicated region
    $region126: #{tpu_custom_call.1} parent=1 // pred_check
      _
    $region127: #{tpu_custom_call.1} parent=1 // pred_check_branch
      %284 = sbr.rel (0) target = $region129
    $region128: #{tpu_custom_call.1} parent=1 // pred_region
      %285 = dma.done [#allocation26], 1024
    $region129: #{tpu_custom_call.1} parent=1 // pred_fallthru
      _
    // Predicated region
    $region130: #{tpu_custom_call.1} parent=1 // pred_check
      _
    $region131: #{tpu_custom_call.1} parent=1 // pred_check_branch
      %287 = sbr.rel (0) target = $region133
    $region132: #{tpu_custom_call.1} parent=1 // pred_region
      %288 = dma.done [#allocation26], 256
    $region133: #{tpu_custom_call.1} parent=1 // pred_fallthru
      _
    // Predicated region
    $region134: #{tpu_custom_call.1} parent=1 // pred_check
      _
    $region135: #{tpu_custom_call.1} parent=1 // pred_check_branch
      %290 = sbr.rel (0) target = $region137
    $region136: #{tpu_custom_call.1} parent=1 // pred_region
      %291 = dma.done [#allocation29], 1024
    $region137: #{tpu_custom_call.1} parent=1 // pred_fallthru
      _
    // Predicated region
    $region138: #{tpu_custom_call.1} parent=1 // pred_check
      _
    $region139: #{tpu_custom_call.1} parent=1 // pred_check_branch
      %293 = sbr.rel (0) target = $region141
    $region140: #{tpu_custom_call.1} parent=1 // pred_region
      %294 = dma.done [#allocation29], 512
    $region141: #{tpu_custom_call.1} parent=1 // pred_fallthru
      _
    %v295 = vld [vmem:[#allocation4] sm:$0xff]
    %v296 = vld [vmem:[#allocation4 + $0x8] sm:$0xff]
    %v297 = vld [vmem:[#allocation4 + $0x10] sm:$0xff]
    %v298 = vld [vmem:[#allocation4 + $0x18] sm:$0xff]
    %v299 = vld [vmem:[#allocation4 + $0x20] sm:$0xff]
    %v300 = vld [vmem:[#allocation4 + $0x28] sm:$0xff]
    %v301 = vld [vmem:[#allocation7] sm:$0xff]
    %v302 = vld [vmem:[#allocation7 + $0x8] sm:$0xff]
    %v303 = vld [vmem:[#allocation7 + $0x10] sm:$0xff]
    %v304 = vld [vmem:[#allocation10] sm:$0xff]
    %v305 = vld [vmem:[#allocation10 + $0x8] sm:$0xff]
    %v306 = vld [vmem:[#allocation10 + $0x10] sm:$0xff]
    %v307 = vld [vmem:[#allocation10 + $0x18] sm:$0xff]
    %v308 = vld [vmem:[#allocation10 + $0x20] sm:$0xff]
    %v309 = vld [vmem:[#allocation10 + $0x28] sm:$0xff]
    %v310 = vld [vmem:[#allocation10 + $0x30] sm:$0xff]
    %v311 = vld [vmem:[#allocation10 + $0x38] sm:$0xff]
    %v312 = vmax.f32 %v295, 0.0
    %v313 = vmax.f32 %v296, 0.0
    %v314 = vmax.f32 %v297, 0.0
    %v315 = vmax.f32 %v298, 0.0
    %v316 = vmax.f32 %v299, 0.0
    %v317 = vmax.f32 %v300, 0.0
    %s318 = sld [smem:[#allocation3 + $0x3]]
    %s319 = sadd.f32 %s318, 1.0
    %v320 = vstv %s319
    %v321 = vmul.f32 %v295, %v320
    %v322 = vmul.f32 %v296, %v320
    %v323 = vmul.f32 %v297, %v320
    %v324 = vmul.f32 %v298, %v320
    %v325 = vmul.f32 %v299, %v320
    %v326 = vmul.f32 %v300, %v320
    %v327 = vsub.f32 1.0, %v301
    %v328 = vsub.f32 1.0, %v302
    %v329 = vsub.f32 1.0, %v303
    %v330 = vmul.f32 %v327, -1e+30
    %v331 = vmul.f32 %v328, -1e+30
    %v332 = vmul.f32 %v329, -1e+30
    %v333 = vadd.f32 %v295, %v330
    %v334 = vadd.f32 %v296, %v331
    %v335 = vadd.f32 %v297, %v332
    %v336 = vadd.f32 %v298, %v330
    %v337 = vadd.f32 %v299, %v331
    %v338 = vadd.f32 %v300, %v332
    %345 = vrot.lane.b32.xlu0 %v333, 124
    %v346 = vpop.permute.xlu0 %345
    %347 = vrot.lane.b32.xlu0 %v334, 124
    %v348 = vpop.permute.xlu0 %347
    %349 = vrot.lane.b32.xlu0 %v335, 124
    %v350 = vpop.permute.xlu0 %349
    %351 = vrot.lane.b32.xlu0 %v336, 124
    %v352 = vpop.permute.xlu0 %351
    %353 = vrot.lane.b32.xlu0 %v337, 124
    %v354 = vpop.permute.xlu0 %353
    %355 = vrot.lane.b32.xlu0 %v338, 124
    %v356 = vpop.permute.xlu0 %355
    %v363 = vmax.f32 %v333, %v346
    %v364 = vmax.f32 %v334, %v348
    %v365 = vmax.f32 %v335, %v350
    %v366 = vmax.f32 %v336, %v352
    %v367 = vmax.f32 %v337, %v354
    %v368 = vmax.f32 %v338, %v356
    %375 = vrot.lane.b32.xlu0 %v295, 124
    %v376 = vpop.permute.xlu0 %375
    %377 = vrot.lane.b32.xlu0 %v296, 124
    %v378 = vpop.permute.xlu0 %377
    %379 = vrot.lane.b32.xlu0 %v297, 124
    %v380 = vpop.permute.xlu0 %379
    %381 = vrot.lane.b32.xlu0 %v298, 124
    %v382 = vpop.permute.xlu0 %381
    %383 = vrot.lane.b32.xlu0 %v299, 124
    %v384 = vpop.permute.xlu0 %383
    %385 = vrot.lane.b32.xlu0 %v300, 124
    %v386 = vpop.permute.xlu0 %385
    %v393 = vadd.f32 %v295, %v376
    %v394 = vadd.f32 %v296, %v378
    %v395 = vadd.f32 %v297, %v380
    %v396 = vadd.f32 %v298, %v382
    %v397 = vadd.f32 %v299, %v384
    %v398 = vadd.f32 %v300, %v386
    %399 = vrot.lane.b32.xlu0 %v333, 120
    %v400 = vpop.permute.xlu0 %399
    %401 = vrot.lane.b32.xlu0 %v334, 120
    %v402 = vpop.permute.xlu0 %401
    %403 = vrot.lane.b32.xlu0 %v335, 120
    %v404 = vpop.permute.xlu0 %403
    %405 = vrot.lane.b32.xlu0 %v336, 120
    %v406 = vpop.permute.xlu0 %405
    %407 = vrot.lane.b32.xlu0 %v337, 120
    %v408 = vpop.permute.xlu0 %407
    %409 = vrot.lane.b32.xlu0 %v338, 120
    %v410 = vpop.permute.xlu0 %409
    %v417 = vmax.f32 %v363, %v400
    %v418 = vmax.f32 %v364, %v402
    %v419 = vmax.f32 %v365, %v404
    %v420 = vmax.f32 %v366, %v406
    %v421 = vmax.f32 %v367, %v408
    %v422 = vmax.f32 %v368, %v410
    %423 = vrot.lane.b32.xlu0 %v295, 120
    %v424 = vpop.permute.xlu0 %423
    %425 = vrot.lane.b32.xlu0 %v296, 120
    %v426 = vpop.permute.xlu0 %425
    %427 = vrot.lane.b32.xlu0 %v297, 120
    %v428 = vpop.permute.xlu0 %427
    %429 = vrot.lane.b32.xlu0 %v298, 120
    %v430 = vpop.permute.xlu0 %429
    %431 = vrot.lane.b32.xlu0 %v299, 120
    %v432 = vpop.permute.xlu0 %431
    %433 = vrot.lane.b32.xlu0 %v300, 120
    %v434 = vpop.permute.xlu0 %433
    %v441 = vadd.f32 %v393, %v424
    %v442 = vadd.f32 %v394, %v426
    %v443 = vadd.f32 %v395, %v428
    %v444 = vadd.f32 %v396, %v430
    %v445 = vadd.f32 %v397, %v432
    %v446 = vadd.f32 %v398, %v434
    %vm447 = vcmask 1046528
    %v448 = vrot.slane %v333, 1
    %v449 = vrot.slane %v334, 1
    %v450 = vsel %vm447, %v448, %v449
    %v451 = vrot.slane %v335, 1
    %v452 = vsel %vm447, %v449, %v451
    %v453 = vrot.slane %v336, 1
    %v454 = vrot.slane %v337, 1
    %v455 = vsel %vm447, %v453, %v454
    %v456 = vrot.slane %v338, 1
    %v457 = vsel %vm447, %v454, %v456
    %v464 = vmax.f32 %v417, %v450
    %v465 = vmax.f32 %v418, %v452
    %v466 = vmax.f32 %v419, %v451
    %v467 = vmax.f32 %v420, %v455
    %v468 = vmax.f32 %v421, %v457
    %v469 = vmax.f32 %v422, %v456
    %v470 = vrot.slane %v295, 1
    %v471 = vrot.slane %v296, 1
    %v472 = vsel %vm447, %v470, %v471
    %v473 = vrot.slane %v297, 1
    %v474 = vsel %vm447, %v471, %v473
    %v475 = vrot.slane %v298, 1
    %v476 = vrot.slane %v299, 1
    %v477 = vsel %vm447, %v475, %v476
    %v478 = vrot.slane %v300, 1
    %v479 = vsel %vm447, %v476, %v478
    %v486 = vadd.f32 %v441, %v472
    %v487 = vadd.f32 %v442, %v474
    %v488 = vadd.f32 %v443, %v473
    %v489 = vadd.f32 %v444, %v477
    %v490 = vadd.f32 %v445, %v479
    %v491 = vadd.f32 %v446, %v478
    %492 = vrot.lane.b32.xlu0 %v450, 124
    %v493 = vpop.permute.xlu0 %492
    %494 = vrot.lane.b32.xlu0 %v452, 124
    %v495 = vpop.permute.xlu0 %494
    %496 = vrot.lane.b32.xlu0 %v451, 124
    %v497 = vpop.permute.xlu0 %496
    %498 = vrot.lane.b32.xlu0 %v455, 124
    %v499 = vpop.permute.xlu0 %498
    %500 = vrot.lane.b32.xlu0 %v457, 124
    %v501 = vpop.permute.xlu0 %500
    %502 = vrot.lane.b32.xlu0 %v456, 124
    %v503 = vpop.permute.xlu0 %502
    %v510 = vmax.f32 %v464, %v493
    %v511 = vmax.f32 %v465, %v495
    %v512 = vmax.f32 %v466, %v497
    %v513 = vmax.f32 %v467, %v499
    %v514 = vmax.f32 %v468, %v501
    %v515 = vmax.f32 %v469, %v503
    %516 = vrot.lane.b32.xlu0 %v472, 124
    %v517 = vpop.permute.xlu0 %516
    %518 = vrot.lane.b32.xlu0 %v474, 124
    %v519 = vpop.permute.xlu0 %518
    %520 = vrot.lane.b32.xlu0 %v473, 124
    %v521 = vpop.permute.xlu0 %520
    %522 = vrot.lane.b32.xlu0 %v477, 124
    %v523 = vpop.permute.xlu0 %522
    %524 = vrot.lane.b32.xlu0 %v479, 124
    %v525 = vpop.permute.xlu0 %524
    %526 = vrot.lane.b32.xlu0 %v478, 124
    %v527 = vpop.permute.xlu0 %526
    %v534 = vadd.f32 %v486, %v517
    %v535 = vadd.f32 %v487, %v519
    %v536 = vadd.f32 %v488, %v521
    %v537 = vadd.f32 %v489, %v523
    %v538 = vadd.f32 %v490, %v525
    %v539 = vadd.f32 %v491, %v527
    %540 = vrot.lane.b32.xlu0 %v450, 120
    %v541 = vpop.permute.xlu0 %540
    %542 = vrot.lane.b32.xlu0 %v452, 120
    %v543 = vpop.permute.xlu0 %542
    %544 = vrot.lane.b32.xlu0 %v451, 120
    %v545 = vpop.permute.xlu0 %544
    %546 = vrot.lane.b32.xlu0 %v455, 120
    %v547 = vpop.permute.xlu0 %546
    %548 = vrot.lane.b32.xlu0 %v457, 120
    %v549 = vpop.permute.xlu0 %548
    %550 = vrot.lane.b32.xlu0 %v456, 120
    %v551 = vpop.permute.xlu0 %550
    %v558 = vmax.f32 %v510, %v541
    %v559 = vmax.f32 %v511, %v543
    %v560 = vmax.f32 %v512, %v545
    %v561 = vmax.f32 %v513, %v547
    %v562 = vmax.f32 %v514, %v549
    %v563 = vmax.f32 %v515, %v551
    %564 = vrot.lane.b32.xlu0 %v472, 120
    %v565 = vpop.permute.xlu0 %564
    %566 = vrot.lane.b32.xlu0 %v474, 120
    %v567 = vpop.permute.xlu0 %566
    %568 = vrot.lane.b32.xlu0 %v473, 120
    %v569 = vpop.permute.xlu0 %568
    %570 = vrot.lane.b32.xlu0 %v477, 120
    %v571 = vpop.permute.xlu0 %570
    %572 = vrot.lane.b32.xlu0 %v479, 120
    %v573 = vpop.permute.xlu0 %572
    %574 = vrot.lane.b32.xlu0 %v478, 120
    %v575 = vpop.permute.xlu0 %574
    %v582 = vadd.f32 %v534, %v565
    %v583 = vadd.f32 %v535, %v567
    %v584 = vadd.f32 %v536, %v569
    %v585 = vadd.f32 %v537, %v571
    %v586 = vadd.f32 %v538, %v573
    %v587 = vadd.f32 %v539, %v575
    %vm588 = vcmask 1045504
    %v589 = vrot.slane %v333, 2
    %v590 = vrot.slane %v334, 2
    %v591 = vsel %vm588, %v589, %v590
    %v592 = vrot.slane %v335, 2
    %v593 = vsel %vm588, %v590, %v592
    %v594 = vrot.slane %v336, 2
    %v595 = vrot.slane %v337, 2
    %v596 = vsel %vm588, %v594, %v595
    %v597 = vrot.slane %v338, 2
    %v598 = vsel %vm588, %v595, %v597
    %v605 = vmax.f32 %v558, %v591
    %v606 = vmax.f32 %v559, %v593
    %v607 = vmax.f32 %v560, %v592
    %v608 = vmax.f32 %v561, %v596
    %v609 = vmax.f32 %v562, %v598
    %v610 = vmax.f32 %v563, %v597
    %v611 = vrot.slane %v295, 2
    %v612 = vrot.slane %v296, 2
    %v613 = vsel %vm588, %v611, %v612
    %v614 = vrot.slane %v297, 2
    %v615 = vsel %vm588, %v612, %v614
    %v616 = vrot.slane %v298, 2
    %v617 = vrot.slane %v299, 2
    %v618 = vsel %vm588, %v616, %v617
    %v619 = vrot.slane %v300, 2
    %v620 = vsel %vm588, %v617, %v619
    %v627 = vadd.f32 %v582, %v613
    %v628 = vadd.f32 %v583, %v615
    %v629 = vadd.f32 %v584, %v614
    %v630 = vadd.f32 %v585, %v618
    %v631 = vadd.f32 %v586, %v620
    %v632 = vadd.f32 %v587, %v619
    %633 = vrot.lane.b32.xlu0 %v591, 124
    %v634 = vpop.permute.xlu0 %633
    %635 = vrot.lane.b32.xlu0 %v593, 124
    %v636 = vpop.permute.xlu0 %635
    %637 = vrot.lane.b32.xlu0 %v592, 124
    %v638 = vpop.permute.xlu0 %637
    %639 = vrot.lane.b32.xlu0 %v596, 124
    %v640 = vpop.permute.xlu0 %639
    %641 = vrot.lane.b32.xlu0 %v598, 124
    %v642 = vpop.permute.xlu0 %641
    %643 = vrot.lane.b32.xlu0 %v597, 124
    %v644 = vpop.permute.xlu0 %643
    %v651 = vmax.f32 %v605, %v634
    %v652 = vmax.f32 %v606, %v636
    %v653 = vmax.f32 %v607, %v638
    %v654 = vmax.f32 %v608, %v640
    %v655 = vmax.f32 %v609, %v642
    %v656 = vmax.f32 %v610, %v644
    %657 = vrot.lane.b32.xlu0 %v613, 124
    %v658 = vpop.permute.xlu0 %657
    %659 = vrot.lane.b32.xlu0 %v615, 124
    %v660 = vpop.permute.xlu0 %659
    %661 = vrot.lane.b32.xlu0 %v614, 124
    %v662 = vpop.permute.xlu0 %661
    %663 = vrot.lane.b32.xlu0 %v618, 124
    %v664 = vpop.permute.xlu0 %663
    %665 = vrot.lane.b32.xlu0 %v620, 124
    %v666 = vpop.permute.xlu0 %665
    %667 = vrot.lane.b32.xlu0 %v619, 124
    %v668 = vpop.permute.xlu0 %667
    %v675 = vadd.f32 %v627, %v658
    %v676 = vadd.f32 %v628, %v660
    %v677 = vadd.f32 %v629, %v662
    %v678 = vadd.f32 %v630, %v664
    %v679 = vadd.f32 %v631, %v666
    %v680 = vadd.f32 %v632, %v668
    %681 = vrot.lane.b32.xlu0 %v591, 120
    %v682 = vpop.permute.xlu0 %681
    %683 = vrot.lane.b32.xlu0 %v593, 120
    %v684 = vpop.permute.xlu0 %683
    %685 = vrot.lane.b32.xlu0 %v592, 120
    %v686 = vpop.permute.xlu0 %685
    %687 = vrot.lane.b32.xlu0 %v596, 120
    %v688 = vpop.permute.xlu0 %687
    %689 = vrot.lane.b32.xlu0 %v598, 120
    %v690 = vpop.permute.xlu0 %689
    %691 = vrot.lane.b32.xlu0 %v597, 120
    %v692 = vpop.permute.xlu0 %691
    %v699 = vmax.f32 %v651, %v682
    %v700 = vmax.f32 %v652, %v684
    %v701 = vmax.f32 %v653, %v686
    %v702 = vmax.f32 %v654, %v688
    %v703 = vmax.f32 %v655, %v690
    %v704 = vmax.f32 %v656, %v692
    %705 = vrot.lane.b32.xlu0 %v613, 120
    %v706 = vpop.permute.xlu0 %705
    %707 = vrot.lane.b32.xlu0 %v615, 120
    %v708 = vpop.permute.xlu0 %707
    %709 = vrot.lane.b32.xlu0 %v614, 120
    %v710 = vpop.permute.xlu0 %709
    %711 = vrot.lane.b32.xlu0 %v618, 120
    %v712 = vpop.permute.xlu0 %711
    %713 = vrot.lane.b32.xlu0 %v620, 120
    %v714 = vpop.permute.xlu0 %713
    %715 = vrot.lane.b32.xlu0 %v619, 120
    %v716 = vpop.permute.xlu0 %715
    %v723 = vadd.f32 %v675, %v706
    %v724 = vadd.f32 %v676, %v708
    %v725 = vadd.f32 %v677, %v710
    %v726 = vadd.f32 %v678, %v712
    %v727 = vadd.f32 %v679, %v714
    %v728 = vadd.f32 %v680, %v716
    %v729 = vld [vmem:[#allocation9] sm:$0xff]
    %v730 = vld [vmem:[#allocation9 + $0x8] sm:$0xff]
    %vm733 = vcmask 1042432
    %v734 = vrot.slane %v729, 5
    %v735 = vrot.slane %v730, 5
    %v736 = vsel %vm733, %v734, %v735
    %737 = vrot.lane.b32.xlu0 %v734, 12
    %v738 = vpop.permute.xlu0 %737
    %739 = vrot.lane.b32.xlu0 %v736, 12
    %v740 = vpop.permute.xlu0 %739
    %741 = vrot.lane.b32.xlu0 %v735, 12
    %v742 = vpop.permute.xlu0 %741
    %v746 = vmul.f32 %v723, %v738
    %v747 = vmul.f32 %v724, %v740
    %v748 = vmul.f32 %v725, %v742
    %v749 = vmul.f32 %v726, %v738
    %v750 = vmul.f32 %v727, %v740
    %v751 = vmul.f32 %v728, %v742
    %s752 = sld [smem:[#allocation3 + $0x1]]
    %vm756 = vcmask 1044480
    %v757 = vrot.slane %v699, 3
    %v758 = vrot.slane %v700, 3
    %v759 = vsel %vm756, %v757, %v758
    %v760 = vrot.slane %v701, 3
    %v761 = vsel %vm756, %v758, %v760
    %vm764 = vcmask 621664
    %v765 = vsel %vm764, %v759, 0.0
    %v766 = vsel %vm764, %v761, 0.0
    %v767 = vadd.f32 %v765, %v766
    %v768 = vrot.slane %v767, 4
    %v769 = vadd.f32 %v767, %v768
    %v770 = vrot.slane %v769, 2
    %v771 = vadd.f32 %v769, %v770
    %v772 = vrot.slane %v771, 1
    %v773 = vadd.f32 %v771, %v772
    %v774 = vadd.f32 %v773, 0.0
    %v775 = vmul.f32 %v699, %v699
    %v776 = vmul.f32 %v700, %v700
    %v777 = vmul.f32 %v701, %v701
    %v781 = vrot.slane %v775, 3
    %v782 = vrot.slane %v776, 3
    %v783 = vsel %vm756, %v781, %v782
    %v784 = vrot.slane %v777, 3
    %v785 = vsel %vm756, %v782, %v784
    %v788 = vsel %vm764, %v783, 0.0
    %v789 = vsel %vm764, %v785, 0.0
    %v790 = vadd.f32 %v788, %v789
    %v791 = vrot.slane %v790, 4
    %v792 = vadd.f32 %v790, %v791
    %v793 = vrot.slane %v792, 2
    %v794 = vadd.f32 %v792, %v793
    %v795 = vrot.slane %v794, 1
    %v796 = vadd.f32 %v794, %v795
    %v797 = vadd.f32 %v796, 0.0
    %v801 = vrot.slane %v702, 3
    %v802 = vrot.slane %v703, 3
    %v803 = vsel %vm756, %v801, %v802
    %v804 = vrot.slane %v704, 3
    %v805 = vsel %vm756, %v802, %v804
    %v808 = vsel %vm764, %v803, 0.0
    %v809 = vsel %vm764, %v805, 0.0
    %v810 = vadd.f32 %v808, %v809
    %v811 = vrot.slane %v810, 4
    %v812 = vadd.f32 %v810, %v811
    %v813 = vrot.slane %v812, 2
    %v814 = vadd.f32 %v812, %v813
    %v815 = vrot.slane %v814, 1
    %v816 = vadd.f32 %v814, %v815
    %v817 = vadd.f32 %v774, %v816
    %v818 = vmul.f32 %v702, %v702
    %v819 = vmul.f32 %v703, %v703
    %v820 = vmul.f32 %v704, %v704
    %v824 = vrot.slane %v818, 3
    %v825 = vrot.slane %v819, 3
    %v826 = vsel %vm756, %v824, %v825
    %v827 = vrot.slane %v820, 3
    %v828 = vsel %vm756, %v825, %v827
    %v831 = vsel %vm764, %v826, 0.0
    %v832 = vsel %vm764, %v828, 0.0
    %v833 = vadd.f32 %v831, %v832
    %v834 = vrot.slane %v833, 4
    %v835 = vadd.f32 %v833, %v834
    %v836 = vrot.slane %v835, 2
    %v837 = vadd.f32 %v835, %v836
    %v838 = vrot.slane %v837, 1
    %v839 = vadd.f32 %v837, %v838
    %v840 = vadd.f32 %v797, %v839
    %842 = vrot.lane.b32.xlu0 %v817, 116
    %v843 = vpop.permute.xlu0 %842
    %vm844 = vcmask 523264
    %v845 = vsel %vm844, %v843, 0
    %847 = vmatprep.subr.mxu0 0.0
    %848 = vmatpush1.msra.mxu0 %v304
    %849 = vmatprep.subr.mxu0 0.0
    %850 = vmatpush1.msra.mxu0 %v305
    %851 = vmatprep.subr.mxu0 0.0
    %852 = vmatpush1.msra.mxu0 %v306
    %853 = vmatprep.subr.mxu0 0.0
    %854 = vmatpush1.msra.mxu0 %v307
    %855 = vmatprep.subr.mxu0 0.0
    %856 = vmatpush1.msra.mxu0 %v308
    %857 = vmatprep.subr.mxu0 0.0
    %858 = vmatpush1.msra.mxu0 %v309
    %859 = vmatprep.subr.mxu0 0.0
    %860 = vmatpush1.msra.mxu0 %v310
    %861 = vmatprep.subr.mxu0 0.0
    %862 = vmatpush1.msra.mxu0 %v311
    %863 = vmatprep.subr.mxu0 0.0
    %864 = vmatpush1.msra.mxu0 0.0
    %865 = vmatprep.subr.mxu0 0.0
    %866 = vmatpush1.msra.mxu0 0.0
    %867 = vmatprep.subr.mxu0 0.0
    %868 = vmatpush1.msra.mxu0 0.0
    %869 = vmatprep.subr.mxu0 0.0
    %870 = vmatpush1.msra.mxu0 0.0
    %871 = vmatprep.subr.mxu0 0.0
    %872 = vmatpush1.msra.mxu0 0.0
    %873 = vmatprep.subr.mxu0 0.0
    %874 = vmatpush1.msra.mxu0 0.0
    %875 = vmatprep.subr.mxu0 0.0
    %876 = vmatpush1.msra.mxu0 0.0
    %877 = vmatprep.subr.mxu0 0.0
    %878 = vmatpush1.msra.mxu0 0.0
    %879 = vmatprep.subr.mxu0 0.0
    %880 = vmatpush1.msra.mxu0 0.0
    %881 = vmatprep.subr.mxu0 0.0
    %882 = vmatpush1.msra.mxu0 0.0
    %883 = vmatprep.subr.mxu0 0.0
    %884 = vmatpush1.msra.mxu0 0.0
    %885 = vmatprep.subr.mxu0 0.0
    %886 = vmatpush1.msra.mxu0 0.0
    %887 = vmatprep.subr.mxu0 0.0
    %888 = vmatpush1.msra.mxu0 0.0
    %889 = vmatprep.subr.mxu0 0.0
    %890 = vmatpush1.msra.mxu0 0.0
    %891 = vmatprep.subr.mxu0 0.0
    %892 = vmatpush1.msra.mxu0 0.0
    %893 = vmatprep.subr.mxu0 0.0
    %894 = vmatpush1.msra.mxu0 0.0
    %895 = vmatprep.subr.mxu0 0.0
    %896 = vmatpush1.msra.mxu0 0.0
    %897 = vmatprep.subr.mxu0 0.0
    %898 = vmatpush1.msra.mxu0 0.0
    %899 = vmatprep.subr.mxu0 0.0
    %900 = vmatpush1.msra.mxu0 0.0
    %901 = vmatprep.subr.mxu0 0.0
    %902 = vmatpush1.msra.mxu0 0.0
    %903 = vmatprep.subr.mxu0 0.0
    %904 = vmatpush1.msra.mxu0 0.0
    %905 = vmatprep.subr.mxu0 0.0
    %906 = vmatpush1.msra.mxu0 0.0
    %907 = vmatprep.subr.mxu0 0.0
    %908 = vmatpush1.msra.mxu0 0.0
    %909 = vmatprep.subr.mxu0 0.0
    %910 = vmatpush1.msra.mxu0 0.0
    %911 = vmatprep.mubr.f32.mxu0 0.0
    %912 = vmatmul.mubr.f32.gmra.mrb[0].mxu0 %v845
    %v913 = vpop.f32.mrb[0].mxu0
    %v914 = vadd.f32 0.0, %v913
    %v915 = vpop.f32.mrb[0].mxu0
    %916 = vdwg.mxu0
    %918 = vrot.lane.b32.xlu0 %v840, 116
    %v919 = vpop.permute.xlu0 %918
    %v920 = vsel %vm844, %v919, 0
    %922 = vmatprep.subr.mxu0 0.0
    %923 = vmatpush1.msra.mxu0 %v304
    %924 = vmatprep.subr.mxu0 0.0
    %925 = vmatpush1.msra.mxu0 %v305
    %926 = vmatprep.subr.mxu0 0.0
    %927 = vmatpush1.msra.mxu0 %v306
    %928 = vmatprep.subr.mxu0 0.0
    %929 = vmatpush1.msra.mxu0 %v307
    %930 = vmatprep.subr.mxu0 0.0
    %931 = vmatpush1.msra.mxu0 %v308
    %932 = vmatprep.subr.mxu0 0.0
    %933 = vmatpush1.msra.mxu0 %v309
    %934 = vmatprep.subr.mxu0 0.0
    %935 = vmatpush1.msra.mxu0 %v310
    %936 = vmatprep.subr.mxu0 0.0
    %937 = vmatpush1.msra.mxu0 %v311
    %938 = vmatprep.subr.mxu0 0.0
    %939 = vmatpush1.msra.mxu0 0.0
    %940 = vmatprep.subr.mxu0 0.0
    %941 = vmatpush1.msra.mxu0 0.0
    %942 = vmatprep.subr.mxu0 0.0
    %943 = vmatpush1.msra.mxu0 0.0
    %944 = vmatprep.subr.mxu0 0.0
    %945 = vmatpush1.msra.mxu0 0.0
    %946 = vmatprep.subr.mxu0 0.0
    %947 = vmatpush1.msra.mxu0 0.0
    %948 = vmatprep.subr.mxu0 0.0
    %949 = vmatpush1.msra.mxu0 0.0
    %950 = vmatprep.subr.mxu0 0.0
    %951 = vmatpush1.msra.mxu0 0.0
    %952 = vmatprep.subr.mxu0 0.0
    %953 = vmatpush1.msra.mxu0 0.0
    %954 = vmatprep.subr.mxu0 0.0
    %955 = vmatpush1.msra.mxu0 0.0
    %956 = vmatprep.subr.mxu0 0.0
    %957 = vmatpush1.msra.mxu0 0.0
    %958 = vmatprep.subr.mxu0 0.0
    %959 = vmatpush1.msra.mxu0 0.0
    %960 = vmatprep.subr.mxu0 0.0
    %961 = vmatpush1.msra.mxu0 0.0
    %962 = vmatprep.subr.mxu0 0.0
    %963 = vmatpush1.msra.mxu0 0.0
    %964 = vmatprep.subr.mxu0 0.0
    %965 = vmatpush1.msra.mxu0 0.0
    %966 = vmatprep.subr.mxu0 0.0
    %967 = vmatpush1.msra.mxu0 0.0
    %968 = vmatprep.subr.mxu0 0.0
    %969 = vmatpush1.msra.mxu0 0.0
    %970 = vmatprep.subr.mxu0 0.0
    %971 = vmatpush1.msra.mxu0 0.0
    %972 = vmatprep.subr.mxu0 0.0
    %973 = vmatpush1.msra.mxu0 0.0
    %974 = vmatprep.subr.mxu0 0.0
    %975 = vmatpush1.msra.mxu0 0.0
    %976 = vmatprep.subr.mxu0 0.0
    %977 = vmatpush1.msra.mxu0 0.0
    %978 = vmatprep.subr.mxu0 0.0
    %979 = vmatpush1.msra.mxu0 0.0
    %980 = vmatprep.subr.mxu0 0.0
    %981 = vmatpush1.msra.mxu0 0.0
    %982 = vmatprep.subr.mxu0 0.0
    %983 = vmatpush1.msra.mxu0 0.0
    %984 = vmatprep.subr.mxu0 0.0
    %985 = vmatpush1.msra.mxu0 0.0
    %986 = vmatprep.mubr.f32.mxu0 0.0
    %987 = vmatmul.mubr.f32.gmra.mrb[0].mxu0 %v920
    %v988 = vpop.f32.mrb[0].mxu0
    %v989 = vadd.f32 0.0, %v988
    %v990 = vpop.f32.mrb[0].mxu0
    %991 = vdwg.mxu0
    %v992 = vmul.f32 %v914, %v914
    %v993 = vsub.f32 %v989, %v992
    %v994 = vmax.f32 %v993, 0.0
    %v995 = vadd.f32 %v994, 1e-05
    %v996 = vrsqrt.pop %v995
    %v997 = vstv %s752
    %v998 = vmul.f32 %v996, %v997
    %v999 = vlaneseq
    %v1000 = vshrl.u32 %v999, 7
    %v1001 = vsub.s32 0, %v1000
    %v1002 = vrot.slane %v914, %v1001
    %1004 = vrot.lane.b32.xlu0 %v1002, 12
    %v1005 = vpop.permute.xlu0 %1004
    %v1007 = vsub.f32 %v699, %v1005
    %v1008 = vsub.f32 %v700, %v1005
    %v1009 = vsub.f32 %v701, %v1005
    %v1010 = vsub.f32 %v702, %v1005
    %v1011 = vsub.f32 %v703, %v1005
    %v1012 = vsub.f32 %v704, %v1005
    %v1013 = vlaneseq
    %v1014 = vshrl.u32 %v1013, 7
    %v1015 = vsub.s32 0, %v1014
    %v1016 = vrot.slane %v998, %v1015
    %1018 = vrot.lane.b32.xlu0 %v1016, 12
    %v1019 = vpop.permute.xlu0 %1018
    %v1021 = vmul.f32 %v1007, %v1019
    %v1022 = vmul.f32 %v1008, %v1019
    %v1023 = vmul.f32 %v1009, %v1019
    %v1024 = vmul.f32 %v1010, %v1019
    %v1025 = vmul.f32 %v1011, %v1019
    %v1026 = vmul.f32 %v1012, %v1019
    %vm1033 = vcmask 1040384
    %v1034 = vrot.slane %v1021, 7
    %v1035 = vrot.slane %v1022, 7
    %v1036 = vsel %vm1033, %v1034, %v1035
    %v1037 = vrot.slane %v1023, 7
    %v1038 = vsel %vm1033, %v1035, %v1037
    %v1039 = vrot.slane %v1024, 7
    %v1040 = vrot.slane %v1025, 7
    %v1041 = vsel %vm1033, %v1039, %v1040
    %v1042 = vrot.slane %v1026, 7
    %v1043 = vsel %vm1033, %v1040, %v1042
    %1044 = vrot.lane.b32.xlu0 %v1034, 4
    %v1045 = vpop.permute.xlu0 %1044
    %1046 = vrot.lane.b32.xlu0 %v1036, 4
    %v1047 = vpop.permute.xlu0 %1046
    %1048 = vrot.lane.b32.xlu0 %v1038, 4
    %v1049 = vpop.permute.xlu0 %1048
    %1050 = vrot.lane.b32.xlu0 %v1039, 4
    %v1051 = vpop.permute.xlu0 %1050
    %1052 = vrot.lane.b32.xlu0 %v1041, 4
    %v1053 = vpop.permute.xlu0 %1052
    %1054 = vrot.lane.b32.xlu0 %v1043, 4
    %v1055 = vpop.permute.xlu0 %1054
    %v1062 = vadd.f32 %v321, %v1045
    %v1063 = vadd.f32 %v322, %v1047
    %v1064 = vadd.f32 %v323, %v1049
    %v1065 = vadd.f32 %v324, %v1051
    %v1066 = vadd.f32 %v325, %v1053
    %v1067 = vadd.f32 %v326, %v1055
    %s1068 = sld [smem:[#allocation3 + $0x2]]
    %v1072 = vrot.slane %v746, 3
    %v1073 = vrot.slane %v747, 3
    %v1074 = vsel %vm756, %v1072, %v1073
    %v1075 = vrot.slane %v748, 3
    %v1076 = vsel %vm756, %v1073, %v1075
    %v1079 = vsel %vm764, %v1074, 0.0
    %v1080 = vsel %vm764, %v1076, 0.0
    %v1081 = vadd.f32 %v1079, %v1080
    %v1082 = vrot.slane %v1081, 4
    %v1083 = vadd.f32 %v1081, %v1082
    %v1084 = vrot.slane %v1083, 2
    %v1085 = vadd.f32 %v1083, %v1084
    %v1086 = vrot.slane %v1085, 1
    %v1087 = vadd.f32 %v1085, %v1086
    %v1088 = vadd.f32 %v1087, 0.0
    %v1089 = vmul.f32 %v746, %v746
    %v1090 = vmul.f32 %v747, %v747
    %v1091 = vmul.f32 %v748, %v748
    %v1095 = vrot.slane %v1089, 3
    %v1096 = vrot.slane %v1090, 3
    %v1097 = vsel %vm756, %v1095, %v1096
    %v1098 = vrot.slane %v1091, 3
    %v1099 = vsel %vm756, %v1096, %v1098
    %v1102 = vsel %vm764, %v1097, 0.0
    %v1103 = vsel %vm764, %v1099, 0.0
    %v1104 = vadd.f32 %v1102, %v1103
    %v1105 = vrot.slane %v1104, 4
    %v1106 = vadd.f32 %v1104, %v1105
    %v1107 = vrot.slane %v1106, 2
    %v1108 = vadd.f32 %v1106, %v1107
    %v1109 = vrot.slane %v1108, 1
    %v1110 = vadd.f32 %v1108, %v1109
    %v1111 = vadd.f32 %v1110, 0.0
    %v1115 = vrot.slane %v749, 3
    %v1116 = vrot.slane %v750, 3
    %v1117 = vsel %vm756, %v1115, %v1116
    %v1118 = vrot.slane %v751, 3
    %v1119 = vsel %vm756, %v1116, %v1118
    %v1122 = vsel %vm764, %v1117, 0.0
    %v1123 = vsel %vm764, %v1119, 0.0
    %v1124 = vadd.f32 %v1122, %v1123
    %v1125 = vrot.slane %v1124, 4
    %v1126 = vadd.f32 %v1124, %v1125
    %v1127 = vrot.slane %v1126, 2
    %v1128 = vadd.f32 %v1126, %v1127
    %v1129 = vrot.slane %v1128, 1
    %v1130 = vadd.f32 %v1128, %v1129
    %v1131 = vadd.f32 %v1088, %v1130
    %v1132 = vmul.f32 %v749, %v749
    %v1133 = vmul.f32 %v750, %v750
    %v1134 = vmul.f32 %v751, %v751
    %v1138 = vrot.slane %v1132, 3
    %v1139 = vrot.slane %v1133, 3
    %v1140 = vsel %vm756, %v1138, %v1139
    %v1141 = vrot.slane %v1134, 3
    %v1142 = vsel %vm756, %v1139, %v1141
    %v1145 = vsel %vm764, %v1140, 0.0
    %v1146 = vsel %vm764, %v1142, 0.0
    %v1147 = vadd.f32 %v1145, %v1146
    %v1148 = vrot.slane %v1147, 4
    %v1149 = vadd.f32 %v1147, %v1148
    %v1150 = vrot.slane %v1149, 2
    %v1151 = vadd.f32 %v1149, %v1150
    %v1152 = vrot.slane %v1151, 1
    %v1153 = vadd.f32 %v1151, %v1152
    %v1154 = vadd.f32 %v1111, %v1153
    %1156 = vrot.lane.b32.xlu0 %v1131, 116
    %v1157 = vpop.permute.xlu0 %1156
    %v1158 = vsel %vm844, %v1157, 0
    %1160 = vmatprep.subr.mxu0 0.0
    %1161 = vmatpush1.msra.mxu0 %v304
    %1162 = vmatprep.subr.mxu0 0.0
    %1163 = vmatpush1.msra.mxu0 %v305
    %1164 = vmatprep.subr.mxu0 0.0
    %1165 = vmatpush1.msra.mxu0 %v306
    %1166 = vmatprep.subr.mxu0 0.0
    %1167 = vmatpush1.msra.mxu0 %v307
    %1168 = vmatprep.subr.mxu0 0.0
    %1169 = vmatpush1.msra.mxu0 %v308
    %1170 = vmatprep.subr.mxu0 0.0
    %1171 = vmatpush1.msra.mxu0 %v309
    %1172 = vmatprep.subr.mxu0 0.0
    %1173 = vmatpush1.msra.mxu0 %v310
    %1174 = vmatprep.subr.mxu0 0.0
    %1175 = vmatpush1.msra.mxu0 %v311
    %1176 = vmatprep.subr.mxu0 0.0
    %1177 = vmatpush1.msra.mxu0 0.0
    %1178 = vmatprep.subr.mxu0 0.0
    %1179 = vmatpush1.msra.mxu0 0.0
    %1180 = vmatprep.subr.mxu0 0.0
    %1181 = vmatpush1.msra.mxu0 0.0
    %1182 = vmatprep.subr.mxu0 0.0
    %1183 = vmatpush1.msra.mxu0 0.0
    %1184 = vmatprep.subr.mxu0 0.0
    %1185 = vmatpush1.msra.mxu0 0.0
    %1186 = vmatprep.subr.mxu0 0.0
    %1187 = vmatpush1.msra.mxu0 0.0
    %1188 = vmatprep.subr.mxu0 0.0
    %1189 = vmatpush1.msra.mxu0 0.0
    %1190 = vmatprep.subr.mxu0 0.0
    %1191 = vmatpush1.msra.mxu0 0.0
    %1192 = vmatprep.subr.mxu0 0.0
    %1193 = vmatpush1.msra.mxu0 0.0
    %1194 = vmatprep.subr.mxu0 0.0
    %1195 = vmatpush1.msra.mxu0 0.0
    %1196 = vmatprep.subr.mxu0 0.0
    %1197 = vmatpush1.msra.mxu0 0.0
    %1198 = vmatprep.subr.mxu0 0.0
    %1199 = vmatpush1.msra.mxu0 0.0
    %1200 = vmatprep.subr.mxu0 0.0
    %1201 = vmatpush1.msra.mxu0 0.0
    %1202 = vmatprep.subr.mxu0 0.0
    %1203 = vmatpush1.msra.mxu0 0.0
    %1204 = vmatprep.subr.mxu0 0.0
    %1205 = vmatpush1.msra.mxu0 0.0
    %1206 = vmatprep.subr.mxu0 0.0
    %1207 = vmatpush1.msra.mxu0 0.0
    %1208 = vmatprep.subr.mxu0 0.0
    %1209 = vmatpush1.msra.mxu0 0.0
    %1210 = vmatprep.subr.mxu0 0.0
    %1211 = vmatpush1.msra.mxu0 0.0
    %1212 = vmatprep.subr.mxu0 0.0
    %1213 = vmatpush1.msra.mxu0 0.0
    %1214 = vmatprep.subr.mxu0 0.0
    %1215 = vmatpush1.msra.mxu0 0.0
    %1216 = vmatprep.subr.mxu0 0.0
    %1217 = vmatpush1.msra.mxu0 0.0
    %1218 = vmatprep.subr.mxu0 0.0
    %1219 = vmatpush1.msra.mxu0 0.0
    %1220 = vmatprep.subr.mxu0 0.0
    %1221 = vmatpush1.msra.mxu0 0.0
    %1222 = vmatprep.subr.mxu0 0.0
    %1223 = vmatpush1.msra.mxu0 0.0
    %1224 = vmatprep.mubr.f32.mxu0 0.0
    %1225 = vmatmul.mubr.f32.gmra.mrb[0].mxu0 %v1158
    %v1226 = vpop.f32.mrb[0].mxu0
    %v1227 = vadd.f32 0.0, %v1226
    %v1228 = vpop.f32.mrb[0].mxu0
    %1229 = vdwg.mxu0
    %1231 = vrot.lane.b32.xlu0 %v1154, 116
    %v1232 = vpop.permute.xlu0 %1231
    %v1233 = vsel %vm844, %v1232, 0
    %1235 = vmatprep.subr.mxu0 0.0
    %1236 = vmatpush1.msra.mxu0 %v304
    %1237 = vmatprep.subr.mxu0 0.0
    %1238 = vmatpush1.msra.mxu0 %v305
    %1239 = vmatprep.subr.mxu0 0.0
    %1240 = vmatpush1.msra.mxu0 %v306
    %1241 = vmatprep.subr.mxu0 0.0
    %1242 = vmatpush1.msra.mxu0 %v307
    %1243 = vmatprep.subr.mxu0 0.0
    %1244 = vmatpush1.msra.mxu0 %v308
    %1245 = vmatprep.subr.mxu0 0.0
    %1246 = vmatpush1.msra.mxu0 %v309
    %1247 = vmatprep.subr.mxu0 0.0
    %1248 = vmatpush1.msra.mxu0 %v310
    %1249 = vmatprep.subr.mxu0 0.0
    %1250 = vmatpush1.msra.mxu0 %v311
    %1251 = vmatprep.subr.mxu0 0.0
    %1252 = vmatpush1.msra.mxu0 0.0
    %1253 = vmatprep.subr.mxu0 0.0
    %1254 = vmatpush1.msra.mxu0 0.0
    %1255 = vmatprep.subr.mxu0 0.0
    %1256 = vmatpush1.msra.mxu0 0.0
    %1257 = vmatprep.subr.mxu0 0.0
    %1258 = vmatpush1.msra.mxu0 0.0
    %1259 = vmatprep.subr.mxu0 0.0
    %1260 = vmatpush1.msra.mxu0 0.0
    %1261 = vmatprep.subr.mxu0 0.0
    %1262 = vmatpush1.msra.mxu0 0.0
    %1263 = vmatprep.subr.mxu0 0.0
    %1264 = vmatpush1.msra.mxu0 0.0
    %1265 = vmatprep.subr.mxu0 0.0
    %1266 = vmatpush1.msra.mxu0 0.0
    %1267 = vmatprep.subr.mxu0 0.0
    %1268 = vmatpush1.msra.mxu0 0.0
    %1269 = vmatprep.subr.mxu0 0.0
    %1270 = vmatpush1.msra.mxu0 0.0
    %1271 = vmatprep.subr.mxu0 0.0
    %1272 = vmatpush1.msra.mxu0 0.0
    %1273 = vmatprep.subr.mxu0 0.0
    %1274 = vmatpush1.msra.mxu0 0.0
    %1275 = vmatprep.subr.mxu0 0.0
    %1276 = vmatpush1.msra.mxu0 0.0
    %1277 = vmatprep.subr.mxu0 0.0
    %1278 = vmatpush1.msra.mxu0 0.0
    %1279 = vmatprep.subr.mxu0 0.0
    %1280 = vmatpush1.msra.mxu0 0.0
    %1281 = vmatprep.subr.mxu0 0.0
    %1282 = vmatpush1.msra.mxu0 0.0
    %1283 = vmatprep.subr.mxu0 0.0
    %1284 = vmatpush1.msra.mxu0 0.0
    %1285 = vmatprep.subr.mxu0 0.0
    %1286 = vmatpush1.msra.mxu0 0.0
    %1287 = vmatprep.subr.mxu0 0.0
    %1288 = vmatpush1.msra.mxu0 0.0
    %1289 = vmatprep.subr.mxu0 0.0
    %1290 = vmatpush1.msra.mxu0 0.0
    %1291 = vmatprep.subr.mxu0 0.0
    %1292 = vmatpush1.msra.mxu0 0.0
    %1293 = vmatprep.subr.mxu0 0.0
    %1294 = vmatpush1.msra.mxu0 0.0
    %1295 = vmatprep.subr.mxu0 0.0
    %1296 = vmatpush1.msra.mxu0 0.0
    %1297 = vmatprep.subr.mxu0 0.0
    %1298 = vmatpush1.msra.mxu0 0.0
    %1299 = vmatprep.mubr.f32.mxu0 0.0
    %1300 = vmatmul.mubr.f32.gmra.mrb[0].mxu0 %v1233
    %v1301 = vpop.f32.mrb[0].mxu0
    %v1302 = vadd.f32 0.0, %v1301
    %v1303 = vpop.f32.mrb[0].mxu0
    %1304 = vdwg.mxu0
    %v1305 = vmul.f32 %v1227, %v1227
    %v1306 = vsub.f32 %v1302, %v1305
    %v1307 = vmax.f32 %v1306, 0.0
    %v1308 = vadd.f32 %v1307, 1e-05
    %v1309 = vrsqrt.pop %v1308
    %v1310 = vstv %s1068
    %v1311 = vmul.f32 %v1309, %v1310
    %v1312 = vlaneseq
    %v1313 = vshrl.u32 %v1312, 7
    %v1314 = vsub.s32 0, %v1313
    %v1315 = vrot.slane %v1227, %v1314
    %1317 = vrot.lane.b32.xlu0 %v1315, 12
    %v1318 = vpop.permute.xlu0 %1317
    %v1320 = vsub.f32 %v746, %v1318
    %v1321 = vsub.f32 %v747, %v1318
    %v1322 = vsub.f32 %v748, %v1318
    %v1323 = vsub.f32 %v749, %v1318
    %v1324 = vsub.f32 %v750, %v1318
    %v1325 = vsub.f32 %v751, %v1318
    %v1326 = vlaneseq
    %v1327 = vshrl.u32 %v1326, 7
    %v1328 = vsub.s32 0, %v1327
    %v1329 = vrot.slane %v1311, %v1328
    %1331 = vrot.lane.b32.xlu0 %v1329, 12
    %v1332 = vpop.permute.xlu0 %1331
    %v1334 = vmul.f32 %v1320, %v1332
    %v1335 = vmul.f32 %v1321, %v1332
    %v1336 = vmul.f32 %v1322, %v1332
    %v1337 = vmul.f32 %v1323, %v1332
    %v1338 = vmul.f32 %v1324, %v1332
    %v1339 = vmul.f32 %v1325, %v1332
    %v1346 = vrot.slane %v1334, 7
    %v1347 = vrot.slane %v1335, 7
    %v1348 = vsel %vm1033, %v1346, %v1347
    %v1349 = vrot.slane %v1336, 7
    %v1350 = vsel %vm1033, %v1347, %v1349
    %v1351 = vrot.slane %v1337, 7
    %v1352 = vrot.slane %v1338, 7
    %v1353 = vsel %vm1033, %v1351, %v1352
    %v1354 = vrot.slane %v1339, 7
    %v1355 = vsel %vm1033, %v1352, %v1354
    %1356 = vrot.lane.b32.xlu0 %v1346, 4
    %v1357 = vpop.permute.xlu0 %1356
    %1358 = vrot.lane.b32.xlu0 %v1348, 4
    %v1359 = vpop.permute.xlu0 %1358
    %1360 = vrot.lane.b32.xlu0 %v1350, 4
    %v1361 = vpop.permute.xlu0 %1360
    %1362 = vrot.lane.b32.xlu0 %v1351, 4
    %v1363 = vpop.permute.xlu0 %1362
    %1364 = vrot.lane.b32.xlu0 %v1353, 4
    %v1365 = vpop.permute.xlu0 %1364
    %1366 = vrot.lane.b32.xlu0 %v1355, 4
    %v1367 = vpop.permute.xlu0 %1366
    %v1374 = vadd.f32 %v1062, %v1357
    %v1375 = vadd.f32 %v1063, %v1359
    %v1376 = vadd.f32 %v1064, %v1361
    %v1377 = vadd.f32 %v1065, %v1363
    %v1378 = vadd.f32 %v1066, %v1365
    %v1379 = vadd.f32 %v1067, %v1367
    %s1380 = sld [smem:[#allocation3 + $0x4]]
    %v1381 = vld [vmem:[#allocation15] sm:$0x1]
    %v1382 = vlaneseq
    %v1383 = vshrl.u32 %v1382, 7
    %v1384 = vsub.s32 0, %v1383
    %v1385 = vrot.slane %v1381, %v1384
    %1387 = vrot.lane.b32.xlu0 %v1385, 8
    %v1388 = vpop.permute.xlu0 %1387
    %v1390 = vmul.f32 %v312, %v1388
    %v1391 = vmul.f32 %v313, %v1388
    %v1392 = vmul.f32 %v314, %v1388
    %v1393 = vmul.f32 %v315, %v1388
    %v1394 = vmul.f32 %v316, %v1388
    %v1395 = vmul.f32 %v317, %v1388
    %v1396 = vld [vmem:[#allocation15 + $0x1] sm:$0x1]
    %v1397 = vlaneseq
    %v1398 = vshrl.u32 %v1397, 7
    %v1399 = vsub.s32 0, %v1398
    %v1400 = vrot.slane %v1396, %v1399
    %1402 = vrot.lane.b32.xlu0 %v1400, 12
    %v1403 = vpop.permute.xlu0 %1402
    %v1405 = vmul.f32 %v312, %v1403
    %v1406 = vmul.f32 %v313, %v1403
    %v1407 = vmul.f32 %v314, %v1403
    %v1408 = vmul.f32 %v315, %v1403
    %v1409 = vmul.f32 %v316, %v1403
    %v1410 = vmul.f32 %v317, %v1403
    %1417 = vrot.lane.b32.xlu0 %v1405, 124
    %v1418 = vpop.permute.xlu0 %1417
    %1419 = vrot.lane.b32.xlu0 %v1406, 124
    %v1420 = vpop.permute.xlu0 %1419
    %1421 = vrot.lane.b32.xlu0 %v1407, 124
    %v1422 = vpop.permute.xlu0 %1421
    %1423 = vrot.lane.b32.xlu0 %v1408, 124
    %v1424 = vpop.permute.xlu0 %1423
    %1425 = vrot.lane.b32.xlu0 %v1409, 124
    %v1426 = vpop.permute.xlu0 %1425
    %1427 = vrot.lane.b32.xlu0 %v1410, 124
    %v1428 = vpop.permute.xlu0 %1427
    %v1435 = vadd.f32 %v1390, %v1418
    %v1436 = vadd.f32 %v1391, %v1420
    %v1437 = vadd.f32 %v1392, %v1422
    %v1438 = vadd.f32 %v1393, %v1424
    %v1439 = vadd.f32 %v1394, %v1426
    %v1440 = vadd.f32 %v1395, %v1428
    %v1441 = vld [vmem:[#allocation15 + $0x2] sm:$0x1]
    %v1442 = vlaneseq
    %v1443 = vshrl.u32 %v1442, 7
    %v1444 = vsub.s32 0, %v1443
    %v1445 = vrot.slane %v1441, %v1444
    %1447 = vrot.lane.b32.xlu0 %v1445, 16
    %v1448 = vpop.permute.xlu0 %1447
    %v1450 = vmul.f32 %v312, %v1448
    %v1451 = vmul.f32 %v313, %v1448
    %v1452 = vmul.f32 %v314, %v1448
    %v1453 = vmul.f32 %v315, %v1448
    %v1454 = vmul.f32 %v316, %v1448
    %v1455 = vmul.f32 %v317, %v1448
    %1462 = vrot.lane.b32.xlu0 %v1450, 120
    %v1463 = vpop.permute.xlu0 %1462
    %1464 = vrot.lane.b32.xlu0 %v1451, 120
    %v1465 = vpop.permute.xlu0 %1464
    %1466 = vrot.lane.b32.xlu0 %v1452, 120
    %v1467 = vpop.permute.xlu0 %1466
    %1468 = vrot.lane.b32.xlu0 %v1453, 120
    %v1469 = vpop.permute.xlu0 %1468
    %1470 = vrot.lane.b32.xlu0 %v1454, 120
    %v1471 = vpop.permute.xlu0 %1470
    %1472 = vrot.lane.b32.xlu0 %v1455, 120
    %v1473 = vpop.permute.xlu0 %1472
    %v1480 = vadd.f32 %v1435, %v1463
    %v1481 = vadd.f32 %v1436, %v1465
    %v1482 = vadd.f32 %v1437, %v1467
    %v1483 = vadd.f32 %v1438, %v1469
    %v1484 = vadd.f32 %v1439, %v1471
    %v1485 = vadd.f32 %v1440, %v1473
    %v1486 = vld [vmem:[#allocation15 + $0x3] sm:$0x1]
    %v1487 = vlaneseq
    %v1488 = vshrl.u32 %v1487, 7
    %v1489 = vsub.s32 0, %v1488
    %v1490 = vrot.slane %v1486, %v1489
    %1492 = vrot.lane.b32.xlu0 %v1490, 8
    %v1493 = vpop.permute.xlu0 %1492
    %v1495 = vmul.f32 %v312, %v1493
    %v1496 = vmul.f32 %v313, %v1493
    %v1497 = vmul.f32 %v314, %v1493
    %v1498 = vmul.f32 %v315, %v1493
    %v1499 = vmul.f32 %v316, %v1493
    %v1500 = vmul.f32 %v317, %v1493
    %v1507 = vrot.slane %v1495, 1
    %v1508 = vrot.slane %v1496, 1
    %v1509 = vsel %vm447, %v1507, %v1508
    %v1510 = vrot.slane %v1497, 1
    %v1511 = vsel %vm447, %v1508, %v1510
    %v1512 = vrot.slane %v1498, 1
    %v1513 = vrot.slane %v1499, 1
    %v1514 = vsel %vm447, %v1512, %v1513
    %v1515 = vrot.slane %v1500, 1
    %v1516 = vsel %vm447, %v1513, %v1515
    %v1523 = vadd.f32 %v1480, %v1509
    %v1524 = vadd.f32 %v1481, %v1511
    %v1525 = vadd.f32 %v1482, %v1510
    %v1526 = vadd.f32 %v1483, %v1514
    %v1527 = vadd.f32 %v1484, %v1516
    %v1528 = vadd.f32 %v1485, %v1515
    %v1529 = vld [vmem:[#allocation15 + $0x4] sm:$0x1]
    %v1530 = vlaneseq
    %v1531 = vshrl.u32 %v1530, 7
    %v1532 = vsub.s32 0, %v1531
    %v1533 = vrot.slane %v1529, %v1532
    %1535 = vrot.lane.b32.xlu0 %v1533, 12
    %v1536 = vpop.permute.xlu0 %1535
    %v1538 = vmul.f32 %v312, %v1536
    %v1539 = vmul.f32 %v313, %v1536
    %v1540 = vmul.f32 %v314, %v1536
    %v1541 = vmul.f32 %v315, %v1536
    %v1542 = vmul.f32 %v316, %v1536
    %v1543 = vmul.f32 %v317, %v1536
    %v1550 = vrot.slane %v1538, 1
    %v1551 = vrot.slane %v1539, 1
    %v1552 = vsel %vm447, %v1550, %v1551
    %v1553 = vrot.slane %v1540, 1
    %v1554 = vsel %vm447, %v1551, %v1553
    %v1555 = vrot.slane %v1541, 1
    %v1556 = vrot.slane %v1542, 1
    %v1557 = vsel %vm447, %v1555, %v1556
    %v1558 = vrot.slane %v1543, 1
    %v1559 = vsel %vm447, %v1556, %v1558
    %1560 = vrot.lane.b32.xlu0 %v1552, 124
    %v1561 = vpop.permute.xlu0 %1560
    %1562 = vrot.lane.b32.xlu0 %v1554, 124
    %v1563 = vpop.permute.xlu0 %1562
    %1564 = vrot.lane.b32.xlu0 %v1553, 124
    %v1565 = vpop.permute.xlu0 %1564
    %1566 = vrot.lane.b32.xlu0 %v1557, 124
    %v1567 = vpop.permute.xlu0 %1566
    %1568 = vrot.lane.b32.xlu0 %v1559, 124
    %v1569 = vpop.permute.xlu0 %1568
    %1570 = vrot.lane.b32.xlu0 %v1558, 124
    %v1571 = vpop.permute.xlu0 %1570
    %v1578 = vadd.f32 %v1523, %v1561
    %v1579 = vadd.f32 %v1524, %v1563
    %v1580 = vadd.f32 %v1525, %v1565
    %v1581 = vadd.f32 %v1526, %v1567
    %v1582 = vadd.f32 %v1527, %v1569
    %v1583 = vadd.f32 %v1528, %v1571
    %v1584 = vld [vmem:[#allocation15 + $0x5] sm:$0x1]
    %v1585 = vlaneseq
    %v1586 = vshrl.u32 %v1585, 7
    %v1587 = vsub.s32 0, %v1586
    %v1588 = vrot.slane %v1584, %v1587
    %1590 = vrot.lane.b32.xlu0 %v1588, 16
    %v1591 = vpop.permute.xlu0 %1590
    %v1593 = vmul.f32 %v312, %v1591
    %v1594 = vmul.f32 %v313, %v1591
    %v1595 = vmul.f32 %v314, %v1591
    %v1596 = vmul.f32 %v315, %v1591
    %v1597 = vmul.f32 %v316, %v1591
    %v1598 = vmul.f32 %v317, %v1591
    %v1605 = vrot.slane %v1593, 1
    %v1606 = vrot.slane %v1594, 1
    %v1607 = vsel %vm447, %v1605, %v1606
    %v1608 = vrot.slane %v1595, 1
    %v1609 = vsel %vm447, %v1606, %v1608
    %v1610 = vrot.slane %v1596, 1
    %v1611 = vrot.slane %v1597, 1
    %v1612 = vsel %vm447, %v1610, %v1611
    %v1613 = vrot.slane %v1598, 1
    %v1614 = vsel %vm447, %v1611, %v1613
    %1615 = vrot.lane.b32.xlu0 %v1607, 120
    %v1616 = vpop.permute.xlu0 %1615
    %1617 = vrot.lane.b32.xlu0 %v1609, 120
    %v1618 = vpop.permute.xlu0 %1617
    %1619 = vrot.lane.b32.xlu0 %v1608, 120
    %v1620 = vpop.permute.xlu0 %1619
    %1621 = vrot.lane.b32.xlu0 %v1612, 120
    %v1622 = vpop.permute.xlu0 %1621
    %1623 = vrot.lane.b32.xlu0 %v1614, 120
    %v1624 = vpop.permute.xlu0 %1623
    %1625 = vrot.lane.b32.xlu0 %v1613, 120
    %v1626 = vpop.permute.xlu0 %1625
    %v1633 = vadd.f32 %v1578, %v1616
    %v1634 = vadd.f32 %v1579, %v1618
    %v1635 = vadd.f32 %v1580, %v1620
    %v1636 = vadd.f32 %v1581, %v1622
    %v1637 = vadd.f32 %v1582, %v1624
    %v1638 = vadd.f32 %v1583, %v1626
    %v1639 = vld [vmem:[#allocation15 + $0x6] sm:$0x1]
    %v1640 = vlaneseq
    %v1641 = vshrl.u32 %v1640, 7
    %v1642 = vsub.s32 0, %v1641
    %v1643 = vrot.slane %v1639, %v1642
    %1645 = vrot.lane.b32.xlu0 %v1643, 8
    %v1646 = vpop.permute.xlu0 %1645
    %v1648 = vmul.f32 %v312, %v1646
    %v1649 = vmul.f32 %v313, %v1646
    %v1650 = vmul.f32 %v314, %v1646
    %v1651 = vmul.f32 %v315, %v1646
    %v1652 = vmul.f32 %v316, %v1646
    %v1653 = vmul.f32 %v317, %v1646
    %v1660 = vrot.slane %v1648, 2
    %v1661 = vrot.slane %v1649, 2
    %v1662 = vsel %vm588, %v1660, %v1661
    %v1663 = vrot.slane %v1650, 2
    %v1664 = vsel %vm588, %v1661, %v1663
    %v1665 = vrot.slane %v1651, 2
    %v1666 = vrot.slane %v1652, 2
    %v1667 = vsel %vm588, %v1665, %v1666
    %v1668 = vrot.slane %v1653, 2
    %v1669 = vsel %vm588, %v1666, %v1668
    %v1676 = vadd.f32 %v1633, %v1662
    %v1677 = vadd.f32 %v1634, %v1664
    %v1678 = vadd.f32 %v1635, %v1663
    %v1679 = vadd.f32 %v1636, %v1667
    %v1680 = vadd.f32 %v1637, %v1669
    %v1681 = vadd.f32 %v1638, %v1668
    %v1682 = vld [vmem:[#allocation15 + $0x7] sm:$0x1]
    %v1683 = vlaneseq
    %v1684 = vshrl.u32 %v1683, 7
    %v1685 = vsub.s32 0, %v1684
    %v1686 = vrot.slane %v1682, %v1685
    %1688 = vrot.lane.b32.xlu0 %v1686, 12
    %v1689 = vpop.permute.xlu0 %1688
    %v1691 = vmul.f32 %v312, %v1689
    %v1692 = vmul.f32 %v313, %v1689
    %v1693 = vmul.f32 %v314, %v1689
    %v1694 = vmul.f32 %v315, %v1689
    %v1695 = vmul.f32 %v316, %v1689
    %v1696 = vmul.f32 %v317, %v1689
    %v1703 = vrot.slane %v1691, 2
    %v1704 = vrot.slane %v1692, 2
    %v1705 = vsel %vm588, %v1703, %v1704
    %v1706 = vrot.slane %v1693, 2
    %v1707 = vsel %vm588, %v1704, %v1706
    %v1708 = vrot.slane %v1694, 2
    %v1709 = vrot.slane %v1695, 2
    %v1710 = vsel %vm588, %v1708, %v1709
    %v1711 = vrot.slane %v1696, 2
    %v1712 = vsel %vm588, %v1709, %v1711
    %1713 = vrot.lane.b32.xlu0 %v1705, 124
    %v1714 = vpop.permute.xlu0 %1713
    %1715 = vrot.lane.b32.xlu0 %v1707, 124
    %v1716 = vpop.permute.xlu0 %1715
    %1717 = vrot.lane.b32.xlu0 %v1706, 124
    %v1718 = vpop.permute.xlu0 %1717
    %1719 = vrot.lane.b32.xlu0 %v1710, 124
    %v1720 = vpop.permute.xlu0 %1719
    %1721 = vrot.lane.b32.xlu0 %v1712, 124
    %v1722 = vpop.permute.xlu0 %1721
    %1723 = vrot.lane.b32.xlu0 %v1711, 124
    %v1724 = vpop.permute.xlu0 %1723
    %v1731 = vadd.f32 %v1676, %v1714
    %v1732 = vadd.f32 %v1677, %v1716
    %v1733 = vadd.f32 %v1678, %v1718
    %v1734 = vadd.f32 %v1679, %v1720
    %v1735 = vadd.f32 %v1680, %v1722
    %v1736 = vadd.f32 %v1681, %v1724
    %v1737 = vld [vmem:[#allocation15 + $0x8] sm:$0x1]
    %v1738 = vlaneseq
    %v1739 = vshrl.u32 %v1738, 7
    %v1740 = vsub.s32 0, %v1739
    %v1741 = vrot.slane %v1737, %v1740
    %1743 = vrot.lane.b32.xlu0 %v1741, 16
    %v1744 = vpop.permute.xlu0 %1743
    %v1746 = vmul.f32 %v312, %v1744
    %v1747 = vmul.f32 %v313, %v1744
    %v1748 = vmul.f32 %v314, %v1744
    %v1749 = vmul.f32 %v315, %v1744
    %v1750 = vmul.f32 %v316, %v1744
    %v1751 = vmul.f32 %v317, %v1744
    %v1758 = vrot.slane %v1746, 2
    %v1759 = vrot.slane %v1747, 2
    %v1760 = vsel %vm588, %v1758, %v1759
    %v1761 = vrot.slane %v1748, 2
    %v1762 = vsel %vm588, %v1759, %v1761
    %v1763 = vrot.slane %v1749, 2
    %v1764 = vrot.slane %v1750, 2
    %v1765 = vsel %vm588, %v1763, %v1764
    %v1766 = vrot.slane %v1751, 2
    %v1767 = vsel %vm588, %v1764, %v1766
    %1768 = vrot.lane.b32.xlu0 %v1760, 120
    %v1769 = vpop.permute.xlu0 %1768
    %1770 = vrot.lane.b32.xlu0 %v1762, 120
    %v1771 = vpop.permute.xlu0 %1770
    %1772 = vrot.lane.b32.xlu0 %v1761, 120
    %v1773 = vpop.permute.xlu0 %1772
    %1774 = vrot.lane.b32.xlu0 %v1765, 120
    %v1775 = vpop.permute.xlu0 %1774
    %1776 = vrot.lane.b32.xlu0 %v1767, 120
    %v1777 = vpop.permute.xlu0 %1776
    %1778 = vrot.lane.b32.xlu0 %v1766, 120
    %v1779 = vpop.permute.xlu0 %1778
    %v1786 = vadd.f32 %v1731, %v1769
    %v1787 = vadd.f32 %v1732, %v1771
    %v1788 = vadd.f32 %v1733, %v1773
    %v1789 = vadd.f32 %v1734, %v1775
    %v1790 = vadd.f32 %v1735, %v1777
    %v1791 = vadd.f32 %v1736, %v1779
    %v1792 = vld [vmem:[#allocation16] sm:$0xff]
    %v1793 = vld [vmem:[#allocation16 + $0x8] sm:$0xff]
    %v1794 = vld [vmem:[#allocation16 + $0x10] sm:$0xff]
    %v1795 = vld [vmem:[#allocation16 + $0x18] sm:$0xff]
    %v1796 = vld [vmem:[#allocation16 + $0x20] sm:$0xff]
    %v1797 = vld [vmem:[#allocation16 + $0x28] sm:$0xff]
    %v1798 = vld [vmem:[#allocation16 + $0x30] sm:$0xff]
    %v1799 = vld [vmem:[#allocation16 + $0x38] sm:$0xff]
    %v1800 = vld [vmem:[#allocation16 + $0x40] sm:$0xff]
    %v1804 = vrot.slane %v1786, 2
    %v1805 = vrot.slane %v1787, 2
    %v1806 = vsel %vm588, %v1804, %v1805
    %v1807 = vrot.slane %v1788, 2
    %v1808 = vsel %vm588, %v1805, %v1807
    %1809 = vrot.lane.b32.xlu0 %v1806, 120
    %v1810 = vpop.permute.xlu0 %1809
    %1811 = vrot.lane.b32.xlu0 %v1808, 120
    %v1812 = vpop.permute.xlu0 %1811
    %1813 = vrot.lane.b32.xlu0 %v1807, 120
    %v1814 = vpop.permute.xlu0 %1813
    %vm1815 = vcmask 588800
    %v1816 = vsel %vm1815, %v1810, 0
    %v1818 = vsel %vm1815, %v1812, 0
    %v1820 = vsel %vm1815, %v1814, 0
    %1822 = vmatprep.subr.mxu0 0.0
    %1823 = vmatpush1.msra.mxu0 %v1792
    %1824 = vmatprep.subr.mxu0 0.0
    %1825 = vmatpush1.msra.mxu0 %v1793
    %1826 = vmatprep.subr.mxu0 0.0
    %1827 = vmatpush1.msra.mxu0 %v1794
    %1828 = vmatprep.subr.mxu0 0.0
    %1829 = vmatpush1.msra.mxu0 %v1795
    %1830 = vmatprep.subr.mxu0 0.0
    %1831 = vmatpush1.msra.mxu0 %v1796
    %1832 = vmatprep.subr.mxu0 0.0
    %1833 = vmatpush1.msra.mxu0 %v1797
    %1834 = vmatprep.subr.mxu0 0.0
    %1835 = vmatpush1.msra.mxu0 %v1798
    %1836 = vmatprep.subr.mxu0 0.0
    %1837 = vmatpush1.msra.mxu0 %v1799
    %1838 = vmatprep.subr.mxu0 0.0
    %1839 = vmatpush1.msra.mxu0 %v1800
    %1840 = vmatprep.subr.mxu0 0.0
    %1841 = vmatpush1.msra.mxu0 0.0
    %1842 = vmatprep.subr.mxu0 0.0
    %1843 = vmatpush1.msra.mxu0 0.0
    %1844 = vmatprep.subr.mxu0 0.0
    %1845 = vmatpush1.msra.mxu0 0.0
    %1846 = vmatprep.subr.mxu0 0.0
    %1847 = vmatpush1.msra.mxu0 0.0
    %1848 = vmatprep.subr.mxu0 0.0
    %1849 = vmatpush1.msra.mxu0 0.0
    %1850 = vmatprep.subr.mxu0 0.0
    %1851 = vmatpush1.msra.mxu0 0.0
    %1852 = vmatprep.subr.mxu0 0.0
    %1853 = vmatpush1.msra.mxu0 0.0
    %1854 = vmatprep.subr.mxu0 0.0
    %1855 = vmatpush1.msra.mxu0 0.0
    %1856 = vmatprep.subr.mxu0 0.0
    %1857 = vmatpush1.msra.mxu0 0.0
    %1858 = vmatprep.subr.mxu0 0.0
    %1859 = vmatpush1.msra.mxu0 0.0
    %1860 = vmatprep.subr.mxu0 0.0
    %1861 = vmatpush1.msra.mxu0 0.0
    %1862 = vmatprep.subr.mxu0 0.0
    %1863 = vmatpush1.msra.mxu0 0.0
    %1864 = vmatprep.subr.mxu0 0.0
    %1865 = vmatpush1.msra.mxu0 0.0
    %1866 = vmatprep.subr.mxu0 0.0
    %1867 = vmatpush1.msra.mxu0 0.0
    %1868 = vmatprep.subr.mxu0 0.0
    %1869 = vmatpush1.msra.mxu0 0.0
    %1870 = vmatprep.subr.mxu0 0.0
    %1871 = vmatpush1.msra.mxu0 0.0
    %1872 = vmatprep.subr.mxu0 0.0
    %1873 = vmatpush1.msra.mxu0 0.0
    %1874 = vmatprep.subr.mxu0 0.0
    %1875 = vmatpush1.msra.mxu0 0.0
    %1876 = vmatprep.subr.mxu0 0.0
    %1877 = vmatpush1.msra.mxu0 0.0
    %1878 = vmatprep.subr.mxu0 0.0
    %1879 = vmatpush1.msra.mxu0 0.0
    %1880 = vmatprep.subr.mxu0 0.0
    %1881 = vmatpush1.msra.mxu0 0.0
    %1882 = vmatprep.subr.mxu0 0.0
    %1883 = vmatpush1.msra.mxu0 0.0
    %1884 = vmatprep.subr.mxu0 0.0
    %1885 = vmatpush1.msra.mxu0 0.0
    %1886 = vmatprep.mubr.f32.mxu0 0.0
    %1887 = vmatmul.mubr.f32.gmra.mrb[0].mxu0 %v1816
    %v1888 = vpop.f32.mrb[0].mxu0
    %v1889 = vadd.f32 0.0, %v1888
    %v1890 = vpop.f32.mrb[0].mxu0
    %1891 = vmatprep.mubr.f32.mxu0 0.0
    %1892 = vmatmul.mubr.f32.gmra.mrb[0].mxu0 %v1818
    %v1893 = vpop.f32.mrb[0].mxu0
    %v1894 = vadd.f32 0.0, %v1893
    %v1895 = vpop.f32.mrb[0].mxu0
    %1896 = vmatprep.mubr.f32.mxu0 0.0
    %1897 = vmatmul.mubr.f32.gmra.mrb[0].mxu0 %v1820
    %v1898 = vpop.f32.mrb[0].mxu0
    %v1899 = vadd.f32 0.0, %v1898
    %v1900 = vpop.f32.mrb[0].mxu0
    %1901 = vdwg.mxu0
    %v1905 = vrot.slane %v1789, 2
    %v1906 = vrot.slane %v1790, 2
    %v1907 = vsel %vm588, %v1905, %v1906
    %v1908 = vrot.slane %v1791, 2
    %v1909 = vsel %vm588, %v1906, %v1908
    %1910 = vrot.lane.b32.xlu0 %v1907, 120
    %v1911 = vpop.permute.xlu0 %1910
    %1912 = vrot.lane.b32.xlu0 %v1909, 120
    %v1913 = vpop.permute.xlu0 %1912
    %1914 = vrot.lane.b32.xlu0 %v1908, 120
    %v1915 = vpop.permute.xlu0 %1914
    %v1916 = vsel %vm1815, %v1911, 0
    %v1918 = vsel %vm1815, %v1913, 0
    %v1920 = vsel %vm1815, %v1915, 0
    %1922 = vmatprep.subr.mxu0 0.0
    %1923 = vmatpush1.msra.mxu0 %v1792
    %1924 = vmatprep.subr.mxu0 0.0
    %1925 = vmatpush1.msra.mxu0 %v1793
    %1926 = vmatprep.subr.mxu0 0.0
    %1927 = vmatpush1.msra.mxu0 %v1794
    %1928 = vmatprep.subr.mxu0 0.0
    %1929 = vmatpush1.msra.mxu0 %v1795
    %1930 = vmatprep.subr.mxu0 0.0
    %1931 = vmatpush1.msra.mxu0 %v1796
    %1932 = vmatprep.subr.mxu0 0.0
    %1933 = vmatpush1.msra.mxu0 %v1797
    %1934 = vmatprep.subr.mxu0 0.0
    %1935 = vmatpush1.msra.mxu0 %v1798
    %1936 = vmatprep.subr.mxu0 0.0
    %1937 = vmatpush1.msra.mxu0 %v1799
    %1938 = vmatprep.subr.mxu0 0.0
    %1939 = vmatpush1.msra.mxu0 %v1800
    %1940 = vmatprep.subr.mxu0 0.0
    %1941 = vmatpush1.msra.mxu0 0.0
    %1942 = vmatprep.subr.mxu0 0.0
    %1943 = vmatpush1.msra.mxu0 0.0
    %1944 = vmatprep.subr.mxu0 0.0
    %1945 = vmatpush1.msra.mxu0 0.0
    %1946 = vmatprep.subr.mxu0 0.0
    %1947 = vmatpush1.msra.mxu0 0.0
    %1948 = vmatprep.subr.mxu0 0.0
    %1949 = vmatpush1.msra.mxu0 0.0
    %1950 = vmatprep.subr.mxu0 0.0
    %1951 = vmatpush1.msra.mxu0 0.0
    %1952 = vmatprep.subr.mxu0 0.0
    %1953 = vmatpush1.msra.mxu0 0.0
    %1954 = vmatprep.subr.mxu0 0.0
    %1955 = vmatpush1.msra.mxu0 0.0
    %1956 = vmatprep.subr.mxu0 0.0
    %1957 = vmatpush1.msra.mxu0 0.0
    %1958 = vmatprep.subr.mxu0 0.0
    %1959 = vmatpush1.msra.mxu0 0.0
    %1960 = vmatprep.subr.mxu0 0.0
    %1961 = vmatpush1.msra.mxu0 0.0
    %1962 = vmatprep.subr.mxu0 0.0
    %1963 = vmatpush1.msra.mxu0 0.0
    %1964 = vmatprep.subr.mxu0 0.0
    %1965 = vmatpush1.msra.mxu0 0.0
    %1966 = vmatprep.subr.mxu0 0.0
    %1967 = vmatpush1.msra.mxu0 0.0
    %1968 = vmatprep.subr.mxu0 0.0
    %1969 = vmatpush1.msra.mxu0 0.0
    %1970 = vmatprep.subr.mxu0 0.0
    %1971 = vmatpush1.msra.mxu0 0.0
    %1972 = vmatprep.subr.mxu0 0.0
    %1973 = vmatpush1.msra.mxu0 0.0
    %1974 = vmatprep.subr.mxu0 0.0
    %1975 = vmatpush1.msra.mxu0 0.0
    %1976 = vmatprep.subr.mxu0 0.0
    %1977 = vmatpush1.msra.mxu0 0.0
    %1978 = vmatprep.subr.mxu0 0.0
    %1979 = vmatpush1.msra.mxu0 0.0
    %1980 = vmatprep.subr.mxu0 0.0
    %1981 = vmatpush1.msra.mxu0 0.0
    %1982 = vmatprep.subr.mxu0 0.0
    %1983 = vmatpush1.msra.mxu0 0.0
    %1984 = vmatprep.subr.mxu0 0.0
    %1985 = vmatpush1.msra.mxu0 0.0
    %1986 = vmatprep.mubr.f32.mxu0 0.0
    %1987 = vmatmul.mubr.f32.gmra.mrb[0].mxu0 %v1916
    %v1988 = vpop.f32.mrb[0].mxu0
    %v1989 = vadd.f32 0.0, %v1988
    %v1990 = vpop.f32.mrb[0].mxu0
    %1991 = vmatprep.mubr.f32.mxu0 0.0
    %1992 = vmatmul.mubr.f32.gmra.mrb[0].mxu0 %v1918
    %v1993 = vpop.f32.mrb[0].mxu0
    %v1994 = vadd.f32 0.0, %v1993
    %v1995 = vpop.f32.mrb[0].mxu0
    %1996 = vmatprep.mubr.f32.mxu0 0.0
    %1997 = vmatmul.mubr.f32.gmra.mrb[0].mxu0 %v1920
    %v1998 = vpop.f32.mrb[0].mxu0
    %v1999 = vadd.f32 0.0, %v1998
    %v2000 = vpop.f32.mrb[0].mxu0
    %2001 = vdwg.mxu0
    %v2002 = vld [vmem:[#allocation12] sm:$0xff]
    %v2003 = vld [vmem:[#allocation12 + $0x8] sm:$0xff]
    %v2004 = vld [vmem:[#allocation12 + $0x10] sm:$0xff]
    %v2005 = vld [vmem:[#allocation12 + $0x18] sm:$0xff]
    %v2006 = vld [vmem:[#allocation12 + $0x20] sm:$0xff]
    %v2007 = vld [vmem:[#allocation12 + $0x28] sm:$0xff]
    %v2008 = vld [vmem:[#allocation12 + $0x30] sm:$0xff]
    %v2009 = vld [vmem:[#allocation12 + $0x38] sm:$0xff]
    %v2013 = vrot.slane %v1889, 1
    %v2014 = vrot.slane %v1894, 1
    %v2015 = vsel %vm447, %v2013, %v2014
    %v2016 = vrot.slane %v1899, 1
    %v2017 = vsel %vm447, %v2014, %v2016
    %vm2020 = vcmask 556064
    %v2021 = vsel %vm2020, %v2015, 0.0
    %v2022 = vsel %vm2020, %v2017, 0.0
    %v2023 = vadd.f32 %v2021, %v2022
    %v2024 = vrot.slane %v2023, 4
    %v2025 = vadd.f32 %v2023, %v2024
    %v2026 = vrot.slane %v2025, 2
    %v2027 = vadd.f32 %v2025, %v2026
    %v2028 = vrot.slane %v2027, 1
    %v2029 = vadd.f32 %v2027, %v2028
    %v2030 = vadd.f32 %v2029, 0.0
    %v2031 = vmul.f32 %v1889, %v1889
    %v2032 = vmul.f32 %v1894, %v1894
    %v2033 = vmul.f32 %v1899, %v1899
    %v2037 = vrot.slane %v2031, 1
    %v2038 = vrot.slane %v2032, 1
    %v2039 = vsel %vm447, %v2037, %v2038
    %v2040 = vrot.slane %v2033, 1
    %v2041 = vsel %vm447, %v2038, %v2040
    %v2044 = vsel %vm2020, %v2039, 0.0
    %v2045 = vsel %vm2020, %v2041, 0.0
    %v2046 = vadd.f32 %v2044, %v2045
    %v2047 = vrot.slane %v2046, 4
    %v2048 = vadd.f32 %v2046, %v2047
    %v2049 = vrot.slane %v2048, 2
    %v2050 = vadd.f32 %v2048, %v2049
    %v2051 = vrot.slane %v2050, 1
    %v2052 = vadd.f32 %v2050, %v2051
    %v2053 = vadd.f32 %v2052, 0.0
    %v2057 = vrot.slane %v1989, 1
    %v2058 = vrot.slane %v1994, 1
    %v2059 = vsel %vm447, %v2057, %v2058
    %v2060 = vrot.slane %v1999, 1
    %v2061 = vsel %vm447, %v2058, %v2060
    %v2064 = vsel %vm2020, %v2059, 0.0
    %v2065 = vsel %vm2020, %v2061, 0.0
    %v2066 = vadd.f32 %v2064, %v2065
    %v2067 = vrot.slane %v2066, 4
    %v2068 = vadd.f32 %v2066, %v2067
    %v2069 = vrot.slane %v2068, 2
    %v2070 = vadd.f32 %v2068, %v2069
    %v2071 = vrot.slane %v2070, 1
    %v2072 = vadd.f32 %v2070, %v2071
    %v2073 = vadd.f32 %v2030, %v2072
    %v2074 = vmul.f32 %v1989, %v1989
    %v2075 = vmul.f32 %v1994, %v1994
    %v2076 = vmul.f32 %v1999, %v1999
    %v2080 = vrot.slane %v2074, 1
    %v2081 = vrot.slane %v2075, 1
    %v2082 = vsel %vm447, %v2080, %v2081
    %v2083 = vrot.slane %v2076, 1
    %v2084 = vsel %vm447, %v2081, %v2083
    %v2087 = vsel %vm2020, %v2082, 0.0
    %v2088 = vsel %vm2020, %v2084, 0.0
    %v2089 = vadd.f32 %v2087, %v2088
    %v2090 = vrot.slane %v2089, 4
    %v2091 = vadd.f32 %v2089, %v2090
    %v2092 = vrot.slane %v2091, 2
    %v2093 = vadd.f32 %v2091, %v2092
    %v2094 = vrot.slane %v2093, 1
    %v2095 = vadd.f32 %v2093, %v2094
    %v2096 = vadd.f32 %v2053, %v2095
    %2098 = vrot.lane.b32.xlu0 %v2073, 124
    %v2099 = vpop.permute.xlu0 %2098
    %v2100 = vsel %vm844, %v2099, 0
    %2102 = vmatprep.subr.mxu0 0.0
    %2103 = vmatpush1.msra.mxu0 %v2002
    %2104 = vmatprep.subr.mxu0 0.0
    %2105 = vmatpush1.msra.mxu0 %v2003
    %2106 = vmatprep.subr.mxu0 0.0
    %2107 = vmatpush1.msra.mxu0 %v2004
    %2108 = vmatprep.subr.mxu0 0.0
    %2109 = vmatpush1.msra.mxu0 %v2005
    %2110 = vmatprep.subr.mxu0 0.0
    %2111 = vmatpush1.msra.mxu0 %v2006
    %2112 = vmatprep.subr.mxu0 0.0
    %2113 = vmatpush1.msra.mxu0 %v2007
    %2114 = vmatprep.subr.mxu0 0.0
    %2115 = vmatpush1.msra.mxu0 %v2008
    %2116 = vmatprep.subr.mxu0 0.0
    %2117 = vmatpush1.msra.mxu0 %v2009
    %2118 = vmatprep.subr.mxu0 0.0
    %2119 = vmatpush1.msra.mxu0 0.0
    %2120 = vmatprep.subr.mxu0 0.0
    %2121 = vmatpush1.msra.mxu0 0.0
    %2122 = vmatprep.subr.mxu0 0.0
    %2123 = vmatpush1.msra.mxu0 0.0
    %2124 = vmatprep.subr.mxu0 0.0
    %2125 = vmatpush1.msra.mxu0 0.0
    %2126 = vmatprep.subr.mxu0 0.0
    %2127 = vmatpush1.msra.mxu0 0.0
    %2128 = vmatprep.subr.mxu0 0.0
    %2129 = vmatpush1.msra.mxu0 0.0
    %2130 = vmatprep.subr.mxu0 0.0
    %2131 = vmatpush1.msra.mxu0 0.0
    %2132 = vmatprep.subr.mxu0 0.0
    %2133 = vmatpush1.msra.mxu0 0.0
    %2134 = vmatprep.subr.mxu0 0.0
    %2135 = vmatpush1.msra.mxu0 0.0
    %2136 = vmatprep.subr.mxu0 0.0
    %2137 = vmatpush1.msra.mxu0 0.0
    %2138 = vmatprep.subr.mxu0 0.0
    %2139 = vmatpush1.msra.mxu0 0.0
    %2140 = vmatprep.subr.mxu0 0.0
    %2141 = vmatpush1.msra.mxu0 0.0
    %2142 = vmatprep.subr.mxu0 0.0
    %2143 = vmatpush1.msra.mxu0 0.0
    %2144 = vmatprep.subr.mxu0 0.0
    %2145 = vmatpush1.msra.mxu0 0.0
    %2146 = vmatprep.subr.mxu0 0.0
    %2147 = vmatpush1.msra.mxu0 0.0
    %2148 = vmatprep.subr.mxu0 0.0
    %2149 = vmatpush1.msra.mxu0 0.0
    %2150 = vmatprep.subr.mxu0 0.0
    %2151 = vmatpush1.msra.mxu0 0.0
    %2152 = vmatprep.subr.mxu0 0.0
    %2153 = vmatpush1.msra.mxu0 0.0
    %2154 = vmatprep.subr.mxu0 0.0
    %2155 = vmatpush1.msra.mxu0 0.0
    %2156 = vmatprep.subr.mxu0 0.0
    %2157 = vmatpush1.msra.mxu0 0.0
    %2158 = vmatprep.subr.mxu0 0.0
    %2159 = vmatpush1.msra.mxu0 0.0
    %2160 = vmatprep.subr.mxu0 0.0
    %2161 = vmatpush1.msra.mxu0 0.0
    %2162 = vmatprep.subr.mxu0 0.0
    %2163 = vmatpush1.msra.mxu0 0.0
    %2164 = vmatprep.subr.mxu0 0.0
    %2165 = vmatpush1.msra.mxu0 0.0
    %2166 = vmatprep.mubr.f32.mxu0 0.0
    %2167 = vmatmul.mubr.f32.gmra.mrb[0].mxu0 %v2100
    %v2168 = vpop.f32.mrb[0].mxu0
    %v2169 = vadd.f32 0.0, %v2168
    %v2170 = vpop.f32.mrb[0].mxu0
    %2171 = vdwg.mxu0
    %2173 = vrot.lane.b32.xlu0 %v2096, 124
    %v2174 = vpop.permute.xlu0 %2173
    %v2175 = vsel %vm844, %v2174, 0
    %2177 = vmatprep.subr.mxu0 0.0
    %2178 = vmatpush1.msra.mxu0 %v2002
    %2179 = vmatprep.subr.mxu0 0.0
    %2180 = vmatpush1.msra.mxu0 %v2003
    %2181 = vmatprep.subr.mxu0 0.0
    %2182 = vmatpush1.msra.mxu0 %v2004
    %2183 = vmatprep.subr.mxu0 0.0
    %2184 = vmatpush1.msra.mxu0 %v2005
    %2185 = vmatprep.subr.mxu0 0.0
    %2186 = vmatpush1.msra.mxu0 %v2006
    %2187 = vmatprep.subr.mxu0 0.0
    %2188 = vmatpush1.msra.mxu0 %v2007
    %2189 = vmatprep.subr.mxu0 0.0
    %2190 = vmatpush1.msra.mxu0 %v2008
    %2191 = vmatprep.subr.mxu0 0.0
    %2192 = vmatpush1.msra.mxu0 %v2009
    %2193 = vmatprep.subr.mxu0 0.0
    %2194 = vmatpush1.msra.mxu0 0.0
    %2195 = vmatprep.subr.mxu0 0.0
    %2196 = vmatpush1.msra.mxu0 0.0
    %2197 = vmatprep.subr.mxu0 0.0
    %2198 = vmatpush1.msra.mxu0 0.0
    %2199 = vmatprep.subr.mxu0 0.0
    %2200 = vmatpush1.msra.mxu0 0.0
    %2201 = vmatprep.subr.mxu0 0.0
    %2202 = vmatpush1.msra.mxu0 0.0
    %2203 = vmatprep.subr.mxu0 0.0
    %2204 = vmatpush1.msra.mxu0 0.0
    %2205 = vmatprep.subr.mxu0 0.0
    %2206 = vmatpush1.msra.mxu0 0.0
    %2207 = vmatprep.subr.mxu0 0.0
    %2208 = vmatpush1.msra.mxu0 0.0
    %2209 = vmatprep.subr.mxu0 0.0
    %2210 = vmatpush1.msra.mxu0 0.0
    %2211 = vmatprep.subr.mxu0 0.0
    %2212 = vmatpush1.msra.mxu0 0.0
    %2213 = vmatprep.subr.mxu0 0.0
    %2214 = vmatpush1.msra.mxu0 0.0
    %2215 = vmatprep.subr.mxu0 0.0
    %2216 = vmatpush1.msra.mxu0 0.0
    %2217 = vmatprep.subr.mxu0 0.0
    %2218 = vmatpush1.msra.mxu0 0.0
    %2219 = vmatprep.subr.mxu0 0.0
    %2220 = vmatpush1.msra.mxu0 0.0
    %2221 = vmatprep.subr.mxu0 0.0
    %2222 = vmatpush1.msra.mxu0 0.0
    %2223 = vmatprep.subr.mxu0 0.0
    %2224 = vmatpush1.msra.mxu0 0.0
    %2225 = vmatprep.subr.mxu0 0.0
    %2226 = vmatpush1.msra.mxu0 0.0
    %2227 = vmatprep.subr.mxu0 0.0
    %2228 = vmatpush1.msra.mxu0 0.0
    %2229 = vmatprep.subr.mxu0 0.0
    %2230 = vmatpush1.msra.mxu0 0.0
    %2231 = vmatprep.subr.mxu0 0.0
    %2232 = vmatpush1.msra.mxu0 0.0
    %2233 = vmatprep.subr.mxu0 0.0
    %2234 = vmatpush1.msra.mxu0 0.0
    %2235 = vmatprep.subr.mxu0 0.0
    %2236 = vmatpush1.msra.mxu0 0.0
    %2237 = vmatprep.subr.mxu0 0.0
    %2238 = vmatpush1.msra.mxu0 0.0
    %2239 = vmatprep.subr.mxu0 0.0
    %2240 = vmatpush1.msra.mxu0 0.0
    %2241 = vmatprep.mubr.f32.mxu0 0.0
    %2242 = vmatmul.mubr.f32.gmra.mrb[0].mxu0 %v2175
    %v2243 = vpop.f32.mrb[0].mxu0
    %v2244 = vadd.f32 0.0, %v2243
    %v2245 = vpop.f32.mrb[0].mxu0
    %2246 = vdwg.mxu0
    %v2247 = vmul.f32 %v2169, %v2169
    %v2248 = vsub.f32 %v2244, %v2247
    %v2249 = vmax.f32 %v2248, 0.0
    %v2250 = vadd.f32 %v2249, 1e-05
    %v2251 = vrsqrt.pop %v2250
    %v2252 = vlaneseq
    %v2253 = vshrl.u32 %v2252, 7
    %v2254 = vsub.s32 0, %v2253
    %v2255 = vrot.slane %v2169, %v2254
    %v2256 = vsub.f32 %v1889, %v2255
    %v2257 = vsub.f32 %v1894, %v2255
    %v2258 = vsub.f32 %v1899, %v2255
    %v2259 = vsub.f32 %v1989, %v2255
    %v2260 = vsub.f32 %v1994, %v2255
    %v2261 = vsub.f32 %v1999, %v2255
    %v2262 = vlaneseq
    %v2263 = vshrl.u32 %v2262, 7
    %v2264 = vsub.s32 0, %v2263
    %v2265 = vrot.slane %v2251, %v2264
    %v2266 = vmul.f32 %v2256, %v2265
    %v2267 = vmul.f32 %v2257, %v2265
    %v2268 = vmul.f32 %v2258, %v2265
    %v2269 = vmul.f32 %v2259, %v2265
    %v2270 = vmul.f32 %v2260, %v2265
    %v2271 = vmul.f32 %v2261, %v2265
    %v2272 = vmax.f32 %v2266, 0.0
    %v2273 = vmax.f32 %v2267, 0.0
    %v2274 = vmax.f32 %v2268, 0.0
    %v2275 = vmax.f32 %v2269, 0.0
    %v2276 = vmax.f32 %v2270, 0.0
    %v2277 = vmax.f32 %v2271, 0.0
    %v2281 = vrot.slane %v301, 3
    %v2282 = vrot.slane %v302, 3
    %v2283 = vsel %vm756, %v2281, %v2282
    %v2284 = vrot.slane %v303, 3
    %v2285 = vsel %vm756, %v2282, %v2284
    %2286 = vrot.lane.b32.xlu0 %v2283, 116
    %v2287 = vpop.permute.xlu0 %2286
    %2288 = vrot.lane.b32.xlu0 %v2285, 116
    %v2289 = vpop.permute.xlu0 %2288
    %2290 = vrot.lane.b32.xlu0 %v2284, 116
    %v2291 = vpop.permute.xlu0 %2290
    %v2295 = vmul.f32 %v2272, %v2287
    %v2296 = vmul.f32 %v2273, %v2289
    %v2297 = vmul.f32 %v2274, %v2291
    %v2298 = vmul.f32 %v2275, %v2287
    %v2299 = vmul.f32 %v2276, %v2289
    %v2300 = vmul.f32 %v2277, %v2291
    %v2301 = vld [vmem:[#allocation18] sm:$0x1]
    %v2302 = vlaneseq
    %v2303 = vshrl.u32 %v2302, 7
    %v2304 = vsub.s32 0, %v2303
    %v2305 = vrot.slane %v2301, %v2304
    %v2306 = vmul.f32 %v2295, %v2305
    %v2307 = vmul.f32 %v2296, %v2305
    %v2308 = vmul.f32 %v2298, %v2305
    %v2309 = vmul.f32 %v2299, %v2305
    %v2310 = vld [vmem:[#allocation18 + $0x1] sm:$0x1]
    %v2311 = vlaneseq
    %v2312 = vshrl.u32 %v2311, 7
    %v2313 = vsub.s32 0, %v2312
    %v2314 = vrot.slane %v2310, %v2313
    %2316 = vrot.lane.b32.xlu0 %v2314, 4
    %v2317 = vpop.permute.xlu0 %2316
    %v2319 = vmul.f32 %v2295, %v2317
    %v2320 = vmul.f32 %v2296, %v2317
    %v2321 = vmul.f32 %v2298, %v2317
    %v2322 = vmul.f32 %v2299, %v2317
    %2327 = vrot.lane.b32.xlu0 %v2319, 124
    %v2328 = vpop.permute.xlu0 %2327
    %2329 = vrot.lane.b32.xlu0 %v2320, 124
    %v2330 = vpop.permute.xlu0 %2329
    %2331 = vrot.lane.b32.xlu0 %v2321, 124
    %v2332 = vpop.permute.xlu0 %2331
    %2333 = vrot.lane.b32.xlu0 %v2322, 124
    %v2334 = vpop.permute.xlu0 %2333
    %v2339 = vadd.f32 %v2306, %v2328
    %v2340 = vadd.f32 %v2307, %v2330
    %v2341 = vadd.f32 %v2308, %v2332
    %v2342 = vadd.f32 %v2309, %v2334
    %v2343 = vld [vmem:[#allocation18 + $0x2] sm:$0x1]
    %v2344 = vlaneseq
    %v2345 = vshrl.u32 %v2344, 7
    %v2346 = vsub.s32 0, %v2345
    %v2347 = vrot.slane %v2343, %v2346
    %2349 = vrot.lane.b32.xlu0 %v2347, 8
    %v2350 = vpop.permute.xlu0 %2349
    %v2352 = vmul.f32 %v2295, %v2350
    %v2353 = vmul.f32 %v2296, %v2350
    %v2354 = vmul.f32 %v2298, %v2350
    %v2355 = vmul.f32 %v2299, %v2350
    %2360 = vrot.lane.b32.xlu0 %v2352, 120
    %v2361 = vpop.permute.xlu0 %2360
    %2362 = vrot.lane.b32.xlu0 %v2353, 120
    %v2363 = vpop.permute.xlu0 %2362
    %2364 = vrot.lane.b32.xlu0 %v2354, 120
    %v2365 = vpop.permute.xlu0 %2364
    %2366 = vrot.lane.b32.xlu0 %v2355, 120
    %v2367 = vpop.permute.xlu0 %2366
    %v2372 = vadd.f32 %v2339, %v2361
    %v2373 = vadd.f32 %v2340, %v2363
    %v2374 = vadd.f32 %v2341, %v2365
    %v2375 = vadd.f32 %v2342, %v2367
    %v2376 = vld [vmem:[#allocation18 + $0x3] sm:$0x1]
    %v2377 = vlaneseq
    %v2378 = vshrl.u32 %v2377, 7
    %v2379 = vsub.s32 0, %v2378
    %v2380 = vrot.slane %v2376, %v2379
    %v2381 = vmul.f32 %v2295, %v2380
    %v2382 = vmul.f32 %v2296, %v2380
    %v2383 = vmul.f32 %v2297, %v2380
    %v2384 = vmul.f32 %v2298, %v2380
    %v2385 = vmul.f32 %v2299, %v2380
    %v2386 = vmul.f32 %v2300, %v2380
    %v2393 = vrot.slane %v2381, 1
    %v2394 = vrot.slane %v2382, 1
    %v2395 = vsel %vm447, %v2393, %v2394
    %v2396 = vrot.slane %v2383, 1
    %v2397 = vsel %vm447, %v2394, %v2396
    %v2398 = vrot.slane %v2384, 1
    %v2399 = vrot.slane %v2385, 1
    %v2400 = vsel %vm447, %v2398, %v2399
    %v2401 = vrot.slane %v2386, 1
    %v2402 = vsel %vm447, %v2399, %v2401
    %v2407 = vadd.f32 %v2372, %v2395
    %v2408 = vadd.f32 %v2373, %v2397
    %v2409 = vadd.f32 %v2374, %v2400
    %v2410 = vadd.f32 %v2375, %v2402
    %v2411 = vld [vmem:[#allocation18 + $0x4] sm:$0x1]
    %v2412 = vlaneseq
    %v2413 = vshrl.u32 %v2412, 7
    %v2414 = vsub.s32 0, %v2413
    %v2415 = vrot.slane %v2411, %v2414
    %2417 = vrot.lane.b32.xlu0 %v2415, 4
    %v2418 = vpop.permute.xlu0 %2417
    %v2420 = vmul.f32 %v2295, %v2418
    %v2421 = vmul.f32 %v2296, %v2418
    %v2422 = vmul.f32 %v2297, %v2418
    %v2423 = vmul.f32 %v2298, %v2418
    %v2424 = vmul.f32 %v2299, %v2418
    %v2425 = vmul.f32 %v2300, %v2418
    %v2432 = vrot.slane %v2420, 1
    %v2433 = vrot.slane %v2421, 1
    %v2434 = vsel %vm447, %v2432, %v2433
    %v2435 = vrot.slane %v2422, 1
    %v2436 = vsel %vm447, %v2433, %v2435
    %v2437 = vrot.slane %v2423, 1
    %v2438 = vrot.slane %v2424, 1
    %v2439 = vsel %vm447, %v2437, %v2438
    %v2440 = vrot.slane %v2425, 1
    %v2441 = vsel %vm447, %v2438, %v2440
    %2442 = vrot.lane.b32.xlu0 %v2434, 124
    %v2443 = vpop.permute.xlu0 %2442
    %2444 = vrot.lane.b32.xlu0 %v2436, 124
    %v2445 = vpop.permute.xlu0 %2444
    %2446 = vrot.lane.b32.xlu0 %v2439, 124
    %v2447 = vpop.permute.xlu0 %2446
    %2448 = vrot.lane.b32.xlu0 %v2441, 124
    %v2449 = vpop.permute.xlu0 %2448
    %v2454 = vadd.f32 %v2407, %v2443
    %v2455 = vadd.f32 %v2408, %v2445
    %v2456 = vadd.f32 %v2409, %v2447
    %v2457 = vadd.f32 %v2410, %v2449
    %v2458 = vld [vmem:[#allocation18 + $0x5] sm:$0x1]
    %v2459 = vlaneseq
    %v2460 = vshrl.u32 %v2459, 7
    %v2461 = vsub.s32 0, %v2460
    %v2462 = vrot.slane %v2458, %v2461
    %2464 = vrot.lane.b32.xlu0 %v2462, 8
    %v2465 = vpop.permute.xlu0 %2464
    %v2467 = vmul.f32 %v2295, %v2465
    %v2468 = vmul.f32 %v2296, %v2465
    %v2469 = vmul.f32 %v2297, %v2465
    %v2470 = vmul.f32 %v2298, %v2465
    %v2471 = vmul.f32 %v2299, %v2465
    %v2472 = vmul.f32 %v2300, %v2465
    %v2479 = vrot.slane %v2467, 1
    %v2480 = vrot.slane %v2468, 1
    %v2481 = vsel %vm447, %v2479, %v2480
    %v2482 = vrot.slane %v2469, 1
    %v2483 = vsel %vm447, %v2480, %v2482
    %v2484 = vrot.slane %v2470, 1
    %v2485 = vrot.slane %v2471, 1
    %v2486 = vsel %vm447, %v2484, %v2485
    %v2487 = vrot.slane %v2472, 1
    %v2488 = vsel %vm447, %v2485, %v2487
    %2489 = vrot.lane.b32.xlu0 %v2481, 120
    %v2490 = vpop.permute.xlu0 %2489
    %2491 = vrot.lane.b32.xlu0 %v2483, 120
    %v2492 = vpop.permute.xlu0 %2491
    %2493 = vrot.lane.b32.xlu0 %v2486, 120
    %v2494 = vpop.permute.xlu0 %2493
    %2495 = vrot.lane.b32.xlu0 %v2488, 120
    %v2496 = vpop.permute.xlu0 %2495
    %v2501 = vadd.f32 %v2454, %v2490
    %v2502 = vadd.f32 %v2455, %v2492
    %v2503 = vadd.f32 %v2456, %v2494
    %v2504 = vadd.f32 %v2457, %v2496
    %v2505 = vld [vmem:[#allocation18 + $0x6] sm:$0x1]
    %v2506 = vlaneseq
    %v2507 = vshrl.u32 %v2506, 7
    %v2508 = vsub.s32 0, %v2507
    %v2509 = vrot.slane %v2505, %v2508
    %v2510 = vmul.f32 %v2295, %v2509
    %v2511 = vmul.f32 %v2296, %v2509
    %v2512 = vmul.f32 %v2297, %v2509
    %v2513 = vmul.f32 %v2298, %v2509
    %v2514 = vmul.f32 %v2299, %v2509
    %v2515 = vmul.f32 %v2300, %v2509
    %v2522 = vrot.slane %v2510, 2
    %v2523 = vrot.slane %v2511, 2
    %v2524 = vsel %vm588, %v2522, %v2523
    %v2525 = vrot.slane %v2512, 2
    %v2526 = vsel %vm588, %v2523, %v2525
    %v2527 = vrot.slane %v2513, 2
    %v2528 = vrot.slane %v2514, 2
    %v2529 = vsel %vm588, %v2527, %v2528
    %v2530 = vrot.slane %v2515, 2
    %v2531 = vsel %vm588, %v2528, %v2530
    %v2536 = vadd.f32 %v2501, %v2524
    %v2537 = vadd.f32 %v2502, %v2526
    %v2538 = vadd.f32 %v2503, %v2529
    %v2539 = vadd.f32 %v2504, %v2531
    %v2540 = vld [vmem:[#allocation18 + $0x7] sm:$0x1]
    %v2541 = vlaneseq
    %v2542 = vshrl.u32 %v2541, 7
    %v2543 = vsub.s32 0, %v2542
    %v2544 = vrot.slane %v2540, %v2543
    %2546 = vrot.lane.b32.xlu0 %v2544, 4
    %v2547 = vpop.permute.xlu0 %2546
    %v2549 = vmul.f32 %v2295, %v2547
    %v2550 = vmul.f32 %v2296, %v2547
    %v2551 = vmul.f32 %v2297, %v2547
    %v2552 = vmul.f32 %v2298, %v2547
    %v2553 = vmul.f32 %v2299, %v2547
    %v2554 = vmul.f32 %v2300, %v2547
    %v2561 = vrot.slane %v2549, 2
    %v2562 = vrot.slane %v2550, 2
    %v2563 = vsel %vm588, %v2561, %v2562
    %v2564 = vrot.slane %v2551, 2
    %v2565 = vsel %vm588, %v2562, %v2564
    %v2566 = vrot.slane %v2552, 2
    %v2567 = vrot.slane %v2553, 2
    %v2568 = vsel %vm588, %v2566, %v2567
    %v2569 = vrot.slane %v2554, 2
    %v2570 = vsel %vm588, %v2567, %v2569
    %2571 = vrot.lane.b32.xlu0 %v2563, 124
    %v2572 = vpop.permute.xlu0 %2571
    %2573 = vrot.lane.b32.xlu0 %v2565, 124
    %v2574 = vpop.permute.xlu0 %2573
    %2575 = vrot.lane.b32.xlu0 %v2568, 124
    %v2576 = vpop.permute.xlu0 %2575
    %2577 = vrot.lane.b32.xlu0 %v2570, 124
    %v2578 = vpop.permute.xlu0 %2577
    %v2583 = vadd.f32 %v2536, %v2572
    %v2584 = vadd.f32 %v2537, %v2574
    %v2585 = vadd.f32 %v2538, %v2576
    %v2586 = vadd.f32 %v2539, %v2578
    %v2587 = vld [vmem:[#allocation18 + $0x8] sm:$0x1]
    %v2588 = vlaneseq
    %v2589 = vshrl.u32 %v2588, 7
    %v2590 = vsub.s32 0, %v2589
    %v2591 = vrot.slane %v2587, %v2590
    %2593 = vrot.lane.b32.xlu0 %v2591, 8
    %v2594 = vpop.permute.xlu0 %2593
    %v2596 = vmul.f32 %v2295, %v2594
    %v2597 = vmul.f32 %v2296, %v2594
    %v2598 = vmul.f32 %v2297, %v2594
    %v2599 = vmul.f32 %v2298, %v2594
    %v2600 = vmul.f32 %v2299, %v2594
    %v2601 = vmul.f32 %v2300, %v2594
    %v2608 = vrot.slane %v2596, 2
    %v2609 = vrot.slane %v2597, 2
    %v2610 = vsel %vm588, %v2608, %v2609
    %v2611 = vrot.slane %v2598, 2
    %v2612 = vsel %vm588, %v2609, %v2611
    %v2613 = vrot.slane %v2599, 2
    %v2614 = vrot.slane %v2600, 2
    %v2615 = vsel %vm588, %v2613, %v2614
    %v2616 = vrot.slane %v2601, 2
    %v2617 = vsel %vm588, %v2614, %v2616
    %2618 = vrot.lane.b32.xlu0 %v2610, 120
    %v2619 = vpop.permute.xlu0 %2618
    %2620 = vrot.lane.b32.xlu0 %v2612, 120
    %v2621 = vpop.permute.xlu0 %2620
    %2622 = vrot.lane.b32.xlu0 %v2615, 120
    %v2623 = vpop.permute.xlu0 %2622
    %2624 = vrot.lane.b32.xlu0 %v2617, 120
    %v2625 = vpop.permute.xlu0 %2624
    %v2630 = vadd.f32 %v2583, %v2619
    %v2631 = vadd.f32 %v2584, %v2621
    %v2632 = vadd.f32 %v2585, %v2623
    %v2633 = vadd.f32 %v2586, %v2625
    %v2634 = vld [vmem:[#allocation19] sm:$0xff]
    %v2635 = vld [vmem:[#allocation19 + $0x8] sm:$0xff]
    %v2636 = vld [vmem:[#allocation19 + $0x10] sm:$0xff]
    %v2637 = vld [vmem:[#allocation19 + $0x18] sm:$0xff]
    %v2638 = vld [vmem:[#allocation19 + $0x20] sm:$0xff]
    %v2639 = vld [vmem:[#allocation19 + $0x28] sm:$0xff]
    %v2640 = vld [vmem:[#allocation19 + $0x30] sm:$0xff]
    %v2641 = vld [vmem:[#allocation19 + $0x38] sm:$0xff]
    %v2643 = vsel %vm844, %v2630, 0
    %v2646 = vsel %vm844, %v2631, 0
    %2648 = vmatprep.subr.mxu0 0.0
    %2649 = vmatpush1.msra.mxu0 %v2634
    %2650 = vmatprep.subr.mxu0 0.0
    %2651 = vmatpush1.msra.mxu0 %v2635
    %2652 = vmatprep.subr.mxu0 0.0
    %2653 = vmatpush1.msra.mxu0 %v2636
    %2654 = vmatprep.subr.mxu0 0.0
    %2655 = vmatpush1.msra.mxu0 %v2637
    %2656 = vmatprep.subr.mxu0 0.0
    %2657 = vmatpush1.msra.mxu0 %v2638
    %2658 = vmatprep.subr.mxu0 0.0
    %2659 = vmatpush1.msra.mxu0 %v2639
    %2660 = vmatprep.subr.mxu0 0.0
    %2661 = vmatpush1.msra.mxu0 %v2640
    %2662 = vmatprep.subr.mxu0 0.0
    %2663 = vmatpush1.msra.mxu0 %v2641
    %2664 = vmatprep.subr.mxu0 0.0
    %2665 = vmatpush1.msra.mxu0 0.0
    %2666 = vmatprep.subr.mxu0 0.0
    %2667 = vmatpush1.msra.mxu0 0.0
    %2668 = vmatprep.subr.mxu0 0.0
    %2669 = vmatpush1.msra.mxu0 0.0
    %2670 = vmatprep.subr.mxu0 0.0
    %2671 = vmatpush1.msra.mxu0 0.0
    %2672 = vmatprep.subr.mxu0 0.0
    %2673 = vmatpush1.msra.mxu0 0.0
    %2674 = vmatprep.subr.mxu0 0.0
    %2675 = vmatpush1.msra.mxu0 0.0
    %2676 = vmatprep.subr.mxu0 0.0
    %2677 = vmatpush1.msra.mxu0 0.0
    %2678 = vmatprep.subr.mxu0 0.0
    %2679 = vmatpush1.msra.mxu0 0.0
    %2680 = vmatprep.subr.mxu0 0.0
    %2681 = vmatpush1.msra.mxu0 0.0
    %2682 = vmatprep.subr.mxu0 0.0
    %2683 = vmatpush1.msra.mxu0 0.0
    %2684 = vmatprep.subr.mxu0 0.0
    %2685 = vmatpush1.msra.mxu0 0.0
    %2686 = vmatprep.subr.mxu0 0.0
    %2687 = vmatpush1.msra.mxu0 0.0
    %2688 = vmatprep.subr.mxu0 0.0
    %2689 = vmatpush1.msra.mxu0 0.0
    %2690 = vmatprep.subr.mxu0 0.0
    %2691 = vmatpush1.msra.mxu0 0.0
    %2692 = vmatprep.subr.mxu0 0.0
    %2693 = vmatpush1.msra.mxu0 0.0
    %2694 = vmatprep.subr.mxu0 0.0
    %2695 = vmatpush1.msra.mxu0 0.0
    %2696 = vmatprep.subr.mxu0 0.0
    %2697 = vmatpush1.msra.mxu0 0.0
    %2698 = vmatprep.subr.mxu0 0.0
    %2699 = vmatpush1.msra.mxu0 0.0
    %2700 = vmatprep.subr.mxu0 0.0
    %2701 = vmatpush1.msra.mxu0 0.0
    %2702 = vmatprep.subr.mxu0 0.0
    %2703 = vmatpush1.msra.mxu0 0.0
    %2704 = vmatprep.subr.mxu0 0.0
    %2705 = vmatpush1.msra.mxu0 0.0
    %2706 = vmatprep.subr.mxu0 0.0
    %2707 = vmatpush1.msra.mxu0 0.0
    %2708 = vmatprep.subr.mxu0 0.0
    %2709 = vmatpush1.msra.mxu0 0.0
    %2710 = vmatprep.subr.mxu0 0.0
    %2711 = vmatpush1.msra.mxu0 0.0
    %2712 = vmatprep.mubr.f32.mxu0 0.0
    %2713 = vmatmul.mubr.f32.gmra.mrb[0].mxu0 %v2643
    %v2714 = vpop.f32.mrb[0].mxu0
    %v2715 = vadd.f32 0.0, %v2714
    %v2716 = vpop.f32.mrb[0].mxu0
    %2717 = vmatprep.mubr.f32.mxu0 0.0
    %2718 = vmatmul.mubr.f32.gmra.mrb[0].mxu0 %v2646
    %v2719 = vpop.f32.mrb[0].mxu0
    %v2720 = vadd.f32 0.0, %v2719
    %v2721 = vpop.f32.mrb[0].mxu0
    %2722 = vdwg.mxu0
    %v2724 = vsel %vm844, %v2632, 0
    %v2727 = vsel %vm844, %v2633, 0
    %2729 = vmatprep.subr.mxu0 0.0
    %2730 = vmatpush1.msra.mxu0 %v2634
    %2731 = vmatprep.subr.mxu0 0.0
    %2732 = vmatpush1.msra.mxu0 %v2635
    %2733 = vmatprep.subr.mxu0 0.0
    %2734 = vmatpush1.msra.mxu0 %v2636
    %2735 = vmatprep.subr.mxu0 0.0
    %2736 = vmatpush1.msra.mxu0 %v2637
    %2737 = vmatprep.subr.mxu0 0.0
    %2738 = vmatpush1.msra.mxu0 %v2638
    %2739 = vmatprep.subr.mxu0 0.0
    %2740 = vmatpush1.msra.mxu0 %v2639
    %2741 = vmatprep.subr.mxu0 0.0
    %2742 = vmatpush1.msra.mxu0 %v2640
    %2743 = vmatprep.subr.mxu0 0.0
    %2744 = vmatpush1.msra.mxu0 %v2641
    %2745 = vmatprep.subr.mxu0 0.0
    %2746 = vmatpush1.msra.mxu0 0.0
    %2747 = vmatprep.subr.mxu0 0.0
    %2748 = vmatpush1.msra.mxu0 0.0
    %2749 = vmatprep.subr.mxu0 0.0
    %2750 = vmatpush1.msra.mxu0 0.0
    %2751 = vmatprep.subr.mxu0 0.0
    %2752 = vmatpush1.msra.mxu0 0.0
    %2753 = vmatprep.subr.mxu0 0.0
    %2754 = vmatpush1.msra.mxu0 0.0
    %2755 = vmatprep.subr.mxu0 0.0
    %2756 = vmatpush1.msra.mxu0 0.0
    %2757 = vmatprep.subr.mxu0 0.0
    %2758 = vmatpush1.msra.mxu0 0.0
    %2759 = vmatprep.subr.mxu0 0.0
    %2760 = vmatpush1.msra.mxu0 0.0
    %2761 = vmatprep.subr.mxu0 0.0
    %2762 = vmatpush1.msra.mxu0 0.0
    %2763 = vmatprep.subr.mxu0 0.0
    %2764 = vmatpush1.msra.mxu0 0.0
    %2765 = vmatprep.subr.mxu0 0.0
    %2766 = vmatpush1.msra.mxu0 0.0
    %2767 = vmatprep.subr.mxu0 0.0
    %2768 = vmatpush1.msra.mxu0 0.0
    %2769 = vmatprep.subr.mxu0 0.0
    %2770 = vmatpush1.msra.mxu0 0.0
    %2771 = vmatprep.subr.mxu0 0.0
    %2772 = vmatpush1.msra.mxu0 0.0
    %2773 = vmatprep.subr.mxu0 0.0
    %2774 = vmatpush1.msra.mxu0 0.0
    %2775 = vmatprep.subr.mxu0 0.0
    %2776 = vmatpush1.msra.mxu0 0.0
    %2777 = vmatprep.subr.mxu0 0.0
    %2778 = vmatpush1.msra.mxu0 0.0
    %2779 = vmatprep.subr.mxu0 0.0
    %2780 = vmatpush1.msra.mxu0 0.0
    %2781 = vmatprep.subr.mxu0 0.0
    %2782 = vmatpush1.msra.mxu0 0.0
    %2783 = vmatprep.subr.mxu0 0.0
    %2784 = vmatpush1.msra.mxu0 0.0
    %2785 = vmatprep.subr.mxu0 0.0
    %2786 = vmatpush1.msra.mxu0 0.0
    %2787 = vmatprep.subr.mxu0 0.0
    %2788 = vmatpush1.msra.mxu0 0.0
    %2789 = vmatprep.subr.mxu0 0.0
    %2790 = vmatpush1.msra.mxu0 0.0
    %2791 = vmatprep.subr.mxu0 0.0
    %2792 = vmatpush1.msra.mxu0 0.0
    %2793 = vmatprep.mubr.f32.mxu0 0.0
    %2794 = vmatmul.mubr.f32.gmra.mrb[0].mxu0 %v2724
    %v2795 = vpop.f32.mrb[0].mxu0
    %v2796 = vadd.f32 0.0, %v2795
    %v2797 = vpop.f32.mrb[0].mxu0
    %2798 = vmatprep.mubr.f32.mxu0 0.0
    %2799 = vmatmul.mubr.f32.gmra.mrb[0].mxu0 %v2727
    %v2800 = vpop.f32.mrb[0].mxu0
    %v2801 = vadd.f32 0.0, %v2800
    %v2802 = vpop.f32.mrb[0].mxu0
    %2803 = vdwg.mxu0
    %v2804 = vsel %vm844, %v2715, 0.0
    %v2805 = vsel %vm844, %v2720, 0.0
    %v2806 = vadd.f32 %v2804, %v2805
    %v2807 = vrot.slane %v2806, 4
    %v2808 = vadd.f32 %v2806, %v2807
    %v2809 = vrot.slane %v2808, 2
    %v2810 = vadd.f32 %v2808, %v2809
    %v2811 = vrot.slane %v2810, 1
    %v2812 = vadd.f32 %v2810, %v2811
    %v2813 = vadd.f32 %v2812, 0.0
    %v2814 = vmul.f32 %v2715, %v2715
    %v2815 = vmul.f32 %v2720, %v2720
    %v2816 = vsel %vm844, %v2814, 0.0
    %v2817 = vsel %vm844, %v2815, 0.0
    %v2818 = vadd.f32 %v2816, %v2817
    %v2819 = vrot.slane %v2818, 4
    %v2820 = vadd.f32 %v2818, %v2819
    %v2821 = vrot.slane %v2820, 2
    %v2822 = vadd.f32 %v2820, %v2821
    %v2823 = vrot.slane %v2822, 1
    %v2824 = vadd.f32 %v2822, %v2823
    %v2825 = vadd.f32 %v2824, 0.0
    %v2826 = vsel %vm844, %v2796, 0.0
    %v2827 = vsel %vm844, %v2801, 0.0
    %v2828 = vadd.f32 %v2826, %v2827
    %v2829 = vrot.slane %v2828, 4
    %v2830 = vadd.f32 %v2828, %v2829
    %v2831 = vrot.slane %v2830, 2
    %v2832 = vadd.f32 %v2830, %v2831
    %v2833 = vrot.slane %v2832, 1
    %v2834 = vadd.f32 %v2832, %v2833
    %v2835 = vadd.f32 %v2813, %v2834
    %v2836 = vmul.f32 %v2796, %v2796
    %v2837 = vmul.f32 %v2801, %v2801
    %v2838 = vsel %vm844, %v2836, 0.0
    %v2839 = vsel %vm844, %v2837, 0.0
    %v2840 = vadd.f32 %v2838, %v2839
    %v2841 = vrot.slane %v2840, 4
    %v2842 = vadd.f32 %v2840, %v2841
    %v2843 = vrot.slane %v2842, 2
    %v2844 = vadd.f32 %v2842, %v2843
    %v2845 = vrot.slane %v2844, 1
    %v2846 = vadd.f32 %v2844, %v2845
    %v2847 = vadd.f32 %v2825, %v2846
    %v2849 = vsel %vm844, %v2835, 0
    %2851 = vmatprep.subr.mxu0 0.0
    %2852 = vmatpush1.msra.mxu0 %v304
    %2853 = vmatprep.subr.mxu0 0.0
    %2854 = vmatpush1.msra.mxu0 %v305
    %2855 = vmatprep.subr.mxu0 0.0
    %2856 = vmatpush1.msra.mxu0 %v306
    %2857 = vmatprep.subr.mxu0 0.0
    %2858 = vmatpush1.msra.mxu0 %v307
    %2859 = vmatprep.subr.mxu0 0.0
    %2860 = vmatpush1.msra.mxu0 %v308
    %2861 = vmatprep.subr.mxu0 0.0
    %2862 = vmatpush1.msra.mxu0 %v309
    %2863 = vmatprep.subr.mxu0 0.0
    %2864 = vmatpush1.msra.mxu0 %v310
    %2865 = vmatprep.subr.mxu0 0.0
    %2866 = vmatpush1.msra.mxu0 %v311
    %2867 = vmatprep.subr.mxu0 0.0
    %2868 = vmatpush1.msra.mxu0 0.0
    %2869 = vmatprep.subr.mxu0 0.0
    %2870 = vmatpush1.msra.mxu0 0.0
    %2871 = vmatprep.subr.mxu0 0.0
    %2872 = vmatpush1.msra.mxu0 0.0
    %2873 = vmatprep.subr.mxu0 0.0
    %2874 = vmatpush1.msra.mxu0 0.0
    %2875 = vmatprep.subr.mxu0 0.0
    %2876 = vmatpush1.msra.mxu0 0.0
    %2877 = vmatprep.subr.mxu0 0.0
    %2878 = vmatpush1.msra.mxu0 0.0
    %2879 = vmatprep.subr.mxu0 0.0
    %2880 = vmatpush1.msra.mxu0 0.0
    %2881 = vmatprep.subr.mxu0 0.0
    %2882 = vmatpush1.msra.mxu0 0.0
    %2883 = vmatprep.subr.mxu0 0.0
    %2884 = vmatpush1.msra.mxu0 0.0
    %2885 = vmatprep.subr.mxu0 0.0
    %2886 = vmatpush1.msra.mxu0 0.0
    %2887 = vmatprep.subr.mxu0 0.0
    %2888 = vmatpush1.msra.mxu0 0.0
    %2889 = vmatprep.subr.mxu0 0.0
    %2890 = vmatpush1.msra.mxu0 0.0
    %2891 = vmatprep.subr.mxu0 0.0
    %2892 = vmatpush1.msra.mxu0 0.0
    %2893 = vmatprep.subr.mxu0 0.0
    %2894 = vmatpush1.msra.mxu0 0.0
    %2895 = vmatprep.subr.mxu0 0.0
    %2896 = vmatpush1.msra.mxu0 0.0
    %2897 = vmatprep.subr.mxu0 0.0
    %2898 = vmatpush1.msra.mxu0 0.0
    %2899 = vmatprep.subr.mxu0 0.0
    %2900 = vmatpush1.msra.mxu0 0.0
    %2901 = vmatprep.subr.mxu0 0.0
    %2902 = vmatpush1.msra.mxu0 0.0
    %2903 = vmatprep.subr.mxu0 0.0
    %2904 = vmatpush1.msra.mxu0 0.0
    %2905 = vmatprep.subr.mxu0 0.0
    %2906 = vmatpush1.msra.mxu0 0.0
    %2907 = vmatprep.subr.mxu0 0.0
    %2908 = vmatpush1.msra.mxu0 0.0
    %2909 = vmatprep.subr.mxu0 0.0
    %2910 = vmatpush1.msra.mxu0 0.0
    %2911 = vmatprep.subr.mxu0 0.0
    %2912 = vmatpush1.msra.mxu0 0.0
    %2913 = vmatprep.subr.mxu0 0.0
    %2914 = vmatpush1.msra.mxu0 0.0
    %2915 = vmatprep.mubr.f32.mxu0 0.0
    %2916 = vmatmul.mubr.f32.gmra.mrb[0].mxu0 %v2849
    %v2917 = vpop.f32.mrb[0].mxu0
    %v2918 = vadd.f32 0.0, %v2917
    %v2919 = vpop.f32.mrb[0].mxu0
    %2920 = vdwg.mxu0
    %v2922 = vsel %vm844, %v2847, 0
    %2924 = vmatprep.subr.mxu0 0.0
    %2925 = vmatpush1.msra.mxu0 %v304
    %2926 = vmatprep.subr.mxu0 0.0
    %2927 = vmatpush1.msra.mxu0 %v305
    %2928 = vmatprep.subr.mxu0 0.0
    %2929 = vmatpush1.msra.mxu0 %v306
    %2930 = vmatprep.subr.mxu0 0.0
    %2931 = vmatpush1.msra.mxu0 %v307
    %2932 = vmatprep.subr.mxu0 0.0
    %2933 = vmatpush1.msra.mxu0 %v308
    %2934 = vmatprep.subr.mxu0 0.0
    %2935 = vmatpush1.msra.mxu0 %v309
    %2936 = vmatprep.subr.mxu0 0.0
    %2937 = vmatpush1.msra.mxu0 %v310
    %2938 = vmatprep.subr.mxu0 0.0
    %2939 = vmatpush1.msra.mxu0 %v311
    %2940 = vmatprep.subr.mxu0 0.0
    %2941 = vmatpush1.msra.mxu0 0.0
    %2942 = vmatprep.subr.mxu0 0.0
    %2943 = vmatpush1.msra.mxu0 0.0
    %2944 = vmatprep.subr.mxu0 0.0
    %2945 = vmatpush1.msra.mxu0 0.0
    %2946 = vmatprep.subr.mxu0 0.0
    %2947 = vmatpush1.msra.mxu0 0.0
    %2948 = vmatprep.subr.mxu0 0.0
    %2949 = vmatpush1.msra.mxu0 0.0
    %2950 = vmatprep.subr.mxu0 0.0
    %2951 = vmatpush1.msra.mxu0 0.0
    %2952 = vmatprep.subr.mxu0 0.0
    %2953 = vmatpush1.msra.mxu0 0.0
    %2954 = vmatprep.subr.mxu0 0.0
    %2955 = vmatpush1.msra.mxu0 0.0
    %2956 = vmatprep.subr.mxu0 0.0
    %2957 = vmatpush1.msra.mxu0 0.0
    %2958 = vmatprep.subr.mxu0 0.0
    %2959 = vmatpush1.msra.mxu0 0.0
    %2960 = vmatprep.subr.mxu0 0.0
    %2961 = vmatpush1.msra.mxu0 0.0
    %2962 = vmatprep.subr.mxu0 0.0
    %2963 = vmatpush1.msra.mxu0 0.0
    %2964 = vmatprep.subr.mxu0 0.0
    %2965 = vmatpush1.msra.mxu0 0.0
    %2966 = vmatprep.subr.mxu0 0.0
    %2967 = vmatpush1.msra.mxu0 0.0
    %2968 = vmatprep.subr.mxu0 0.0
    %2969 = vmatpush1.msra.mxu0 0.0
    %2970 = vmatprep.subr.mxu0 0.0
    %2971 = vmatpush1.msra.mxu0 0.0
    %2972 = vmatprep.subr.mxu0 0.0
    %2973 = vmatpush1.msra.mxu0 0.0
    %2974 = vmatprep.subr.mxu0 0.0
    %2975 = vmatpush1.msra.mxu0 0.0
    %2976 = vmatprep.subr.mxu0 0.0
    %2977 = vmatpush1.msra.mxu0 0.0
    %2978 = vmatprep.subr.mxu0 0.0
    %2979 = vmatpush1.msra.mxu0 0.0
    %2980 = vmatprep.subr.mxu0 0.0
    %2981 = vmatpush1.msra.mxu0 0.0
    %2982 = vmatprep.subr.mxu0 0.0
    %2983 = vmatpush1.msra.mxu0 0.0
    %2984 = vmatprep.subr.mxu0 0.0
    %2985 = vmatpush1.msra.mxu0 0.0
    %2986 = vmatprep.subr.mxu0 0.0
    %2987 = vmatpush1.msra.mxu0 0.0
    %2988 = vmatprep.mubr.f32.mxu0 0.0
    %2989 = vmatmul.mubr.f32.gmra.mrb[0].mxu0 %v2922
    %v2990 = vpop.f32.mrb[0].mxu0
    %v2991 = vadd.f32 0.0, %v2990
    %v2992 = vpop.f32.mrb[0].mxu0
    %2993 = vdwg.mxu0
    %v2994 = vmul.f32 %v2918, %v2918
    %v2995 = vsub.f32 %v2991, %v2994
    %v2996 = vmax.f32 %v2995, 0.0
    %v2997 = vadd.f32 %v2996, 1e-05
    %v2998 = vrsqrt.pop %v2997
    %v2999 = vstv %s1380
    %v3000 = vmul.f32 %v2998, %v2999
    %v3001 = vlaneseq
    %v3002 = vshrl.u32 %v3001, 7
    %v3003 = vsub.s32 0, %v3002
    %v3004 = vrot.slane %v2918, %v3003
    %v3005 = vsub.f32 %v2715, %v3004
    %v3006 = vsub.f32 %v2720, %v3004
    %v3007 = vsub.f32 %v2796, %v3004
    %v3008 = vsub.f32 %v2801, %v3004
    %v3009 = vlaneseq
    %v3010 = vshrl.u32 %v3009, 7
    %v3011 = vsub.s32 0, %v3010
    %v3012 = vrot.slane %v3000, %v3011
    %v3013 = vmul.f32 %v3005, %v3012
    %v3014 = vmul.f32 %v3006, %v3012
    %v3015 = vmul.f32 %v3007, %v3012
    %v3016 = vmul.f32 %v3008, %v3012
    %vm3021 = vcmask 1043456
    %v3022 = vrot.slane %v3013, 4
    %v3023 = vrot.slane %v3014, 4
    %v3024 = vsel %vm3021, %v3022, %v3023
    %v3025 = vrot.slane %v3015, 4
    %v3026 = vrot.slane %v3016, 4
    %v3027 = vsel %vm3021, %v3025, %v3026
    %3028 = vrot.lane.b32.xlu0 %v3022, 16
    %v3029 = vpop.permute.xlu0 %3028
    %3030 = vrot.lane.b32.xlu0 %v3024, 16
    %v3031 = vpop.permute.xlu0 %3030
    %3032 = vrot.lane.b32.xlu0 %v3023, 16
    %v3033 = vpop.permute.xlu0 %3032
    %3034 = vrot.lane.b32.xlu0 %v3025, 16
    %v3035 = vpop.permute.xlu0 %3034
    %3036 = vrot.lane.b32.xlu0 %v3027, 16
    %v3037 = vpop.permute.xlu0 %3036
    %3038 = vrot.lane.b32.xlu0 %v3026, 16
    %v3039 = vpop.permute.xlu0 %3038
    %v3046 = vadd.f32 %v1374, %v3029
    %v3047 = vadd.f32 %v1375, %v3031
    %v3048 = vadd.f32 %v1376, %v3033
    %v3049 = vadd.f32 %v1377, %v3035
    %v3050 = vadd.f32 %v1378, %v3037
    %v3051 = vadd.f32 %v1379, %v3039
    %s3052 = sld [smem:[#allocation3 + $0x5]]
    %v3053 = vld [vmem:[#allocation21] sm:$0x1]
    %v3054 = vlaneseq
    %v3055 = vshrl.u32 %v3054, 7
    %v3056 = vsub.s32 0, %v3055
    %v3057 = vrot.slane %v3053, %v3056
    %v3058 = vmul.f32 %v312, %v3057
    %v3059 = vmul.f32 %v313, %v3057
    %v3060 = vmul.f32 %v314, %v3057
    %v3061 = vmul.f32 %v315, %v3057
    %v3062 = vmul.f32 %v316, %v3057
    %v3063 = vmul.f32 %v317, %v3057
    %v3064 = vld [vmem:[#allocation21 + $0x1] sm:$0x1]
    %v3065 = vlaneseq
    %v3066 = vshrl.u32 %v3065, 7
    %v3067 = vsub.s32 0, %v3066
    %v3068 = vrot.slane %v3064, %v3067
    %3070 = vrot.lane.b32.xlu0 %v3068, 4
    %v3071 = vpop.permute.xlu0 %3070
    %v3073 = vmul.f32 %v312, %v3071
    %v3074 = vmul.f32 %v313, %v3071
    %v3075 = vmul.f32 %v314, %v3071
    %v3076 = vmul.f32 %v315, %v3071
    %v3077 = vmul.f32 %v316, %v3071
    %v3078 = vmul.f32 %v317, %v3071
    %3085 = vrot.lane.b32.xlu0 %v3073, 124
    %v3086 = vpop.permute.xlu0 %3085
    %3087 = vrot.lane.b32.xlu0 %v3074, 124
    %v3088 = vpop.permute.xlu0 %3087
    %3089 = vrot.lane.b32.xlu0 %v3075, 124
    %v3090 = vpop.permute.xlu0 %3089
    %3091 = vrot.lane.b32.xlu0 %v3076, 124
    %v3092 = vpop.permute.xlu0 %3091
    %3093 = vrot.lane.b32.xlu0 %v3077, 124
    %v3094 = vpop.permute.xlu0 %3093
    %3095 = vrot.lane.b32.xlu0 %v3078, 124
    %v3096 = vpop.permute.xlu0 %3095
    %v3103 = vadd.f32 %v3058, %v3086
    %v3104 = vadd.f32 %v3059, %v3088
    %v3105 = vadd.f32 %v3060, %v3090
    %v3106 = vadd.f32 %v3061, %v3092
    %v3107 = vadd.f32 %v3062, %v3094
    %v3108 = vadd.f32 %v3063, %v3096
    %v3109 = vld [vmem:[#allocation21 + $0x2] sm:$0x1]
    %v3110 = vlaneseq
    %v3111 = vshrl.u32 %v3110, 7
    %v3112 = vsub.s32 0, %v3111
    %v3113 = vrot.slane %v3109, %v3112
    %3115 = vrot.lane.b32.xlu0 %v3113, 8
    %v3116 = vpop.permute.xlu0 %3115
    %v3118 = vmul.f32 %v312, %v3116
    %v3119 = vmul.f32 %v313, %v3116
    %v3120 = vmul.f32 %v314, %v3116
    %v3121 = vmul.f32 %v315, %v3116
    %v3122 = vmul.f32 %v316, %v3116
    %v3123 = vmul.f32 %v317, %v3116
    %3130 = vrot.lane.b32.xlu0 %v3118, 120
    %v3131 = vpop.permute.xlu0 %3130
    %3132 = vrot.lane.b32.xlu0 %v3119, 120
    %v3133 = vpop.permute.xlu0 %3132
    %3134 = vrot.lane.b32.xlu0 %v3120, 120
    %v3135 = vpop.permute.xlu0 %3134
    %3136 = vrot.lane.b32.xlu0 %v3121, 120
    %v3137 = vpop.permute.xlu0 %3136
    %3138 = vrot.lane.b32.xlu0 %v3122, 120
    %v3139 = vpop.permute.xlu0 %3138
    %3140 = vrot.lane.b32.xlu0 %v3123, 120
    %v3141 = vpop.permute.xlu0 %3140
    %v3148 = vadd.f32 %v3103, %v3131
    %v3149 = vadd.f32 %v3104, %v3133
    %v3150 = vadd.f32 %v3105, %v3135
    %v3151 = vadd.f32 %v3106, %v3137
    %v3152 = vadd.f32 %v3107, %v3139
    %v3153 = vadd.f32 %v3108, %v3141
    %v3154 = vld [vmem:[#allocation21 + $0x3] sm:$0x1]
    %v3155 = vlaneseq
    %v3156 = vshrl.u32 %v3155, 7
    %v3157 = vsub.s32 0, %v3156
    %v3158 = vrot.slane %v3154, %v3157
    %3160 = vrot.lane.b32.xlu0 %v3158, 12
    %v3161 = vpop.permute.xlu0 %3160
    %v3163 = vmul.f32 %v312, %v3161
    %v3164 = vmul.f32 %v313, %v3161
    %v3165 = vmul.f32 %v314, %v3161
    %v3166 = vmul.f32 %v315, %v3161
    %v3167 = vmul.f32 %v316, %v3161
    %v3168 = vmul.f32 %v317, %v3161
    %3175 = vrot.lane.b32.xlu0 %v3163, 116
    %v3176 = vpop.permute.xlu0 %3175
    %3177 = vrot.lane.b32.xlu0 %v3164, 116
    %v3178 = vpop.permute.xlu0 %3177
    %3179 = vrot.lane.b32.xlu0 %v3165, 116
    %v3180 = vpop.permute.xlu0 %3179
    %3181 = vrot.lane.b32.xlu0 %v3166, 116
    %v3182 = vpop.permute.xlu0 %3181
    %3183 = vrot.lane.b32.xlu0 %v3167, 116
    %v3184 = vpop.permute.xlu0 %3183
    %3185 = vrot.lane.b32.xlu0 %v3168, 116
    %v3186 = vpop.permute.xlu0 %3185
    %v3193 = vadd.f32 %v3148, %v3176
    %v3194 = vadd.f32 %v3149, %v3178
    %v3195 = vadd.f32 %v3150, %v3180
    %v3196 = vadd.f32 %v3151, %v3182
    %v3197 = vadd.f32 %v3152, %v3184
    %v3198 = vadd.f32 %v3153, %v3186
    %v3199 = vld [vmem:[#allocation21 + $0x4] sm:$0x1]
    %v3200 = vlaneseq
    %v3201 = vshrl.u32 %v3200, 7
    %v3202 = vsub.s32 0, %v3201
    %v3203 = vrot.slane %v3199, %v3202
    %3205 = vrot.lane.b32.xlu0 %v3203, 16
    %v3206 = vpop.permute.xlu0 %3205
    %v3208 = vmul.f32 %v312, %v3206
    %v3209 = vmul.f32 %v313, %v3206
    %v3210 = vmul.f32 %v314, %v3206
    %v3211 = vmul.f32 %v315, %v3206
    %v3212 = vmul.f32 %v316, %v3206
    %v3213 = vmul.f32 %v317, %v3206
    %3220 = vrot.lane.b32.xlu0 %v3208, 112
    %v3221 = vpop.permute.xlu0 %3220
    %3222 = vrot.lane.b32.xlu0 %v3209, 112
    %v3223 = vpop.permute.xlu0 %3222
    %3224 = vrot.lane.b32.xlu0 %v3210, 112
    %v3225 = vpop.permute.xlu0 %3224
    %3226 = vrot.lane.b32.xlu0 %v3211, 112
    %v3227 = vpop.permute.xlu0 %3226
    %3228 = vrot.lane.b32.xlu0 %v3212, 112
    %v3229 = vpop.permute.xlu0 %3228
    %3230 = vrot.lane.b32.xlu0 %v3213, 112
    %v3231 = vpop.permute.xlu0 %3230
    %v3238 = vadd.f32 %v3193, %v3221
    %v3239 = vadd.f32 %v3194, %v3223
    %v3240 = vadd.f32 %v3195, %v3225
    %v3241 = vadd.f32 %v3196, %v3227
    %v3242 = vadd.f32 %v3197, %v3229
    %v3243 = vadd.f32 %v3198, %v3231
    %v3244 = vld [vmem:[#allocation21 + $0x5] sm:$0x1]
    %v3245 = vlaneseq
    %v3246 = vshrl.u32 %v3245, 7
    %v3247 = vsub.s32 0, %v3246
    %v3248 = vrot.slane %v3244, %v3247
    %v3249 = vmul.f32 %v312, %v3248
    %v3250 = vmul.f32 %v313, %v3248
    %v3251 = vmul.f32 %v314, %v3248
    %v3252 = vmul.f32 %v315, %v3248
    %v3253 = vmul.f32 %v316, %v3248
    %v3254 = vmul.f32 %v317, %v3248
    %v3261 = vrot.slane %v3249, 1
    %v3262 = vrot.slane %v3250, 1
    %v3263 = vsel %vm447, %v3261, %v3262
    %v3264 = vrot.slane %v3251, 1
    %v3265 = vsel %vm447, %v3262, %v3264
    %v3266 = vrot.slane %v3252, 1
    %v3267 = vrot.slane %v3253, 1
    %v3268 = vsel %vm447, %v3266, %v3267
    %v3269 = vrot.slane %v3254, 1
    %v3270 = vsel %vm447, %v3267, %v3269
    %v3277 = vadd.f32 %v3238, %v3263
    %v3278 = vadd.f32 %v3239, %v3265
    %v3279 = vadd.f32 %v3240, %v3264
    %v3280 = vadd.f32 %v3241, %v3268
    %v3281 = vadd.f32 %v3242, %v3270
    %v3282 = vadd.f32 %v3243, %v3269
    %v3283 = vld [vmem:[#allocation21 + $0x6] sm:$0x1]
    %v3284 = vlaneseq
    %v3285 = vshrl.u32 %v3284, 7
    %v3286 = vsub.s32 0, %v3285
    %v3287 = vrot.slane %v3283, %v3286
    %3289 = vrot.lane.b32.xlu0 %v3287, 4
    %v3290 = vpop.permute.xlu0 %3289
    %v3292 = vmul.f32 %v312, %v3290
    %v3293 = vmul.f32 %v313, %v3290
    %v3294 = vmul.f32 %v314, %v3290
    %v3295 = vmul.f32 %v315, %v3290
    %v3296 = vmul.f32 %v316, %v3290
    %v3297 = vmul.f32 %v317, %v3290
    %v3304 = vrot.slane %v3292, 1
    %v3305 = vrot.slane %v3293, 1
    %v3306 = vsel %vm447, %v3304, %v3305
    %v3307 = vrot.slane %v3294, 1
    %v3308 = vsel %vm447, %v3305, %v3307
    %v3309 = vrot.slane %v3295, 1
    %v3310 = vrot.slane %v3296, 1
    %v3311 = vsel %vm447, %v3309, %v3310
    %v3312 = vrot.slane %v3297, 1
    %v3313 = vsel %vm447, %v3310, %v3312
    %3314 = vrot.lane.b32.xlu0 %v3306, 124
    %v3315 = vpop.permute.xlu0 %3314
    %3316 = vrot.lane.b32.xlu0 %v3308, 124
    %v3317 = vpop.permute.xlu0 %3316
    %3318 = vrot.lane.b32.xlu0 %v3307, 124
    %v3319 = vpop.permute.xlu0 %3318
    %3320 = vrot.lane.b32.xlu0 %v3311, 124
    %v3321 = vpop.permute.xlu0 %3320
    %3322 = vrot.lane.b32.xlu0 %v3313, 124
    %v3323 = vpop.permute.xlu0 %3322
    %3324 = vrot.lane.b32.xlu0 %v3312, 124
    %v3325 = vpop.permute.xlu0 %3324
    %v3332 = vadd.f32 %v3277, %v3315
    %v3333 = vadd.f32 %v3278, %v3317
    %v3334 = vadd.f32 %v3279, %v3319
    %v3335 = vadd.f32 %v3280, %v3321
    %v3336 = vadd.f32 %v3281, %v3323
    %v3337 = vadd.f32 %v3282, %v3325
    %v3338 = vld [vmem:[#allocation21 + $0x7] sm:$0x1]
    %v3339 = vlaneseq
    %v3340 = vshrl.u32 %v3339, 7
    %v3341 = vsub.s32 0, %v3340
    %v3342 = vrot.slane %v3338, %v3341
    %3344 = vrot.lane.b32.xlu0 %v3342, 8
    %v3345 = vpop.permute.xlu0 %3344
    %v3347 = vmul.f32 %v312, %v3345
    %v3348 = vmul.f32 %v313, %v3345
    %v3349 = vmul.f32 %v314, %v3345
    %v3350 = vmul.f32 %v315, %v3345
    %v3351 = vmul.f32 %v316, %v3345
    %v3352 = vmul.f32 %v317, %v3345
    %v3359 = vrot.slane %v3347, 1
    %v3360 = vrot.slane %v3348, 1
    %v3361 = vsel %vm447, %v3359, %v3360
    %v3362 = vrot.slane %v3349, 1
    %v3363 = vsel %vm447, %v3360, %v3362
    %v3364 = vrot.slane %v3350, 1
    %v3365 = vrot.slane %v3351, 1
    %v3366 = vsel %vm447, %v3364, %v3365
    %v3367 = vrot.slane %v3352, 1
    %v3368 = vsel %vm447, %v3365, %v3367
    %3369 = vrot.lane.b32.xlu0 %v3361, 120
    %v3370 = vpop.permute.xlu0 %3369
    %3371 = vrot.lane.b32.xlu0 %v3363, 120
    %v3372 = vpop.permute.xlu0 %3371
    %3373 = vrot.lane.b32.xlu0 %v3362, 120
    %v3374 = vpop.permute.xlu0 %3373
    %3375 = vrot.lane.b32.xlu0 %v3366, 120
    %v3376 = vpop.permute.xlu0 %3375
    %3377 = vrot.lane.b32.xlu0 %v3368, 120
    %v3378 = vpop.permute.xlu0 %3377
    %3379 = vrot.lane.b32.xlu0 %v3367, 120
    %v3380 = vpop.permute.xlu0 %3379
    %v3387 = vadd.f32 %v3332, %v3370
    %v3388 = vadd.f32 %v3333, %v3372
    %v3389 = vadd.f32 %v3334, %v3374
    %v3390 = vadd.f32 %v3335, %v3376
    %v3391 = vadd.f32 %v3336, %v3378
    %v3392 = vadd.f32 %v3337, %v3380
    %v3393 = vld [vmem:[#allocation21 + $0x8] sm:$0x1]
    %v3394 = vlaneseq
    %v3395 = vshrl.u32 %v3394, 7
    %v3396 = vsub.s32 0, %v3395
    %v3397 = vrot.slane %v3393, %v3396
    %3399 = vrot.lane.b32.xlu0 %v3397, 12
    %v3400 = vpop.permute.xlu0 %3399
    %v3402 = vmul.f32 %v312, %v3400
    %v3403 = vmul.f32 %v313, %v3400
    %v3404 = vmul.f32 %v314, %v3400
    %v3405 = vmul.f32 %v315, %v3400
    %v3406 = vmul.f32 %v316, %v3400
    %v3407 = vmul.f32 %v317, %v3400
    %v3414 = vrot.slane %v3402, 1
    %v3415 = vrot.slane %v3403, 1
    %v3416 = vsel %vm447, %v3414, %v3415
    %v3417 = vrot.slane %v3404, 1
    %v3418 = vsel %vm447, %v3415, %v3417
    %v3419 = vrot.slane %v3405, 1
    %v3420 = vrot.slane %v3406, 1
    %v3421 = vsel %vm447, %v3419, %v3420
    %v3422 = vrot.slane %v3407, 1
    %v3423 = vsel %vm447, %v3420, %v3422
    %3424 = vrot.lane.b32.xlu0 %v3416, 116
    %v3425 = vpop.permute.xlu0 %3424
    %3426 = vrot.lane.b32.xlu0 %v3418, 116
    %v3427 = vpop.permute.xlu0 %3426
    %3428 = vrot.lane.b32.xlu0 %v3417, 116
    %v3429 = vpop.permute.xlu0 %3428
    %3430 = vrot.lane.b32.xlu0 %v3421, 116
    %v3431 = vpop.permute.xlu0 %3430
    %3432 = vrot.lane.b32.xlu0 %v3423, 116
    %v3433 = vpop.permute.xlu0 %3432
    %3434 = vrot.lane.b32.xlu0 %v3422, 116
    %v3435 = vpop.permute.xlu0 %3434
    %v3442 = vadd.f32 %v3387, %v3425
    %v3443 = vadd.f32 %v3388, %v3427
    %v3444 = vadd.f32 %v3389, %v3429
    %v3445 = vadd.f32 %v3390, %v3431
    %v3446 = vadd.f32 %v3391, %v3433
    %v3447 = vadd.f32 %v3392, %v3435
    %v3448 = vld [vmem:[#allocation21 + $0x9] sm:$0x1]
    %v3449 = vlaneseq
    %v3450 = vshrl.u32 %v3449, 7
    %v3451 = vsub.s32 0, %v3450
    %v3452 = vrot.slane %v3448, %v3451
    %3454 = vrot.lane.b32.xlu0 %v3452, 16
    %v3455 = vpop.permute.xlu0 %3454
    %v3457 = vmul.f32 %v312, %v3455
    %v3458 = vmul.f32 %v313, %v3455
    %v3459 = vmul.f32 %v314, %v3455
    %v3460 = vmul.f32 %v315, %v3455
    %v3461 = vmul.f32 %v316, %v3455
    %v3462 = vmul.f32 %v317, %v3455
    %v3469 = vrot.slane %v3457, 1
    %v3470 = vrot.slane %v3458, 1
    %v3471 = vsel %vm447, %v3469, %v3470
    %v3472 = vrot.slane %v3459, 1
    %v3473 = vsel %vm447, %v3470, %v3472
    %v3474 = vrot.slane %v3460, 1
    %v3475 = vrot.slane %v3461, 1
    %v3476 = vsel %vm447, %v3474, %v3475
    %v3477 = vrot.slane %v3462, 1
    %v3478 = vsel %vm447, %v3475, %v3477
    %3479 = vrot.lane.b32.xlu0 %v3471, 112
    %v3480 = vpop.permute.xlu0 %3479
    %3481 = vrot.lane.b32.xlu0 %v3473, 112
    %v3482 = vpop.permute.xlu0 %3481
    %3483 = vrot.lane.b32.xlu0 %v3472, 112
    %v3484 = vpop.permute.xlu0 %3483
    %3485 = vrot.lane.b32.xlu0 %v3476, 112
    %v3486 = vpop.permute.xlu0 %3485
    %3487 = vrot.lane.b32.xlu0 %v3478, 112
    %v3488 = vpop.permute.xlu0 %3487
    %3489 = vrot.lane.b32.xlu0 %v3477, 112
    %v3490 = vpop.permute.xlu0 %3489
    %v3497 = vadd.f32 %v3442, %v3480
    %v3498 = vadd.f32 %v3443, %v3482
    %v3499 = vadd.f32 %v3444, %v3484
    %v3500 = vadd.f32 %v3445, %v3486
    %v3501 = vadd.f32 %v3446, %v3488
    %v3502 = vadd.f32 %v3447, %v3490
    %v3503 = vld [vmem:[#allocation21 + $0xa] sm:$0x1]
    %v3504 = vlaneseq
    %v3505 = vshrl.u32 %v3504, 7
    %v3506 = vsub.s32 0, %v3505
    %v3507 = vrot.slane %v3503, %v3506
    %v3508 = vmul.f32 %v312, %v3507
    %v3509 = vmul.f32 %v313, %v3507
    %v3510 = vmul.f32 %v314, %v3507
    %v3511 = vmul.f32 %v315, %v3507
    %v3512 = vmul.f32 %v316, %v3507
    %v3513 = vmul.f32 %v317, %v3507
    %v3520 = vrot.slane %v3508, 2
    %v3521 = vrot.slane %v3509, 2
    %v3522 = vsel %vm588, %v3520, %v3521
    %v3523 = vrot.slane %v3510, 2
    %v3524 = vsel %vm588, %v3521, %v3523
    %v3525 = vrot.slane %v3511, 2
    %v3526 = vrot.slane %v3512, 2
    %v3527 = vsel %vm588, %v3525, %v3526
    %v3528 = vrot.slane %v3513, 2
    %v3529 = vsel %vm588, %v3526, %v3528
    %v3536 = vadd.f32 %v3497, %v3522
    %v3537 = vadd.f32 %v3498, %v3524
    %v3538 = vadd.f32 %v3499, %v3523
    %v3539 = vadd.f32 %v3500, %v3527
    %v3540 = vadd.f32 %v3501, %v3529
    %v3541 = vadd.f32 %v3502, %v3528
    %v3542 = vld [vmem:[#allocation21 + $0xb] sm:$0x1]
    %v3543 = vlaneseq
    %v3544 = vshrl.u32 %v3543, 7
    %v3545 = vsub.s32 0, %v3544
    %v3546 = vrot.slane %v3542, %v3545
    %3548 = vrot.lane.b32.xlu0 %v3546, 4
    %v3549 = vpop.permute.xlu0 %3548
    %v3551 = vmul.f32 %v312, %v3549
    %v3552 = vmul.f32 %v313, %v3549
    %v3553 = vmul.f32 %v314, %v3549
    %v3554 = vmul.f32 %v315, %v3549
    %v3555 = vmul.f32 %v316, %v3549
    %v3556 = vmul.f32 %v317, %v3549
    %v3563 = vrot.slane %v3551, 2
    %v3564 = vrot.slane %v3552, 2
    %v3565 = vsel %vm588, %v3563, %v3564
    %v3566 = vrot.slane %v3553, 2
    %v3567 = vsel %vm588, %v3564, %v3566
    %v3568 = vrot.slane %v3554, 2
    %v3569 = vrot.slane %v3555, 2
    %v3570 = vsel %vm588, %v3568, %v3569
    %v3571 = vrot.slane %v3556, 2
    %v3572 = vsel %vm588, %v3569, %v3571
    %3573 = vrot.lane.b32.xlu0 %v3565, 124
    %v3574 = vpop.permute.xlu0 %3573
    %3575 = vrot.lane.b32.xlu0 %v3567, 124
    %v3576 = vpop.permute.xlu0 %3575
    %3577 = vrot.lane.b32.xlu0 %v3566, 124
    %v3578 = vpop.permute.xlu0 %3577
    %3579 = vrot.lane.b32.xlu0 %v3570, 124
    %v3580 = vpop.permute.xlu0 %3579
    %3581 = vrot.lane.b32.xlu0 %v3572, 124
    %v3582 = vpop.permute.xlu0 %3581
    %3583 = vrot.lane.b32.xlu0 %v3571, 124
    %v3584 = vpop.permute.xlu0 %3583
    %v3591 = vadd.f32 %v3536, %v3574
    %v3592 = vadd.f32 %v3537, %v3576
    %v3593 = vadd.f32 %v3538, %v3578
    %v3594 = vadd.f32 %v3539, %v3580
    %v3595 = vadd.f32 %v3540, %v3582
    %v3596 = vadd.f32 %v3541, %v3584
    %v3597 = vld [vmem:[#allocation21 + $0xc] sm:$0x1]
    %v3598 = vlaneseq
    %v3599 = vshrl.u32 %v3598, 7
    %v3600 = vsub.s32 0, %v3599
    %v3601 = vrot.slane %v3597, %v3600
    %3603 = vrot.lane.b32.xlu0 %v3601, 8
    %v3604 = vpop.permute.xlu0 %3603
    %v3606 = vmul.f32 %v312, %v3604
    %v3607 = vmul.f32 %v313, %v3604
    %v3608 = vmul.f32 %v314, %v3604
    %v3609 = vmul.f32 %v315, %v3604
    %v3610 = vmul.f32 %v316, %v3604
    %v3611 = vmul.f32 %v317, %v3604
    %v3618 = vrot.slane %v3606, 2
    %v3619 = vrot.slane %v3607, 2
    %v3620 = vsel %vm588, %v3618, %v3619
    %v3621 = vrot.slane %v3608, 2
    %v3622 = vsel %vm588, %v3619, %v3621
    %v3623 = vrot.slane %v3609, 2
    %v3624 = vrot.slane %v3610, 2
    %v3625 = vsel %vm588, %v3623, %v3624
    %v3626 = vrot.slane %v3611, 2
    %v3627 = vsel %vm588, %v3624, %v3626
    %3628 = vrot.lane.b32.xlu0 %v3620, 120
    %v3629 = vpop.permute.xlu0 %3628
    %3630 = vrot.lane.b32.xlu0 %v3622, 120
    %v3631 = vpop.permute.xlu0 %3630
    %3632 = vrot.lane.b32.xlu0 %v3621, 120
    %v3633 = vpop.permute.xlu0 %3632
    %3634 = vrot.lane.b32.xlu0 %v3625, 120
    %v3635 = vpop.permute.xlu0 %3634
    %3636 = vrot.lane.b32.xlu0 %v3627, 120
    %v3637 = vpop.permute.xlu0 %3636
    %3638 = vrot.lane.b32.xlu0 %v3626, 120
    %v3639 = vpop.permute.xlu0 %3638
    %v3646 = vadd.f32 %v3591, %v3629
    %v3647 = vadd.f32 %v3592, %v3631
    %v3648 = vadd.f32 %v3593, %v3633
    %v3649 = vadd.f32 %v3594, %v3635
    %v3650 = vadd.f32 %v3595, %v3637
    %v3651 = vadd.f32 %v3596, %v3639
    %v3652 = vld [vmem:[#allocation21 + $0xd] sm:$0x1]
    %v3653 = vlaneseq
    %v3654 = vshrl.u32 %v3653, 7
    %v3655 = vsub.s32 0, %v3654
    %v3656 = vrot.slane %v3652, %v3655
    %3658 = vrot.lane.b32.xlu0 %v3656, 12
    %v3659 = vpop.permute.xlu0 %3658
    %v3661 = vmul.f32 %v312, %v3659
    %v3662 = vmul.f32 %v313, %v3659
    %v3663 = vmul.f32 %v314, %v3659
    %v3664 = vmul.f32 %v315, %v3659
    %v3665 = vmul.f32 %v316, %v3659
    %v3666 = vmul.f32 %v317, %v3659
    %v3673 = vrot.slane %v3661, 2
    %v3674 = vrot.slane %v3662, 2
    %v3675 = vsel %vm588, %v3673, %v3674
    %v3676 = vrot.slane %v3663, 2
    %v3677 = vsel %vm588, %v3674, %v3676
    %v3678 = vrot.slane %v3664, 2
    %v3679 = vrot.slane %v3665, 2
    %v3680 = vsel %vm588, %v3678, %v3679
    %v3681 = vrot.slane %v3666, 2
    %v3682 = vsel %vm588, %v3679, %v3681
    %3683 = vrot.lane.b32.xlu0 %v3675, 116
    %v3684 = vpop.permute.xlu0 %3683
    %3685 = vrot.lane.b32.xlu0 %v3677, 116
    %v3686 = vpop.permute.xlu0 %3685
    %3687 = vrot.lane.b32.xlu0 %v3676, 116
    %v3688 = vpop.permute.xlu0 %3687
    %3689 = vrot.lane.b32.xlu0 %v3680, 116
    %v3690 = vpop.permute.xlu0 %3689
    %3691 = vrot.lane.b32.xlu0 %v3682, 116
    %v3692 = vpop.permute.xlu0 %3691
    %3693 = vrot.lane.b32.xlu0 %v3681, 116
    %v3694 = vpop.permute.xlu0 %3693
    %v3701 = vadd.f32 %v3646, %v3684
    %v3702 = vadd.f32 %v3647, %v3686
    %v3703 = vadd.f32 %v3648, %v3688
    %v3704 = vadd.f32 %v3649, %v3690
    %v3705 = vadd.f32 %v3650, %v3692
    %v3706 = vadd.f32 %v3651, %v3694
    %v3707 = vld [vmem:[#allocation21 + $0xe] sm:$0x1]
    %v3708 = vlaneseq
    %v3709 = vshrl.u32 %v3708, 7
    %v3710 = vsub.s32 0, %v3709
    %v3711 = vrot.slane %v3707, %v3710
    %3713 = vrot.lane.b32.xlu0 %v3711, 16
    %v3714 = vpop.permute.xlu0 %3713
    %v3716 = vmul.f32 %v312, %v3714
    %v3717 = vmul.f32 %v313, %v3714
    %v3718 = vmul.f32 %v314, %v3714
    %v3719 = vmul.f32 %v315, %v3714
    %v3720 = vmul.f32 %v316, %v3714
    %v3721 = vmul.f32 %v317, %v3714
    %v3728 = vrot.slane %v3716, 2
    %v3729 = vrot.slane %v3717, 2
    %v3730 = vsel %vm588, %v3728, %v3729
    %v3731 = vrot.slane %v3718, 2
    %v3732 = vsel %vm588, %v3729, %v3731
    %v3733 = vrot.slane %v3719, 2
    %v3734 = vrot.slane %v3720, 2
    %v3735 = vsel %vm588, %v3733, %v3734
    %v3736 = vrot.slane %v3721, 2
    %v3737 = vsel %vm588, %v3734, %v3736
    %3738 = vrot.lane.b32.xlu0 %v3730, 112
    %v3739 = vpop.permute.xlu0 %3738
    %3740 = vrot.lane.b32.xlu0 %v3732, 112
    %v3741 = vpop.permute.xlu0 %3740
    %3742 = vrot.lane.b32.xlu0 %v3731, 112
    %v3743 = vpop.permute.xlu0 %3742
    %3744 = vrot.lane.b32.xlu0 %v3735, 112
    %v3745 = vpop.permute.xlu0 %3744
    %3746 = vrot.lane.b32.xlu0 %v3737, 112
    %v3747 = vpop.permute.xlu0 %3746
    %3748 = vrot.lane.b32.xlu0 %v3736, 112
    %v3749 = vpop.permute.xlu0 %3748
    %v3756 = vadd.f32 %v3701, %v3739
    %v3757 = vadd.f32 %v3702, %v3741
    %v3758 = vadd.f32 %v3703, %v3743
    %v3759 = vadd.f32 %v3704, %v3745
    %v3760 = vadd.f32 %v3705, %v3747
    %v3761 = vadd.f32 %v3706, %v3749
    %v3762 = vld [vmem:[#allocation21 + $0xf] sm:$0x1]
    %v3763 = vlaneseq
    %v3764 = vshrl.u32 %v3763, 7
    %v3765 = vsub.s32 0, %v3764
    %v3766 = vrot.slane %v3762, %v3765
    %v3767 = vmul.f32 %v312, %v3766
    %v3768 = vmul.f32 %v313, %v3766
    %v3769 = vmul.f32 %v314, %v3766
    %v3770 = vmul.f32 %v315, %v3766
    %v3771 = vmul.f32 %v316, %v3766
    %v3772 = vmul.f32 %v317, %v3766
    %v3779 = vrot.slane %v3767, 3
    %v3780 = vrot.slane %v3768, 3
    %v3781 = vsel %vm756, %v3779, %v3780
    %v3782 = vrot.slane %v3769, 3
    %v3783 = vsel %vm756, %v3780, %v3782
    %v3784 = vrot.slane %v3770, 3
    %v3785 = vrot.slane %v3771, 3
    %v3786 = vsel %vm756, %v3784, %v3785
    %v3787 = vrot.slane %v3772, 3
    %v3788 = vsel %vm756, %v3785, %v3787
    %v3795 = vadd.f32 %v3756, %v3781
    %v3796 = vadd.f32 %v3757, %v3783
    %v3797 = vadd.f32 %v3758, %v3782
    %v3798 = vadd.f32 %v3759, %v3786
    %v3799 = vadd.f32 %v3760, %v3788
    %v3800 = vadd.f32 %v3761, %v3787
    %v3801 = vld [vmem:[#allocation21 + $0x10] sm:$0x1]
    %v3802 = vlaneseq
    %v3803 = vshrl.u32 %v3802, 7
    %v3804 = vsub.s32 0, %v3803
    %v3805 = vrot.slane %v3801, %v3804
    %3807 = vrot.lane.b32.xlu0 %v3805, 4
    %v3808 = vpop.permute.xlu0 %3807
    %v3810 = vmul.f32 %v312, %v3808
    %v3811 = vmul.f32 %v313, %v3808
    %v3812 = vmul.f32 %v314, %v3808
    %v3813 = vmul.f32 %v315, %v3808
    %v3814 = vmul.f32 %v316, %v3808
    %v3815 = vmul.f32 %v317, %v3808
    %v3822 = vrot.slane %v3810, 3
    %v3823 = vrot.slane %v3811, 3
    %v3824 = vsel %vm756, %v3822, %v3823
    %v3825 = vrot.slane %v3812, 3
    %v3826 = vsel %vm756, %v3823, %v3825
    %v3827 = vrot.slane %v3813, 3
    %v3828 = vrot.slane %v3814, 3
    %v3829 = vsel %vm756, %v3827, %v3828
    %v3830 = vrot.slane %v3815, 3
    %v3831 = vsel %vm756, %v3828, %v3830
    %3832 = vrot.lane.b32.xlu0 %v3824, 124
    %v3833 = vpop.permute.xlu0 %3832
    %3834 = vrot.lane.b32.xlu0 %v3826, 124
    %v3835 = vpop.permute.xlu0 %3834
    %3836 = vrot.lane.b32.xlu0 %v3825, 124
    %v3837 = vpop.permute.xlu0 %3836
    %3838 = vrot.lane.b32.xlu0 %v3829, 124
    %v3839 = vpop.permute.xlu0 %3838
    %3840 = vrot.lane.b32.xlu0 %v3831, 124
    %v3841 = vpop.permute.xlu0 %3840
    %3842 = vrot.lane.b32.xlu0 %v3830, 124
    %v3843 = vpop.permute.xlu0 %3842
    %v3850 = vadd.f32 %v3795, %v3833
    %v3851 = vadd.f32 %v3796, %v3835
    %v3852 = vadd.f32 %v3797, %v3837
    %v3853 = vadd.f32 %v3798, %v3839
    %v3854 = vadd.f32 %v3799, %v3841
    %v3855 = vadd.f32 %v3800, %v3843
    %v3856 = vld [vmem:[#allocation21 + $0x11] sm:$0x1]
    %v3857 = vlaneseq
    %v3858 = vshrl.u32 %v3857, 7
    %v3859 = vsub.s32 0, %v3858
    %v3860 = vrot.slane %v3856, %v3859
    %3862 = vrot.lane.b32.xlu0 %v3860, 8
    %v3863 = vpop.permute.xlu0 %3862
    %v3865 = vmul.f32 %v312, %v3863
    %v3866 = vmul.f32 %v313, %v3863
    %v3867 = vmul.f32 %v314, %v3863
    %v3868 = vmul.f32 %v315, %v3863
    %v3869 = vmul.f32 %v316, %v3863
    %v3870 = vmul.f32 %v317, %v3863
    %v3877 = vrot.slane %v3865, 3
    %v3878 = vrot.slane %v3866, 3
    %v3879 = vsel %vm756, %v3877, %v3878
    %v3880 = vrot.slane %v3867, 3
    %v3881 = vsel %vm756, %v3878, %v3880
    %v3882 = vrot.slane %v3868, 3
    %v3883 = vrot.slane %v3869, 3
    %v3884 = vsel %vm756, %v3882, %v3883
    %v3885 = vrot.slane %v3870, 3
    %v3886 = vsel %vm756, %v3883, %v3885
    %3887 = vrot.lane.b32.xlu0 %v3879, 120
    %v3888 = vpop.permute.xlu0 %3887
    %3889 = vrot.lane.b32.xlu0 %v3881, 120
    %v3890 = vpop.permute.xlu0 %3889
    %3891 = vrot.lane.b32.xlu0 %v3880, 120
    %v3892 = vpop.permute.xlu0 %3891
    %3893 = vrot.lane.b32.xlu0 %v3884, 120
    %v3894 = vpop.permute.xlu0 %3893
    %3895 = vrot.lane.b32.xlu0 %v3886, 120
    %v3896 = vpop.permute.xlu0 %3895
    %3897 = vrot.lane.b32.xlu0 %v3885, 120
    %v3898 = vpop.permute.xlu0 %3897
    %v3905 = vadd.f32 %v3850, %v3888
    %v3906 = vadd.f32 %v3851, %v3890
    %v3907 = vadd.f32 %v3852, %v3892
    %v3908 = vadd.f32 %v3853, %v3894
    %v3909 = vadd.f32 %v3854, %v3896
    %v3910 = vadd.f32 %v3855, %v3898
    %v3911 = vld [vmem:[#allocation21 + $0x12] sm:$0x1]
    %v3912 = vlaneseq
    %v3913 = vshrl.u32 %v3912, 7
    %v3914 = vsub.s32 0, %v3913
    %v3915 = vrot.slane %v3911, %v3914
    %3917 = vrot.lane.b32.xlu0 %v3915, 12
    %v3918 = vpop.permute.xlu0 %3917
    %v3920 = vmul.f32 %v312, %v3918
    %v3921 = vmul.f32 %v313, %v3918
    %v3922 = vmul.f32 %v314, %v3918
    %v3923 = vmul.f32 %v315, %v3918
    %v3924 = vmul.f32 %v316, %v3918
    %v3925 = vmul.f32 %v317, %v3918
    %v3932 = vrot.slane %v3920, 3
    %v3933 = vrot.slane %v3921, 3
    %v3934 = vsel %vm756, %v3932, %v3933
    %v3935 = vrot.slane %v3922, 3
    %v3936 = vsel %vm756, %v3933, %v3935
    %v3937 = vrot.slane %v3923, 3
    %v3938 = vrot.slane %v3924, 3
    %v3939 = vsel %vm756, %v3937, %v3938
    %v3940 = vrot.slane %v3925, 3
    %v3941 = vsel %vm756, %v3938, %v3940
    %3942 = vrot.lane.b32.xlu0 %v3934, 116
    %v3943 = vpop.permute.xlu0 %3942
    %3944 = vrot.lane.b32.xlu0 %v3936, 116
    %v3945 = vpop.permute.xlu0 %3944
    %3946 = vrot.lane.b32.xlu0 %v3935, 116
    %v3947 = vpop.permute.xlu0 %3946
    %3948 = vrot.lane.b32.xlu0 %v3939, 116
    %v3949 = vpop.permute.xlu0 %3948
    %3950 = vrot.lane.b32.xlu0 %v3941, 116
    %v3951 = vpop.permute.xlu0 %3950
    %3952 = vrot.lane.b32.xlu0 %v3940, 116
    %v3953 = vpop.permute.xlu0 %3952
    %v3960 = vadd.f32 %v3905, %v3943
    %v3961 = vadd.f32 %v3906, %v3945
    %v3962 = vadd.f32 %v3907, %v3947
    %v3963 = vadd.f32 %v3908, %v3949
    %v3964 = vadd.f32 %v3909, %v3951
    %v3965 = vadd.f32 %v3910, %v3953
    %v3966 = vld [vmem:[#allocation21 + $0x13] sm:$0x1]
    %v3967 = vlaneseq
    %v3968 = vshrl.u32 %v3967, 7
    %v3969 = vsub.s32 0, %v3968
    %v3970 = vrot.slane %v3966, %v3969
    %3972 = vrot.lane.b32.xlu0 %v3970, 16
    %v3973 = vpop.permute.xlu0 %3972
    %v3975 = vmul.f32 %v312, %v3973
    %v3976 = vmul.f32 %v313, %v3973
    %v3977 = vmul.f32 %v314, %v3973
    %v3978 = vmul.f32 %v315, %v3973
    %v3979 = vmul.f32 %v316, %v3973
    %v3980 = vmul.f32 %v317, %v3973
    %v3987 = vrot.slane %v3975, 3
    %v3988 = vrot.slane %v3976, 3
    %v3989 = vsel %vm756, %v3987, %v3988
    %v3990 = vrot.slane %v3977, 3
    %v3991 = vsel %vm756, %v3988, %v3990
    %v3992 = vrot.slane %v3978, 3
    %v3993 = vrot.slane %v3979, 3
    %v3994 = vsel %vm756, %v3992, %v3993
    %v3995 = vrot.slane %v3980, 3
    %v3996 = vsel %vm756, %v3993, %v3995
    %3997 = vrot.lane.b32.xlu0 %v3989, 112
    %v3998 = vpop.permute.xlu0 %3997
    %3999 = vrot.lane.b32.xlu0 %v3991, 112
    %v4000 = vpop.permute.xlu0 %3999
    %4001 = vrot.lane.b32.xlu0 %v3990, 112
    %v4002 = vpop.permute.xlu0 %4001
    %4003 = vrot.lane.b32.xlu0 %v3994, 112
    %v4004 = vpop.permute.xlu0 %4003
    %4005 = vrot.lane.b32.xlu0 %v3996, 112
    %v4006 = vpop.permute.xlu0 %4005
    %4007 = vrot.lane.b32.xlu0 %v3995, 112
    %v4008 = vpop.permute.xlu0 %4007
    %v4015 = vadd.f32 %v3960, %v3998
    %v4016 = vadd.f32 %v3961, %v4000
    %v4017 = vadd.f32 %v3962, %v4002
    %v4018 = vadd.f32 %v3963, %v4004
    %v4019 = vadd.f32 %v3964, %v4006
    %v4020 = vadd.f32 %v3965, %v4008
    %v4021 = vld [vmem:[#allocation21 + $0x14] sm:$0x1]
    %v4022 = vlaneseq
    %v4023 = vshrl.u32 %v4022, 7
    %v4024 = vsub.s32 0, %v4023
    %v4025 = vrot.slane %v4021, %v4024
    %v4026 = vmul.f32 %v312, %v4025
    %v4027 = vmul.f32 %v313, %v4025
    %v4028 = vmul.f32 %v314, %v4025
    %v4029 = vmul.f32 %v315, %v4025
    %v4030 = vmul.f32 %v316, %v4025
    %v4031 = vmul.f32 %v317, %v4025
    %v4038 = vrot.slane %v4026, 4
    %v4039 = vrot.slane %v4027, 4
    %v4040 = vsel %vm3021, %v4038, %v4039
    %v4041 = vrot.slane %v4028, 4
    %v4042 = vsel %vm3021, %v4039, %v4041
    %v4043 = vrot.slane %v4029, 4
    %v4044 = vrot.slane %v4030, 4
    %v4045 = vsel %vm3021, %v4043, %v4044
    %v4046 = vrot.slane %v4031, 4
    %v4047 = vsel %vm3021, %v4044, %v4046
    %v4054 = vadd.f32 %v4015, %v4040
    %v4055 = vadd.f32 %v4016, %v4042
    %v4056 = vadd.f32 %v4017, %v4041
    %v4057 = vadd.f32 %v4018, %v4045
    %v4058 = vadd.f32 %v4019, %v4047
    %v4059 = vadd.f32 %v4020, %v4046
    %v4060 = vld [vmem:[#allocation21 + $0x15] sm:$0x1]
    %v4061 = vlaneseq
    %v4062 = vshrl.u32 %v4061, 7
    %v4063 = vsub.s32 0, %v4062
    %v4064 = vrot.slane %v4060, %v4063
    %4066 = vrot.lane.b32.xlu0 %v4064, 4
    %v4067 = vpop.permute.xlu0 %4066
    %v4069 = vmul.f32 %v312, %v4067
    %v4070 = vmul.f32 %v313, %v4067
    %v4071 = vmul.f32 %v314, %v4067
    %v4072 = vmul.f32 %v315, %v4067
    %v4073 = vmul.f32 %v316, %v4067
    %v4074 = vmul.f32 %v317, %v4067
    %v4081 = vrot.slane %v4069, 4
    %v4082 = vrot.slane %v4070, 4
    %v4083 = vsel %vm3021, %v4081, %v4082
    %v4084 = vrot.slane %v4071, 4
    %v4085 = vsel %vm3021, %v4082, %v4084
    %v4086 = vrot.slane %v4072, 4
    %v4087 = vrot.slane %v4073, 4
    %v4088 = vsel %vm3021, %v4086, %v4087
    %v4089 = vrot.slane %v4074, 4
    %v4090 = vsel %vm3021, %v4087, %v4089
    %4091 = vrot.lane.b32.xlu0 %v4083, 124
    %v4092 = vpop.permute.xlu0 %4091
    %4093 = vrot.lane.b32.xlu0 %v4085, 124
    %v4094 = vpop.permute.xlu0 %4093
    %4095 = vrot.lane.b32.xlu0 %v4084, 124
    %v4096 = vpop.permute.xlu0 %4095
    %4097 = vrot.lane.b32.xlu0 %v4088, 124
    %v4098 = vpop.permute.xlu0 %4097
    %4099 = vrot.lane.b32.xlu0 %v4090, 124
    %v4100 = vpop.permute.xlu0 %4099
    %4101 = vrot.lane.b32.xlu0 %v4089, 124
    %v4102 = vpop.permute.xlu0 %4101
    %v4109 = vadd.f32 %v4054, %v4092
    %v4110 = vadd.f32 %v4055, %v4094
    %v4111 = vadd.f32 %v4056, %v4096
    %v4112 = vadd.f32 %v4057, %v4098
    %v4113 = vadd.f32 %v4058, %v4100
    %v4114 = vadd.f32 %v4059, %v4102
    %v4115 = vld [vmem:[#allocation21 + $0x16] sm:$0x1]
    %v4116 = vlaneseq
    %v4117 = vshrl.u32 %v4116, 7
    %v4118 = vsub.s32 0, %v4117
    %v4119 = vrot.slane %v4115, %v4118
    %4121 = vrot.lane.b32.xlu0 %v4119, 8
    %v4122 = vpop.permute.xlu0 %4121
    %v4124 = vmul.f32 %v312, %v4122
    %v4125 = vmul.f32 %v313, %v4122
    %v4126 = vmul.f32 %v314, %v4122
    %v4127 = vmul.f32 %v315, %v4122
    %v4128 = vmul.f32 %v316, %v4122
    %v4129 = vmul.f32 %v317, %v4122
    %v4136 = vrot.slane %v4124, 4
    %v4137 = vrot.slane %v4125, 4
    %v4138 = vsel %vm3021, %v4136, %v4137
    %v4139 = vrot.slane %v4126, 4
    %v4140 = vsel %vm3021, %v4137, %v4139
    %v4141 = vrot.slane %v4127, 4
    %v4142 = vrot.slane %v4128, 4
    %v4143 = vsel %vm3021, %v4141, %v4142
    %v4144 = vrot.slane %v4129, 4
    %v4145 = vsel %vm3021, %v4142, %v4144
    %4146 = vrot.lane.b32.xlu0 %v4138, 120
    %v4147 = vpop.permute.xlu0 %4146
    %4148 = vrot.lane.b32.xlu0 %v4140, 120
    %v4149 = vpop.permute.xlu0 %4148
    %4150 = vrot.lane.b32.xlu0 %v4139, 120
    %v4151 = vpop.permute.xlu0 %4150
    %4152 = vrot.lane.b32.xlu0 %v4143, 120
    %v4153 = vpop.permute.xlu0 %4152
    %4154 = vrot.lane.b32.xlu0 %v4145, 120
    %v4155 = vpop.permute.xlu0 %4154
    %4156 = vrot.lane.b32.xlu0 %v4144, 120
    %v4157 = vpop.permute.xlu0 %4156
    %v4164 = vadd.f32 %v4109, %v4147
    %v4165 = vadd.f32 %v4110, %v4149
    %v4166 = vadd.f32 %v4111, %v4151
    %v4167 = vadd.f32 %v4112, %v4153
    %v4168 = vadd.f32 %v4113, %v4155
    %v4169 = vadd.f32 %v4114, %v4157
    %v4170 = vld [vmem:[#allocation21 + $0x17] sm:$0x1]
    %v4171 = vlaneseq
    %v4172 = vshrl.u32 %v4171, 7
    %v4173 = vsub.s32 0, %v4172
    %v4174 = vrot.slane %v4170, %v4173
    %4176 = vrot.lane.b32.xlu0 %v4174, 12
    %v4177 = vpop.permute.xlu0 %4176
    %v4179 = vmul.f32 %v312, %v4177
    %v4180 = vmul.f32 %v313, %v4177
    %v4181 = vmul.f32 %v314, %v4177
    %v4182 = vmul.f32 %v315, %v4177
    %v4183 = vmul.f32 %v316, %v4177
    %v4184 = vmul.f32 %v317, %v4177
    %v4191 = vrot.slane %v4179, 4
    %v4192 = vrot.slane %v4180, 4
    %v4193 = vsel %vm3021, %v4191, %v4192
    %v4194 = vrot.slane %v4181, 4
    %v4195 = vsel %vm3021, %v4192, %v4194
    %v4196 = vrot.slane %v4182, 4
    %v4197 = vrot.slane %v4183, 4
    %v4198 = vsel %vm3021, %v4196, %v4197
    %v4199 = vrot.slane %v4184, 4
    %v4200 = vsel %vm3021, %v4197, %v4199
    %4201 = vrot.lane.b32.xlu0 %v4193, 116
    %v4202 = vpop.permute.xlu0 %4201
    %4203 = vrot.lane.b32.xlu0 %v4195, 116
    %v4204 = vpop.permute.xlu0 %4203
    %4205 = vrot.lane.b32.xlu0 %v4194, 116
    %v4206 = vpop.permute.xlu0 %4205
    %4207 = vrot.lane.b32.xlu0 %v4198, 116
    %v4208 = vpop.permute.xlu0 %4207
    %4209 = vrot.lane.b32.xlu0 %v4200, 116
    %v4210 = vpop.permute.xlu0 %4209
    %4211 = vrot.lane.b32.xlu0 %v4199, 116
    %v4212 = vpop.permute.xlu0 %4211
    %v4219 = vadd.f32 %v4164, %v4202
    %v4220 = vadd.f32 %v4165, %v4204
    %v4221 = vadd.f32 %v4166, %v4206
    %v4222 = vadd.f32 %v4167, %v4208
    %v4223 = vadd.f32 %v4168, %v4210
    %v4224 = vadd.f32 %v4169, %v4212
    %v4225 = vld [vmem:[#allocation21 + $0x18] sm:$0x1]
    %v4226 = vlaneseq
    %v4227 = vshrl.u32 %v4226, 7
    %v4228 = vsub.s32 0, %v4227
    %v4229 = vrot.slane %v4225, %v4228
    %4231 = vrot.lane.b32.xlu0 %v4229, 16
    %v4232 = vpop.permute.xlu0 %4231
    %v4234 = vmul.f32 %v312, %v4232
    %v4235 = vmul.f32 %v313, %v4232
    %v4236 = vmul.f32 %v314, %v4232
    %v4237 = vmul.f32 %v315, %v4232
    %v4238 = vmul.f32 %v316, %v4232
    %v4239 = vmul.f32 %v317, %v4232
    %v4246 = vrot.slane %v4234, 4
    %v4247 = vrot.slane %v4235, 4
    %v4248 = vsel %vm3021, %v4246, %v4247
    %v4249 = vrot.slane %v4236, 4
    %v4250 = vsel %vm3021, %v4247, %v4249
    %v4251 = vrot.slane %v4237, 4
    %v4252 = vrot.slane %v4238, 4
    %v4253 = vsel %vm3021, %v4251, %v4252
    %v4254 = vrot.slane %v4239, 4
    %v4255 = vsel %vm3021, %v4252, %v4254
    %4256 = vrot.lane.b32.xlu0 %v4248, 112
    %v4257 = vpop.permute.xlu0 %4256
    %4258 = vrot.lane.b32.xlu0 %v4250, 112
    %v4259 = vpop.permute.xlu0 %4258
    %4260 = vrot.lane.b32.xlu0 %v4249, 112
    %v4261 = vpop.permute.xlu0 %4260
    %4262 = vrot.lane.b32.xlu0 %v4253, 112
    %v4263 = vpop.permute.xlu0 %4262
    %4264 = vrot.lane.b32.xlu0 %v4255, 112
    %v4265 = vpop.permute.xlu0 %4264
    %4266 = vrot.lane.b32.xlu0 %v4254, 112
    %v4267 = vpop.permute.xlu0 %4266
    %v4274 = vadd.f32 %v4219, %v4257
    %v4275 = vadd.f32 %v4220, %v4259
    %v4276 = vadd.f32 %v4221, %v4261
    %v4277 = vadd.f32 %v4222, %v4263
    %v4278 = vadd.f32 %v4223, %v4265
    %v4279 = vadd.f32 %v4224, %v4267
    %v4280 = vld [vmem:[#allocation22] sm:$0xff]
    %v4281 = vld [vmem:[#allocation22 + $0x8] sm:$0xff]
    %v4282 = vld [vmem:[#allocation22 + $0x10] sm:$0xff]
    %v4283 = vld [vmem:[#allocation22 + $0x18] sm:$0xff]
    %v4284 = vld [vmem:[#allocation22 + $0x20] sm:$0xff]
    %v4285 = vld [vmem:[#allocation22 + $0x28] sm:$0xff]
    %v4286 = vld [vmem:[#allocation22 + $0x30] sm:$0xff]
    %v4287 = vld [vmem:[#allocation22 + $0x38] sm:$0xff]
    %v4288 = vld [vmem:[#allocation22 + $0x40] sm:$0xff]
    %v4289 = vld [vmem:[#allocation22 + $0x48] sm:$0xff]
    %vm4290 = vcmask 654336
    %v4292 = vsel %vm4290, %v4274, 0
    %v4295 = vsel %vm4290, %v4275, 0
    %v4298 = vsel %vm4290, %v4276, 0
    %4300 = vmatprep.subr.mxu0 0.0
    %4301 = vmatpush1.msra.mxu0 %v4280
    %4302 = vmatprep.subr.mxu0 0.0
    %4303 = vmatpush1.msra.mxu0 %v4281
    %4304 = vmatprep.subr.mxu0 0.0
    %4305 = vmatpush1.msra.mxu0 %v4282
    %4306 = vmatprep.subr.mxu0 0.0
    %4307 = vmatpush1.msra.mxu0 %v4283
    %4308 = vmatprep.subr.mxu0 0.0
    %4309 = vmatpush1.msra.mxu0 %v4284
    %4310 = vmatprep.subr.mxu0 0.0
    %4311 = vmatpush1.msra.mxu0 %v4285
    %4312 = vmatprep.subr.mxu0 0.0
    %4313 = vmatpush1.msra.mxu0 %v4286
    %4314 = vmatprep.subr.mxu0 0.0
    %4315 = vmatpush1.msra.mxu0 %v4287
    %4316 = vmatprep.subr.mxu0 0.0
    %4317 = vmatpush1.msra.mxu0 %v4288
    %4318 = vmatprep.subr.mxu0 0.0
    %4319 = vmatpush1.msra.mxu0 %v4289
    %4320 = vmatprep.subr.mxu0 0.0
    %4321 = vmatpush1.msra.mxu0 0.0
    %4322 = vmatprep.subr.mxu0 0.0
    %4323 = vmatpush1.msra.mxu0 0.0
    %4324 = vmatprep.subr.mxu0 0.0
    %4325 = vmatpush1.msra.mxu0 0.0
    %4326 = vmatprep.subr.mxu0 0.0
    %4327 = vmatpush1.msra.mxu0 0.0
    %4328 = vmatprep.subr.mxu0 0.0
    %4329 = vmatpush1.msra.mxu0 0.0
    %4330 = vmatprep.subr.mxu0 0.0
    %4331 = vmatpush1.msra.mxu0 0.0
    %4332 = vmatprep.subr.mxu0 0.0
    %4333 = vmatpush1.msra.mxu0 0.0
    %4334 = vmatprep.subr.mxu0 0.0
    %4335 = vmatpush1.msra.mxu0 0.0
    %4336 = vmatprep.subr.mxu0 0.0
    %4337 = vmatpush1.msra.mxu0 0.0
    %4338 = vmatprep.subr.mxu0 0.0
    %4339 = vmatpush1.msra.mxu0 0.0
    %4340 = vmatprep.subr.mxu0 0.0
    %4341 = vmatpush1.msra.mxu0 0.0
    %4342 = vmatprep.subr.mxu0 0.0
    %4343 = vmatpush1.msra.mxu0 0.0
    %4344 = vmatprep.subr.mxu0 0.0
    %4345 = vmatpush1.msra.mxu0 0.0
    %4346 = vmatprep.subr.mxu0 0.0
    %4347 = vmatpush1.msra.mxu0 0.0
    %4348 = vmatprep.subr.mxu0 0.0
    %4349 = vmatpush1.msra.mxu0 0.0
    %4350 = vmatprep.subr.mxu0 0.0
    %4351 = vmatpush1.msra.mxu0 0.0
    %4352 = vmatprep.subr.mxu0 0.0
    %4353 = vmatpush1.msra.mxu0 0.0
    %4354 = vmatprep.subr.mxu0 0.0
    %4355 = vmatpush1.msra.mxu0 0.0
    %4356 = vmatprep.subr.mxu0 0.0
    %4357 = vmatpush1.msra.mxu0 0.0
    %4358 = vmatprep.subr.mxu0 0.0
    %4359 = vmatpush1.msra.mxu0 0.0
    %4360 = vmatprep.subr.mxu0 0.0
    %4361 = vmatpush1.msra.mxu0 0.0
    %4362 = vmatprep.subr.mxu0 0.0
    %4363 = vmatpush1.msra.mxu0 0.0
    %4364 = vmatprep.mubr.f32.mxu0 0.0
    %4365 = vmatmul.mubr.f32.gmra.mrb[0].mxu0 %v4292
    %v4366 = vpop.f32.mrb[0].mxu0
    %v4367 = vadd.f32 0.0, %v4366
    %v4368 = vpop.f32.mrb[0].mxu0
    %4369 = vmatprep.mubr.f32.mxu0 0.0
    %4370 = vmatmul.mubr.f32.gmra.mrb[0].mxu0 %v4295
    %v4371 = vpop.f32.mrb[0].mxu0
    %v4372 = vadd.f32 0.0, %v4371
    %v4373 = vpop.f32.mrb[0].mxu0
    %4374 = vmatprep.mubr.f32.mxu0 0.0
    %4375 = vmatmul.mubr.f32.gmra.mrb[0].mxu0 %v4298
    %v4376 = vpop.f32.mrb[0].mxu0
    %v4377 = vadd.f32 0.0, %v4376
    %v4378 = vpop.f32.mrb[0].mxu0
    %4379 = vdwg.mxu0
    %v4381 = vsel %vm4290, %v4277, 0
    %v4384 = vsel %vm4290, %v4278, 0
    %v4387 = vsel %vm4290, %v4279, 0
    %4389 = vmatprep.subr.mxu0 0.0
    %4390 = vmatpush1.msra.mxu0 %v4280
    %4391 = vmatprep.subr.mxu0 0.0
    %4392 = vmatpush1.msra.mxu0 %v4281
    %4393 = vmatprep.subr.mxu0 0.0
    %4394 = vmatpush1.msra.mxu0 %v4282
    %4395 = vmatprep.subr.mxu0 0.0
    %4396 = vmatpush1.msra.mxu0 %v4283
    %4397 = vmatprep.subr.mxu0 0.0
    %4398 = vmatpush1.msra.mxu0 %v4284
    %4399 = vmatprep.subr.mxu0 0.0
    %4400 = vmatpush1.msra.mxu0 %v4285
    %4401 = vmatprep.subr.mxu0 0.0
    %4402 = vmatpush1.msra.mxu0 %v4286
    %4403 = vmatprep.subr.mxu0 0.0
    %4404 = vmatpush1.msra.mxu0 %v4287
    %4405 = vmatprep.subr.mxu0 0.0
    %4406 = vmatpush1.msra.mxu0 %v4288
    %4407 = vmatprep.subr.mxu0 0.0
    %4408 = vmatpush1.msra.mxu0 %v4289
    %4409 = vmatprep.subr.mxu0 0.0
    %4410 = vmatpush1.msra.mxu0 0.0
    %4411 = vmatprep.subr.mxu0 0.0
    %4412 = vmatpush1.msra.mxu0 0.0
    %4413 = vmatprep.subr.mxu0 0.0
    %4414 = vmatpush1.msra.mxu0 0.0
    %4415 = vmatprep.subr.mxu0 0.0
    %4416 = vmatpush1.msra.mxu0 0.0
    %4417 = vmatprep.subr.mxu0 0.0
    %4418 = vmatpush1.msra.mxu0 0.0
    %4419 = vmatprep.subr.mxu0 0.0
    %4420 = vmatpush1.msra.mxu0 0.0
    %4421 = vmatprep.subr.mxu0 0.0
    %4422 = vmatpush1.msra.mxu0 0.0
    %4423 = vmatprep.subr.mxu0 0.0
    %4424 = vmatpush1.msra.mxu0 0.0
    %4425 = vmatprep.subr.mxu0 0.0
    %4426 = vmatpush1.msra.mxu0 0.0
    %4427 = vmatprep.subr.mxu0 0.0
    %4428 = vmatpush1.msra.mxu0 0.0
    %4429 = vmatprep.subr.mxu0 0.0
    %4430 = vmatpush1.msra.mxu0 0.0
    %4431 = vmatprep.subr.mxu0 0.0
    %4432 = vmatpush1.msra.mxu0 0.0
    %4433 = vmatprep.subr.mxu0 0.0
    %4434 = vmatpush1.msra.mxu0 0.0
    %4435 = vmatprep.subr.mxu0 0.0
    %4436 = vmatpush1.msra.mxu0 0.0
    %4437 = vmatprep.subr.mxu0 0.0
    %4438 = vmatpush1.msra.mxu0 0.0
    %4439 = vmatprep.subr.mxu0 0.0
    %4440 = vmatpush1.msra.mxu0 0.0
    %4441 = vmatprep.subr.mxu0 0.0
    %4442 = vmatpush1.msra.mxu0 0.0
    %4443 = vmatprep.subr.mxu0 0.0
    %4444 = vmatpush1.msra.mxu0 0.0
    %4445 = vmatprep.subr.mxu0 0.0
    %4446 = vmatpush1.msra.mxu0 0.0
    %4447 = vmatprep.subr.mxu0 0.0
    %4448 = vmatpush1.msra.mxu0 0.0
    %4449 = vmatprep.subr.mxu0 0.0
    %4450 = vmatpush1.msra.mxu0 0.0
    %4451 = vmatprep.subr.mxu0 0.0
    %4452 = vmatpush1.msra.mxu0 0.0
    %4453 = vmatprep.mubr.f32.mxu0 0.0
    %4454 = vmatmul.mubr.f32.gmra.mrb[0].mxu0 %v4381
    %v4455 = vpop.f32.mrb[0].mxu0
    %v4456 = vadd.f32 0.0, %v4455
    %v4457 = vpop.f32.mrb[0].mxu0
    %4458 = vmatprep.mubr.f32.mxu0 0.0
    %4459 = vmatmul.mubr.f32.gmra.mrb[0].mxu0 %v4384
    %v4460 = vpop.f32.mrb[0].mxu0
    %v4461 = vadd.f32 0.0, %v4460
    %v4462 = vpop.f32.mrb[0].mxu0
    %4463 = vmatprep.mubr.f32.mxu0 0.0
    %4464 = vmatmul.mubr.f32.gmra.mrb[0].mxu0 %v4387
    %v4465 = vpop.f32.mrb[0].mxu0
    %v4466 = vadd.f32 0.0, %v4465
    %v4467 = vpop.f32.mrb[0].mxu0
    %4468 = vdwg.mxu0
    %v4469 = vld [vmem:[#allocation13] sm:$0xff]
    %v4470 = vld [vmem:[#allocation13 + $0x8] sm:$0xff]
    %v4471 = vld [vmem:[#allocation13 + $0x10] sm:$0xff]
    %v4472 = vld [vmem:[#allocation13 + $0x18] sm:$0xff]
    %v4473 = vld [vmem:[#allocation13 + $0x20] sm:$0xff]
    %v4474 = vld [vmem:[#allocation13 + $0x28] sm:$0xff]
    %v4475 = vld [vmem:[#allocation13 + $0x30] sm:$0xff]
    %v4476 = vld [vmem:[#allocation13 + $0x38] sm:$0xff]
    %v4480 = vrot.slane %v4367, 2
    %v4481 = vrot.slane %v4372, 2
    %v4482 = vsel %vm588, %v4480, %v4481
    %v4483 = vrot.slane %v4377, 2
    %v4484 = vsel %vm588, %v4481, %v4483
    %vm4487 = vcmask 588864
    %v4488 = vsel %vm4487, %v4482, 0.0
    %v4489 = vsel %vm4487, %v4484, 0.0
    %v4490 = vadd.f32 %v4488, %v4489
    %v4491 = vrot.slane %v4490, 4
    %v4492 = vadd.f32 %v4490, %v4491
    %v4493 = vrot.slane %v4492, 2
    %v4494 = vadd.f32 %v4492, %v4493
    %v4495 = vrot.slane %v4494, 1
    %v4496 = vadd.f32 %v4494, %v4495
    %v4497 = vadd.f32 %v4496, 0.0
    %v4498 = vmul.f32 %v4367, %v4367
    %v4499 = vmul.f32 %v4372, %v4372
    %v4500 = vmul.f32 %v4377, %v4377
    %v4504 = vrot.slane %v4498, 2
    %v4505 = vrot.slane %v4499, 2
    %v4506 = vsel %vm588, %v4504, %v4505
    %v4507 = vrot.slane %v4500, 2
    %v4508 = vsel %vm588, %v4505, %v4507
    %v4511 = vsel %vm4487, %v4506, 0.0
    %v4512 = vsel %vm4487, %v4508, 0.0
    %v4513 = vadd.f32 %v4511, %v4512
    %v4514 = vrot.slane %v4513, 4
    %v4515 = vadd.f32 %v4513, %v4514
    %v4516 = vrot.slane %v4515, 2
    %v4517 = vadd.f32 %v4515, %v4516
    %v4518 = vrot.slane %v4517, 1
    %v4519 = vadd.f32 %v4517, %v4518
    %v4520 = vadd.f32 %v4519, 0.0
    %v4524 = vrot.slane %v4456, 2
    %v4525 = vrot.slane %v4461, 2
    %v4526 = vsel %vm588, %v4524, %v4525
    %v4527 = vrot.slane %v4466, 2
    %v4528 = vsel %vm588, %v4525, %v4527
    %v4531 = vsel %vm4487, %v4526, 0.0
    %v4532 = vsel %vm4487, %v4528, 0.0
    %v4533 = vadd.f32 %v4531, %v4532
    %v4534 = vrot.slane %v4533, 4
    %v4535 = vadd.f32 %v4533, %v4534
    %v4536 = vrot.slane %v4535, 2
    %v4537 = vadd.f32 %v4535, %v4536
    %v4538 = vrot.slane %v4537, 1
    %v4539 = vadd.f32 %v4537, %v4538
    %v4540 = vadd.f32 %v4497, %v4539
    %v4541 = vmul.f32 %v4456, %v4456
    %v4542 = vmul.f32 %v4461, %v4461
    %v4543 = vmul.f32 %v4466, %v4466
    %v4547 = vrot.slane %v4541, 2
    %v4548 = vrot.slane %v4542, 2
    %v4549 = vsel %vm588, %v4547, %v4548
    %v4550 = vrot.slane %v4543, 2
    %v4551 = vsel %vm588, %v4548, %v4550
    %v4554 = vsel %vm4487, %v4549, 0.0
    %v4555 = vsel %vm4487, %v4551, 0.0
    %v4556 = vadd.f32 %v4554, %v4555
    %v4557 = vrot.slane %v4556, 4
    %v4558 = vadd.f32 %v4556, %v4557
    %v4559 = vrot.slane %v4558, 2
    %v4560 = vadd.f32 %v4558, %v4559
    %v4561 = vrot.slane %v4560, 1
    %v4562 = vadd.f32 %v4560, %v4561
    %v4563 = vadd.f32 %v4520, %v4562
    %4565 = vrot.lane.b32.xlu0 %v4540, 120
    %v4566 = vpop.permute.xlu0 %4565
    %v4567 = vsel %vm844, %v4566, 0
    %4569 = vmatprep.subr.mxu0 0.0
    %4570 = vmatpush1.msra.mxu0 %v4469
    %4571 = vmatprep.subr.mxu0 0.0
    %4572 = vmatpush1.msra.mxu0 %v4470
    %4573 = vmatprep.subr.mxu0 0.0
    %4574 = vmatpush1.msra.mxu0 %v4471
    %4575 = vmatprep.subr.mxu0 0.0
    %4576 = vmatpush1.msra.mxu0 %v4472
    %4577 = vmatprep.subr.mxu0 0.0
    %4578 = vmatpush1.msra.mxu0 %v4473
    %4579 = vmatprep.subr.mxu0 0.0
    %4580 = vmatpush1.msra.mxu0 %v4474
    %4581 = vmatprep.subr.mxu0 0.0
    %4582 = vmatpush1.msra.mxu0 %v4475
    %4583 = vmatprep.subr.mxu0 0.0
    %4584 = vmatpush1.msra.mxu0 %v4476
    %4585 = vmatprep.subr.mxu0 0.0
    %4586 = vmatpush1.msra.mxu0 0.0
    %4587 = vmatprep.subr.mxu0 0.0
    %4588 = vmatpush1.msra.mxu0 0.0
    %4589 = vmatprep.subr.mxu0 0.0
    %4590 = vmatpush1.msra.mxu0 0.0
    %4591 = vmatprep.subr.mxu0 0.0
    %4592 = vmatpush1.msra.mxu0 0.0
    %4593 = vmatprep.subr.mxu0 0.0
    %4594 = vmatpush1.msra.mxu0 0.0
    %4595 = vmatprep.subr.mxu0 0.0
    %4596 = vmatpush1.msra.mxu0 0.0
    %4597 = vmatprep.subr.mxu0 0.0
    %4598 = vmatpush1.msra.mxu0 0.0
    %4599 = vmatprep.subr.mxu0 0.0
    %4600 = vmatpush1.msra.mxu0 0.0
    %4601 = vmatprep.subr.mxu0 0.0
    %4602 = vmatpush1.msra.mxu0 0.0
    %4603 = vmatprep.subr.mxu0 0.0
    %4604 = vmatpush1.msra.mxu0 0.0
    %4605 = vmatprep.subr.mxu0 0.0
    %4606 = vmatpush1.msra.mxu0 0.0
    %4607 = vmatprep.subr.mxu0 0.0
    %4608 = vmatpush1.msra.mxu0 0.0
    %4609 = vmatprep.subr.mxu0 0.0
    %4610 = vmatpush1.msra.mxu0 0.0
    %4611 = vmatprep.subr.mxu0 0.0
    %4612 = vmatpush1.msra.mxu0 0.0
    %4613 = vmatprep.subr.mxu0 0.0
    %4614 = vmatpush1.msra.mxu0 0.0
    %4615 = vmatprep.subr.mxu0 0.0
    %4616 = vmatpush1.msra.mxu0 0.0
    %4617 = vmatprep.subr.mxu0 0.0
    %4618 = vmatpush1.msra.mxu0 0.0
    %4619 = vmatprep.subr.mxu0 0.0
    %4620 = vmatpush1.msra.mxu0 0.0
    %4621 = vmatprep.subr.mxu0 0.0
    %4622 = vmatpush1.msra.mxu0 0.0
    %4623 = vmatprep.subr.mxu0 0.0
    %4624 = vmatpush1.msra.mxu0 0.0
    %4625 = vmatprep.subr.mxu0 0.0
    %4626 = vmatpush1.msra.mxu0 0.0
    %4627 = vmatprep.subr.mxu0 0.0
    %4628 = vmatpush1.msra.mxu0 0.0
    %4629 = vmatprep.subr.mxu0 0.0
    %4630 = vmatpush1.msra.mxu0 0.0
    %4631 = vmatprep.subr.mxu0 0.0
    %4632 = vmatpush1.msra.mxu0 0.0
    %4633 = vmatprep.mubr.f32.mxu0 0.0
    %4634 = vmatmul.mubr.f32.gmra.mrb[0].mxu0 %v4567
    %v4635 = vpop.f32.mrb[0].mxu0
    %v4636 = vadd.f32 0.0, %v4635
    %v4637 = vpop.f32.mrb[0].mxu0
    %4638 = vdwg.mxu0
    %4640 = vrot.lane.b32.xlu0 %v4563, 120
    %v4641 = vpop.permute.xlu0 %4640
    %v4642 = vsel %vm844, %v4641, 0
    %4644 = vmatprep.subr.mxu0 0.0
    %4645 = vmatpush1.msra.mxu0 %v4469
    %4646 = vmatprep.subr.mxu0 0.0
    %4647 = vmatpush1.msra.mxu0 %v4470
    %4648 = vmatprep.subr.mxu0 0.0
    %4649 = vmatpush1.msra.mxu0 %v4471
    %4650 = vmatprep.subr.mxu0 0.0
    %4651 = vmatpush1.msra.mxu0 %v4472
    %4652 = vmatprep.subr.mxu0 0.0
    %4653 = vmatpush1.msra.mxu0 %v4473
    %4654 = vmatprep.subr.mxu0 0.0
    %4655 = vmatpush1.msra.mxu0 %v4474
    %4656 = vmatprep.subr.mxu0 0.0
    %4657 = vmatpush1.msra.mxu0 %v4475
    %4658 = vmatprep.subr.mxu0 0.0
    %4659 = vmatpush1.msra.mxu0 %v4476
    %4660 = vmatprep.subr.mxu0 0.0
    %4661 = vmatpush1.msra.mxu0 0.0
    %4662 = vmatprep.subr.mxu0 0.0
    %4663 = vmatpush1.msra.mxu0 0.0
    %4664 = vmatprep.subr.mxu0 0.0
    %4665 = vmatpush1.msra.mxu0 0.0
    %4666 = vmatprep.subr.mxu0 0.0
    %4667 = vmatpush1.msra.mxu0 0.0
    %4668 = vmatprep.subr.mxu0 0.0
    %4669 = vmatpush1.msra.mxu0 0.0
    %4670 = vmatprep.subr.mxu0 0.0
    %4671 = vmatpush1.msra.mxu0 0.0
    %4672 = vmatprep.subr.mxu0 0.0
    %4673 = vmatpush1.msra.mxu0 0.0
    %4674 = vmatprep.subr.mxu0 0.0
    %4675 = vmatpush1.msra.mxu0 0.0
    %4676 = vmatprep.subr.mxu0 0.0
    %4677 = vmatpush1.msra.mxu0 0.0
    %4678 = vmatprep.subr.mxu0 0.0
    %4679 = vmatpush1.msra.mxu0 0.0
    %4680 = vmatprep.subr.mxu0 0.0
    %4681 = vmatpush1.msra.mxu0 0.0
    %4682 = vmatprep.subr.mxu0 0.0
    %4683 = vmatpush1.msra.mxu0 0.0
    %4684 = vmatprep.subr.mxu0 0.0
    %4685 = vmatpush1.msra.mxu0 0.0
    %4686 = vmatprep.subr.mxu0 0.0
    %4687 = vmatpush1.msra.mxu0 0.0
    %4688 = vmatprep.subr.mxu0 0.0
    %4689 = vmatpush1.msra.mxu0 0.0
    %4690 = vmatprep.subr.mxu0 0.0
    %4691 = vmatpush1.msra.mxu0 0.0
    %4692 = vmatprep.subr.mxu0 0.0
    %4693 = vmatpush1.msra.mxu0 0.0
    %4694 = vmatprep.subr.mxu0 0.0
    %4695 = vmatpush1.msra.mxu0 0.0
    %4696 = vmatprep.subr.mxu0 0.0
    %4697 = vmatpush1.msra.mxu0 0.0
    %4698 = vmatprep.subr.mxu0 0.0
    %4699 = vmatpush1.msra.mxu0 0.0
    %4700 = vmatprep.subr.mxu0 0.0
    %4701 = vmatpush1.msra.mxu0 0.0
    %4702 = vmatprep.subr.mxu0 0.0
    %4703 = vmatpush1.msra.mxu0 0.0
    %4704 = vmatprep.subr.mxu0 0.0
    %4705 = vmatpush1.msra.mxu0 0.0
    %4706 = vmatprep.subr.mxu0 0.0
    %4707 = vmatpush1.msra.mxu0 0.0
    %4708 = vmatprep.mubr.f32.mxu0 0.0
    %4709 = vmatmul.mubr.f32.gmra.mrb[0].mxu0 %v4642
    %v4710 = vpop.f32.mrb[0].mxu0
    %v4711 = vadd.f32 0.0, %v4710
    %v4712 = vpop.f32.mrb[0].mxu0
    %4713 = vdwg.mxu0
    %v4714 = vmul.f32 %v4636, %v4636
    %v4715 = vsub.f32 %v4711, %v4714
    %v4716 = vmax.f32 %v4715, 0.0
    %v4717 = vadd.f32 %v4716, 1e-05
    %v4718 = vrsqrt.pop %v4717
    %v4719 = vlaneseq
    %v4720 = vshrl.u32 %v4719, 7
    %v4721 = vsub.s32 0, %v4720
    %v4722 = vrot.slane %v4636, %v4721
    %v4723 = vsub.f32 %v4367, %v4722
    %v4724 = vsub.f32 %v4372, %v4722
    %v4725 = vsub.f32 %v4377, %v4722
    %v4726 = vsub.f32 %v4456, %v4722
    %v4727 = vsub.f32 %v4461, %v4722
    %v4728 = vsub.f32 %v4466, %v4722
    %v4729 = vlaneseq
    %v4730 = vshrl.u32 %v4729, 7
    %v4731 = vsub.s32 0, %v4730
    %v4732 = vrot.slane %v4718, %v4731
    %v4733 = vmul.f32 %v4723, %v4732
    %v4734 = vmul.f32 %v4724, %v4732
    %v4735 = vmul.f32 %v4725, %v4732
    %v4736 = vmul.f32 %v4726, %v4732
    %v4737 = vmul.f32 %v4727, %v4732
    %v4738 = vmul.f32 %v4728, %v4732
    %v4739 = vmax.f32 %v4733, 0.0
    %v4740 = vmax.f32 %v4734, 0.0
    %v4741 = vmax.f32 %v4735, 0.0
    %v4742 = vmax.f32 %v4736, 0.0
    %v4743 = vmax.f32 %v4737, 0.0
    %v4744 = vmax.f32 %v4738, 0.0
    %v4745 = vrot.slane %v301, 2
    %v4746 = vrot.slane %v302, 2
    %v4747 = vsel %vm588, %v4745, %v4746
    %v4748 = vrot.slane %v303, 2
    %v4749 = vsel %vm588, %v4746, %v4748
    %4750 = vrot.lane.b32.xlu0 %v4747, 120
    %v4751 = vpop.permute.xlu0 %4750
    %4752 = vrot.lane.b32.xlu0 %v4749, 120
    %v4753 = vpop.permute.xlu0 %4752
    %4754 = vrot.lane.b32.xlu0 %v4748, 120
    %v4755 = vpop.permute.xlu0 %4754
    %v4759 = vmul.f32 %v4739, %v4751
    %v4760 = vmul.f32 %v4740, %v4753
    %v4761 = vmul.f32 %v4741, %v4755
    %v4762 = vmul.f32 %v4742, %v4751
    %v4763 = vmul.f32 %v4743, %v4753
    %v4764 = vmul.f32 %v4744, %v4755
    %v4765 = vld [vmem:[#allocation24] sm:$0x1]
    %v4766 = vlaneseq
    %v4767 = vshrl.u32 %v4766, 7
    %v4768 = vsub.s32 0, %v4767
    %v4769 = vrot.slane %v4765, %v4768
    %v4770 = vmul.f32 %v4759, %v4769
    %v4771 = vmul.f32 %v4760, %v4769
    %v4772 = vmul.f32 %v4762, %v4769
    %v4773 = vmul.f32 %v4763, %v4769
    %v4774 = vld [vmem:[#allocation24 + $0x1] sm:$0x1]
    %v4775 = vlaneseq
    %v4776 = vshrl.u32 %v4775, 7
    %v4777 = vsub.s32 0, %v4776
    %v4778 = vrot.slane %v4774, %v4777
    %4780 = vrot.lane.b32.xlu0 %v4778, 4
    %v4781 = vpop.permute.xlu0 %4780
    %v4783 = vmul.f32 %v4759, %v4781
    %v4784 = vmul.f32 %v4760, %v4781
    %v4785 = vmul.f32 %v4762, %v4781
    %v4786 = vmul.f32 %v4763, %v4781
    %4791 = vrot.lane.b32.xlu0 %v4783, 124
    %v4792 = vpop.permute.xlu0 %4791
    %4793 = vrot.lane.b32.xlu0 %v4784, 124
    %v4794 = vpop.permute.xlu0 %4793
    %4795 = vrot.lane.b32.xlu0 %v4785, 124
    %v4796 = vpop.permute.xlu0 %4795
    %4797 = vrot.lane.b32.xlu0 %v4786, 124
    %v4798 = vpop.permute.xlu0 %4797
    %v4803 = vadd.f32 %v4770, %v4792
    %v4804 = vadd.f32 %v4771, %v4794
    %v4805 = vadd.f32 %v4772, %v4796
    %v4806 = vadd.f32 %v4773, %v4798
    %v4807 = vld [vmem:[#allocation24 + $0x2] sm:$0x1]
    %v4808 = vlaneseq
    %v4809 = vshrl.u32 %v4808, 7
    %v4810 = vsub.s32 0, %v4809
    %v4811 = vrot.slane %v4807, %v4810
    %4813 = vrot.lane.b32.xlu0 %v4811, 8
    %v4814 = vpop.permute.xlu0 %4813
    %v4816 = vmul.f32 %v4759, %v4814
    %v4817 = vmul.f32 %v4760, %v4814
    %v4818 = vmul.f32 %v4762, %v4814
    %v4819 = vmul.f32 %v4763, %v4814
    %4824 = vrot.lane.b32.xlu0 %v4816, 120
    %v4825 = vpop.permute.xlu0 %4824
    %4826 = vrot.lane.b32.xlu0 %v4817, 120
    %v4827 = vpop.permute.xlu0 %4826
    %4828 = vrot.lane.b32.xlu0 %v4818, 120
    %v4829 = vpop.permute.xlu0 %4828
    %4830 = vrot.lane.b32.xlu0 %v4819, 120
    %v4831 = vpop.permute.xlu0 %4830
    %v4836 = vadd.f32 %v4803, %v4825
    %v4837 = vadd.f32 %v4804, %v4827
    %v4838 = vadd.f32 %v4805, %v4829
    %v4839 = vadd.f32 %v4806, %v4831
    %v4840 = vld [vmem:[#allocation24 + $0x3] sm:$0x1]
    %v4841 = vlaneseq
    %v4842 = vshrl.u32 %v4841, 7
    %v4843 = vsub.s32 0, %v4842
    %v4844 = vrot.slane %v4840, %v4843
    %4846 = vrot.lane.b32.xlu0 %v4844, 12
    %v4847 = vpop.permute.xlu0 %4846
    %v4849 = vmul.f32 %v4759, %v4847
    %v4850 = vmul.f32 %v4760, %v4847
    %v4851 = vmul.f32 %v4762, %v4847
    %v4852 = vmul.f32 %v4763, %v4847
    %4857 = vrot.lane.b32.xlu0 %v4849, 116
    %v4858 = vpop.permute.xlu0 %4857
    %4859 = vrot.lane.b32.xlu0 %v4850, 116
    %v4860 = vpop.permute.xlu0 %4859
    %4861 = vrot.lane.b32.xlu0 %v4851, 116
    %v4862 = vpop.permute.xlu0 %4861
    %4863 = vrot.lane.b32.xlu0 %v4852, 116
    %v4864 = vpop.permute.xlu0 %4863
    %v4869 = vadd.f32 %v4836, %v4858
    %v4870 = vadd.f32 %v4837, %v4860
    %v4871 = vadd.f32 %v4838, %v4862
    %v4872 = vadd.f32 %v4839, %v4864
    %v4873 = vld [vmem:[#allocation24 + $0x4] sm:$0x1]
    %v4874 = vlaneseq
    %v4875 = vshrl.u32 %v4874, 7
    %v4876 = vsub.s32 0, %v4875
    %v4877 = vrot.slane %v4873, %v4876
    %4879 = vrot.lane.b32.xlu0 %v4877, 16
    %v4880 = vpop.permute.xlu0 %4879
    %v4882 = vmul.f32 %v4759, %v4880
    %v4883 = vmul.f32 %v4760, %v4880
    %v4884 = vmul.f32 %v4762, %v4880
    %v4885 = vmul.f32 %v4763, %v4880
    %4890 = vrot.lane.b32.xlu0 %v4882, 112
    %v4891 = vpop.permute.xlu0 %4890
    %4892 = vrot.lane.b32.xlu0 %v4883, 112
    %v4893 = vpop.permute.xlu0 %4892
    %4894 = vrot.lane.b32.xlu0 %v4884, 112
    %v4895 = vpop.permute.xlu0 %4894
    %4896 = vrot.lane.b32.xlu0 %v4885, 112
    %v4897 = vpop.permute.xlu0 %4896
    %v4902 = vadd.f32 %v4869, %v4891
    %v4903 = vadd.f32 %v4870, %v4893
    %v4904 = vadd.f32 %v4871, %v4895
    %v4905 = vadd.f32 %v4872, %v4897
    %v4906 = vld [vmem:[#allocation24 + $0x5] sm:$0x1]
    %v4907 = vlaneseq
    %v4908 = vshrl.u32 %v4907, 7
    %v4909 = vsub.s32 0, %v4908
    %v4910 = vrot.slane %v4906, %v4909
    %v4911 = vmul.f32 %v4759, %v4910
    %v4912 = vmul.f32 %v4760, %v4910
    %v4913 = vmul.f32 %v4761, %v4910
    %v4914 = vmul.f32 %v4762, %v4910
    %v4915 = vmul.f32 %v4763, %v4910
    %v4916 = vmul.f32 %v4764, %v4910
    %v4923 = vrot.slane %v4911, 1
    %v4924 = vrot.slane %v4912, 1
    %v4925 = vsel %vm447, %v4923, %v4924
    %v4926 = vrot.slane %v4913, 1
    %v4927 = vsel %vm447, %v4924, %v4926
    %v4928 = vrot.slane %v4914, 1
    %v4929 = vrot.slane %v4915, 1
    %v4930 = vsel %vm447, %v4928, %v4929
    %v4931 = vrot.slane %v4916, 1
    %v4932 = vsel %vm447, %v4929, %v4931
    %v4937 = vadd.f32 %v4902, %v4925
    %v4938 = vadd.f32 %v4903, %v4927
    %v4939 = vadd.f32 %v4904, %v4930
    %v4940 = vadd.f32 %v4905, %v4932
    %v4941 = vld [vmem:[#allocation24 + $0x6] sm:$0x1]
    %v4942 = vlaneseq
    %v4943 = vshrl.u32 %v4942, 7
    %v4944 = vsub.s32 0, %v4943
    %v4945 = vrot.slane %v4941, %v4944
    %4947 = vrot.lane.b32.xlu0 %v4945, 4
    %v4948 = vpop.permute.xlu0 %4947
    %v4950 = vmul.f32 %v4759, %v4948
    %v4951 = vmul.f32 %v4760, %v4948
    %v4952 = vmul.f32 %v4761, %v4948
    %v4953 = vmul.f32 %v4762, %v4948
    %v4954 = vmul.f32 %v4763, %v4948
    %v4955 = vmul.f32 %v4764, %v4948
    %v4962 = vrot.slane %v4950, 1
    %v4963 = vrot.slane %v4951, 1
    %v4964 = vsel %vm447, %v4962, %v4963
    %v4965 = vrot.slane %v4952, 1
    %v4966 = vsel %vm447, %v4963, %v4965
    %v4967 = vrot.slane %v4953, 1
    %v4968 = vrot.slane %v4954, 1
    %v4969 = vsel %vm447, %v4967, %v4968
    %v4970 = vrot.slane %v4955, 1
    %v4971 = vsel %vm447, %v4968, %v4970
    %4972 = vrot.lane.b32.xlu0 %v4964, 124
    %v4973 = vpop.permute.xlu0 %4972
    %4974 = vrot.lane.b32.xlu0 %v4966, 124
    %v4975 = vpop.permute.xlu0 %4974
    %4976 = vrot.lane.b32.xlu0 %v4969, 124
    %v4977 = vpop.permute.xlu0 %4976
    %4978 = vrot.lane.b32.xlu0 %v4971, 124
    %v4979 = vpop.permute.xlu0 %4978
    %v4984 = vadd.f32 %v4937, %v4973
    %v4985 = vadd.f32 %v4938, %v4975
    %v4986 = vadd.f32 %v4939, %v4977
    %v4987 = vadd.f32 %v4940, %v4979
    %v4988 = vld [vmem:[#allocation24 + $0x7] sm:$0x1]
    %v4989 = vlaneseq
    %v4990 = vshrl.u32 %v4989, 7
    %v4991 = vsub.s32 0, %v4990
    %v4992 = vrot.slane %v4988, %v4991
    %4994 = vrot.lane.b32.xlu0 %v4992, 8
    %v4995 = vpop.permute.xlu0 %4994
    %v4997 = vmul.f32 %v4759, %v4995
    %v4998 = vmul.f32 %v4760, %v4995
    %v4999 = vmul.f32 %v4761, %v4995
    %v5000 = vmul.f32 %v4762, %v4995
    %v5001 = vmul.f32 %v4763, %v4995
    %v5002 = vmul.f32 %v4764, %v4995
    %v5009 = vrot.slane %v4997, 1
    %v5010 = vrot.slane %v4998, 1
    %v5011 = vsel %vm447, %v5009, %v5010
    %v5012 = vrot.slane %v4999, 1
    %v5013 = vsel %vm447, %v5010, %v5012
    %v5014 = vrot.slane %v5000, 1
    %v5015 = vrot.slane %v5001, 1
    %v5016 = vsel %vm447, %v5014, %v5015
    %v5017 = vrot.slane %v5002, 1
    %v5018 = vsel %vm447, %v5015, %v5017
    %5019 = vrot.lane.b32.xlu0 %v5011, 120
    %v5020 = vpop.permute.xlu0 %5019
    %5021 = vrot.lane.b32.xlu0 %v5013, 120
    %v5022 = vpop.permute.xlu0 %5021
    %5023 = vrot.lane.b32.xlu0 %v5016, 120
    %v5024 = vpop.permute.xlu0 %5023
    %5025 = vrot.lane.b32.xlu0 %v5018, 120
    %v5026 = vpop.permute.xlu0 %5025
    %v5031 = vadd.f32 %v4984, %v5020
    %v5032 = vadd.f32 %v4985, %v5022
    %v5033 = vadd.f32 %v4986, %v5024
    %v5034 = vadd.f32 %v4987, %v5026
    %v5035 = vld [vmem:[#allocation24 + $0x8] sm:$0x1]
    %v5036 = vlaneseq
    %v5037 = vshrl.u32 %v5036, 7
    %v5038 = vsub.s32 0, %v5037
    %v5039 = vrot.slane %v5035, %v5038
    %5041 = vrot.lane.b32.xlu0 %v5039, 12
    %v5042 = vpop.permute.xlu0 %5041
    %v5044 = vmul.f32 %v4759, %v5042
    %v5045 = vmul.f32 %v4760, %v5042
    %v5046 = vmul.f32 %v4761, %v5042
    %v5047 = vmul.f32 %v4762, %v5042
    %v5048 = vmul.f32 %v4763, %v5042
    %v5049 = vmul.f32 %v4764, %v5042
    %v5056 = vrot.slane %v5044, 1
    %v5057 = vrot.slane %v5045, 1
    %v5058 = vsel %vm447, %v5056, %v5057
    %v5059 = vrot.slane %v5046, 1
    %v5060 = vsel %vm447, %v5057, %v5059
    %v5061 = vrot.slane %v5047, 1
    %v5062 = vrot.slane %v5048, 1
    %v5063 = vsel %vm447, %v5061, %v5062
    %v5064 = vrot.slane %v5049, 1
    %v5065 = vsel %vm447, %v5062, %v5064
    %5066 = vrot.lane.b32.xlu0 %v5058, 116
    %v5067 = vpop.permute.xlu0 %5066
    %5068 = vrot.lane.b32.xlu0 %v5060, 116
    %v5069 = vpop.permute.xlu0 %5068
    %5070 = vrot.lane.b32.xlu0 %v5063, 116
    %v5071 = vpop.permute.xlu0 %5070
    %5072 = vrot.lane.b32.xlu0 %v5065, 116
    %v5073 = vpop.permute.xlu0 %5072
    %v5078 = vadd.f32 %v5031, %v5067
    %v5079 = vadd.f32 %v5032, %v5069
    %v5080 = vadd.f32 %v5033, %v5071
    %v5081 = vadd.f32 %v5034, %v5073
    %v5082 = vld [vmem:[#allocation24 + $0x9] sm:$0x1]
    %v5083 = vlaneseq
    %v5084 = vshrl.u32 %v5083, 7
    %v5085 = vsub.s32 0, %v5084
    %v5086 = vrot.slane %v5082, %v5085
    %5088 = vrot.lane.b32.xlu0 %v5086, 16
    %v5089 = vpop.permute.xlu0 %5088
    %v5091 = vmul.f32 %v4759, %v5089
    %v5092 = vmul.f32 %v4760, %v5089
    %v5093 = vmul.f32 %v4761, %v5089
    %v5094 = vmul.f32 %v4762, %v5089
    %v5095 = vmul.f32 %v4763, %v5089
    %v5096 = vmul.f32 %v4764, %v5089
    %v5103 = vrot.slane %v5091, 1
    %v5104 = vrot.slane %v5092, 1
    %v5105 = vsel %vm447, %v5103, %v5104
    %v5106 = vrot.slane %v5093, 1
    %v5107 = vsel %vm447, %v5104, %v5106
    %v5108 = vrot.slane %v5094, 1
    %v5109 = vrot.slane %v5095, 1
    %v5110 = vsel %vm447, %v5108, %v5109
    %v5111 = vrot.slane %v5096, 1
    %v5112 = vsel %vm447, %v5109, %v5111
    %5113 = vrot.lane.b32.xlu0 %v5105, 112
    %v5114 = vpop.permute.xlu0 %5113
    %5115 = vrot.lane.b32.xlu0 %v5107, 112
    %v5116 = vpop.permute.xlu0 %5115
    %5117 = vrot.lane.b32.xlu0 %v5110, 112
    %v5118 = vpop.permute.xlu0 %5117
    %5119 = vrot.lane.b32.xlu0 %v5112, 112
    %v5120 = vpop.permute.xlu0 %5119
    %v5125 = vadd.f32 %v5078, %v5114
    %v5126 = vadd.f32 %v5079, %v5116
    %v5127 = vadd.f32 %v5080, %v5118
    %v5128 = vadd.f32 %v5081, %v5120
    %v5129 = vld [vmem:[#allocation24 + $0xa] sm:$0x1]
    %v5130 = vlaneseq
    %v5131 = vshrl.u32 %v5130, 7
    %v5132 = vsub.s32 0, %v5131
    %v5133 = vrot.slane %v5129, %v5132
    %v5134 = vmul.f32 %v4759, %v5133
    %v5135 = vmul.f32 %v4760, %v5133
    %v5136 = vmul.f32 %v4761, %v5133
    %v5137 = vmul.f32 %v4762, %v5133
    %v5138 = vmul.f32 %v4763, %v5133
    %v5139 = vmul.f32 %v4764, %v5133
    %v5146 = vrot.slane %v5134, 2
    %v5147 = vrot.slane %v5135, 2
    %v5148 = vsel %vm588, %v5146, %v5147
    %v5149 = vrot.slane %v5136, 2
    %v5150 = vsel %vm588, %v5147, %v5149
    %v5151 = vrot.slane %v5137, 2
    %v5152 = vrot.slane %v5138, 2
    %v5153 = vsel %vm588, %v5151, %v5152
    %v5154 = vrot.slane %v5139, 2
    %v5155 = vsel %vm588, %v5152, %v5154
    %v5160 = vadd.f32 %v5125, %v5148
    %v5161 = vadd.f32 %v5126, %v5150
    %v5162 = vadd.f32 %v5127, %v5153
    %v5163 = vadd.f32 %v5128, %v5155
    %v5164 = vld [vmem:[#allocation24 + $0xb] sm:$0x1]
    %v5165 = vlaneseq
    %v5166 = vshrl.u32 %v5165, 7
    %v5167 = vsub.s32 0, %v5166
    %v5168 = vrot.slane %v5164, %v5167
    %5170 = vrot.lane.b32.xlu0 %v5168, 4
    %v5171 = vpop.permute.xlu0 %5170
    %v5173 = vmul.f32 %v4759, %v5171
    %v5174 = vmul.f32 %v4760, %v5171
    %v5175 = vmul.f32 %v4761, %v5171
    %v5176 = vmul.f32 %v4762, %v5171
    %v5177 = vmul.f32 %v4763, %v5171
    %v5178 = vmul.f32 %v4764, %v5171
    %v5185 = vrot.slane %v5173, 2
    %v5186 = vrot.slane %v5174, 2
    %v5187 = vsel %vm588, %v5185, %v5186
    %v5188 = vrot.slane %v5175, 2
    %v5189 = vsel %vm588, %v5186, %v5188
    %v5190 = vrot.slane %v5176, 2
    %v5191 = vrot.slane %v5177, 2
    %v5192 = vsel %vm588, %v5190, %v5191
    %v5193 = vrot.slane %v5178, 2
    %v5194 = vsel %vm588, %v5191, %v5193
    %5195 = vrot.lane.b32.xlu0 %v5187, 124
    %v5196 = vpop.permute.xlu0 %5195
    %5197 = vrot.lane.b32.xlu0 %v5189, 124
    %v5198 = vpop.permute.xlu0 %5197
    %5199 = vrot.lane.b32.xlu0 %v5192, 124
    %v5200 = vpop.permute.xlu0 %5199
    %5201 = vrot.lane.b32.xlu0 %v5194, 124
    %v5202 = vpop.permute.xlu0 %5201
    %v5207 = vadd.f32 %v5160, %v5196
    %v5208 = vadd.f32 %v5161, %v5198
    %v5209 = vadd.f32 %v5162, %v5200
    %v5210 = vadd.f32 %v5163, %v5202
    %v5211 = vld [vmem:[#allocation24 + $0xc] sm:$0x1]
    %v5212 = vlaneseq
    %v5213 = vshrl.u32 %v5212, 7
    %v5214 = vsub.s32 0, %v5213
    %v5215 = vrot.slane %v5211, %v5214
    %5217 = vrot.lane.b32.xlu0 %v5215, 8
    %v5218 = vpop.permute.xlu0 %5217
    %v5220 = vmul.f32 %v4759, %v5218
    %v5221 = vmul.f32 %v4760, %v5218
    %v5222 = vmul.f32 %v4761, %v5218
    %v5223 = vmul.f32 %v4762, %v5218
    %v5224 = vmul.f32 %v4763, %v5218
    %v5225 = vmul.f32 %v4764, %v5218
    %v5232 = vrot.slane %v5220, 2
    %v5233 = vrot.slane %v5221, 2
    %v5234 = vsel %vm588, %v5232, %v5233
    %v5235 = vrot.slane %v5222, 2
    %v5236 = vsel %vm588, %v5233, %v5235
    %v5237 = vrot.slane %v5223, 2
    %v5238 = vrot.slane %v5224, 2
    %v5239 = vsel %vm588, %v5237, %v5238
    %v5240 = vrot.slane %v5225, 2
    %v5241 = vsel %vm588, %v5238, %v5240
    %5242 = vrot.lane.b32.xlu0 %v5234, 120
    %v5243 = vpop.permute.xlu0 %5242
    %5244 = vrot.lane.b32.xlu0 %v5236, 120
    %v5245 = vpop.permute.xlu0 %5244
    %5246 = vrot.lane.b32.xlu0 %v5239, 120
    %v5247 = vpop.permute.xlu0 %5246
    %5248 = vrot.lane.b32.xlu0 %v5241, 120
    %v5249 = vpop.permute.xlu0 %5248
    %v5254 = vadd.f32 %v5207, %v5243
    %v5255 = vadd.f32 %v5208, %v5245
    %v5256 = vadd.f32 %v5209, %v5247
    %v5257 = vadd.f32 %v5210, %v5249
    %v5258 = vld [vmem:[#allocation24 + $0xd] sm:$0x1]
    %v5259 = vlaneseq
    %v5260 = vshrl.u32 %v5259, 7
    %v5261 = vsub.s32 0, %v5260
    %v5262 = vrot.slane %v5258, %v5261
    %5264 = vrot.lane.b32.xlu0 %v5262, 12
    %v5265 = vpop.permute.xlu0 %5264
    %v5267 = vmul.f32 %v4759, %v5265
    %v5268 = vmul.f32 %v4760, %v5265
    %v5269 = vmul.f32 %v4761, %v5265
    %v5270 = vmul.f32 %v4762, %v5265
    %v5271 = vmul.f32 %v4763, %v5265
    %v5272 = vmul.f32 %v4764, %v5265
    %v5279 = vrot.slane %v5267, 2
    %v5280 = vrot.slane %v5268, 2
    %v5281 = vsel %vm588, %v5279, %v5280
    %v5282 = vrot.slane %v5269, 2
    %v5283 = vsel %vm588, %v5280, %v5282
    %v5284 = vrot.slane %v5270, 2
    %v5285 = vrot.slane %v5271, 2
    %v5286 = vsel %vm588, %v5284, %v5285
    %v5287 = vrot.slane %v5272, 2
    %v5288 = vsel %vm588, %v5285, %v5287
    %5289 = vrot.lane.b32.xlu0 %v5281, 116
    %v5290 = vpop.permute.xlu0 %5289
    %5291 = vrot.lane.b32.xlu0 %v5283, 116
    %v5292 = vpop.permute.xlu0 %5291
    %5293 = vrot.lane.b32.xlu0 %v5286, 116
    %v5294 = vpop.permute.xlu0 %5293
    %5295 = vrot.lane.b32.xlu0 %v5288, 116
    %v5296 = vpop.permute.xlu0 %5295
    %v5301 = vadd.f32 %v5254, %v5290
    %v5302 = vadd.f32 %v5255, %v5292
    %v5303 = vadd.f32 %v5256, %v5294
    %v5304 = vadd.f32 %v5257, %v5296
    %v5305 = vld [vmem:[#allocation24 + $0xe] sm:$0x1]
    %v5306 = vlaneseq
    %v5307 = vshrl.u32 %v5306, 7
    %v5308 = vsub.s32 0, %v5307
    %v5309 = vrot.slane %v5305, %v5308
    %5311 = vrot.lane.b32.xlu0 %v5309, 16
    %v5312 = vpop.permute.xlu0 %5311
    %v5314 = vmul.f32 %v4759, %v5312
    %v5315 = vmul.f32 %v4760, %v5312
    %v5316 = vmul.f32 %v4761, %v5312
    %v5317 = vmul.f32 %v4762, %v5312
    %v5318 = vmul.f32 %v4763, %v5312
    %v5319 = vmul.f32 %v4764, %v5312
    %v5326 = vrot.slane %v5314, 2
    %v5327 = vrot.slane %v5315, 2
    %v5328 = vsel %vm588, %v5326, %v5327
    %v5329 = vrot.slane %v5316, 2
    %v5330 = vsel %vm588, %v5327, %v5329
    %v5331 = vrot.slane %v5317, 2
    %v5332 = vrot.slane %v5318, 2
    %v5333 = vsel %vm588, %v5331, %v5332
    %v5334 = vrot.slane %v5319, 2
    %v5335 = vsel %vm588, %v5332, %v5334
    %5336 = vrot.lane.b32.xlu0 %v5328, 112
    %v5337 = vpop.permute.xlu0 %5336
    %5338 = vrot.lane.b32.xlu0 %v5330, 112
    %v5339 = vpop.permute.xlu0 %5338
    %5340 = vrot.lane.b32.xlu0 %v5333, 112
    %v5341 = vpop.permute.xlu0 %5340
    %5342 = vrot.lane.b32.xlu0 %v5335, 112
    %v5343 = vpop.permute.xlu0 %5342
    %v5348 = vadd.f32 %v5301, %v5337
    %v5349 = vadd.f32 %v5302, %v5339
    %v5350 = vadd.f32 %v5303, %v5341
    %v5351 = vadd.f32 %v5304, %v5343
    %v5352 = vld [vmem:[#allocation24 + $0xf] sm:$0x1]
    %v5353 = vlaneseq
    %v5354 = vshrl.u32 %v5353, 7
    %v5355 = vsub.s32 0, %v5354
    %v5356 = vrot.slane %v5352, %v5355
    %v5357 = vmul.f32 %v4759, %v5356
    %v5358 = vmul.f32 %v4760, %v5356
    %v5359 = vmul.f32 %v4761, %v5356
    %v5360 = vmul.f32 %v4762, %v5356
    %v5361 = vmul.f32 %v4763, %v5356
    %v5362 = vmul.f32 %v4764, %v5356
    %v5369 = vrot.slane %v5357, 3
    %v5370 = vrot.slane %v5358, 3
    %v5371 = vsel %vm756, %v5369, %v5370
    %v5372 = vrot.slane %v5359, 3
    %v5373 = vsel %vm756, %v5370, %v5372
    %v5374 = vrot.slane %v5360, 3
    %v5375 = vrot.slane %v5361, 3
    %v5376 = vsel %vm756, %v5374, %v5375
    %v5377 = vrot.slane %v5362, 3
    %v5378 = vsel %vm756, %v5375, %v5377
    %v5383 = vadd.f32 %v5348, %v5371
    %v5384 = vadd.f32 %v5349, %v5373
    %v5385 = vadd.f32 %v5350, %v5376
    %v5386 = vadd.f32 %v5351, %v5378
    %v5387 = vld [vmem:[#allocation24 + $0x10] sm:$0x1]
    %v5388 = vlaneseq
    %v5389 = vshrl.u32 %v5388, 7
    %v5390 = vsub.s32 0, %v5389
    %v5391 = vrot.slane %v5387, %v5390
    %5393 = vrot.lane.b32.xlu0 %v5391, 4
    %v5394 = vpop.permute.xlu0 %5393
    %v5396 = vmul.f32 %v4759, %v5394
    %v5397 = vmul.f32 %v4760, %v5394
    %v5398 = vmul.f32 %v4761, %v5394
    %v5399 = vmul.f32 %v4762, %v5394
    %v5400 = vmul.f32 %v4763, %v5394
    %v5401 = vmul.f32 %v4764, %v5394
    %v5408 = vrot.slane %v5396, 3
    %v5409 = vrot.slane %v5397, 3
    %v5410 = vsel %vm756, %v5408, %v5409
    %v5411 = vrot.slane %v5398, 3
    %v5412 = vsel %vm756, %v5409, %v5411
    %v5413 = vrot.slane %v5399, 3
    %v5414 = vrot.slane %v5400, 3
    %v5415 = vsel %vm756, %v5413, %v5414
    %v5416 = vrot.slane %v5401, 3
    %v5417 = vsel %vm756, %v5414, %v5416
    %5418 = vrot.lane.b32.xlu0 %v5410, 124
    %v5419 = vpop.permute.xlu0 %5418
    %5420 = vrot.lane.b32.xlu0 %v5412, 124
    %v5421 = vpop.permute.xlu0 %5420
    %5422 = vrot.lane.b32.xlu0 %v5415, 124
    %v5423 = vpop.permute.xlu0 %5422
    %5424 = vrot.lane.b32.xlu0 %v5417, 124
    %v5425 = vpop.permute.xlu0 %5424
    %v5430 = vadd.f32 %v5383, %v5419
    %v5431 = vadd.f32 %v5384, %v5421
    %v5432 = vadd.f32 %v5385, %v5423
    %v5433 = vadd.f32 %v5386, %v5425
    %v5434 = vld [vmem:[#allocation24 + $0x11] sm:$0x1]
    %v5435 = vlaneseq
    %v5436 = vshrl.u32 %v5435, 7
    %v5437 = vsub.s32 0, %v5436
    %v5438 = vrot.slane %v5434, %v5437
    %5440 = vrot.lane.b32.xlu0 %v5438, 8
    %v5441 = vpop.permute.xlu0 %5440
    %v5443 = vmul.f32 %v4759, %v5441
    %v5444 = vmul.f32 %v4760, %v5441
    %v5445 = vmul.f32 %v4761, %v5441
    %v5446 = vmul.f32 %v4762, %v5441
    %v5447 = vmul.f32 %v4763, %v5441
    %v5448 = vmul.f32 %v4764, %v5441
    %v5455 = vrot.slane %v5443, 3
    %v5456 = vrot.slane %v5444, 3
    %v5457 = vsel %vm756, %v5455, %v5456
    %v5458 = vrot.slane %v5445, 3
    %v5459 = vsel %vm756, %v5456, %v5458
    %v5460 = vrot.slane %v5446, 3
    %v5461 = vrot.slane %v5447, 3
    %v5462 = vsel %vm756, %v5460, %v5461
    %v5463 = vrot.slane %v5448, 3
    %v5464 = vsel %vm756, %v5461, %v5463
    %5465 = vrot.lane.b32.xlu0 %v5457, 120
    %v5466 = vpop.permute.xlu0 %5465
    %5467 = vrot.lane.b32.xlu0 %v5459, 120
    %v5468 = vpop.permute.xlu0 %5467
    %5469 = vrot.lane.b32.xlu0 %v5462, 120
    %v5470 = vpop.permute.xlu0 %5469
    %5471 = vrot.lane.b32.xlu0 %v5464, 120
    %v5472 = vpop.permute.xlu0 %5471
    %v5477 = vadd.f32 %v5430, %v5466
    %v5478 = vadd.f32 %v5431, %v5468
    %v5479 = vadd.f32 %v5432, %v5470
    %v5480 = vadd.f32 %v5433, %v5472
    %v5481 = vld [vmem:[#allocation24 + $0x12] sm:$0x1]
    %v5482 = vlaneseq
    %v5483 = vshrl.u32 %v5482, 7
    %v5484 = vsub.s32 0, %v5483
    %v5485 = vrot.slane %v5481, %v5484
    %5487 = vrot.lane.b32.xlu0 %v5485, 12
    %v5488 = vpop.permute.xlu0 %5487
    %v5490 = vmul.f32 %v4759, %v5488
    %v5491 = vmul.f32 %v4760, %v5488
    %v5492 = vmul.f32 %v4761, %v5488
    %v5493 = vmul.f32 %v4762, %v5488
    %v5494 = vmul.f32 %v4763, %v5488
    %v5495 = vmul.f32 %v4764, %v5488
    %v5502 = vrot.slane %v5490, 3
    %v5503 = vrot.slane %v5491, 3
    %v5504 = vsel %vm756, %v5502, %v5503
    %v5505 = vrot.slane %v5492, 3
    %v5506 = vsel %vm756, %v5503, %v5505
    %v5507 = vrot.slane %v5493, 3
    %v5508 = vrot.slane %v5494, 3
    %v5509 = vsel %vm756, %v5507, %v5508
    %v5510 = vrot.slane %v5495, 3
    %v5511 = vsel %vm756, %v5508, %v5510
    %5512 = vrot.lane.b32.xlu0 %v5504, 116
    %v5513 = vpop.permute.xlu0 %5512
    %5514 = vrot.lane.b32.xlu0 %v5506, 116
    %v5515 = vpop.permute.xlu0 %5514
    %5516 = vrot.lane.b32.xlu0 %v5509, 116
    %v5517 = vpop.permute.xlu0 %5516
    %5518 = vrot.lane.b32.xlu0 %v5511, 116
    %v5519 = vpop.permute.xlu0 %5518
    %v5524 = vadd.f32 %v5477, %v5513
    %v5525 = vadd.f32 %v5478, %v5515
    %v5526 = vadd.f32 %v5479, %v5517
    %v5527 = vadd.f32 %v5480, %v5519
    %v5528 = vld [vmem:[#allocation24 + $0x13] sm:$0x1]
    %v5529 = vlaneseq
    %v5530 = vshrl.u32 %v5529, 7
    %v5531 = vsub.s32 0, %v5530
    %v5532 = vrot.slane %v5528, %v5531
    %5534 = vrot.lane.b32.xlu0 %v5532, 16
    %v5535 = vpop.permute.xlu0 %5534
    %v5537 = vmul.f32 %v4759, %v5535
    %v5538 = vmul.f32 %v4760, %v5535
    %v5539 = vmul.f32 %v4761, %v5535
    %v5540 = vmul.f32 %v4762, %v5535
    %v5541 = vmul.f32 %v4763, %v5535
    %v5542 = vmul.f32 %v4764, %v5535
    %v5549 = vrot.slane %v5537, 3
    %v5550 = vrot.slane %v5538, 3
    %v5551 = vsel %vm756, %v5549, %v5550
    %v5552 = vrot.slane %v5539, 3
    %v5553 = vsel %vm756, %v5550, %v5552
    %v5554 = vrot.slane %v5540, 3
    %v5555 = vrot.slane %v5541, 3
    %v5556 = vsel %vm756, %v5554, %v5555
    %v5557 = vrot.slane %v5542, 3
    %v5558 = vsel %vm756, %v5555, %v5557
    %5559 = vrot.lane.b32.xlu0 %v5551, 112
    %v5560 = vpop.permute.xlu0 %5559
    %5561 = vrot.lane.b32.xlu0 %v5553, 112
    %v5562 = vpop.permute.xlu0 %5561
    %5563 = vrot.lane.b32.xlu0 %v5556, 112
    %v5564 = vpop.permute.xlu0 %5563
    %5565 = vrot.lane.b32.xlu0 %v5558, 112
    %v5566 = vpop.permute.xlu0 %5565
    %v5571 = vadd.f32 %v5524, %v5560
    %v5572 = vadd.f32 %v5525, %v5562
    %v5573 = vadd.f32 %v5526, %v5564
    %v5574 = vadd.f32 %v5527, %v5566
    %v5575 = vld [vmem:[#allocation24 + $0x14] sm:$0x1]
    %v5576 = vlaneseq
    %v5577 = vshrl.u32 %v5576, 7
    %v5578 = vsub.s32 0, %v5577
    %v5579 = vrot.slane %v5575, %v5578
    %v5580 = vmul.f32 %v4759, %v5579
    %v5581 = vmul.f32 %v4760, %v5579
    %v5582 = vmul.f32 %v4761, %v5579
    %v5583 = vmul.f32 %v4762, %v5579
    %v5584 = vmul.f32 %v4763, %v5579
    %v5585 = vmul.f32 %v4764, %v5579
    %v5592 = vrot.slane %v5580, 4
    %v5593 = vrot.slane %v5581, 4
    %v5594 = vsel %vm3021, %v5592, %v5593
    %v5595 = vrot.slane %v5582, 4
    %v5596 = vsel %vm3021, %v5593, %v5595
    %v5597 = vrot.slane %v5583, 4
    %v5598 = vrot.slane %v5584, 4
    %v5599 = vsel %vm3021, %v5597, %v5598
    %v5600 = vrot.slane %v5585, 4
    %v5601 = vsel %vm3021, %v5598, %v5600
    %v5606 = vadd.f32 %v5571, %v5594
    %v5607 = vadd.f32 %v5572, %v5596
    %v5608 = vadd.f32 %v5573, %v5599
    %v5609 = vadd.f32 %v5574, %v5601
    %v5610 = vld [vmem:[#allocation24 + $0x15] sm:$0x1]
    %v5611 = vlaneseq
    %v5612 = vshrl.u32 %v5611, 7
    %v5613 = vsub.s32 0, %v5612
    %v5614 = vrot.slane %v5610, %v5613
    %5616 = vrot.lane.b32.xlu0 %v5614, 4
    %v5617 = vpop.permute.xlu0 %5616
    %v5619 = vmul.f32 %v4759, %v5617
    %v5620 = vmul.f32 %v4760, %v5617
    %v5621 = vmul.f32 %v4761, %v5617
    %v5622 = vmul.f32 %v4762, %v5617
    %v5623 = vmul.f32 %v4763, %v5617
    %v5624 = vmul.f32 %v4764, %v5617
    %v5631 = vrot.slane %v5619, 4
    %v5632 = vrot.slane %v5620, 4
    %v5633 = vsel %vm3021, %v5631, %v5632
    %v5634 = vrot.slane %v5621, 4
    %v5635 = vsel %vm3021, %v5632, %v5634
    %v5636 = vrot.slane %v5622, 4
    %v5637 = vrot.slane %v5623, 4
    %v5638 = vsel %vm3021, %v5636, %v5637
    %v5639 = vrot.slane %v5624, 4
    %v5640 = vsel %vm3021, %v5637, %v5639
    %5641 = vrot.lane.b32.xlu0 %v5633, 124
    %v5642 = vpop.permute.xlu0 %5641
    %5643 = vrot.lane.b32.xlu0 %v5635, 124
    %v5644 = vpop.permute.xlu0 %5643
    %5645 = vrot.lane.b32.xlu0 %v5638, 124
    %v5646 = vpop.permute.xlu0 %5645
    %5647 = vrot.lane.b32.xlu0 %v5640, 124
    %v5648 = vpop.permute.xlu0 %5647
    %v5653 = vadd.f32 %v5606, %v5642
    %v5654 = vadd.f32 %v5607, %v5644
    %v5655 = vadd.f32 %v5608, %v5646
    %v5656 = vadd.f32 %v5609, %v5648
    %v5657 = vld [vmem:[#allocation24 + $0x16] sm:$0x1]
    %v5658 = vlaneseq
    %v5659 = vshrl.u32 %v5658, 7
    %v5660 = vsub.s32 0, %v5659
    %v5661 = vrot.slane %v5657, %v5660
    %5663 = vrot.lane.b32.xlu0 %v5661, 8
    %v5664 = vpop.permute.xlu0 %5663
    %v5666 = vmul.f32 %v4759, %v5664
    %v5667 = vmul.f32 %v4760, %v5664
    %v5668 = vmul.f32 %v4761, %v5664
    %v5669 = vmul.f32 %v4762, %v5664
    %v5670 = vmul.f32 %v4763, %v5664
    %v5671 = vmul.f32 %v4764, %v5664
    %v5678 = vrot.slane %v5666, 4
    %v5679 = vrot.slane %v5667, 4
    %v5680 = vsel %vm3021, %v5678, %v5679
    %v5681 = vrot.slane %v5668, 4
    %v5682 = vsel %vm3021, %v5679, %v5681
    %v5683 = vrot.slane %v5669, 4
    %v5684 = vrot.slane %v5670, 4
    %v5685 = vsel %vm3021, %v5683, %v5684
    %v5686 = vrot.slane %v5671, 4
    %v5687 = vsel %vm3021, %v5684, %v5686
    %5688 = vrot.lane.b32.xlu0 %v5680, 120
    %v5689 = vpop.permute.xlu0 %5688
    %5690 = vrot.lane.b32.xlu0 %v5682, 120
    %v5691 = vpop.permute.xlu0 %5690
    %5692 = vrot.lane.b32.xlu0 %v5685, 120
    %v5693 = vpop.permute.xlu0 %5692
    %5694 = vrot.lane.b32.xlu0 %v5687, 120
    %v5695 = vpop.permute.xlu0 %5694
    %v5700 = vadd.f32 %v5653, %v5689
    %v5701 = vadd.f32 %v5654, %v5691
    %v5702 = vadd.f32 %v5655, %v5693
    %v5703 = vadd.f32 %v5656, %v5695
    %v5704 = vld [vmem:[#allocation24 + $0x17] sm:$0x1]
    %v5705 = vlaneseq
    %v5706 = vshrl.u32 %v5705, 7
    %v5707 = vsub.s32 0, %v5706
    %v5708 = vrot.slane %v5704, %v5707
    %5710 = vrot.lane.b32.xlu0 %v5708, 12
    %v5711 = vpop.permute.xlu0 %5710
    %v5713 = vmul.f32 %v4759, %v5711
    %v5714 = vmul.f32 %v4760, %v5711
    %v5715 = vmul.f32 %v4761, %v5711
    %v5716 = vmul.f32 %v4762, %v5711
    %v5717 = vmul.f32 %v4763, %v5711
    %v5718 = vmul.f32 %v4764, %v5711
    %v5725 = vrot.slane %v5713, 4
    %v5726 = vrot.slane %v5714, 4
    %v5727 = vsel %vm3021, %v5725, %v5726
    %v5728 = vrot.slane %v5715, 4
    %v5729 = vsel %vm3021, %v5726, %v5728
    %v5730 = vrot.slane %v5716, 4
    %v5731 = vrot.slane %v5717, 4
    %v5732 = vsel %vm3021, %v5730, %v5731
    %v5733 = vrot.slane %v5718, 4
    %v5734 = vsel %vm3021, %v5731, %v5733
    %5735 = vrot.lane.b32.xlu0 %v5727, 116
    %v5736 = vpop.permute.xlu0 %5735
    %5737 = vrot.lane.b32.xlu0 %v5729, 116
    %v5738 = vpop.permute.xlu0 %5737
    %5739 = vrot.lane.b32.xlu0 %v5732, 116
    %v5740 = vpop.permute.xlu0 %5739
    %5741 = vrot.lane.b32.xlu0 %v5734, 116
    %v5742 = vpop.permute.xlu0 %5741
    %v5747 = vadd.f32 %v5700, %v5736
    %v5748 = vadd.f32 %v5701, %v5738
    %v5749 = vadd.f32 %v5702, %v5740
    %v5750 = vadd.f32 %v5703, %v5742
    %v5751 = vld [vmem:[#allocation24 + $0x18] sm:$0x1]
    %v5752 = vlaneseq
    %v5753 = vshrl.u32 %v5752, 7
    %v5754 = vsub.s32 0, %v5753
    %v5755 = vrot.slane %v5751, %v5754
    %5757 = vrot.lane.b32.xlu0 %v5755, 16
    %v5758 = vpop.permute.xlu0 %5757
    %v5760 = vmul.f32 %v4759, %v5758
    %v5761 = vmul.f32 %v4760, %v5758
    %v5762 = vmul.f32 %v4761, %v5758
    %v5763 = vmul.f32 %v4762, %v5758
    %v5764 = vmul.f32 %v4763, %v5758
    %v5765 = vmul.f32 %v4764, %v5758
    %v5772 = vrot.slane %v5760, 4
    %v5773 = vrot.slane %v5761, 4
    %v5774 = vsel %vm3021, %v5772, %v5773
    %v5775 = vrot.slane %v5762, 4
    %v5776 = vsel %vm3021, %v5773, %v5775
    %v5777 = vrot.slane %v5763, 4
    %v5778 = vrot.slane %v5764, 4
    %v5779 = vsel %vm3021, %v5777, %v5778
    %v5780 = vrot.slane %v5765, 4
    %v5781 = vsel %vm3021, %v5778, %v5780
    %5782 = vrot.lane.b32.xlu0 %v5774, 112
    %v5783 = vpop.permute.xlu0 %5782
    %5784 = vrot.lane.b32.xlu0 %v5776, 112
    %v5785 = vpop.permute.xlu0 %5784
    %5786 = vrot.lane.b32.xlu0 %v5779, 112
    %v5787 = vpop.permute.xlu0 %5786
    %5788 = vrot.lane.b32.xlu0 %v5781, 112
    %v5789 = vpop.permute.xlu0 %5788
    %v5794 = vadd.f32 %v5747, %v5783
    %v5795 = vadd.f32 %v5748, %v5785
    %v5796 = vadd.f32 %v5749, %v5787
    %v5797 = vadd.f32 %v5750, %v5789
    %v5798 = vld [vmem:[#allocation25] sm:$0xff]
    %v5799 = vld [vmem:[#allocation25 + $0x8] sm:$0xff]
    %v5800 = vld [vmem:[#allocation25 + $0x10] sm:$0xff]
    %v5801 = vld [vmem:[#allocation25 + $0x18] sm:$0xff]
    %v5802 = vld [vmem:[#allocation25 + $0x20] sm:$0xff]
    %v5803 = vld [vmem:[#allocation25 + $0x28] sm:$0xff]
    %v5804 = vld [vmem:[#allocation25 + $0x30] sm:$0xff]
    %v5805 = vld [vmem:[#allocation25 + $0x38] sm:$0xff]
    %v5807 = vsel %vm844, %v5794, 0
    %v5810 = vsel %vm844, %v5795, 0
    %5812 = vmatprep.subr.mxu0 0.0
    %5813 = vmatpush1.msra.mxu0 %v5798
    %5814 = vmatprep.subr.mxu0 0.0
    %5815 = vmatpush1.msra.mxu0 %v5799
    %5816 = vmatprep.subr.mxu0 0.0
    %5817 = vmatpush1.msra.mxu0 %v5800
    %5818 = vmatprep.subr.mxu0 0.0
    %5819 = vmatpush1.msra.mxu0 %v5801
    %5820 = vmatprep.subr.mxu0 0.0
    %5821 = vmatpush1.msra.mxu0 %v5802
    %5822 = vmatprep.subr.mxu0 0.0
    %5823 = vmatpush1.msra.mxu0 %v5803
    %5824 = vmatprep.subr.mxu0 0.0
    %5825 = vmatpush1.msra.mxu0 %v5804
    %5826 = vmatprep.subr.mxu0 0.0
    %5827 = vmatpush1.msra.mxu0 %v5805
    %5828 = vmatprep.subr.mxu0 0.0
    %5829 = vmatpush1.msra.mxu0 0.0
    %5830 = vmatprep.subr.mxu0 0.0
    %5831 = vmatpush1.msra.mxu0 0.0
    %5832 = vmatprep.subr.mxu0 0.0
    %5833 = vmatpush1.msra.mxu0 0.0
    %5834 = vmatprep.subr.mxu0 0.0
    %5835 = vmatpush1.msra.mxu0 0.0
    %5836 = vmatprep.subr.mxu0 0.0
    %5837 = vmatpush1.msra.mxu0 0.0
    %5838 = vmatprep.subr.mxu0 0.0
    %5839 = vmatpush1.msra.mxu0 0.0
    %5840 = vmatprep.subr.mxu0 0.0
    %5841 = vmatpush1.msra.mxu0 0.0
    %5842 = vmatprep.subr.mxu0 0.0
    %5843 = vmatpush1.msra.mxu0 0.0
    %5844 = vmatprep.subr.mxu0 0.0
    %5845 = vmatpush1.msra.mxu0 0.0
    %5846 = vmatprep.subr.mxu0 0.0
    %5847 = vmatpush1.msra.mxu0 0.0
    %5848 = vmatprep.subr.mxu0 0.0
    %5849 = vmatpush1.msra.mxu0 0.0
    %5850 = vmatprep.subr.mxu0 0.0
    %5851 = vmatpush1.msra.mxu0 0.0
    %5852 = vmatprep.subr.mxu0 0.0
    %5853 = vmatpush1.msra.mxu0 0.0
    %5854 = vmatprep.subr.mxu0 0.0
    %5855 = vmatpush1.msra.mxu0 0.0
    %5856 = vmatprep.subr.mxu0 0.0
    %5857 = vmatpush1.msra.mxu0 0.0
    %5858 = vmatprep.subr.mxu0 0.0
    %5859 = vmatpush1.msra.mxu0 0.0
    %5860 = vmatprep.subr.mxu0 0.0
    %5861 = vmatpush1.msra.mxu0 0.0
    %5862 = vmatprep.subr.mxu0 0.0
    %5863 = vmatpush1.msra.mxu0 0.0
    %5864 = vmatprep.subr.mxu0 0.0
    %5865 = vmatpush1.msra.mxu0 0.0
    %5866 = vmatprep.subr.mxu0 0.0
    %5867 = vmatpush1.msra.mxu0 0.0
    %5868 = vmatprep.subr.mxu0 0.0
    %5869 = vmatpush1.msra.mxu0 0.0
    %5870 = vmatprep.subr.mxu0 0.0
    %5871 = vmatpush1.msra.mxu0 0.0
    %5872 = vmatprep.subr.mxu0 0.0
    %5873 = vmatpush1.msra.mxu0 0.0
    %5874 = vmatprep.subr.mxu0 0.0
    %5875 = vmatpush1.msra.mxu0 0.0
    %5876 = vmatprep.mubr.f32.mxu0 0.0
    %5877 = vmatmul.mubr.f32.gmra.mrb[0].mxu0 %v5807
    %v5878 = vpop.f32.mrb[0].mxu0
    %v5879 = vadd.f32 0.0, %v5878
    %v5880 = vpop.f32.mrb[0].mxu0
    %5881 = vmatprep.mubr.f32.mxu0 0.0
    %5882 = vmatmul.mubr.f32.gmra.mrb[0].mxu0 %v5810
    %v5883 = vpop.f32.mrb[0].mxu0
    %v5884 = vadd.f32 0.0, %v5883
    %v5885 = vpop.f32.mrb[0].mxu0
    %5886 = vdwg.mxu0
    %v5888 = vsel %vm844, %v5796, 0
    %v5891 = vsel %vm844, %v5797, 0
    %5893 = vmatprep.subr.mxu0 0.0
    %5894 = vmatpush1.msra.mxu0 %v5798
    %5895 = vmatprep.subr.mxu0 0.0
    %5896 = vmatpush1.msra.mxu0 %v5799
    %5897 = vmatprep.subr.mxu0 0.0
    %5898 = vmatpush1.msra.mxu0 %v5800
    %5899 = vmatprep.subr.mxu0 0.0
    %5900 = vmatpush1.msra.mxu0 %v5801
    %5901 = vmatprep.subr.mxu0 0.0
    %5902 = vmatpush1.msra.mxu0 %v5802
    %5903 = vmatprep.subr.mxu0 0.0
    %5904 = vmatpush1.msra.mxu0 %v5803
    %5905 = vmatprep.subr.mxu0 0.0
    %5906 = vmatpush1.msra.mxu0 %v5804
    %5907 = vmatprep.subr.mxu0 0.0
    %5908 = vmatpush1.msra.mxu0 %v5805
    %5909 = vmatprep.subr.mxu0 0.0
    %5910 = vmatpush1.msra.mxu0 0.0
    %5911 = vmatprep.subr.mxu0 0.0
    %5912 = vmatpush1.msra.mxu0 0.0
    %5913 = vmatprep.subr.mxu0 0.0
    %5914 = vmatpush1.msra.mxu0 0.0
    %5915 = vmatprep.subr.mxu0 0.0
    %5916 = vmatpush1.msra.mxu0 0.0
    %5917 = vmatprep.subr.mxu0 0.0
    %5918 = vmatpush1.msra.mxu0 0.0
    %5919 = vmatprep.subr.mxu0 0.0
    %5920 = vmatpush1.msra.mxu0 0.0
    %5921 = vmatprep.subr.mxu0 0.0
    %5922 = vmatpush1.msra.mxu0 0.0
    %5923 = vmatprep.subr.mxu0 0.0
    %5924 = vmatpush1.msra.mxu0 0.0
    %5925 = vmatprep.subr.mxu0 0.0
    %5926 = vmatpush1.msra.mxu0 0.0
    %5927 = vmatprep.subr.mxu0 0.0
    %5928 = vmatpush1.msra.mxu0 0.0
    %5929 = vmatprep.subr.mxu0 0.0
    %5930 = vmatpush1.msra.mxu0 0.0
    %5931 = vmatprep.subr.mxu0 0.0
    %5932 = vmatpush1.msra.mxu0 0.0
    %5933 = vmatprep.subr.mxu0 0.0
    %5934 = vmatpush1.msra.mxu0 0.0
    %5935 = vmatprep.subr.mxu0 0.0
    %5936 = vmatpush1.msra.mxu0 0.0
    %5937 = vmatprep.subr.mxu0 0.0
    %5938 = vmatpush1.msra.mxu0 0.0
    %5939 = vmatprep.subr.mxu0 0.0
    %5940 = vmatpush1.msra.mxu0 0.0
    %5941 = vmatprep.subr.mxu0 0.0
    %5942 = vmatpush1.msra.mxu0 0.0
    %5943 = vmatprep.subr.mxu0 0.0
    %5944 = vmatpush1.msra.mxu0 0.0
    %5945 = vmatprep.subr.mxu0 0.0
    %5946 = vmatpush1.msra.mxu0 0.0
    %5947 = vmatprep.subr.mxu0 0.0
    %5948 = vmatpush1.msra.mxu0 0.0
    %5949 = vmatprep.subr.mxu0 0.0
    %5950 = vmatpush1.msra.mxu0 0.0
    %5951 = vmatprep.subr.mxu0 0.0
    %5952 = vmatpush1.msra.mxu0 0.0
    %5953 = vmatprep.subr.mxu0 0.0
    %5954 = vmatpush1.msra.mxu0 0.0
    %5955 = vmatprep.subr.mxu0 0.0
    %5956 = vmatpush1.msra.mxu0 0.0
    %5957 = vmatprep.mubr.f32.mxu0 0.0
    %5958 = vmatmul.mubr.f32.gmra.mrb[0].mxu0 %v5888
    %v5959 = vpop.f32.mrb[0].mxu0
    %v5960 = vadd.f32 0.0, %v5959
    %v5961 = vpop.f32.mrb[0].mxu0
    %5962 = vmatprep.mubr.f32.mxu0 0.0
    %5963 = vmatmul.mubr.f32.gmra.mrb[0].mxu0 %v5891
    %v5964 = vpop.f32.mrb[0].mxu0
    %v5965 = vadd.f32 0.0, %v5964
    %v5966 = vpop.f32.mrb[0].mxu0
    %5967 = vdwg.mxu0
    %v5968 = vsel %vm844, %v5879, 0.0
    %v5969 = vsel %vm844, %v5884, 0.0
    %v5970 = vadd.f32 %v5968, %v5969
    %v5971 = vrot.slane %v5970, 4
    %v5972 = vadd.f32 %v5970, %v5971
    %v5973 = vrot.slane %v5972, 2
    %v5974 = vadd.f32 %v5972, %v5973
    %v5975 = vrot.slane %v5974, 1
    %v5976 = vadd.f32 %v5974, %v5975
    %v5977 = vadd.f32 %v5976, 0.0
    %v5978 = vmul.f32 %v5879, %v5879
    %v5979 = vmul.f32 %v5884, %v5884
    %v5980 = vsel %vm844, %v5978, 0.0
    %v5981 = vsel %vm844, %v5979, 0.0
    %v5982 = vadd.f32 %v5980, %v5981
    %v5983 = vrot.slane %v5982, 4
    %v5984 = vadd.f32 %v5982, %v5983
    %v5985 = vrot.slane %v5984, 2
    %v5986 = vadd.f32 %v5984, %v5985
    %v5987 = vrot.slane %v5986, 1
    %v5988 = vadd.f32 %v5986, %v5987
    %v5989 = vadd.f32 %v5988, 0.0
    %v5990 = vsel %vm844, %v5960, 0.0
    %v5991 = vsel %vm844, %v5965, 0.0
    %v5992 = vadd.f32 %v5990, %v5991
    %v5993 = vrot.slane %v5992, 4
    %v5994 = vadd.f32 %v5992, %v5993
    %v5995 = vrot.slane %v5994, 2
    %v5996 = vadd.f32 %v5994, %v5995
    %v5997 = vrot.slane %v5996, 1
    %v5998 = vadd.f32 %v5996, %v5997
    %v5999 = vadd.f32 %v5977, %v5998
    %v6000 = vmul.f32 %v5960, %v5960
    %v6001 = vmul.f32 %v5965, %v5965
    %v6002 = vsel %vm844, %v6000, 0.0
    %v6003 = vsel %vm844, %v6001, 0.0
    %v6004 = vadd.f32 %v6002, %v6003
    %v6005 = vrot.slane %v6004, 4
    %v6006 = vadd.f32 %v6004, %v6005
    %v6007 = vrot.slane %v6006, 2
    %v6008 = vadd.f32 %v6006, %v6007
    %v6009 = vrot.slane %v6008, 1
    %v6010 = vadd.f32 %v6008, %v6009
    %v6011 = vadd.f32 %v5989, %v6010
    %v6013 = vsel %vm844, %v5999, 0
    %6015 = vmatprep.subr.mxu0 0.0
    %6016 = vmatpush1.msra.mxu0 %v304
    %6017 = vmatprep.subr.mxu0 0.0
    %6018 = vmatpush1.msra.mxu0 %v305
    %6019 = vmatprep.subr.mxu0 0.0
    %6020 = vmatpush1.msra.mxu0 %v306
    %6021 = vmatprep.subr.mxu0 0.0
    %6022 = vmatpush1.msra.mxu0 %v307
    %6023 = vmatprep.subr.mxu0 0.0
    %6024 = vmatpush1.msra.mxu0 %v308
    %6025 = vmatprep.subr.mxu0 0.0
    %6026 = vmatpush1.msra.mxu0 %v309
    %6027 = vmatprep.subr.mxu0 0.0
    %6028 = vmatpush1.msra.mxu0 %v310
    %6029 = vmatprep.subr.mxu0 0.0
    %6030 = vmatpush1.msra.mxu0 %v311
    %6031 = vmatprep.subr.mxu0 0.0
    %6032 = vmatpush1.msra.mxu0 0.0
    %6033 = vmatprep.subr.mxu0 0.0
    %6034 = vmatpush1.msra.mxu0 0.0
    %6035 = vmatprep.subr.mxu0 0.0
    %6036 = vmatpush1.msra.mxu0 0.0
    %6037 = vmatprep.subr.mxu0 0.0
    %6038 = vmatpush1.msra.mxu0 0.0
    %6039 = vmatprep.subr.mxu0 0.0
    %6040 = vmatpush1.msra.mxu0 0.0
    %6041 = vmatprep.subr.mxu0 0.0
    %6042 = vmatpush1.msra.mxu0 0.0
    %6043 = vmatprep.subr.mxu0 0.0
    %6044 = vmatpush1.msra.mxu0 0.0
    %6045 = vmatprep.subr.mxu0 0.0
    %6046 = vmatpush1.msra.mxu0 0.0
    %6047 = vmatprep.subr.mxu0 0.0
    %6048 = vmatpush1.msra.mxu0 0.0
    %6049 = vmatprep.subr.mxu0 0.0
    %6050 = vmatpush1.msra.mxu0 0.0
    %6051 = vmatprep.subr.mxu0 0.0
    %6052 = vmatpush1.msra.mxu0 0.0
    %6053 = vmatprep.subr.mxu0 0.0
    %6054 = vmatpush1.msra.mxu0 0.0
    %6055 = vmatprep.subr.mxu0 0.0
    %6056 = vmatpush1.msra.mxu0 0.0
    %6057 = vmatprep.subr.mxu0 0.0
    %6058 = vmatpush1.msra.mxu0 0.0
    %6059 = vmatprep.subr.mxu0 0.0
    %6060 = vmatpush1.msra.mxu0 0.0
    %6061 = vmatprep.subr.mxu0 0.0
    %6062 = vmatpush1.msra.mxu0 0.0
    %6063 = vmatprep.subr.mxu0 0.0
    %6064 = vmatpush1.msra.mxu0 0.0
    %6065 = vmatprep.subr.mxu0 0.0
    %6066 = vmatpush1.msra.mxu0 0.0
    %6067 = vmatprep.subr.mxu0 0.0
    %6068 = vmatpush1.msra.mxu0 0.0
    %6069 = vmatprep.subr.mxu0 0.0
    %6070 = vmatpush1.msra.mxu0 0.0
    %6071 = vmatprep.subr.mxu0 0.0
    %6072 = vmatpush1.msra.mxu0 0.0
    %6073 = vmatprep.subr.mxu0 0.0
    %6074 = vmatpush1.msra.mxu0 0.0
    %6075 = vmatprep.subr.mxu0 0.0
    %6076 = vmatpush1.msra.mxu0 0.0
    %6077 = vmatprep.subr.mxu0 0.0
    %6078 = vmatpush1.msra.mxu0 0.0
    %6079 = vmatprep.mubr.f32.mxu0 0.0
    %6080 = vmatmul.mubr.f32.gmra.mrb[0].mxu0 %v6013
    %v6081 = vpop.f32.mrb[0].mxu0
    %v6082 = vadd.f32 0.0, %v6081
    %v6083 = vpop.f32.mrb[0].mxu0
    %6084 = vdwg.mxu0
    %v6086 = vsel %vm844, %v6011, 0
    %6088 = vmatprep.subr.mxu0 0.0
    %6089 = vmatpush1.msra.mxu0 %v304
    %6090 = vmatprep.subr.mxu0 0.0
    %6091 = vmatpush1.msra.mxu0 %v305
    %6092 = vmatprep.subr.mxu0 0.0
    %6093 = vmatpush1.msra.mxu0 %v306
    %6094 = vmatprep.subr.mxu0 0.0
    %6095 = vmatpush1.msra.mxu0 %v307
    %6096 = vmatprep.subr.mxu0 0.0
    %6097 = vmatpush1.msra.mxu0 %v308
    %6098 = vmatprep.subr.mxu0 0.0
    %6099 = vmatpush1.msra.mxu0 %v309
    %6100 = vmatprep.subr.mxu0 0.0
    %6101 = vmatpush1.msra.mxu0 %v310
    %6102 = vmatprep.subr.mxu0 0.0
    %6103 = vmatpush1.msra.mxu0 %v311
    %6104 = vmatprep.subr.mxu0 0.0
    %6105 = vmatpush1.msra.mxu0 0.0
    %6106 = vmatprep.subr.mxu0 0.0
    %6107 = vmatpush1.msra.mxu0 0.0
    %6108 = vmatprep.subr.mxu0 0.0
    %6109 = vmatpush1.msra.mxu0 0.0
    %6110 = vmatprep.subr.mxu0 0.0
    %6111 = vmatpush1.msra.mxu0 0.0
    %6112 = vmatprep.subr.mxu0 0.0
    %6113 = vmatpush1.msra.mxu0 0.0
    %6114 = vmatprep.subr.mxu0 0.0
    %6115 = vmatpush1.msra.mxu0 0.0
    %6116 = vmatprep.subr.mxu0 0.0
    %6117 = vmatpush1.msra.mxu0 0.0
    %6118 = vmatprep.subr.mxu0 0.0
    %6119 = vmatpush1.msra.mxu0 0.0
    %6120 = vmatprep.subr.mxu0 0.0
    %6121 = vmatpush1.msra.mxu0 0.0
    %6122 = vmatprep.subr.mxu0 0.0
    %6123 = vmatpush1.msra.mxu0 0.0
    %6124 = vmatprep.subr.mxu0 0.0
    %6125 = vmatpush1.msra.mxu0 0.0
    %6126 = vmatprep.subr.mxu0 0.0
    %6127 = vmatpush1.msra.mxu0 0.0
    %6128 = vmatprep.subr.mxu0 0.0
    %6129 = vmatpush1.msra.mxu0 0.0
    %6130 = vmatprep.subr.mxu0 0.0
    %6131 = vmatpush1.msra.mxu0 0.0
    %6132 = vmatprep.subr.mxu0 0.0
    %6133 = vmatpush1.msra.mxu0 0.0
    %6134 = vmatprep.subr.mxu0 0.0
    %6135 = vmatpush1.msra.mxu0 0.0
    %6136 = vmatprep.subr.mxu0 0.0
    %6137 = vmatpush1.msra.mxu0 0.0
    %6138 = vmatprep.subr.mxu0 0.0
    %6139 = vmatpush1.msra.mxu0 0.0
    %6140 = vmatprep.subr.mxu0 0.0
    %6141 = vmatpush1.msra.mxu0 0.0
    %6142 = vmatprep.subr.mxu0 0.0
    %6143 = vmatpush1.msra.mxu0 0.0
    %6144 = vmatprep.subr.mxu0 0.0
    %6145 = vmatpush1.msra.mxu0 0.0
    %6146 = vmatprep.subr.mxu0 0.0
    %6147 = vmatpush1.msra.mxu0 0.0
    %6148 = vmatprep.subr.mxu0 0.0
    %6149 = vmatpush1.msra.mxu0 0.0
    %6150 = vmatprep.subr.mxu0 0.0
    %6151 = vmatpush1.msra.mxu0 0.0
    %6152 = vmatprep.mubr.f32.mxu0 0.0
    %6153 = vmatmul.mubr.f32.gmra.mrb[0].mxu0 %v6086
    %v6154 = vpop.f32.mrb[0].mxu0
    %v6155 = vadd.f32 0.0, %v6154
    %v6156 = vpop.f32.mrb[0].mxu0
    %6157 = vdwg.mxu0
    %v6158 = vmul.f32 %v6082, %v6082
    %v6159 = vsub.f32 %v6155, %v6158
    %v6160 = vmax.f32 %v6159, 0.0
    %v6161 = vadd.f32 %v6160, 1e-05
    %v6162 = vrsqrt.pop %v6161
    %v6163 = vstv %s3052
    %v6164 = vmul.f32 %v6162, %v6163
    %v6165 = vlaneseq
    %v6166 = vshrl.u32 %v6165, 7
    %v6167 = vsub.s32 0, %v6166
    %v6168 = vrot.slane %v6082, %v6167
    %v6169 = vsub.f32 %v5879, %v6168
    %v6170 = vsub.f32 %v5884, %v6168
    %v6171 = vsub.f32 %v5960, %v6168
    %v6172 = vsub.f32 %v5965, %v6168
    %v6173 = vlaneseq
    %v6174 = vshrl.u32 %v6173, 7
    %v6175 = vsub.s32 0, %v6174
    %v6176 = vrot.slane %v6164, %v6175
    %v6177 = vmul.f32 %v6169, %v6176
    %v6178 = vmul.f32 %v6170, %v6176
    %v6179 = vmul.f32 %v6171, %v6176
    %v6180 = vmul.f32 %v6172, %v6176
    %v6185 = vrot.slane %v6177, 4
    %v6186 = vrot.slane %v6178, 4
    %v6187 = vsel %vm3021, %v6185, %v6186
    %v6188 = vrot.slane %v6179, 4
    %v6189 = vrot.slane %v6180, 4
    %v6190 = vsel %vm3021, %v6188, %v6189
    %6191 = vrot.lane.b32.xlu0 %v6185, 16
    %v6192 = vpop.permute.xlu0 %6191
    %6193 = vrot.lane.b32.xlu0 %v6187, 16
    %v6194 = vpop.permute.xlu0 %6193
    %6195 = vrot.lane.b32.xlu0 %v6186, 16
    %v6196 = vpop.permute.xlu0 %6195
    %6197 = vrot.lane.b32.xlu0 %v6188, 16
    %v6198 = vpop.permute.xlu0 %6197
    %6199 = vrot.lane.b32.xlu0 %v6190, 16
    %v6200 = vpop.permute.xlu0 %6199
    %6201 = vrot.lane.b32.xlu0 %v6189, 16
    %v6202 = vpop.permute.xlu0 %6201
    %v6209 = vadd.f32 %v3046, %v6192
    %v6210 = vadd.f32 %v3047, %v6194
    %v6211 = vadd.f32 %v3048, %v6196
    %v6212 = vadd.f32 %v3049, %v6198
    %v6213 = vadd.f32 %v3050, %v6200
    %v6214 = vadd.f32 %v3051, %v6202
    %s6215 = sld [smem:[#allocation3 + $0x6]]
    %v6216 = vld [vmem:[#allocation27] sm:$0x1]
    %v6217 = vlaneseq
    %v6218 = vshrl.u32 %v6217, 7
    %v6219 = vsub.s32 0, %v6218
    %v6220 = vrot.slane %v6216, %v6219
    %6222 = vrot.lane.b32.xlu0 %v6220, 8
    %v6223 = vpop.permute.xlu0 %6222
    %v6225 = vmul.f32 %v312, %v6223
    %v6226 = vmul.f32 %v313, %v6223
    %v6227 = vmul.f32 %v314, %v6223
    %v6228 = vmul.f32 %v315, %v6223
    %v6229 = vmul.f32 %v316, %v6223
    %v6230 = vmul.f32 %v317, %v6223
    %v6231 = vld [vmem:[#allocation27 + $0x1] sm:$0x1]
    %v6232 = vlaneseq
    %v6233 = vshrl.u32 %v6232, 7
    %v6234 = vsub.s32 0, %v6233
    %v6235 = vrot.slane %v6231, %v6234
    %6237 = vrot.lane.b32.xlu0 %v6235, 16
    %v6238 = vpop.permute.xlu0 %6237
    %v6240 = vmul.f32 %v312, %v6238
    %v6241 = vmul.f32 %v313, %v6238
    %v6242 = vmul.f32 %v314, %v6238
    %v6243 = vmul.f32 %v315, %v6238
    %v6244 = vmul.f32 %v316, %v6238
    %v6245 = vmul.f32 %v317, %v6238
    %6252 = vrot.lane.b32.xlu0 %v6240, 120
    %v6253 = vpop.permute.xlu0 %6252
    %6254 = vrot.lane.b32.xlu0 %v6241, 120
    %v6255 = vpop.permute.xlu0 %6254
    %6256 = vrot.lane.b32.xlu0 %v6242, 120
    %v6257 = vpop.permute.xlu0 %6256
    %6258 = vrot.lane.b32.xlu0 %v6243, 120
    %v6259 = vpop.permute.xlu0 %6258
    %6260 = vrot.lane.b32.xlu0 %v6244, 120
    %v6261 = vpop.permute.xlu0 %6260
    %6262 = vrot.lane.b32.xlu0 %v6245, 120
    %v6263 = vpop.permute.xlu0 %6262
    %v6270 = vadd.f32 %v6225, %v6253
    %v6271 = vadd.f32 %v6226, %v6255
    %v6272 = vadd.f32 %v6227, %v6257
    %v6273 = vadd.f32 %v6228, %v6259
    %v6274 = vadd.f32 %v6229, %v6261
    %v6275 = vadd.f32 %v6230, %v6263
    %v6276 = vld [vmem:[#allocation27 + $0x2] sm:$0x1]
    %v6277 = vlaneseq
    %v6278 = vshrl.u32 %v6277, 7
    %v6279 = vsub.s32 0, %v6278
    %v6280 = vrot.slane %v6276, %v6279
    %6282 = vrot.lane.b32.xlu0 %v6280, 24
    %v6283 = vpop.permute.xlu0 %6282
    %v6285 = vmul.f32 %v312, %v6283
    %v6286 = vmul.f32 %v313, %v6283
    %v6287 = vmul.f32 %v314, %v6283
    %v6288 = vmul.f32 %v315, %v6283
    %v6289 = vmul.f32 %v316, %v6283
    %v6290 = vmul.f32 %v317, %v6283
    %6297 = vrot.lane.b32.xlu0 %v6285, 112
    %v6298 = vpop.permute.xlu0 %6297
    %6299 = vrot.lane.b32.xlu0 %v6286, 112
    %v6300 = vpop.permute.xlu0 %6299
    %6301 = vrot.lane.b32.xlu0 %v6287, 112
    %v6302 = vpop.permute.xlu0 %6301
    %6303 = vrot.lane.b32.xlu0 %v6288, 112
    %v6304 = vpop.permute.xlu0 %6303
    %6305 = vrot.lane.b32.xlu0 %v6289, 112
    %v6306 = vpop.permute.xlu0 %6305
    %6307 = vrot.lane.b32.xlu0 %v6290, 112
    %v6308 = vpop.permute.xlu0 %6307
    %v6315 = vadd.f32 %v6270, %v6298
    %v6316 = vadd.f32 %v6271, %v6300
    %v6317 = vadd.f32 %v6272, %v6302
    %v6318 = vadd.f32 %v6273, %v6304
    %v6319 = vadd.f32 %v6274, %v6306
    %v6320 = vadd.f32 %v6275, %v6308
    %v6321 = vld [vmem:[#allocation27 + $0x3] sm:$0x1]
    %v6322 = vlaneseq
    %v6323 = vshrl.u32 %v6322, 7
    %v6324 = vsub.s32 0, %v6323
    %v6325 = vrot.slane %v6321, %v6324
    %6327 = vrot.lane.b32.xlu0 %v6325, 8
    %v6328 = vpop.permute.xlu0 %6327
    %v6330 = vmul.f32 %v312, %v6328
    %v6331 = vmul.f32 %v313, %v6328
    %v6332 = vmul.f32 %v314, %v6328
    %v6333 = vmul.f32 %v315, %v6328
    %v6334 = vmul.f32 %v316, %v6328
    %v6335 = vmul.f32 %v317, %v6328
    %v6342 = vrot.slane %v6330, 2
    %v6343 = vrot.slane %v6331, 2
    %v6344 = vsel %vm588, %v6342, %v6343
    %v6345 = vrot.slane %v6332, 2
    %v6346 = vsel %vm588, %v6343, %v6345
    %v6347 = vrot.slane %v6333, 2
    %v6348 = vrot.slane %v6334, 2
    %v6349 = vsel %vm588, %v6347, %v6348
    %v6350 = vrot.slane %v6335, 2
    %v6351 = vsel %vm588, %v6348, %v6350
    %v6358 = vadd.f32 %v6315, %v6344
    %v6359 = vadd.f32 %v6316, %v6346
    %v6360 = vadd.f32 %v6317, %v6345
    %v6361 = vadd.f32 %v6318, %v6349
    %v6362 = vadd.f32 %v6319, %v6351
    %v6363 = vadd.f32 %v6320, %v6350
    %v6364 = vld [vmem:[#allocation27 + $0x4] sm:$0x1]
    %v6365 = vlaneseq
    %v6366 = vshrl.u32 %v6365, 7
    %v6367 = vsub.s32 0, %v6366
    %v6368 = vrot.slane %v6364, %v6367
    %6370 = vrot.lane.b32.xlu0 %v6368, 16
    %v6371 = vpop.permute.xlu0 %6370
    %v6373 = vmul.f32 %v312, %v6371
    %v6374 = vmul.f32 %v313, %v6371
    %v6375 = vmul.f32 %v314, %v6371
    %v6376 = vmul.f32 %v315, %v6371
    %v6377 = vmul.f32 %v316, %v6371
    %v6378 = vmul.f32 %v317, %v6371
    %v6385 = vrot.slane %v6373, 2
    %v6386 = vrot.slane %v6374, 2
    %v6387 = vsel %vm588, %v6385, %v6386
    %v6388 = vrot.slane %v6375, 2
    %v6389 = vsel %vm588, %v6386, %v6388
    %v6390 = vrot.slane %v6376, 2
    %v6391 = vrot.slane %v6377, 2
    %v6392 = vsel %vm588, %v6390, %v6391
    %v6393 = vrot.slane %v6378, 2
    %v6394 = vsel %vm588, %v6391, %v6393
    %6395 = vrot.lane.b32.xlu0 %v6387, 120
    %v6396 = vpop.permute.xlu0 %6395
    %6397 = vrot.lane.b32.xlu0 %v6389, 120
    %v6398 = vpop.permute.xlu0 %6397
    %6399 = vrot.lane.b32.xlu0 %v6388, 120
    %v6400 = vpop.permute.xlu0 %6399
    %6401 = vrot.lane.b32.xlu0 %v6392, 120
    %v6402 = vpop.permute.xlu0 %6401
    %6403 = vrot.lane.b32.xlu0 %v6394, 120
    %v6404 = vpop.permute.xlu0 %6403
    %6405 = vrot.lane.b32.xlu0 %v6393, 120
    %v6406 = vpop.permute.xlu0 %6405
    %v6413 = vadd.f32 %v6358, %v6396
    %v6414 = vadd.f32 %v6359, %v6398
    %v6415 = vadd.f32 %v6360, %v6400
    %v6416 = vadd.f32 %v6361, %v6402
    %v6417 = vadd.f32 %v6362, %v6404
    %v6418 = vadd.f32 %v6363, %v6406
    %v6419 = vld [vmem:[#allocation27 + $0x5] sm:$0x1]
    %v6420 = vlaneseq
    %v6421 = vshrl.u32 %v6420, 7
    %v6422 = vsub.s32 0, %v6421
    %v6423 = vrot.slane %v6419, %v6422
    %6425 = vrot.lane.b32.xlu0 %v6423, 24
    %v6426 = vpop.permute.xlu0 %6425
    %v6428 = vmul.f32 %v312, %v6426
    %v6429 = vmul.f32 %v313, %v6426
    %v6430 = vmul.f32 %v314, %v6426
    %v6431 = vmul.f32 %v315, %v6426
    %v6432 = vmul.f32 %v316, %v6426
    %v6433 = vmul.f32 %v317, %v6426
    %v6440 = vrot.slane %v6428, 2
    %v6441 = vrot.slane %v6429, 2
    %v6442 = vsel %vm588, %v6440, %v6441
    %v6443 = vrot.slane %v6430, 2
    %v6444 = vsel %vm588, %v6441, %v6443
    %v6445 = vrot.slane %v6431, 2
    %v6446 = vrot.slane %v6432, 2
    %v6447 = vsel %vm588, %v6445, %v6446
    %v6448 = vrot.slane %v6433, 2
    %v6449 = vsel %vm588, %v6446, %v6448
    %6450 = vrot.lane.b32.xlu0 %v6442, 112
    %v6451 = vpop.permute.xlu0 %6450
    %6452 = vrot.lane.b32.xlu0 %v6444, 112
    %v6453 = vpop.permute.xlu0 %6452
    %6454 = vrot.lane.b32.xlu0 %v6443, 112
    %v6455 = vpop.permute.xlu0 %6454
    %6456 = vrot.lane.b32.xlu0 %v6447, 112
    %v6457 = vpop.permute.xlu0 %6456
    %6458 = vrot.lane.b32.xlu0 %v6449, 112
    %v6459 = vpop.permute.xlu0 %6458
    %6460 = vrot.lane.b32.xlu0 %v6448, 112
    %v6461 = vpop.permute.xlu0 %6460
    %v6468 = vadd.f32 %v6413, %v6451
    %v6469 = vadd.f32 %v6414, %v6453
    %v6470 = vadd.f32 %v6415, %v6455
    %v6471 = vadd.f32 %v6416, %v6457
    %v6472 = vadd.f32 %v6417, %v6459
    %v6473 = vadd.f32 %v6418, %v6461
    %v6474 = vld [vmem:[#allocation27 + $0x6] sm:$0x1]
    %v6475 = vlaneseq
    %v6476 = vshrl.u32 %v6475, 7
    %v6477 = vsub.s32 0, %v6476
    %v6478 = vrot.slane %v6474, %v6477
    %6480 = vrot.lane.b32.xlu0 %v6478, 8
    %v6481 = vpop.permute.xlu0 %6480
    %v6483 = vmul.f32 %v312, %v6481
    %v6484 = vmul.f32 %v313, %v6481
    %v6485 = vmul.f32 %v314, %v6481
    %v6486 = vmul.f32 %v315, %v6481
    %v6487 = vmul.f32 %v316, %v6481
    %v6488 = vmul.f32 %v317, %v6481
    %v6495 = vrot.slane %v6483, 4
    %v6496 = vrot.slane %v6484, 4
    %v6497 = vsel %vm3021, %v6495, %v6496
    %v6498 = vrot.slane %v6485, 4
    %v6499 = vsel %vm3021, %v6496, %v6498
    %v6500 = vrot.slane %v6486, 4
    %v6501 = vrot.slane %v6487, 4
    %v6502 = vsel %vm3021, %v6500, %v6501
    %v6503 = vrot.slane %v6488, 4
    %v6504 = vsel %vm3021, %v6501, %v6503
    %v6511 = vadd.f32 %v6468, %v6497
    %v6512 = vadd.f32 %v6469, %v6499
    %v6513 = vadd.f32 %v6470, %v6498
    %v6514 = vadd.f32 %v6471, %v6502
    %v6515 = vadd.f32 %v6472, %v6504
    %v6516 = vadd.f32 %v6473, %v6503
    %v6517 = vld [vmem:[#allocation27 + $0x7] sm:$0x1]
    %v6518 = vlaneseq
    %v6519 = vshrl.u32 %v6518, 7
    %v6520 = vsub.s32 0, %v6519
    %v6521 = vrot.slane %v6517, %v6520
    %6523 = vrot.lane.b32.xlu0 %v6521, 16
    %v6524 = vpop.permute.xlu0 %6523
    %v6526 = vmul.f32 %v312, %v6524
    %v6527 = vmul.f32 %v313, %v6524
    %v6528 = vmul.f32 %v314, %v6524
    %v6529 = vmul.f32 %v315, %v6524
    %v6530 = vmul.f32 %v316, %v6524
    %v6531 = vmul.f32 %v317, %v6524
    %v6538 = vrot.slane %v6526, 4
    %v6539 = vrot.slane %v6527, 4
    %v6540 = vsel %vm3021, %v6538, %v6539
    %v6541 = vrot.slane %v6528, 4
    %v6542 = vsel %vm3021, %v6539, %v6541
    %v6543 = vrot.slane %v6529, 4
    %v6544 = vrot.slane %v6530, 4
    %v6545 = vsel %vm3021, %v6543, %v6544
    %v6546 = vrot.slane %v6531, 4
    %v6547 = vsel %vm3021, %v6544, %v6546
    %6548 = vrot.lane.b32.xlu0 %v6540, 120
    %v6549 = vpop.permute.xlu0 %6548
    %6550 = vrot.lane.b32.xlu0 %v6542, 120
    %v6551 = vpop.permute.xlu0 %6550
    %6552 = vrot.lane.b32.xlu0 %v6541, 120
    %v6553 = vpop.permute.xlu0 %6552
    %6554 = vrot.lane.b32.xlu0 %v6545, 120
    %v6555 = vpop.permute.xlu0 %6554
    %6556 = vrot.lane.b32.xlu0 %v6547, 120
    %v6557 = vpop.permute.xlu0 %6556
    %6558 = vrot.lane.b32.xlu0 %v6546, 120
    %v6559 = vpop.permute.xlu0 %6558
    %v6566 = vadd.f32 %v6511, %v6549
    %v6567 = vadd.f32 %v6512, %v6551
    %v6568 = vadd.f32 %v6513, %v6553
    %v6569 = vadd.f32 %v6514, %v6555
    %v6570 = vadd.f32 %v6515, %v6557
    %v6571 = vadd.f32 %v6516, %v6559
    %v6572 = vld [vmem:[#allocation27 + $0x8] sm:$0x1]
    %v6573 = vlaneseq
    %v6574 = vshrl.u32 %v6573, 7
    %v6575 = vsub.s32 0, %v6574
    %v6576 = vrot.slane %v6572, %v6575
    %6578 = vrot.lane.b32.xlu0 %v6576, 24
    %v6579 = vpop.permute.xlu0 %6578
    %v6581 = vmul.f32 %v312, %v6579
    %v6582 = vmul.f32 %v313, %v6579
    %v6583 = vmul.f32 %v314, %v6579
    %v6584 = vmul.f32 %v315, %v6579
    %v6585 = vmul.f32 %v316, %v6579
    %v6586 = vmul.f32 %v317, %v6579
    %v6593 = vrot.slane %v6581, 4
    %v6594 = vrot.slane %v6582, 4
    %v6595 = vsel %vm3021, %v6593, %v6594
    %v6596 = vrot.slane %v6583, 4
    %v6597 = vsel %vm3021, %v6594, %v6596
    %v6598 = vrot.slane %v6584, 4
    %v6599 = vrot.slane %v6585, 4
    %v6600 = vsel %vm3021, %v6598, %v6599
    %v6601 = vrot.slane %v6586, 4
    %v6602 = vsel %vm3021, %v6599, %v6601
    %6603 = vrot.lane.b32.xlu0 %v6595, 112
    %v6604 = vpop.permute.xlu0 %6603
    %6605 = vrot.lane.b32.xlu0 %v6597, 112
    %v6606 = vpop.permute.xlu0 %6605
    %6607 = vrot.lane.b32.xlu0 %v6596, 112
    %v6608 = vpop.permute.xlu0 %6607
    %6609 = vrot.lane.b32.xlu0 %v6600, 112
    %v6610 = vpop.permute.xlu0 %6609
    %6611 = vrot.lane.b32.xlu0 %v6602, 112
    %v6612 = vpop.permute.xlu0 %6611
    %6613 = vrot.lane.b32.xlu0 %v6601, 112
    %v6614 = vpop.permute.xlu0 %6613
    %v6621 = vadd.f32 %v6566, %v6604
    %v6622 = vadd.f32 %v6567, %v6606
    %v6623 = vadd.f32 %v6568, %v6608
    %v6624 = vadd.f32 %v6569, %v6610
    %v6625 = vadd.f32 %v6570, %v6612
    %v6626 = vadd.f32 %v6571, %v6614
    %v6627 = vld [vmem:[#allocation28] sm:$0xff]
    %v6628 = vld [vmem:[#allocation28 + $0x8] sm:$0xff]
    %v6629 = vld [vmem:[#allocation28 + $0x10] sm:$0xff]
    %v6630 = vld [vmem:[#allocation28 + $0x18] sm:$0xff]
    %v6631 = vld [vmem:[#allocation28 + $0x20] sm:$0xff]
    %v6632 = vld [vmem:[#allocation28 + $0x28] sm:$0xff]
    %v6633 = vld [vmem:[#allocation28 + $0x30] sm:$0xff]
    %v6634 = vld [vmem:[#allocation28 + $0x38] sm:$0xff]
    %v6638 = vrot.slane %v6621, 2
    %v6639 = vrot.slane %v6622, 2
    %v6640 = vsel %vm588, %v6638, %v6639
    %v6641 = vrot.slane %v6623, 2
    %v6642 = vsel %vm588, %v6639, %v6641
    %6643 = vrot.lane.b32.xlu0 %v6640, 120
    %v6644 = vpop.permute.xlu0 %6643
    %6645 = vrot.lane.b32.xlu0 %v6642, 120
    %v6646 = vpop.permute.xlu0 %6645
    %v6647 = vsel %vm844, %v6644, 0
    %v6649 = vsel %vm844, %v6646, 0
    %6651 = vmatprep.subr.mxu0 0.0
    %6652 = vmatpush1.msra.mxu0 %v6627
    %6653 = vmatprep.subr.mxu0 0.0
    %6654 = vmatpush1.msra.mxu0 %v6628
    %6655 = vmatprep.subr.mxu0 0.0
    %6656 = vmatpush1.msra.mxu0 %v6629
    %6657 = vmatprep.subr.mxu0 0.0
    %6658 = vmatpush1.msra.mxu0 %v6630
    %6659 = vmatprep.subr.mxu0 0.0
    %6660 = vmatpush1.msra.mxu0 %v6631
    %6661 = vmatprep.subr.mxu0 0.0
    %6662 = vmatpush1.msra.mxu0 %v6632
    %6663 = vmatprep.subr.mxu0 0.0
    %6664 = vmatpush1.msra.mxu0 %v6633
    %6665 = vmatprep.subr.mxu0 0.0
    %6666 = vmatpush1.msra.mxu0 %v6634
    %6667 = vmatprep.subr.mxu0 0.0
    %6668 = vmatpush1.msra.mxu0 0.0
    %6669 = vmatprep.subr.mxu0 0.0
    %6670 = vmatpush1.msra.mxu0 0.0
    %6671 = vmatprep.subr.mxu0 0.0
    %6672 = vmatpush1.msra.mxu0 0.0
    %6673 = vmatprep.subr.mxu0 0.0
    %6674 = vmatpush1.msra.mxu0 0.0
    %6675 = vmatprep.subr.mxu0 0.0
    %6676 = vmatpush1.msra.mxu0 0.0
    %6677 = vmatprep.subr.mxu0 0.0
    %6678 = vmatpush1.msra.mxu0 0.0
    %6679 = vmatprep.subr.mxu0 0.0
    %6680 = vmatpush1.msra.mxu0 0.0
    %6681 = vmatprep.subr.mxu0 0.0
    %6682 = vmatpush1.msra.mxu0 0.0
    %6683 = vmatprep.subr.mxu0 0.0
    %6684 = vmatpush1.msra.mxu0 0.0
    %6685 = vmatprep.subr.mxu0 0.0
    %6686 = vmatpush1.msra.mxu0 0.0
    %6687 = vmatprep.subr.mxu0 0.0
    %6688 = vmatpush1.msra.mxu0 0.0
    %6689 = vmatprep.subr.mxu0 0.0
    %6690 = vmatpush1.msra.mxu0 0.0
    %6691 = vmatprep.subr.mxu0 0.0
    %6692 = vmatpush1.msra.mxu0 0.0
    %6693 = vmatprep.subr.mxu0 0.0
    %6694 = vmatpush1.msra.mxu0 0.0
    %6695 = vmatprep.subr.mxu0 0.0
    %6696 = vmatpush1.msra.mxu0 0.0
    %6697 = vmatprep.subr.mxu0 0.0
    %6698 = vmatpush1.msra.mxu0 0.0
    %6699 = vmatprep.subr.mxu0 0.0
    %6700 = vmatpush1.msra.mxu0 0.0
    %6701 = vmatprep.subr.mxu0 0.0
    %6702 = vmatpush1.msra.mxu0 0.0
    %6703 = vmatprep.subr.mxu0 0.0
    %6704 = vmatpush1.msra.mxu0 0.0
    %6705 = vmatprep.subr.mxu0 0.0
    %6706 = vmatpush1.msra.mxu0 0.0
    %6707 = vmatprep.subr.mxu0 0.0
    %6708 = vmatpush1.msra.mxu0 0.0
    %6709 = vmatprep.subr.mxu0 0.0
    %6710 = vmatpush1.msra.mxu0 0.0
    %6711 = vmatprep.subr.mxu0 0.0
    %6712 = vmatpush1.msra.mxu0 0.0
    %6713 = vmatprep.subr.mxu0 0.0
    %6714 = vmatpush1.msra.mxu0 0.0
    %6715 = vmatprep.mubr.f32.mxu0 0.0
    %6716 = vmatmul.mubr.f32.gmra.mrb[0].mxu0 %v6647
    %v6717 = vpop.f32.mrb[0].mxu0
    %v6718 = vadd.f32 0.0, %v6717
    %v6719 = vpop.f32.mrb[0].mxu0
    %6720 = vmatprep.mubr.f32.mxu0 0.0
    %6721 = vmatmul.mubr.f32.gmra.mrb[0].mxu0 %v6649
    %v6722 = vpop.f32.mrb[0].mxu0
    %v6723 = vadd.f32 0.0, %v6722
    %v6724 = vpop.f32.mrb[0].mxu0
    %6725 = vdwg.mxu0
    %v6729 = vrot.slane %v6624, 2
    %v6730 = vrot.slane %v6625, 2
    %v6731 = vsel %vm588, %v6729, %v6730
    %v6732 = vrot.slane %v6626, 2
    %v6733 = vsel %vm588, %v6730, %v6732
    %6734 = vrot.lane.b32.xlu0 %v6731, 120
    %v6735 = vpop.permute.xlu0 %6734
    %6736 = vrot.lane.b32.xlu0 %v6733, 120
    %v6737 = vpop.permute.xlu0 %6736
    %v6738 = vsel %vm844, %v6735, 0
    %v6740 = vsel %vm844, %v6737, 0
    %6742 = vmatprep.subr.mxu0 0.0
    %6743 = vmatpush1.msra.mxu0 %v6627
    %6744 = vmatprep.subr.mxu0 0.0
    %6745 = vmatpush1.msra.mxu0 %v6628
    %6746 = vmatprep.subr.mxu0 0.0
    %6747 = vmatpush1.msra.mxu0 %v6629
    %6748 = vmatprep.subr.mxu0 0.0
    %6749 = vmatpush1.msra.mxu0 %v6630
    %6750 = vmatprep.subr.mxu0 0.0
    %6751 = vmatpush1.msra.mxu0 %v6631
    %6752 = vmatprep.subr.mxu0 0.0
    %6753 = vmatpush1.msra.mxu0 %v6632
    %6754 = vmatprep.subr.mxu0 0.0
    %6755 = vmatpush1.msra.mxu0 %v6633
    %6756 = vmatprep.subr.mxu0 0.0
    %6757 = vmatpush1.msra.mxu0 %v6634
    %6758 = vmatprep.subr.mxu0 0.0
    %6759 = vmatpush1.msra.mxu0 0.0
    %6760 = vmatprep.subr.mxu0 0.0
    %6761 = vmatpush1.msra.mxu0 0.0
    %6762 = vmatprep.subr.mxu0 0.0
    %6763 = vmatpush1.msra.mxu0 0.0
    %6764 = vmatprep.subr.mxu0 0.0
    %6765 = vmatpush1.msra.mxu0 0.0
    %6766 = vmatprep.subr.mxu0 0.0
    %6767 = vmatpush1.msra.mxu0 0.0
    %6768 = vmatprep.subr.mxu0 0.0
    %6769 = vmatpush1.msra.mxu0 0.0
    %6770 = vmatprep.subr.mxu0 0.0
    %6771 = vmatpush1.msra.mxu0 0.0
    %6772 = vmatprep.subr.mxu0 0.0
    %6773 = vmatpush1.msra.mxu0 0.0
    %6774 = vmatprep.subr.mxu0 0.0
    %6775 = vmatpush1.msra.mxu0 0.0
    %6776 = vmatprep.subr.mxu0 0.0
    %6777 = vmatpush1.msra.mxu0 0.0
    %6778 = vmatprep.subr.mxu0 0.0
    %6779 = vmatpush1.msra.mxu0 0.0
    %6780 = vmatprep.subr.mxu0 0.0
    %6781 = vmatpush1.msra.mxu0 0.0
    %6782 = vmatprep.subr.mxu0 0.0
    %6783 = vmatpush1.msra.mxu0 0.0
    %6784 = vmatprep.subr.mxu0 0.0
    %6785 = vmatpush1.msra.mxu0 0.0
    %6786 = vmatprep.subr.mxu0 0.0
    %6787 = vmatpush1.msra.mxu0 0.0
    %6788 = vmatprep.subr.mxu0 0.0
    %6789 = vmatpush1.msra.mxu0 0.0
    %6790 = vmatprep.subr.mxu0 0.0
    %6791 = vmatpush1.msra.mxu0 0.0
    %6792 = vmatprep.subr.mxu0 0.0
    %6793 = vmatpush1.msra.mxu0 0.0
    %6794 = vmatprep.subr.mxu0 0.0
    %6795 = vmatpush1.msra.mxu0 0.0
    %6796 = vmatprep.subr.mxu0 0.0
    %6797 = vmatpush1.msra.mxu0 0.0
    %6798 = vmatprep.subr.mxu0 0.0
    %6799 = vmatpush1.msra.mxu0 0.0
    %6800 = vmatprep.subr.mxu0 0.0
    %6801 = vmatpush1.msra.mxu0 0.0
    %6802 = vmatprep.subr.mxu0 0.0
    %6803 = vmatpush1.msra.mxu0 0.0
    %6804 = vmatprep.subr.mxu0 0.0
    %6805 = vmatpush1.msra.mxu0 0.0
    %6806 = vmatprep.mubr.f32.mxu0 0.0
    %6807 = vmatmul.mubr.f32.gmra.mrb[0].mxu0 %v6738
    %v6808 = vpop.f32.mrb[0].mxu0
    %v6809 = vadd.f32 0.0, %v6808
    %v6810 = vpop.f32.mrb[0].mxu0
    %6811 = vmatprep.mubr.f32.mxu0 0.0
    %6812 = vmatmul.mubr.f32.gmra.mrb[0].mxu0 %v6740
    %v6813 = vpop.f32.mrb[0].mxu0
    %v6814 = vadd.f32 0.0, %v6813
    %v6815 = vpop.f32.mrb[0].mxu0
    %6816 = vdwg.mxu0
    %v6817 = vsel %vm844, %v6718, 0.0
    %v6818 = vsel %vm844, %v6723, 0.0
    %v6819 = vadd.f32 %v6817, %v6818
    %v6820 = vrot.slane %v6819, 4
    %v6821 = vadd.f32 %v6819, %v6820
    %v6822 = vrot.slane %v6821, 2
    %v6823 = vadd.f32 %v6821, %v6822
    %v6824 = vrot.slane %v6823, 1
    %v6825 = vadd.f32 %v6823, %v6824
    %v6826 = vadd.f32 %v6825, 0.0
    %v6827 = vmul.f32 %v6718, %v6718
    %v6828 = vmul.f32 %v6723, %v6723
    %v6829 = vsel %vm844, %v6827, 0.0
    %v6830 = vsel %vm844, %v6828, 0.0
    %v6831 = vadd.f32 %v6829, %v6830
    %v6832 = vrot.slane %v6831, 4
    %v6833 = vadd.f32 %v6831, %v6832
    %v6834 = vrot.slane %v6833, 2
    %v6835 = vadd.f32 %v6833, %v6834
    %v6836 = vrot.slane %v6835, 1
    %v6837 = vadd.f32 %v6835, %v6836
    %v6838 = vadd.f32 %v6837, 0.0
    %v6839 = vsel %vm844, %v6809, 0.0
    %v6840 = vsel %vm844, %v6814, 0.0
    %v6841 = vadd.f32 %v6839, %v6840
    %v6842 = vrot.slane %v6841, 4
    %v6843 = vadd.f32 %v6841, %v6842
    %v6844 = vrot.slane %v6843, 2
    %v6845 = vadd.f32 %v6843, %v6844
    %v6846 = vrot.slane %v6845, 1
    %v6847 = vadd.f32 %v6845, %v6846
    %v6848 = vadd.f32 %v6826, %v6847
    %v6849 = vmul.f32 %v6809, %v6809
    %v6850 = vmul.f32 %v6814, %v6814
    %v6851 = vsel %vm844, %v6849, 0.0
    %v6852 = vsel %vm844, %v6850, 0.0
    %v6853 = vadd.f32 %v6851, %v6852
    %v6854 = vrot.slane %v6853, 4
    %v6855 = vadd.f32 %v6853, %v6854
    %v6856 = vrot.slane %v6855, 2
    %v6857 = vadd.f32 %v6855, %v6856
    %v6858 = vrot.slane %v6857, 1
    %v6859 = vadd.f32 %v6857, %v6858
    %v6860 = vadd.f32 %v6838, %v6859
    %v6862 = vsel %vm844, %v6848, 0
    %6864 = vmatprep.subr.mxu0 0.0
    %6865 = vmatpush1.msra.mxu0 %v304
    %6866 = vmatprep.subr.mxu0 0.0
    %6867 = vmatpush1.msra.mxu0 %v305
    %6868 = vmatprep.subr.mxu0 0.0
    %6869 = vmatpush1.msra.mxu0 %v306
    %6870 = vmatprep.subr.mxu0 0.0
    %6871 = vmatpush1.msra.mxu0 %v307
    %6872 = vmatprep.subr.mxu0 0.0
    %6873 = vmatpush1.msra.mxu0 %v308
    %6874 = vmatprep.subr.mxu0 0.0
    %6875 = vmatpush1.msra.mxu0 %v309
    %6876 = vmatprep.subr.mxu0 0.0
    %6877 = vmatpush1.msra.mxu0 %v310
    %6878 = vmatprep.subr.mxu0 0.0
    %6879 = vmatpush1.msra.mxu0 %v311
    %6880 = vmatprep.subr.mxu0 0.0
    %6881 = vmatpush1.msra.mxu0 0.0
    %6882 = vmatprep.subr.mxu0 0.0
    %6883 = vmatpush1.msra.mxu0 0.0
    %6884 = vmatprep.subr.mxu0 0.0
    %6885 = vmatpush1.msra.mxu0 0.0
    %6886 = vmatprep.subr.mxu0 0.0
    %6887 = vmatpush1.msra.mxu0 0.0
    %6888 = vmatprep.subr.mxu0 0.0
    %6889 = vmatpush1.msra.mxu0 0.0
    %6890 = vmatprep.subr.mxu0 0.0
    %6891 = vmatpush1.msra.mxu0 0.0
    %6892 = vmatprep.subr.mxu0 0.0
    %6893 = vmatpush1.msra.mxu0 0.0
    %6894 = vmatprep.subr.mxu0 0.0
    %6895 = vmatpush1.msra.mxu0 0.0
    %6896 = vmatprep.subr.mxu0 0.0
    %6897 = vmatpush1.msra.mxu0 0.0
    %6898 = vmatprep.subr.mxu0 0.0
    %6899 = vmatpush1.msra.mxu0 0.0
    %6900 = vmatprep.subr.mxu0 0.0
    %6901 = vmatpush1.msra.mxu0 0.0
    %6902 = vmatprep.subr.mxu0 0.0
    %6903 = vmatpush1.msra.mxu0 0.0
    %6904 = vmatprep.subr.mxu0 0.0
    %6905 = vmatpush1.msra.mxu0 0.0
    %6906 = vmatprep.subr.mxu0 0.0
    %6907 = vmatpush1.msra.mxu0 0.0
    %6908 = vmatprep.subr.mxu0 0.0
    %6909 = vmatpush1.msra.mxu0 0.0
    %6910 = vmatprep.subr.mxu0 0.0
    %6911 = vmatpush1.msra.mxu0 0.0
    %6912 = vmatprep.subr.mxu0 0.0
    %6913 = vmatpush1.msra.mxu0 0.0
    %6914 = vmatprep.subr.mxu0 0.0
    %6915 = vmatpush1.msra.mxu0 0.0
    %6916 = vmatprep.subr.mxu0 0.0
    %6917 = vmatpush1.msra.mxu0 0.0
    %6918 = vmatprep.subr.mxu0 0.0
    %6919 = vmatpush1.msra.mxu0 0.0
    %6920 = vmatprep.subr.mxu0 0.0
    %6921 = vmatpush1.msra.mxu0 0.0
    %6922 = vmatprep.subr.mxu0 0.0
    %6923 = vmatpush1.msra.mxu0 0.0
    %6924 = vmatprep.subr.mxu0 0.0
    %6925 = vmatpush1.msra.mxu0 0.0
    %6926 = vmatprep.subr.mxu0 0.0
    %6927 = vmatpush1.msra.mxu0 0.0
    %6928 = vmatprep.mubr.f32.mxu0 0.0
    %6929 = vmatmul.mubr.f32.gmra.mrb[0].mxu0 %v6862
    %v6930 = vpop.f32.mrb[0].mxu0
    %v6931 = vadd.f32 0.0, %v6930
    %v6932 = vpop.f32.mrb[0].mxu0
    %6933 = vdwg.mxu0
    %v6935 = vsel %vm844, %v6860, 0
    %6937 = vmatprep.subr.mxu0 0.0
    %6938 = vmatpush1.msra.mxu0 %v304
    %6939 = vmatprep.subr.mxu0 0.0
    %6940 = vmatpush1.msra.mxu0 %v305
    %6941 = vmatprep.subr.mxu0 0.0
    %6942 = vmatpush1.msra.mxu0 %v306
    %6943 = vmatprep.subr.mxu0 0.0
    %6944 = vmatpush1.msra.mxu0 %v307
    %6945 = vmatprep.subr.mxu0 0.0
    %6946 = vmatpush1.msra.mxu0 %v308
    %6947 = vmatprep.subr.mxu0 0.0
    %6948 = vmatpush1.msra.mxu0 %v309
    %6949 = vmatprep.subr.mxu0 0.0
    %6950 = vmatpush1.msra.mxu0 %v310
    %6951 = vmatprep.subr.mxu0 0.0
    %6952 = vmatpush1.msra.mxu0 %v311
    %6953 = vmatprep.subr.mxu0 0.0
    %6954 = vmatpush1.msra.mxu0 0.0
    %6955 = vmatprep.subr.mxu0 0.0
    %6956 = vmatpush1.msra.mxu0 0.0
    %6957 = vmatprep.subr.mxu0 0.0
    %6958 = vmatpush1.msra.mxu0 0.0
    %6959 = vmatprep.subr.mxu0 0.0
    %6960 = vmatpush1.msra.mxu0 0.0
    %6961 = vmatprep.subr.mxu0 0.0
    %6962 = vmatpush1.msra.mxu0 0.0
    %6963 = vmatprep.subr.mxu0 0.0
    %6964 = vmatpush1.msra.mxu0 0.0
    %6965 = vmatprep.subr.mxu0 0.0
    %6966 = vmatpush1.msra.mxu0 0.0
    %6967 = vmatprep.subr.mxu0 0.0
    %6968 = vmatpush1.msra.mxu0 0.0
    %6969 = vmatprep.subr.mxu0 0.0
    %6970 = vmatpush1.msra.mxu0 0.0
    %6971 = vmatprep.subr.mxu0 0.0
    %6972 = vmatpush1.msra.mxu0 0.0
    %6973 = vmatprep.subr.mxu0 0.0
    %6974 = vmatpush1.msra.mxu0 0.0
    %6975 = vmatprep.subr.mxu0 0.0
    %6976 = vmatpush1.msra.mxu0 0.0
    %6977 = vmatprep.subr.mxu0 0.0
    %6978 = vmatpush1.msra.mxu0 0.0
    %6979 = vmatprep.subr.mxu0 0.0
    %6980 = vmatpush1.msra.mxu0 0.0
    %6981 = vmatprep.subr.mxu0 0.0
    %6982 = vmatpush1.msra.mxu0 0.0
    %6983 = vmatprep.subr.mxu0 0.0
    %6984 = vmatpush1.msra.mxu0 0.0
    %6985 = vmatprep.subr.mxu0 0.0
    %6986 = vmatpush1.msra.mxu0 0.0
    %6987 = vmatprep.subr.mxu0 0.0
    %6988 = vmatpush1.msra.mxu0 0.0
    %6989 = vmatprep.subr.mxu0 0.0
    %6990 = vmatpush1.msra.mxu0 0.0
    %6991 = vmatprep.subr.mxu0 0.0
    %6992 = vmatpush1.msra.mxu0 0.0
    %6993 = vmatprep.subr.mxu0 0.0
    %6994 = vmatpush1.msra.mxu0 0.0
    %6995 = vmatprep.subr.mxu0 0.0
    %6996 = vmatpush1.msra.mxu0 0.0
    %6997 = vmatprep.subr.mxu0 0.0
    %6998 = vmatpush1.msra.mxu0 0.0
    %6999 = vmatprep.subr.mxu0 0.0
    %7000 = vmatpush1.msra.mxu0 0.0
    %7001 = vmatprep.mubr.f32.mxu0 0.0
    %7002 = vmatmul.mubr.f32.gmra.mrb[0].mxu0 %v6935
    %v7003 = vpop.f32.mrb[0].mxu0
    %v7004 = vadd.f32 0.0, %v7003
    %v7005 = vpop.f32.mrb[0].mxu0
    %7006 = vdwg.mxu0
    %v7007 = vmul.f32 %v6931, %v6931
    %v7008 = vsub.f32 %v7004, %v7007
    %v7009 = vmax.f32 %v7008, 0.0
    %v7010 = vadd.f32 %v7009, 1e-05
    %v7011 = vrsqrt.pop %v7010
    %v7012 = vstv %s6215
    %v7013 = vmul.f32 %v7011, %v7012
    %v7014 = vlaneseq
    %v7015 = vshrl.u32 %v7014, 7
    %v7016 = vsub.s32 0, %v7015
    %v7017 = vrot.slane %v6931, %v7016
    %v7018 = vsub.f32 %v6718, %v7017
    %v7019 = vsub.f32 %v6723, %v7017
    %v7020 = vsub.f32 %v6809, %v7017
    %v7021 = vsub.f32 %v6814, %v7017
    %v7022 = vlaneseq
    %v7023 = vshrl.u32 %v7022, 7
    %v7024 = vsub.s32 0, %v7023
    %v7025 = vrot.slane %v7013, %v7024
    %v7026 = vmul.f32 %v7018, %v7025
    %v7027 = vmul.f32 %v7019, %v7025
    %v7028 = vmul.f32 %v7020, %v7025
    %v7029 = vmul.f32 %v7021, %v7025
    %v7034 = vrot.slane %v7026, 4
    %v7035 = vrot.slane %v7027, 4
    %v7036 = vsel %vm3021, %v7034, %v7035
    %v7037 = vrot.slane %v7028, 4
    %v7038 = vrot.slane %v7029, 4
    %v7039 = vsel %vm3021, %v7037, %v7038
    %7040 = vrot.lane.b32.xlu0 %v7034, 16
    %v7041 = vpop.permute.xlu0 %7040
    %7042 = vrot.lane.b32.xlu0 %v7036, 16
    %v7043 = vpop.permute.xlu0 %7042
    %7044 = vrot.lane.b32.xlu0 %v7035, 16
    %v7045 = vpop.permute.xlu0 %7044
    %7046 = vrot.lane.b32.xlu0 %v7037, 16
    %v7047 = vpop.permute.xlu0 %7046
    %7048 = vrot.lane.b32.xlu0 %v7039, 16
    %v7049 = vpop.permute.xlu0 %7048
    %7050 = vrot.lane.b32.xlu0 %v7038, 16
    %v7051 = vpop.permute.xlu0 %7050
    %v7058 = vadd.f32 %v6209, %v7041
    %v7059 = vadd.f32 %v6210, %v7043
    %v7060 = vadd.f32 %v6211, %v7045
    %v7061 = vadd.f32 %v6212, %v7047
    %v7062 = vadd.f32 %v6213, %v7049
    %v7063 = vadd.f32 %v6214, %v7051
    %s7064 = sld [smem:[#allocation3 + $0x7]]
    %v7065 = vld [vmem:[#allocation30] sm:$0x1]
    %v7066 = vlaneseq
    %v7067 = vshrl.u32 %v7066, 7
    %v7068 = vsub.s32 0, %v7067
    %v7069 = vrot.slane %v7065, %v7068
    %v7070 = vmul.f32 %v312, %v7069
    %v7071 = vmul.f32 %v313, %v7069
    %v7072 = vmul.f32 %v315, %v7069
    %v7073 = vmul.f32 %v316, %v7069
    %v7074 = vld [vmem:[#allocation30 + $0x1] sm:$0x1]
    %v7075 = vlaneseq
    %v7076 = vshrl.u32 %v7075, 7
    %v7077 = vsub.s32 0, %v7076
    %v7078 = vrot.slane %v7074, %v7077
    %7080 = vrot.lane.b32.xlu0 %v7078, 8
    %v7081 = vpop.permute.xlu0 %7080
    %v7083 = vmul.f32 %v312, %v7081
    %v7084 = vmul.f32 %v313, %v7081
    %v7085 = vmul.f32 %v315, %v7081
    %v7086 = vmul.f32 %v316, %v7081
    %7091 = vrot.lane.b32.xlu0 %v7083, 120
    %v7092 = vpop.permute.xlu0 %7091
    %7093 = vrot.lane.b32.xlu0 %v7084, 120
    %v7094 = vpop.permute.xlu0 %7093
    %7095 = vrot.lane.b32.xlu0 %v7085, 120
    %v7096 = vpop.permute.xlu0 %7095
    %7097 = vrot.lane.b32.xlu0 %v7086, 120
    %v7098 = vpop.permute.xlu0 %7097
    %v7103 = vadd.f32 %v7070, %v7092
    %v7104 = vadd.f32 %v7071, %v7094
    %v7105 = vadd.f32 %v7072, %v7096
    %v7106 = vadd.f32 %v7073, %v7098
    %v7107 = vld [vmem:[#allocation30 + $0x2] sm:$0x1]
    %v7108 = vlaneseq
    %v7109 = vshrl.u32 %v7108, 7
    %v7110 = vsub.s32 0, %v7109
    %v7111 = vrot.slane %v7107, %v7110
    %7113 = vrot.lane.b32.xlu0 %v7111, 16
    %v7114 = vpop.permute.xlu0 %7113
    %v7116 = vmul.f32 %v312, %v7114
    %v7117 = vmul.f32 %v313, %v7114
    %v7118 = vmul.f32 %v315, %v7114
    %v7119 = vmul.f32 %v316, %v7114
    %7124 = vrot.lane.b32.xlu0 %v7116, 112
    %v7125 = vpop.permute.xlu0 %7124
    %7126 = vrot.lane.b32.xlu0 %v7117, 112
    %v7127 = vpop.permute.xlu0 %7126
    %7128 = vrot.lane.b32.xlu0 %v7118, 112
    %v7129 = vpop.permute.xlu0 %7128
    %7130 = vrot.lane.b32.xlu0 %v7119, 112
    %v7131 = vpop.permute.xlu0 %7130
    %v7136 = vadd.f32 %v7103, %v7125
    %v7137 = vadd.f32 %v7104, %v7127
    %v7138 = vadd.f32 %v7105, %v7129
    %v7139 = vadd.f32 %v7106, %v7131
    %v7140 = vld [vmem:[#allocation30 + $0x3] sm:$0x1]
    %v7141 = vlaneseq
    %v7142 = vshrl.u32 %v7141, 7
    %v7143 = vsub.s32 0, %v7142
    %v7144 = vrot.slane %v7140, %v7143
    %7146 = vrot.lane.b32.xlu0 %v7144, 24
    %v7147 = vpop.permute.xlu0 %7146
    %v7149 = vmul.f32 %v312, %v7147
    %v7150 = vmul.f32 %v313, %v7147
    %v7151 = vmul.f32 %v315, %v7147
    %v7152 = vmul.f32 %v316, %v7147
    %7157 = vrot.lane.b32.xlu0 %v7149, 104
    %v7158 = vpop.permute.xlu0 %7157
    %7159 = vrot.lane.b32.xlu0 %v7150, 104
    %v7160 = vpop.permute.xlu0 %7159
    %7161 = vrot.lane.b32.xlu0 %v7151, 104
    %v7162 = vpop.permute.xlu0 %7161
    %7163 = vrot.lane.b32.xlu0 %v7152, 104
    %v7164 = vpop.permute.xlu0 %7163
    %v7169 = vadd.f32 %v7136, %v7158
    %v7170 = vadd.f32 %v7137, %v7160
    %v7171 = vadd.f32 %v7138, %v7162
    %v7172 = vadd.f32 %v7139, %v7164
    %v7173 = vld [vmem:[#allocation30 + $0x4] sm:$0x1]
    %v7174 = vlaneseq
    %v7175 = vshrl.u32 %v7174, 7
    %v7176 = vsub.s32 0, %v7175
    %v7177 = vrot.slane %v7173, %v7176
    %7179 = vrot.lane.b32.xlu0 %v7177, 32
    %v7180 = vpop.permute.xlu0 %7179
    %v7182 = vmul.f32 %v312, %v7180
    %v7183 = vmul.f32 %v313, %v7180
    %v7184 = vmul.f32 %v315, %v7180
    %v7185 = vmul.f32 %v316, %v7180
    %7190 = vrot.lane.b32.xlu0 %v7182, 96
    %v7191 = vpop.permute.xlu0 %7190
    %7192 = vrot.lane.b32.xlu0 %v7183, 96
    %v7193 = vpop.permute.xlu0 %7192
    %7194 = vrot.lane.b32.xlu0 %v7184, 96
    %v7195 = vpop.permute.xlu0 %7194
    %7196 = vrot.lane.b32.xlu0 %v7185, 96
    %v7197 = vpop.permute.xlu0 %7196
    %v7202 = vadd.f32 %v7169, %v7191
    %v7203 = vadd.f32 %v7170, %v7193
    %v7204 = vadd.f32 %v7171, %v7195
    %v7205 = vadd.f32 %v7172, %v7197
    %v7206 = vld [vmem:[#allocation30 + $0x5] sm:$0x1]
    %v7207 = vlaneseq
    %v7208 = vshrl.u32 %v7207, 7
    %v7209 = vsub.s32 0, %v7208
    %v7210 = vrot.slane %v7206, %v7209
    %v7211 = vmul.f32 %v312, %v7210
    %v7212 = vmul.f32 %v313, %v7210
    %v7213 = vmul.f32 %v314, %v7210
    %v7214 = vmul.f32 %v315, %v7210
    %v7215 = vmul.f32 %v316, %v7210
    %v7216 = vmul.f32 %v317, %v7210
    %v7223 = vrot.slane %v7211, 2
    %v7224 = vrot.slane %v7212, 2
    %v7225 = vsel %vm588, %v7223, %v7224
    %v7226 = vrot.slane %v7213, 2
    %v7227 = vsel %vm588, %v7224, %v7226
    %v7228 = vrot.slane %v7214, 2
    %v7229 = vrot.slane %v7215, 2
    %v7230 = vsel %vm588, %v7228, %v7229
    %v7231 = vrot.slane %v7216, 2
    %v7232 = vsel %vm588, %v7229, %v7231
    %v7237 = vadd.f32 %v7202, %v7225
    %v7238 = vadd.f32 %v7203, %v7227
    %v7239 = vadd.f32 %v7204, %v7230
    %v7240 = vadd.f32 %v7205, %v7232
    %v7241 = vld [vmem:[#allocation30 + $0x6] sm:$0x1]
    %v7242 = vlaneseq
    %v7243 = vshrl.u32 %v7242, 7
    %v7244 = vsub.s32 0, %v7243
    %v7245 = vrot.slane %v7241, %v7244
    %7247 = vrot.lane.b32.xlu0 %v7245, 8
    %v7248 = vpop.permute.xlu0 %7247
    %v7250 = vmul.f32 %v312, %v7248
    %v7251 = vmul.f32 %v313, %v7248
    %v7252 = vmul.f32 %v314, %v7248
    %v7253 = vmul.f32 %v315, %v7248
    %v7254 = vmul.f32 %v316, %v7248
    %v7255 = vmul.f32 %v317, %v7248
    %v7262 = vrot.slane %v7250, 2
    %v7263 = vrot.slane %v7251, 2
    %v7264 = vsel %vm588, %v7262, %v7263
    %v7265 = vrot.slane %v7252, 2
    %v7266 = vsel %vm588, %v7263, %v7265
    %v7267 = vrot.slane %v7253, 2
    %v7268 = vrot.slane %v7254, 2
    %v7269 = vsel %vm588, %v7267, %v7268
    %v7270 = vrot.slane %v7255, 2
    %v7271 = vsel %vm588, %v7268, %v7270
    %7272 = vrot.lane.b32.xlu0 %v7264, 120
    %v7273 = vpop.permute.xlu0 %7272
    %7274 = vrot.lane.b32.xlu0 %v7266, 120
    %v7275 = vpop.permute.xlu0 %7274
    %7276 = vrot.lane.b32.xlu0 %v7269, 120
    %v7277 = vpop.permute.xlu0 %7276
    %7278 = vrot.lane.b32.xlu0 %v7271, 120
    %v7279 = vpop.permute.xlu0 %7278
    %v7284 = vadd.f32 %v7237, %v7273
    %v7285 = vadd.f32 %v7238, %v7275
    %v7286 = vadd.f32 %v7239, %v7277
    %v7287 = vadd.f32 %v7240, %v7279
    %v7288 = vld [vmem:[#allocation30 + $0x7] sm:$0x1]
    %v7289 = vlaneseq
    %v7290 = vshrl.u32 %v7289, 7
    %v7291 = vsub.s32 0, %v7290
    %v7292 = vrot.slane %v7288, %v7291
    %7294 = vrot.lane.b32.xlu0 %v7292, 16
    %v7295 = vpop.permute.xlu0 %7294
    %v7297 = vmul.f32 %v312, %v7295
    %v7298 = vmul.f32 %v313, %v7295
    %v7299 = vmul.f32 %v314, %v7295
    %v7300 = vmul.f32 %v315, %v7295
    %v7301 = vmul.f32 %v316, %v7295
    %v7302 = vmul.f32 %v317, %v7295
    %v7309 = vrot.slane %v7297, 2
    %v7310 = vrot.slane %v7298, 2
    %v7311 = vsel %vm588, %v7309, %v7310
    %v7312 = vrot.slane %v7299, 2
    %v7313 = vsel %vm588, %v7310, %v7312
    %v7314 = vrot.slane %v7300, 2
    %v7315 = vrot.slane %v7301, 2
    %v7316 = vsel %vm588, %v7314, %v7315
    %v7317 = vrot.slane %v7302, 2
    %v7318 = vsel %vm588, %v7315, %v7317
    %7319 = vrot.lane.b32.xlu0 %v7311, 112
    %v7320 = vpop.permute.xlu0 %7319
    %7321 = vrot.lane.b32.xlu0 %v7313, 112
    %v7322 = vpop.permute.xlu0 %7321
    %7323 = vrot.lane.b32.xlu0 %v7316, 112
    %v7324 = vpop.permute.xlu0 %7323
    %7325 = vrot.lane.b32.xlu0 %v7318, 112
    %v7326 = vpop.permute.xlu0 %7325
    %v7331 = vadd.f32 %v7284, %v7320
    %v7332 = vadd.f32 %v7285, %v7322
    %v7333 = vadd.f32 %v7286, %v7324
    %v7334 = vadd.f32 %v7287, %v7326
    %v7335 = vld [vmem:[#allocation30 + $0x8] sm:$0x1]
    %v7336 = vlaneseq
    %v7337 = vshrl.u32 %v7336, 7
    %v7338 = vsub.s32 0, %v7337
    %v7339 = vrot.slane %v7335, %v7338
    %7341 = vrot.lane.b32.xlu0 %v7339, 24
    %v7342 = vpop.permute.xlu0 %7341
    %v7344 = vmul.f32 %v312, %v7342
    %v7345 = vmul.f32 %v313, %v7342
    %v7346 = vmul.f32 %v314, %v7342
    %v7347 = vmul.f32 %v315, %v7342
    %v7348 = vmul.f32 %v316, %v7342
    %v7349 = vmul.f32 %v317, %v7342
    %v7356 = vrot.slane %v7344, 2
    %v7357 = vrot.slane %v7345, 2
    %v7358 = vsel %vm588, %v7356, %v7357
    %v7359 = vrot.slane %v7346, 2
    %v7360 = vsel %vm588, %v7357, %v7359
    %v7361 = vrot.slane %v7347, 2
    %v7362 = vrot.slane %v7348, 2
    %v7363 = vsel %vm588, %v7361, %v7362
    %v7364 = vrot.slane %v7349, 2
    %v7365 = vsel %vm588, %v7362, %v7364
    %7366 = vrot.lane.b32.xlu0 %v7358, 104
    %v7367 = vpop.permute.xlu0 %7366
    %7368 = vrot.lane.b32.xlu0 %v7360, 104
    %v7369 = vpop.permute.xlu0 %7368
    %7370 = vrot.lane.b32.xlu0 %v7363, 104
    %v7371 = vpop.permute.xlu0 %7370
    %7372 = vrot.lane.b32.xlu0 %v7365, 104
    %v7373 = vpop.permute.xlu0 %7372
    %v7378 = vadd.f32 %v7331, %v7367
    %v7379 = vadd.f32 %v7332, %v7369
    %v7380 = vadd.f32 %v7333, %v7371
    %v7381 = vadd.f32 %v7334, %v7373
    %v7382 = vld [vmem:[#allocation30 + $0x9] sm:$0x1]
    %v7383 = vlaneseq
    %v7384 = vshrl.u32 %v7383, 7
    %v7385 = vsub.s32 0, %v7384
    %v7386 = vrot.slane %v7382, %v7385
    %7388 = vrot.lane.b32.xlu0 %v7386, 32
    %v7389 = vpop.permute.xlu0 %7388
    %v7391 = vmul.f32 %v312, %v7389
    %v7392 = vmul.f32 %v313, %v7389
    %v7393 = vmul.f32 %v314, %v7389
    %v7394 = vmul.f32 %v315, %v7389
    %v7395 = vmul.f32 %v316, %v7389
    %v7396 = vmul.f32 %v317, %v7389
    %v7403 = vrot.slane %v7391, 2
    %v7404 = vrot.slane %v7392, 2
    %v7405 = vsel %vm588, %v7403, %v7404
    %v7406 = vrot.slane %v7393, 2
    %v7407 = vsel %vm588, %v7404, %v7406
    %v7408 = vrot.slane %v7394, 2
    %v7409 = vrot.slane %v7395, 2
    %v7410 = vsel %vm588, %v7408, %v7409
    %v7411 = vrot.slane %v7396, 2
    %v7412 = vsel %vm588, %v7409, %v7411
    %7413 = vrot.lane.b32.xlu0 %v7405, 96
    %v7414 = vpop.permute.xlu0 %7413
    %7415 = vrot.lane.b32.xlu0 %v7407, 96
    %v7416 = vpop.permute.xlu0 %7415
    %7417 = vrot.lane.b32.xlu0 %v7410, 96
    %v7418 = vpop.permute.xlu0 %7417
    %7419 = vrot.lane.b32.xlu0 %v7412, 96
    %v7420 = vpop.permute.xlu0 %7419
    %v7425 = vadd.f32 %v7378, %v7414
    %v7426 = vadd.f32 %v7379, %v7416
    %v7427 = vadd.f32 %v7380, %v7418
    %v7428 = vadd.f32 %v7381, %v7420
    %v7429 = vld [vmem:[#allocation30 + $0xa] sm:$0x1]
    %v7430 = vlaneseq
    %v7431 = vshrl.u32 %v7430, 7
    %v7432 = vsub.s32 0, %v7431
    %v7433 = vrot.slane %v7429, %v7432
    %v7434 = vmul.f32 %v312, %v7433
    %v7435 = vmul.f32 %v313, %v7433
    %v7436 = vmul.f32 %v314, %v7433
    %v7437 = vmul.f32 %v315, %v7433
    %v7438 = vmul.f32 %v316, %v7433
    %v7439 = vmul.f32 %v317, %v7433
    %v7446 = vrot.slane %v7434, 4
    %v7447 = vrot.slane %v7435, 4
    %v7448 = vsel %vm3021, %v7446, %v7447
    %v7449 = vrot.slane %v7436, 4
    %v7450 = vsel %vm3021, %v7447, %v7449
    %v7451 = vrot.slane %v7437, 4
    %v7452 = vrot.slane %v7438, 4
    %v7453 = vsel %vm3021, %v7451, %v7452
    %v7454 = vrot.slane %v7439, 4
    %v7455 = vsel %vm3021, %v7452, %v7454
    %v7460 = vadd.f32 %v7425, %v7448
    %v7461 = vadd.f32 %v7426, %v7450
    %v7462 = vadd.f32 %v7427, %v7453
    %v7463 = vadd.f32 %v7428, %v7455
    %v7464 = vld [vmem:[#allocation30 + $0xb] sm:$0x1]
    %v7465 = vlaneseq
    %v7466 = vshrl.u32 %v7465, 7
    %v7467 = vsub.s32 0, %v7466
    %v7468 = vrot.slane %v7464, %v7467
    %7470 = vrot.lane.b32.xlu0 %v7468, 8
    %v7471 = vpop.permute.xlu0 %7470
    %v7473 = vmul.f32 %v312, %v7471
    %v7474 = vmul.f32 %v313, %v7471
    %v7475 = vmul.f32 %v314, %v7471
    %v7476 = vmul.f32 %v315, %v7471
    %v7477 = vmul.f32 %v316, %v7471
    %v7478 = vmul.f32 %v317, %v7471
    %v7485 = vrot.slane %v7473, 4
    %v7486 = vrot.slane %v7474, 4
    %v7487 = vsel %vm3021, %v7485, %v7486
    %v7488 = vrot.slane %v7475, 4
    %v7489 = vsel %vm3021, %v7486, %v7488
    %v7490 = vrot.slane %v7476, 4
    %v7491 = vrot.slane %v7477, 4
    %v7492 = vsel %vm3021, %v7490, %v7491
    %v7493 = vrot.slane %v7478, 4
    %v7494 = vsel %vm3021, %v7491, %v7493
    %7495 = vrot.lane.b32.xlu0 %v7487, 120
    %v7496 = vpop.permute.xlu0 %7495
    %7497 = vrot.lane.b32.xlu0 %v7489, 120
    %v7498 = vpop.permute.xlu0 %7497
    %7499 = vrot.lane.b32.xlu0 %v7492, 120
    %v7500 = vpop.permute.xlu0 %7499
    %7501 = vrot.lane.b32.xlu0 %v7494, 120
    %v7502 = vpop.permute.xlu0 %7501
    %v7507 = vadd.f32 %v7460, %v7496
    %v7508 = vadd.f32 %v7461, %v7498
    %v7509 = vadd.f32 %v7462, %v7500
    %v7510 = vadd.f32 %v7463, %v7502
    %v7511 = vld [vmem:[#allocation30 + $0xc] sm:$0x1]
    %v7512 = vlaneseq
    %v7513 = vshrl.u32 %v7512, 7
    %v7514 = vsub.s32 0, %v7513
    %v7515 = vrot.slane %v7511, %v7514
    %7517 = vrot.lane.b32.xlu0 %v7515, 16
    %v7518 = vpop.permute.xlu0 %7517
    %v7520 = vmul.f32 %v312, %v7518
    %v7521 = vmul.f32 %v313, %v7518
    %v7522 = vmul.f32 %v314, %v7518
    %v7523 = vmul.f32 %v315, %v7518
    %v7524 = vmul.f32 %v316, %v7518
    %v7525 = vmul.f32 %v317, %v7518
    %v7532 = vrot.slane %v7520, 4
    %v7533 = vrot.slane %v7521, 4
    %v7534 = vsel %vm3021, %v7532, %v7533
    %v7535 = vrot.slane %v7522, 4
    %v7536 = vsel %vm3021, %v7533, %v7535
    %v7537 = vrot.slane %v7523, 4
    %v7538 = vrot.slane %v7524, 4
    %v7539 = vsel %vm3021, %v7537, %v7538
    %v7540 = vrot.slane %v7525, 4
    %v7541 = vsel %vm3021, %v7538, %v7540
    %7542 = vrot.lane.b32.xlu0 %v7534, 112
    %v7543 = vpop.permute.xlu0 %7542
    %7544 = vrot.lane.b32.xlu0 %v7536, 112
    %v7545 = vpop.permute.xlu0 %7544
    %7546 = vrot.lane.b32.xlu0 %v7539, 112
    %v7547 = vpop.permute.xlu0 %7546
    %7548 = vrot.lane.b32.xlu0 %v7541, 112
    %v7549 = vpop.permute.xlu0 %7548
    %v7554 = vadd.f32 %v7507, %v7543
    %v7555 = vadd.f32 %v7508, %v7545
    %v7556 = vadd.f32 %v7509, %v7547
    %v7557 = vadd.f32 %v7510, %v7549
    %v7558 = vld [vmem:[#allocation30 + $0xd] sm:$0x1]
    %v7559 = vlaneseq
    %v7560 = vshrl.u32 %v7559, 7
    %v7561 = vsub.s32 0, %v7560
    %v7562 = vrot.slane %v7558, %v7561
    %7564 = vrot.lane.b32.xlu0 %v7562, 24
    %v7565 = vpop.permute.xlu0 %7564
    %v7567 = vmul.f32 %v312, %v7565
    %v7568 = vmul.f32 %v313, %v7565
    %v7569 = vmul.f32 %v314, %v7565
    %v7570 = vmul.f32 %v315, %v7565
    %v7571 = vmul.f32 %v316, %v7565
    %v7572 = vmul.f32 %v317, %v7565
    %v7579 = vrot.slane %v7567, 4
    %v7580 = vrot.slane %v7568, 4
    %v7581 = vsel %vm3021, %v7579, %v7580
    %v7582 = vrot.slane %v7569, 4
    %v7583 = vsel %vm3021, %v7580, %v7582
    %v7584 = vrot.slane %v7570, 4
    %v7585 = vrot.slane %v7571, 4
    %v7586 = vsel %vm3021, %v7584, %v7585
    %v7587 = vrot.slane %v7572, 4
    %v7588 = vsel %vm3021, %v7585, %v7587
    %7589 = vrot.lane.b32.xlu0 %v7581, 104
    %v7590 = vpop.permute.xlu0 %7589
    %7591 = vrot.lane.b32.xlu0 %v7583, 104
    %v7592 = vpop.permute.xlu0 %7591
    %7593 = vrot.lane.b32.xlu0 %v7586, 104
    %v7594 = vpop.permute.xlu0 %7593
    %7595 = vrot.lane.b32.xlu0 %v7588, 104
    %v7596 = vpop.permute.xlu0 %7595
    %v7601 = vadd.f32 %v7554, %v7590
    %v7602 = vadd.f32 %v7555, %v7592
    %v7603 = vadd.f32 %v7556, %v7594
    %v7604 = vadd.f32 %v7557, %v7596
    %v7605 = vld [vmem:[#allocation30 + $0xe] sm:$0x1]
    %v7606 = vlaneseq
    %v7607 = vshrl.u32 %v7606, 7
    %v7608 = vsub.s32 0, %v7607
    %v7609 = vrot.slane %v7605, %v7608
    %7611 = vrot.lane.b32.xlu0 %v7609, 32
    %v7612 = vpop.permute.xlu0 %7611
    %v7614 = vmul.f32 %v312, %v7612
    %v7615 = vmul.f32 %v313, %v7612
    %v7616 = vmul.f32 %v314, %v7612
    %v7617 = vmul.f32 %v315, %v7612
    %v7618 = vmul.f32 %v316, %v7612
    %v7619 = vmul.f32 %v317, %v7612
    %v7626 = vrot.slane %v7614, 4
    %v7627 = vrot.slane %v7615, 4
    %v7628 = vsel %vm3021, %v7626, %v7627
    %v7629 = vrot.slane %v7616, 4
    %v7630 = vsel %vm3021, %v7627, %v7629
    %v7631 = vrot.slane %v7617, 4
    %v7632 = vrot.slane %v7618, 4
    %v7633 = vsel %vm3021, %v7631, %v7632
    %v7634 = vrot.slane %v7619, 4
    %v7635 = vsel %vm3021, %v7632, %v7634
    %7636 = vrot.lane.b32.xlu0 %v7628, 96
    %v7637 = vpop.permute.xlu0 %7636
    %7638 = vrot.lane.b32.xlu0 %v7630, 96
    %v7639 = vpop.permute.xlu0 %7638
    %7640 = vrot.lane.b32.xlu0 %v7633, 96
    %v7641 = vpop.permute.xlu0 %7640
    %7642 = vrot.lane.b32.xlu0 %v7635, 96
    %v7643 = vpop.permute.xlu0 %7642
    %v7648 = vadd.f32 %v7601, %v7637
    %v7649 = vadd.f32 %v7602, %v7639
    %v7650 = vadd.f32 %v7603, %v7641
    %v7651 = vadd.f32 %v7604, %v7643
    %v7652 = vld [vmem:[#allocation30 + $0xf] sm:$0x1]
    %v7653 = vlaneseq
    %v7654 = vshrl.u32 %v7653, 7
    %v7655 = vsub.s32 0, %v7654
    %v7656 = vrot.slane %v7652, %v7655
    %v7657 = vmul.f32 %v312, %v7656
    %v7658 = vmul.f32 %v313, %v7656
    %v7659 = vmul.f32 %v314, %v7656
    %v7660 = vmul.f32 %v315, %v7656
    %v7661 = vmul.f32 %v316, %v7656
    %v7662 = vmul.f32 %v317, %v7656
    %vm7669 = vcmask 1041408
    %v7670 = vrot.slane %v7657, 6
    %v7671 = vrot.slane %v7658, 6
    %v7672 = vsel %vm7669, %v7670, %v7671
    %v7673 = vrot.slane %v7659, 6
    %v7674 = vsel %vm7669, %v7671, %v7673
    %v7675 = vrot.slane %v7660, 6
    %v7676 = vrot.slane %v7661, 6
    %v7677 = vsel %vm7669, %v7675, %v7676
    %v7678 = vrot.slane %v7662, 6
    %v7679 = vsel %vm7669, %v7676, %v7678
    %v7684 = vadd.f32 %v7648, %v7672
    %v7685 = vadd.f32 %v7649, %v7674
    %v7686 = vadd.f32 %v7650, %v7677
    %v7687 = vadd.f32 %v7651, %v7679
    %v7688 = vld [vmem:[#allocation30 + $0x10] sm:$0x1]
    %v7689 = vlaneseq
    %v7690 = vshrl.u32 %v7689, 7
    %v7691 = vsub.s32 0, %v7690
    %v7692 = vrot.slane %v7688, %v7691
    %7694 = vrot.lane.b32.xlu0 %v7692, 8
    %v7695 = vpop.permute.xlu0 %7694
    %v7697 = vmul.f32 %v312, %v7695
    %v7698 = vmul.f32 %v313, %v7695
    %v7699 = vmul.f32 %v314, %v7695
    %v7700 = vmul.f32 %v315, %v7695
    %v7701 = vmul.f32 %v316, %v7695
    %v7702 = vmul.f32 %v317, %v7695
    %v7709 = vrot.slane %v7697, 6
    %v7710 = vrot.slane %v7698, 6
    %v7711 = vsel %vm7669, %v7709, %v7710
    %v7712 = vrot.slane %v7699, 6
    %v7713 = vsel %vm7669, %v7710, %v7712
    %v7714 = vrot.slane %v7700, 6
    %v7715 = vrot.slane %v7701, 6
    %v7716 = vsel %vm7669, %v7714, %v7715
    %v7717 = vrot.slane %v7702, 6
    %v7718 = vsel %vm7669, %v7715, %v7717
    %7719 = vrot.lane.b32.xlu0 %v7711, 120
    %v7720 = vpop.permute.xlu0 %7719
    %7721 = vrot.lane.b32.xlu0 %v7713, 120
    %v7722 = vpop.permute.xlu0 %7721
    %7723 = vrot.lane.b32.xlu0 %v7716, 120
    %v7724 = vpop.permute.xlu0 %7723
    %7725 = vrot.lane.b32.xlu0 %v7718, 120
    %v7726 = vpop.permute.xlu0 %7725
    %v7731 = vadd.f32 %v7684, %v7720
    %v7732 = vadd.f32 %v7685, %v7722
    %v7733 = vadd.f32 %v7686, %v7724
    %v7734 = vadd.f32 %v7687, %v7726
    %v7735 = vld [vmem:[#allocation30 + $0x11] sm:$0x1]
    %v7736 = vlaneseq
    %v7737 = vshrl.u32 %v7736, 7
    %v7738 = vsub.s32 0, %v7737
    %v7739 = vrot.slane %v7735, %v7738
    %7741 = vrot.lane.b32.xlu0 %v7739, 16
    %v7742 = vpop.permute.xlu0 %7741
    %v7744 = vmul.f32 %v312, %v7742
    %v7745 = vmul.f32 %v313, %v7742
    %v7746 = vmul.f32 %v314, %v7742
    %v7747 = vmul.f32 %v315, %v7742
    %v7748 = vmul.f32 %v316, %v7742
    %v7749 = vmul.f32 %v317, %v7742
    %v7756 = vrot.slane %v7744, 6
    %v7757 = vrot.slane %v7745, 6
    %v7758 = vsel %vm7669, %v7756, %v7757
    %v7759 = vrot.slane %v7746, 6
    %v7760 = vsel %vm7669, %v7757, %v7759
    %v7761 = vrot.slane %v7747, 6
    %v7762 = vrot.slane %v7748, 6
    %v7763 = vsel %vm7669, %v7761, %v7762
    %v7764 = vrot.slane %v7749, 6
    %v7765 = vsel %vm7669, %v7762, %v7764
    %7766 = vrot.lane.b32.xlu0 %v7758, 112
    %v7767 = vpop.permute.xlu0 %7766
    %7768 = vrot.lane.b32.xlu0 %v7760, 112
    %v7769 = vpop.permute.xlu0 %7768
    %7770 = vrot.lane.b32.xlu0 %v7763, 112
    %v7771 = vpop.permute.xlu0 %7770
    %7772 = vrot.lane.b32.xlu0 %v7765, 112
    %v7773 = vpop.permute.xlu0 %7772
    %v7778 = vadd.f32 %v7731, %v7767
    %v7779 = vadd.f32 %v7732, %v7769
    %v7780 = vadd.f32 %v7733, %v7771
    %v7781 = vadd.f32 %v7734, %v7773
    %v7782 = vld [vmem:[#allocation30 + $0x12] sm:$0x1]
    %v7783 = vlaneseq
    %v7784 = vshrl.u32 %v7783, 7
    %v7785 = vsub.s32 0, %v7784
    %v7786 = vrot.slane %v7782, %v7785
    %7788 = vrot.lane.b32.xlu0 %v7786, 24
    %v7789 = vpop.permute.xlu0 %7788
    %v7791 = vmul.f32 %v312, %v7789
    %v7792 = vmul.f32 %v313, %v7789
    %v7793 = vmul.f32 %v314, %v7789
    %v7794 = vmul.f32 %v315, %v7789
    %v7795 = vmul.f32 %v316, %v7789
    %v7796 = vmul.f32 %v317, %v7789
    %v7803 = vrot.slane %v7791, 6
    %v7804 = vrot.slane %v7792, 6
    %v7805 = vsel %vm7669, %v7803, %v7804
    %v7806 = vrot.slane %v7793, 6
    %v7807 = vsel %vm7669, %v7804, %v7806
    %v7808 = vrot.slane %v7794, 6
    %v7809 = vrot.slane %v7795, 6
    %v7810 = vsel %vm7669, %v7808, %v7809
    %v7811 = vrot.slane %v7796, 6
    %v7812 = vsel %vm7669, %v7809, %v7811
    %7813 = vrot.lane.b32.xlu0 %v7805, 104
    %v7814 = vpop.permute.xlu0 %7813
    %7815 = vrot.lane.b32.xlu0 %v7807, 104
    %v7816 = vpop.permute.xlu0 %7815
    %7817 = vrot.lane.b32.xlu0 %v7810, 104
    %v7818 = vpop.permute.xlu0 %7817
    %7819 = vrot.lane.b32.xlu0 %v7812, 104
    %v7820 = vpop.permute.xlu0 %7819
    %v7825 = vadd.f32 %v7778, %v7814
    %v7826 = vadd.f32 %v7779, %v7816
    %v7827 = vadd.f32 %v7780, %v7818
    %v7828 = vadd.f32 %v7781, %v7820
    %v7829 = vld [vmem:[#allocation30 + $0x13] sm:$0x1]
    %v7830 = vlaneseq
    %v7831 = vshrl.u32 %v7830, 7
    %v7832 = vsub.s32 0, %v7831
    %v7833 = vrot.slane %v7829, %v7832
    %7835 = vrot.lane.b32.xlu0 %v7833, 32
    %v7836 = vpop.permute.xlu0 %7835
    %v7838 = vmul.f32 %v312, %v7836
    %v7839 = vmul.f32 %v313, %v7836
    %v7840 = vmul.f32 %v314, %v7836
    %v7841 = vmul.f32 %v315, %v7836
    %v7842 = vmul.f32 %v316, %v7836
    %v7843 = vmul.f32 %v317, %v7836
    %v7850 = vrot.slane %v7838, 6
    %v7851 = vrot.slane %v7839, 6
    %v7852 = vsel %vm7669, %v7850, %v7851
    %v7853 = vrot.slane %v7840, 6
    %v7854 = vsel %vm7669, %v7851, %v7853
    %v7855 = vrot.slane %v7841, 6
    %v7856 = vrot.slane %v7842, 6
    %v7857 = vsel %vm7669, %v7855, %v7856
    %v7858 = vrot.slane %v7843, 6
    %v7859 = vsel %vm7669, %v7856, %v7858
    %7860 = vrot.lane.b32.xlu0 %v7852, 96
    %v7861 = vpop.permute.xlu0 %7860
    %7862 = vrot.lane.b32.xlu0 %v7854, 96
    %v7863 = vpop.permute.xlu0 %7862
    %7864 = vrot.lane.b32.xlu0 %v7857, 96
    %v7865 = vpop.permute.xlu0 %7864
    %7866 = vrot.lane.b32.xlu0 %v7859, 96
    %v7867 = vpop.permute.xlu0 %7866
    %v7872 = vadd.f32 %v7825, %v7861
    %v7873 = vadd.f32 %v7826, %v7863
    %v7874 = vadd.f32 %v7827, %v7865
    %v7875 = vadd.f32 %v7828, %v7867
    %v7876 = vld [vmem:[#allocation30 + $0x14] sm:$0x1]
    %v7877 = vlaneseq
    %v7878 = vshrl.u32 %v7877, 7
    %v7879 = vsub.s32 0, %v7878
    %v7880 = vrot.slane %v7876, %v7879
    %v7881 = vmul.f32 %v313, %v7880
    %v7882 = vmul.f32 %v314, %v7880
    %v7883 = vmul.f32 %v316, %v7880
    %v7884 = vmul.f32 %v317, %v7880
    %v7885 = vadd.f32 %v7872, %v7881
    %v7886 = vadd.f32 %v7873, %v7882
    %v7887 = vadd.f32 %v7874, %v7883
    %v7888 = vadd.f32 %v7875, %v7884
    %v7889 = vld [vmem:[#allocation30 + $0x15] sm:$0x1]
    %v7890 = vlaneseq
    %v7891 = vshrl.u32 %v7890, 7
    %v7892 = vsub.s32 0, %v7891
    %v7893 = vrot.slane %v7889, %v7892
    %7895 = vrot.lane.b32.xlu0 %v7893, 8
    %v7896 = vpop.permute.xlu0 %7895
    %v7898 = vmul.f32 %v313, %v7896
    %v7899 = vmul.f32 %v314, %v7896
    %v7900 = vmul.f32 %v316, %v7896
    %v7901 = vmul.f32 %v317, %v7896
    %7906 = vrot.lane.b32.xlu0 %v7898, 120
    %v7907 = vpop.permute.xlu0 %7906
    %7908 = vrot.lane.b32.xlu0 %v7899, 120
    %v7909 = vpop.permute.xlu0 %7908
    %7910 = vrot.lane.b32.xlu0 %v7900, 120
    %v7911 = vpop.permute.xlu0 %7910
    %7912 = vrot.lane.b32.xlu0 %v7901, 120
    %v7913 = vpop.permute.xlu0 %7912
    %v7918 = vadd.f32 %v7885, %v7907
    %v7919 = vadd.f32 %v7886, %v7909
    %v7920 = vadd.f32 %v7887, %v7911
    %v7921 = vadd.f32 %v7888, %v7913
    %v7922 = vld [vmem:[#allocation30 + $0x16] sm:$0x1]
    %v7923 = vlaneseq
    %v7924 = vshrl.u32 %v7923, 7
    %v7925 = vsub.s32 0, %v7924
    %v7926 = vrot.slane %v7922, %v7925
    %7928 = vrot.lane.b32.xlu0 %v7926, 16
    %v7929 = vpop.permute.xlu0 %7928
    %v7931 = vmul.f32 %v313, %v7929
    %v7932 = vmul.f32 %v314, %v7929
    %v7933 = vmul.f32 %v316, %v7929
    %v7934 = vmul.f32 %v317, %v7929
    %7939 = vrot.lane.b32.xlu0 %v7931, 112
    %v7940 = vpop.permute.xlu0 %7939
    %7941 = vrot.lane.b32.xlu0 %v7932, 112
    %v7942 = vpop.permute.xlu0 %7941
    %7943 = vrot.lane.b32.xlu0 %v7933, 112
    %v7944 = vpop.permute.xlu0 %7943
    %7945 = vrot.lane.b32.xlu0 %v7934, 112
    %v7946 = vpop.permute.xlu0 %7945
    %v7951 = vadd.f32 %v7918, %v7940
    %v7952 = vadd.f32 %v7919, %v7942
    %v7953 = vadd.f32 %v7920, %v7944
    %v7954 = vadd.f32 %v7921, %v7946
    %v7955 = vld [vmem:[#allocation30 + $0x17] sm:$0x1]
    %v7956 = vlaneseq
    %v7957 = vshrl.u32 %v7956, 7
    %v7958 = vsub.s32 0, %v7957
    %v7959 = vrot.slane %v7955, %v7958
    %7961 = vrot.lane.b32.xlu0 %v7959, 24
    %v7962 = vpop.permute.xlu0 %7961
    %v7964 = vmul.f32 %v313, %v7962
    %v7965 = vmul.f32 %v314, %v7962
    %v7966 = vmul.f32 %v316, %v7962
    %v7967 = vmul.f32 %v317, %v7962
    %7972 = vrot.lane.b32.xlu0 %v7964, 104
    %v7973 = vpop.permute.xlu0 %7972
    %7974 = vrot.lane.b32.xlu0 %v7965, 104
    %v7975 = vpop.permute.xlu0 %7974
    %7976 = vrot.lane.b32.xlu0 %v7966, 104
    %v7977 = vpop.permute.xlu0 %7976
    %7978 = vrot.lane.b32.xlu0 %v7967, 104
    %v7979 = vpop.permute.xlu0 %7978
    %v7984 = vadd.f32 %v7951, %v7973
    %v7985 = vadd.f32 %v7952, %v7975
    %v7986 = vadd.f32 %v7953, %v7977
    %v7987 = vadd.f32 %v7954, %v7979
    %v7988 = vld [vmem:[#allocation30 + $0x18] sm:$0x1]
    %v7989 = vlaneseq
    %v7990 = vshrl.u32 %v7989, 7
    %v7991 = vsub.s32 0, %v7990
    %v7992 = vrot.slane %v7988, %v7991
    %7994 = vrot.lane.b32.xlu0 %v7992, 32
    %v7995 = vpop.permute.xlu0 %7994
    %v7997 = vmul.f32 %v313, %v7995
    %v7998 = vmul.f32 %v314, %v7995
    %v7999 = vmul.f32 %v316, %v7995
    %v8000 = vmul.f32 %v317, %v7995
    %8005 = vrot.lane.b32.xlu0 %v7997, 96
    %v8006 = vpop.permute.xlu0 %8005
    %8007 = vrot.lane.b32.xlu0 %v7998, 96
    %v8008 = vpop.permute.xlu0 %8007
    %8009 = vrot.lane.b32.xlu0 %v7999, 96
    %v8010 = vpop.permute.xlu0 %8009
    %8011 = vrot.lane.b32.xlu0 %v8000, 96
    %v8012 = vpop.permute.xlu0 %8011
    %v8017 = vadd.f32 %v7984, %v8006
    %v8018 = vadd.f32 %v7985, %v8008
    %v8019 = vadd.f32 %v7986, %v8010
    %v8020 = vadd.f32 %v7987, %v8012
    %v8021 = vld [vmem:[%s18] sm:$0xff]
    %v8022 = vld [vmem:[%s18 + $0x8] sm:$0xff]
    %v8023 = vld [vmem:[%s18 + $0x10] sm:$0xff]
    %v8024 = vld [vmem:[%s18 + $0x18] sm:$0xff]
    %v8025 = vld [vmem:[%s18 + $0x20] sm:$0xff]
    %v8026 = vld [vmem:[%s18 + $0x28] sm:$0xff]
    %v8027 = vld [vmem:[%s18 + $0x30] sm:$0xff]
    %v8028 = vld [vmem:[%s18 + $0x38] sm:$0xff]
    %v8030 = vsel %vm844, %v8017, 0
    %v8033 = vsel %vm844, %v8018, 0
    %8035 = vmatprep.subr.mxu0 0.0
    %8036 = vmatpush1.msra.mxu0 %v8021
    %8037 = vmatprep.subr.mxu0 0.0
    %8038 = vmatpush1.msra.mxu0 %v8022
    %8039 = vmatprep.subr.mxu0 0.0
    %8040 = vmatpush1.msra.mxu0 %v8023
    %8041 = vmatprep.subr.mxu0 0.0
    %8042 = vmatpush1.msra.mxu0 %v8024
    %8043 = vmatprep.subr.mxu0 0.0
    %8044 = vmatpush1.msra.mxu0 %v8025
    %8045 = vmatprep.subr.mxu0 0.0
    %8046 = vmatpush1.msra.mxu0 %v8026
    %8047 = vmatprep.subr.mxu0 0.0
    %8048 = vmatpush1.msra.mxu0 %v8027
    %8049 = vmatprep.subr.mxu0 0.0
    %8050 = vmatpush1.msra.mxu0 %v8028
    %8051 = vmatprep.subr.mxu0 0.0
    %8052 = vmatpush1.msra.mxu0 0.0
    %8053 = vmatprep.subr.mxu0 0.0
    %8054 = vmatpush1.msra.mxu0 0.0
    %8055 = vmatprep.subr.mxu0 0.0
    %8056 = vmatpush1.msra.mxu0 0.0
    %8057 = vmatprep.subr.mxu0 0.0
    %8058 = vmatpush1.msra.mxu0 0.0
    %8059 = vmatprep.subr.mxu0 0.0
    %8060 = vmatpush1.msra.mxu0 0.0
    %8061 = vmatprep.subr.mxu0 0.0
    %8062 = vmatpush1.msra.mxu0 0.0
    %8063 = vmatprep.subr.mxu0 0.0
    %8064 = vmatpush1.msra.mxu0 0.0
    %8065 = vmatprep.subr.mxu0 0.0
    %8066 = vmatpush1.msra.mxu0 0.0
    %8067 = vmatprep.subr.mxu0 0.0
    %8068 = vmatpush1.msra.mxu0 0.0
    %8069 = vmatprep.subr.mxu0 0.0
    %8070 = vmatpush1.msra.mxu0 0.0
    %8071 = vmatprep.subr.mxu0 0.0
    %8072 = vmatpush1.msra.mxu0 0.0
    %8073 = vmatprep.subr.mxu0 0.0
    %8074 = vmatpush1.msra.mxu0 0.0
    %8075 = vmatprep.subr.mxu0 0.0
    %8076 = vmatpush1.msra.mxu0 0.0
    %8077 = vmatprep.subr.mxu0 0.0
    %8078 = vmatpush1.msra.mxu0 0.0
    %8079 = vmatprep.subr.mxu0 0.0
    %8080 = vmatpush1.msra.mxu0 0.0
    %8081 = vmatprep.subr.mxu0 0.0
    %8082 = vmatpush1.msra.mxu0 0.0
    %8083 = vmatprep.subr.mxu0 0.0
    %8084 = vmatpush1.msra.mxu0 0.0
    %8085 = vmatprep.subr.mxu0 0.0
    %8086 = vmatpush1.msra.mxu0 0.0
    %8087 = vmatprep.subr.mxu0 0.0
    %8088 = vmatpush1.msra.mxu0 0.0
    %8089 = vmatprep.subr.mxu0 0.0
    %8090 = vmatpush1.msra.mxu0 0.0
    %8091 = vmatprep.subr.mxu0 0.0
    %8092 = vmatpush1.msra.mxu0 0.0
    %8093 = vmatprep.subr.mxu0 0.0
    %8094 = vmatpush1.msra.mxu0 0.0
    %8095 = vmatprep.subr.mxu0 0.0
    %8096 = vmatpush1.msra.mxu0 0.0
    %8097 = vmatprep.subr.mxu0 0.0
    %8098 = vmatpush1.msra.mxu0 0.0
    %8099 = vmatprep.mubr.f32.mxu0 0.0
    %8100 = vmatmul.mubr.f32.gmra.mrb[0].mxu0 %v8030
    %v8101 = vpop.f32.mrb[0].mxu0
    %v8102 = vadd.f32 0.0, %v8101
    %v8103 = vpop.f32.mrb[0].mxu0
    %8104 = vmatprep.mubr.f32.mxu0 0.0
    %8105 = vmatmul.mubr.f32.gmra.mrb[0].mxu0 %v8033
    %v8106 = vpop.f32.mrb[0].mxu0
    %v8107 = vadd.f32 0.0, %v8106
    %v8108 = vpop.f32.mrb[0].mxu0
    %8109 = vdwg.mxu0
    %v8111 = vsel %vm844, %v8019, 0
    %v8114 = vsel %vm844, %v8020, 0
    %8116 = vmatprep.subr.mxu0 0.0
    %8117 = vmatpush1.msra.mxu0 %v8021
    %8118 = vmatprep.subr.mxu0 0.0
    %8119 = vmatpush1.msra.mxu0 %v8022
    %8120 = vmatprep.subr.mxu0 0.0
    %8121 = vmatpush1.msra.mxu0 %v8023
    %8122 = vmatprep.subr.mxu0 0.0
    %8123 = vmatpush1.msra.mxu0 %v8024
    %8124 = vmatprep.subr.mxu0 0.0
    %8125 = vmatpush1.msra.mxu0 %v8025
    %8126 = vmatprep.subr.mxu0 0.0
    %8127 = vmatpush1.msra.mxu0 %v8026
    %8128 = vmatprep.subr.mxu0 0.0
    %8129 = vmatpush1.msra.mxu0 %v8027
    %8130 = vmatprep.subr.mxu0 0.0
    %8131 = vmatpush1.msra.mxu0 %v8028
    %8132 = vmatprep.subr.mxu0 0.0
    %8133 = vmatpush1.msra.mxu0 0.0
    %8134 = vmatprep.subr.mxu0 0.0
    %8135 = vmatpush1.msra.mxu0 0.0
    %8136 = vmatprep.subr.mxu0 0.0
    %8137 = vmatpush1.msra.mxu0 0.0
    %8138 = vmatprep.subr.mxu0 0.0
    %8139 = vmatpush1.msra.mxu0 0.0
    %8140 = vmatprep.subr.mxu0 0.0
    %8141 = vmatpush1.msra.mxu0 0.0
    %8142 = vmatprep.subr.mxu0 0.0
    %8143 = vmatpush1.msra.mxu0 0.0
    %8144 = vmatprep.subr.mxu0 0.0
    %8145 = vmatpush1.msra.mxu0 0.0
    %8146 = vmatprep.subr.mxu0 0.0
    %8147 = vmatpush1.msra.mxu0 0.0
    %8148 = vmatprep.subr.mxu0 0.0
    %8149 = vmatpush1.msra.mxu0 0.0
    %8150 = vmatprep.subr.mxu0 0.0
    %8151 = vmatpush1.msra.mxu0 0.0
    %8152 = vmatprep.subr.mxu0 0.0
    %8153 = vmatpush1.msra.mxu0 0.0
    %8154 = vmatprep.subr.mxu0 0.0
    %8155 = vmatpush1.msra.mxu0 0.0
    %8156 = vmatprep.subr.mxu0 0.0
    %8157 = vmatpush1.msra.mxu0 0.0
    %8158 = vmatprep.subr.mxu0 0.0
    %8159 = vmatpush1.msra.mxu0 0.0
    %8160 = vmatprep.subr.mxu0 0.0
    %8161 = vmatpush1.msra.mxu0 0.0
    %8162 = vmatprep.subr.mxu0 0.0
    %8163 = vmatpush1.msra.mxu0 0.0
    %8164 = vmatprep.subr.mxu0 0.0
    %8165 = vmatpush1.msra.mxu0 0.0
    %8166 = vmatprep.subr.mxu0 0.0
    %8167 = vmatpush1.msra.mxu0 0.0
    %8168 = vmatprep.subr.mxu0 0.0
    %8169 = vmatpush1.msra.mxu0 0.0
    %8170 = vmatprep.subr.mxu0 0.0
    %8171 = vmatpush1.msra.mxu0 0.0
    %8172 = vmatprep.subr.mxu0 0.0
    %8173 = vmatpush1.msra.mxu0 0.0
    %8174 = vmatprep.subr.mxu0 0.0
    %8175 = vmatpush1.msra.mxu0 0.0
    %8176 = vmatprep.subr.mxu0 0.0
    %8177 = vmatpush1.msra.mxu0 0.0
    %8178 = vmatprep.subr.mxu0 0.0
    %8179 = vmatpush1.msra.mxu0 0.0
    %8180 = vmatprep.mubr.f32.mxu0 0.0
    %8181 = vmatmul.mubr.f32.gmra.mrb[0].mxu0 %v8111
    %v8182 = vpop.f32.mrb[0].mxu0
    %v8183 = vadd.f32 0.0, %v8182
    %v8184 = vpop.f32.mrb[0].mxu0
    %8185 = vmatprep.mubr.f32.mxu0 0.0
    %8186 = vmatmul.mubr.f32.gmra.mrb[0].mxu0 %v8114
    %v8187 = vpop.f32.mrb[0].mxu0
    %v8188 = vadd.f32 0.0, %v8187
    %v8189 = vpop.f32.mrb[0].mxu0
    %8190 = vdwg.mxu0
    %v8191 = vsel %vm844, %v8102, 0.0
    %v8192 = vsel %vm844, %v8107, 0.0
    %v8193 = vadd.f32 %v8191, %v8192
    %v8194 = vrot.slane %v8193, 4
    %v8195 = vadd.f32 %v8193, %v8194
    %v8196 = vrot.slane %v8195, 2
    %v8197 = vadd.f32 %v8195, %v8196
    %v8198 = vrot.slane %v8197, 1
    %v8199 = vadd.f32 %v8197, %v8198
    %v8200 = vadd.f32 %v8199, 0.0
    %v8201 = vmul.f32 %v8102, %v8102
    %v8202 = vmul.f32 %v8107, %v8107
    %v8203 = vsel %vm844, %v8201, 0.0
    %v8204 = vsel %vm844, %v8202, 0.0
    %v8205 = vadd.f32 %v8203, %v8204
    %v8206 = vrot.slane %v8205, 4
    %v8207 = vadd.f32 %v8205, %v8206
    %v8208 = vrot.slane %v8207, 2
    %v8209 = vadd.f32 %v8207, %v8208
    %v8210 = vrot.slane %v8209, 1
    %v8211 = vadd.f32 %v8209, %v8210
    %v8212 = vadd.f32 %v8211, 0.0
    %v8213 = vsel %vm844, %v8183, 0.0
    %v8214 = vsel %vm844, %v8188, 0.0
    %v8215 = vadd.f32 %v8213, %v8214
    %v8216 = vrot.slane %v8215, 4
    %v8217 = vadd.f32 %v8215, %v8216
    %v8218 = vrot.slane %v8217, 2
    %v8219 = vadd.f32 %v8217, %v8218
    %v8220 = vrot.slane %v8219, 1
    %v8221 = vadd.f32 %v8219, %v8220
    %v8222 = vadd.f32 %v8200, %v8221
    %v8223 = vmul.f32 %v8183, %v8183
    %v8224 = vmul.f32 %v8188, %v8188
    %v8225 = vsel %vm844, %v8223, 0.0
    %v8226 = vsel %vm844, %v8224, 0.0
    %v8227 = vadd.f32 %v8225, %v8226
    %v8228 = vrot.slane %v8227, 4
    %v8229 = vadd.f32 %v8227, %v8228
    %v8230 = vrot.slane %v8229, 2
    %v8231 = vadd.f32 %v8229, %v8230
    %v8232 = vrot.slane %v8231, 1
    %v8233 = vadd.f32 %v8231, %v8232
    %v8234 = vadd.f32 %v8212, %v8233
    %v8236 = vsel %vm844, %v8222, 0
    %8238 = vmatprep.subr.mxu0 0.0
    %8239 = vmatpush1.msra.mxu0 %v304
    %8240 = vmatprep.subr.mxu0 0.0
    %8241 = vmatpush1.msra.mxu0 %v305
    %8242 = vmatprep.subr.mxu0 0.0
    %8243 = vmatpush1.msra.mxu0 %v306
    %8244 = vmatprep.subr.mxu0 0.0
    %8245 = vmatpush1.msra.mxu0 %v307
    %8246 = vmatprep.subr.mxu0 0.0
    %8247 = vmatpush1.msra.mxu0 %v308
    %8248 = vmatprep.subr.mxu0 0.0
    %8249 = vmatpush1.msra.mxu0 %v309
    %8250 = vmatprep.subr.mxu0 0.0
    %8251 = vmatpush1.msra.mxu0 %v310
    %8252 = vmatprep.subr.mxu0 0.0
    %8253 = vmatpush1.msra.mxu0 %v311
    %8254 = vmatprep.subr.mxu0 0.0
    %8255 = vmatpush1.msra.mxu0 0.0
    %8256 = vmatprep.subr.mxu0 0.0
    %8257 = vmatpush1.msra.mxu0 0.0
    %8258 = vmatprep.subr.mxu0 0.0
    %8259 = vmatpush1.msra.mxu0 0.0
    %8260 = vmatprep.subr.mxu0 0.0
    %8261 = vmatpush1.msra.mxu0 0.0
    %8262 = vmatprep.subr.mxu0 0.0
    %8263 = vmatpush1.msra.mxu0 0.0
    %8264 = vmatprep.subr.mxu0 0.0
    %8265 = vmatpush1.msra.mxu0 0.0
    %8266 = vmatprep.subr.mxu0 0.0
    %8267 = vmatpush1.msra.mxu0 0.0
    %8268 = vmatprep.subr.mxu0 0.0
    %8269 = vmatpush1.msra.mxu0 0.0
    %8270 = vmatprep.subr.mxu0 0.0
    %8271 = vmatpush1.msra.mxu0 0.0
    %8272 = vmatprep.subr.mxu0 0.0
    %8273 = vmatpush1.msra.mxu0 0.0
    %8274 = vmatprep.subr.mxu0 0.0
    %8275 = vmatpush1.msra.mxu0 0.0
    %8276 = vmatprep.subr.mxu0 0.0
    %8277 = vmatpush1.msra.mxu0 0.0
    %8278 = vmatprep.subr.mxu0 0.0
    %8279 = vmatpush1.msra.mxu0 0.0
    %8280 = vmatprep.subr.mxu0 0.0
    %8281 = vmatpush1.msra.mxu0 0.0
    %8282 = vmatprep.subr.mxu0 0.0
    %8283 = vmatpush1.msra.mxu0 0.0
    %8284 = vmatprep.subr.mxu0 0.0
    %8285 = vmatpush1.msra.mxu0 0.0
    %8286 = vmatprep.subr.mxu0 0.0
    %8287 = vmatpush1.msra.mxu0 0.0
    %8288 = vmatprep.subr.mxu0 0.0
    %8289 = vmatpush1.msra.mxu0 0.0
    %8290 = vmatprep.subr.mxu0 0.0
    %8291 = vmatpush1.msra.mxu0 0.0
    %8292 = vmatprep.subr.mxu0 0.0
    %8293 = vmatpush1.msra.mxu0 0.0
    %8294 = vmatprep.subr.mxu0 0.0
    %8295 = vmatpush1.msra.mxu0 0.0
    %8296 = vmatprep.subr.mxu0 0.0
    %8297 = vmatpush1.msra.mxu0 0.0
    %8298 = vmatprep.subr.mxu0 0.0
    %8299 = vmatpush1.msra.mxu0 0.0
    %8300 = vmatprep.subr.mxu0 0.0
    %8301 = vmatpush1.msra.mxu0 0.0
    %8302 = vmatprep.mubr.f32.mxu0 0.0
    %8303 = vmatmul.mubr.f32.gmra.mrb[0].mxu0 %v8236
    %v8304 = vpop.f32.mrb[0].mxu0
    %v8305 = vadd.f32 0.0, %v8304
    %v8306 = vpop.f32.mrb[0].mxu0
    %8307 = vdwg.mxu0
    %v8309 = vsel %vm844, %v8234, 0
    %8311 = vmatprep.subr.mxu0 0.0
    %8312 = vmatpush1.msra.mxu0 %v304
    %8313 = vmatprep.subr.mxu0 0.0
    %8314 = vmatpush1.msra.mxu0 %v305
    %8315 = vmatprep.subr.mxu0 0.0
    %8316 = vmatpush1.msra.mxu0 %v306
    %8317 = vmatprep.subr.mxu0 0.0
    %8318 = vmatpush1.msra.mxu0 %v307
    %8319 = vmatprep.subr.mxu0 0.0
    %8320 = vmatpush1.msra.mxu0 %v308
    %8321 = vmatprep.subr.mxu0 0.0
    %8322 = vmatpush1.msra.mxu0 %v309
    %8323 = vmatprep.subr.mxu0 0.0
    %8324 = vmatpush1.msra.mxu0 %v310
    %8325 = vmatprep.subr.mxu0 0.0
    %8326 = vmatpush1.msra.mxu0 %v311
    %8327 = vmatprep.subr.mxu0 0.0
    %8328 = vmatpush1.msra.mxu0 0.0
    %8329 = vmatprep.subr.mxu0 0.0
    %8330 = vmatpush1.msra.mxu0 0.0
    %8331 = vmatprep.subr.mxu0 0.0
    %8332 = vmatpush1.msra.mxu0 0.0
    %8333 = vmatprep.subr.mxu0 0.0
    %8334 = vmatpush1.msra.mxu0 0.0
    %8335 = vmatprep.subr.mxu0 0.0
    %8336 = vmatpush1.msra.mxu0 0.0
    %8337 = vmatprep.subr.mxu0 0.0
    %8338 = vmatpush1.msra.mxu0 0.0
    %8339 = vmatprep.subr.mxu0 0.0
    %8340 = vmatpush1.msra.mxu0 0.0
    %8341 = vmatprep.subr.mxu0 0.0
    %8342 = vmatpush1.msra.mxu0 0.0
    %8343 = vmatprep.subr.mxu0 0.0
    %8344 = vmatpush1.msra.mxu0 0.0
    %8345 = vmatprep.subr.mxu0 0.0
    %8346 = vmatpush1.msra.mxu0 0.0
    %8347 = vmatprep.subr.mxu0 0.0
    %8348 = vmatpush1.msra.mxu0 0.0
    %8349 = vmatprep.subr.mxu0 0.0
    %8350 = vmatpush1.msra.mxu0 0.0
    %8351 = vmatprep.subr.mxu0 0.0
    %8352 = vmatpush1.msra.mxu0 0.0
    %8353 = vmatprep.subr.mxu0 0.0
    %8354 = vmatpush1.msra.mxu0 0.0
    %8355 = vmatprep.subr.mxu0 0.0
    %8356 = vmatpush1.msra.mxu0 0.0
    %8357 = vmatprep.subr.mxu0 0.0
    %8358 = vmatpush1.msra.mxu0 0.0
    %8359 = vmatprep.subr.mxu0 0.0
    %8360 = vmatpush1.msra.mxu0 0.0
    %8361 = vmatprep.subr.mxu0 0.0
    %8362 = vmatpush1.msra.mxu0 0.0
    %8363 = vmatprep.subr.mxu0 0.0
    %8364 = vmatpush1.msra.mxu0 0.0
    %8365 = vmatprep.subr.mxu0 0.0
    %8366 = vmatpush1.msra.mxu0 0.0
    %8367 = vmatprep.subr.mxu0 0.0
    %8368 = vmatpush1.msra.mxu0 0.0
    %8369 = vmatprep.subr.mxu0 0.0
    %8370 = vmatpush1.msra.mxu0 0.0
    %8371 = vmatprep.subr.mxu0 0.0
    %8372 = vmatpush1.msra.mxu0 0.0
    %8373 = vmatprep.subr.mxu0 0.0
    %8374 = vmatpush1.msra.mxu0 0.0
    %8375 = vmatprep.mubr.f32.mxu0 0.0
    %8376 = vmatmul.mubr.f32.gmra.mrb[0].mxu0 %v8309
    %v8377 = vpop.f32.mrb[0].mxu0
    %v8378 = vadd.f32 0.0, %v8377
    %v8379 = vpop.f32.mrb[0].mxu0
    %8380 = vdwg.mxu0
    %v8381 = vmul.f32 %v8305, %v8305
    %v8382 = vsub.f32 %v8378, %v8381
    %v8383 = vmax.f32 %v8382, 0.0
    %v8384 = vadd.f32 %v8383, 1e-05
    %v8385 = vrsqrt.pop %v8384
    %v8386 = vstv %s7064
    %v8387 = vmul.f32 %v8385, %v8386
    %v8388 = vlaneseq
    %v8389 = vshrl.u32 %v8388, 7
    %v8390 = vsub.s32 0, %v8389
    %v8391 = vrot.slane %v8305, %v8390
    %v8392 = vsub.f32 %v8102, %v8391
    %v8393 = vsub.f32 %v8107, %v8391
    %v8394 = vsub.f32 %v8183, %v8391
    %v8395 = vsub.f32 %v8188, %v8391
    %v8396 = vlaneseq
    %v8397 = vshrl.u32 %v8396, 7
    %v8398 = vsub.s32 0, %v8397
    %v8399 = vrot.slane %v8387, %v8398
    %v8400 = vmul.f32 %v8392, %v8399
    %v8401 = vmul.f32 %v8393, %v8399
    %v8402 = vmul.f32 %v8394, %v8399
    %v8403 = vmul.f32 %v8395, %v8399
    %v8408 = vrot.slane %v8400, 4
    %v8409 = vrot.slane %v8401, 4
    %v8410 = vsel %vm3021, %v8408, %v8409
    %v8411 = vrot.slane %v8402, 4
    %v8412 = vrot.slane %v8403, 4
    %v8413 = vsel %vm3021, %v8411, %v8412
    %8414 = vrot.lane.b32.xlu0 %v8408, 16
    %v8415 = vpop.permute.xlu0 %8414
    %8416 = vrot.lane.b32.xlu0 %v8410, 16
    %v8417 = vpop.permute.xlu0 %8416
    %8418 = vrot.lane.b32.xlu0 %v8409, 16
    %v8419 = vpop.permute.xlu0 %8418
    %8420 = vrot.lane.b32.xlu0 %v8411, 16
    %v8421 = vpop.permute.xlu0 %8420
    %8422 = vrot.lane.b32.xlu0 %v8413, 16
    %v8423 = vpop.permute.xlu0 %8422
    %8424 = vrot.lane.b32.xlu0 %v8412, 16
    %v8425 = vpop.permute.xlu0 %8424
    %v8432 = vadd.f32 %v7058, %v8415
    %v8433 = vadd.f32 %v7059, %v8417
    %v8434 = vadd.f32 %v7060, %v8419
    %v8435 = vadd.f32 %v7061, %v8421
    %v8436 = vadd.f32 %v7062, %v8423
    %v8437 = vadd.f32 %v7063, %v8425
    %8444 = vrot.lane.b32.xlu0 %v8432, 112
    %v8445 = vpop.permute.xlu0 %8444
    %8446 = vrot.lane.b32.xlu0 %v8433, 112
    %v8447 = vpop.permute.xlu0 %8446
    %8448 = vrot.lane.b32.xlu0 %v8434, 112
    %v8449 = vpop.permute.xlu0 %8448
    %8450 = vrot.lane.b32.xlu0 %v8435, 112
    %v8451 = vpop.permute.xlu0 %8450
    %8452 = vrot.lane.b32.xlu0 %v8436, 112
    %v8453 = vpop.permute.xlu0 %8452
    %8454 = vrot.lane.b32.xlu0 %v8437, 112
    %v8455 = vpop.permute.xlu0 %8454
    %vm8462 = vcmask 523268
    %8463 = vst.msk [vmem:[#allocation31 - $0x4] sm:$0xf0] %vm8462, %v8445
    %8464 = vst.msk [vmem:[#allocation31 + $0x4] sm:$0xff] %vm844, %v8447
    %vm8465 = vcmask 519168
    %8466 = vst.msk [vmem:[#allocation31 + $0xc] sm:$0xf] %vm8465, %v8449
    %8467 = vst.msk [vmem:[#allocation31 + $0xc] sm:$0xf0] %vm8462, %v8451
    %8468 = vst.msk [vmem:[#allocation31 + $0x14] sm:$0xff] %vm844, %v8453
    %8469 = vst.msk [vmem:[#allocation31 + $0x1c] sm:$0xf] %vm8465, %v8455
    // Predicated region
    $region142: #{tpu_custom_call.1} parent=1 // pred_check
      _
    $region143: #{tpu_custom_call.1} parent=1 // pred_check_branch
      %8471 = sbr.rel (0) target = $region145
    $region144: #{tpu_custom_call.1} parent=1 // pred_region
      %s8473 = ssub.s32 512, 512
      %8474 = vsyncadd [#allocation6], %s8473
      %s8475 = sshll.u32 [#allocation31], 4
      %s8476 = int_to_ptr.vmem [resolvable:$true] %s8475
      %8481 = dma.vmem_to_hbm [thread:$0]  %s8476, 512, %s19, [#allocation6], 128, 128, 8
    $region145: #{tpu_custom_call.1} parent=1 // pred_fallthru
      _
    // Predicated region
    $region146: #{tpu_custom_call.1} parent=1 // pred_check
      _
    $region147: #{tpu_custom_call.1} parent=1 // pred_check_branch
      %8483 = sbr.rel (0) target = $region149
    $region148: #{tpu_custom_call.1} parent=1 // pred_region
      %8484 = dma.done [#allocation6], 512
    $region149: #{tpu_custom_call.1} parent=1 // pred_fallthru
      _
    %8485 = vsyncpa [#allocation5], 1
    %8486 = vsyncpa [#allocation8], 1
    %8487 = vsyncpa [#allocation11], 1
    %8488 = vsyncpa [#allocation14], 1
    %8489 = vsyncpa [#allocation17], 1
    %8490 = vsyncpa [#allocation20], 1
    %8491 = vsyncpa [#allocation23], 1
    %8492 = vsyncpa [#allocation26], 1
    %8493 = vsyncpa [#allocation29], 1
    %8494 = vsyncpa [#allocation6], 1

</llo_original>
